<compile_context>
chip_gen: v5e
topology: v5e:2x2
jax: 0.10.0
libtpu: 0.0.40
codegen_flags: <defaults>
</compile_context>

<pallas_src>
import math

import numpy as np

import jax
import jax.numpy as jnp
from jax.experimental import pallas as pl
from jax.experimental.pallas import tpu as pltpu

LANE = 128


def _rup(n, m=LANE):
    return ((n + m - 1) // m) * m


def _pick_strip(h, w, target_rows=256):
    """Largest divisor s of h with s*w <= target_rows (bounds the accumulator)."""
    best = 1
    for s in range(1, h + 1):
        if h % s == 0 and s * w <= target_rows:
            best = s
    return best


def _interp_matrix(n_in, total_out, offset):
    """(total_out, n_in) f32 matrix for x2 bilinear upsample, align_corners=True.

    Rows [offset, offset + 2*n_in) hold the 1-D interpolation weights; every
    other row is zero, which implements F.pad (and, when offset includes +1,
    the conv3x3 zero halo) for free.  Out-of-range rows are dropped, which also
    covers the negative-pad (crop) case.
    """
    n_up = 2 * n_in
    m = np.zeros((total_out, n_in), np.float32)
    rows = np.arange(n_up) + offset
    valid = (rows >= 0) & (rows < total_out)
    if n_in == 1:
        m[rows[valid], 0] = 1.0
        return jnp.asarray(m)
    src = np.arange(n_up, dtype=np.float64) * (n_in - 1) / (n_up - 1)
    lo = np.clip(np.floor(src).astype(np.int64), 0, n_in - 2)
    frac = (src - lo).astype(np.float32)
    np.add.at(m, (rows[valid], lo[valid]), (1.0 - frac)[valid])
    np.add.at(m, (rows[valid], (lo + 1)[valid]), frac[valid])
    return jnp.asarray(m)


# ---------------------------------------------------------------------------
# In-kernel helpers
# ---------------------------------------------------------------------------
def _zero_halo(ref):
    """Zero the 1-pixel spatial frame of a (Hp, Wp, C) VMEM scratch slab."""
    Hp, Wp, C = ref.shape
    z_row = jnp.zeros((1, Wp, C), ref.dtype)
    z_col = jnp.zeros((Hp, 1, C), ref.dtype)
    ref[0:1, :, :] = z_row
    ref[Hp - 1:Hp, :, :] = z_row
    ref[:, 0:1, :] = z_col
    ref[:, Wp - 1:Wp, :] = z_col


def _conv3x3_bn_relu_strips(xpad_ref, w_ref, scale, shift, out_ref,
                            row_off, col_off, target_rows=256):
    """conv3x3 (padding already in xpad_ref) + folded BN + ReLU.

    Processed in output-row strips so the f32 accumulator stays ~target_rows
    x Cout (bounded, no multi-MiB spilled running sum).  Each tap is one
    (strip*W, Cin) @ (Cin, Cout) MXU matmul; Cin/Cout are lane-padded to 128 so
    K >= 128 and all stores are lane-dense.  The dx-shifted slices are the one
    remaining relayout (inherent to a 3x3 conv on a channels-last layout).
    """
    Hp, Wp, Cin = xpad_ref.shape
    H, W = Hp - 2, Wp - 2
    Cout = w_ref.shape[-1]
    strip = _pick_strip(H, W, target_rows)
    for r0 in range(0, H, strip):
        acc = jnp.zeros((strip * W, Cout), jnp.float32)
        for dy in range(3):
            for dx in range(3):
                patch = xpad_ref[r0 + dy:r0 + dy + strip, dx:dx + W, :]
                acc = acc + jnp.dot(patch.reshape(strip * W, Cin),
                                    w_ref[3 * dy + dx],
                                    preferred_element_type=jnp.float32)
        y = jnp.maximum(acc * scale + shift, 0.0)
        out_ref[row_off + r0:row_off + r0 + strip,
                col_off:col_off + W, :] = (
            y.reshape(strip, W, Cout).astype(out_ref.dtype))


# ---------------------------------------------------------------------------
# Fused kernel: upsample + pad + concat + (conv3x3 -> BN -> ReLU) x 2
# ---------------------------------------------------------------------------
def _up_block_kernel(x1_ref, x2_ref, ph_ref, pw_ref,
                     w1_ref, s1_ref, t1_ref,
                     w2_ref, s2_ref, t2_ref,
                     o_ref, xpad1, xpad2):
    H1, W1, C1p = x1_ref.shape
    H2, W2, C2p = x2_ref.shape
    Hp, Wp, Ctot = xpad1.shape

    # Conv halo frames of both padded slabs must be zero (done every grid step
    # so it stays correct under megacore "parallel" batch sharding).
    _zero_halo(xpad1)
    _zero_halo(xpad2)

    # --- separable bilinear x2 upsample of x1 (F.pad + halo fused into P) ---
    x1 = x1_ref[...].astype(jnp.float32)                        # (H1, W1, C1p)
    pw = jnp.broadcast_to(pw_ref[...].reshape(1, Wp, W1), (H1, Wp, W1))
    # W interpolation, batched over input rows: (H1,Wp,W1) x (H1,W1,C1p)
    t = jax.lax.dot_general(pw, x1, (((2,), (1,)), ((0,), (0,))),
                            preferred_element_type=jnp.float32)  # (H1, Wp, C1p)
    # H interpolation: (Hp, H1) @ (H1, Wp*C1p)
    u = jnp.dot(ph_ref[...], t.reshape(H1, Wp * C1p),
                preferred_element_type=jnp.float32)              # (Hp, Wp*C1p)

    # --- concat([x2, x1_up], channels) written straight into padded slab ----
    xpad1[1:H2 + 1, 1:W2 + 1, 0:C2p] = x2_ref[...].astype(xpad1.dtype)
    xpad1[:, :, C2p:Ctot] = u.reshape(Hp, Wp, Ctot - C2p).astype(xpad1.dtype)

    # --- conv1 -> BN -> ReLU (into padded slab #2), conv2 -> BN -> ReLU -----
    _conv3x3_bn_relu_strips(xpad1, w1_ref, s1_ref[...], t1_ref[...],
                            xpad2, row_off=1, col_off=1)
    _conv3x3_bn_relu_strips(xpad2, w2_ref, s2_ref[...], t2_ref[...],
                            o_ref, row_off=0, col_off=0)


# ---------------------------------------------------------------------------
# Parameter init (deterministic; BN folded into per-channel scale/shift)
# ---------------------------------------------------------------------------
def init_up_params(key, in_ch, out_ch):
    def conv_init(k, cin, cout):
        kw, kb = jax.random.split(k)
        bound = 1.0 / math.sqrt(cin * 9)
        w = jax.random.uniform(kw, (3, 3, cin, cout), jnp.float32, -bound, bound)
        b = jax.random.uniform(kb, (cout,), jnp.float32, -bound, bound)
        return w, b

    def bn_init(k, c):
        k1, k2, k3, k4 = jax.random.split(k, 4)
        gamma = 1.0 + 0.1 * jax.random.normal(k1, (c,), jnp.float32)
        beta = 0.1 * jax.random.normal(k2, (c,), jnp.float32)
        mean = 0.1 * jax.random.normal(k3, (c,), jnp.float32)
        var = jnp.abs(jax.random.normal(k4, (c,), jnp.float32)) + 0.5
        return gamma, beta, mean, var

    eps = 1e-5
    k1, k2, k3, k4 = jax.random.split(key, 4)
    w1, b1 = conv_init(k1, in_ch, out_ch)
    g1, be1, m1, v1 = bn_init(k2, out_ch)
    w2, b2 = conv_init(k3, out_ch, out_ch)
    g2, be2, m2, v2 = bn_init(k4, out_ch)
    s1 = g1 / jnp.sqrt(v1 + eps)
    t1 = be1 + (b1 - m1) * s1
    s2 = g2 / jnp.sqrt(v2 + eps)
    t2 = be2 + (b2 - m2) * s2
    return dict(w1=w1, s1=s1, t1=t1, w2=w2, s2=s2, t2=t2)


# ---------------------------------------------------------------------------
# Forward pass of `up` (NCHW in / NCHW out, matching PyTorch semantics)
# ---------------------------------------------------------------------------
def up_forward(params, x1_nchw, x2_nchw):
    B, C1, H1, W1 = x1_nchw.shape
    _, C2, H2, W2 = x2_nchw.shape
    Cout = params["w2"].shape[-1]
    C1p, C2p, Coutp = _rup(C1), _rup(C2), _rup(Cout)
    Ctot_p = C2p + C1p
    Hp, Wp = H2 + 2, W2 + 2

    # NCHW -> NHWC and lane-pad channels (fuses with the transpose in XLA).
    x1 = jnp.pad(jnp.transpose(x1_nchw, (0, 2, 3, 1)),
                 ((0, 0), (0, 0), (0, 0), (0, C1p - C1)))
    x2 = jnp.pad(jnp.transpose(x2_nchw, (0, 2, 3, 1)),
                 ((0, 0), (0, 0), (0, 0), (0, C2p - C2)))

    # Interpolation matrices: rows offset by (conv halo) + (F.pad left/top).
    diffY, diffX = H2 - 2 * H1, W2 - 2 * W1
    ph = _interp_matrix(H1, Hp, 1 + diffY // 2)    # (Hp, H1)
    pw = _interp_matrix(W1, Wp, 1 + diffX // 2)    # (Wp, W1)

    # conv1 weights: split at the concat([x2, x1]) channel boundary, lane-pad.
    w1 = params["w1"].astype(jnp.float32)          # (3,3,C2+C1,Cout)
    w1p = jnp.zeros((3, 3, Ctot_p, Coutp), jnp.float32)
    w1p = w1p.at[:, :, :C2, :Cout].set(w1[:, :, :C2, :])
    w1p = w1p.at[:, :, C2p:C2p + C1, :Cout].set(w1[:, :, C2:, :])
    w1p = w1p.reshape(9, Ctot_p, Coutp)

    w2p = jnp.zeros((3, 3, Coutp, Coutp), jnp.float32)
    w2p = w2p.at[:, :, :Cout, :Cout].set(params["w2"].astype(jnp.float32))
    w2p = w2p.reshape(9, Coutp, Coutp)

    def padv(v):
        return jnp.pad(v.astype(jnp.float32), (0, Coutp - Cout)).reshape(1, Coutp)

    s1, t1 = padv(params["s1"]), padv(params["t1"])
    s2, t2 = padv(params["s2"]), padv(params["t2"])

    out = pl.pallas_call(
        _up_block_kernel,
        out_shape=jax.ShapeDtypeStruct((B, H2, W2, Coutp), x2.dtype),
        grid_spec=pltpu.PrefetchScalarGridSpec(
            num_scalar_prefetch=0,
            grid=(B,),
            in_specs=[
                pl.BlockSpec((None, H1, W1, C1p), lambda b: (b, 0, 0, 0)),
                pl.BlockSpec((None, H2, W2, C2p), lambda b: (b, 0, 0, 0)),
                # Weights / BN params / interp matrices: constant index maps
                # -> stay VMEM-resident across the whole grid.
                pl.BlockSpec((Hp, H1), lambda b: (0, 0)),
                pl.BlockSpec((Wp, W1), lambda b: (0, 0)),
                pl.BlockSpec((9, Ctot_p, Coutp), lambda b: (0, 0, 0)),
                pl.BlockSpec((1, Coutp), lambda b: (0, 0)),
                pl.BlockSpec((1, Coutp), lambda b: (0, 0)),
                pl.BlockSpec((9, Coutp, Coutp), lambda b: (0, 0, 0)),
                pl.BlockSpec((1, Coutp), lambda b: (0, 0)),
                pl.BlockSpec((1, Coutp), lambda b: (0, 0)),
            ],
            out_specs=pl.BlockSpec((None, H2, W2, Coutp), lambda b: (b, 0, 0, 0)),
            scratch_shapes=[
                pltpu.VMEM((Hp, Wp, Ctot_p), jnp.float32),   # padded concat in
                pltpu.VMEM((Hp, Wp, Coutp), jnp.float32),    # padded conv1 out
            ],
        ),
        compiler_params=pltpu.CompilerParams(
            dimension_semantics=("parallel",),
        ),
    )(x1, x2, ph, pw, w1p, s1, t1, w2p, s2, t2)

    # Drop channel padding, back to NCHW.
    return jnp.transpose(out[..., :Cout], (0, 3, 1, 2))


# ---------------------------------------------------------------------------
# Pure-JAX (XLA) reference used as an in-script self-check
# ---------------------------------------------------------------------------
def _reference_up(params, x1_nchw, x2_nchw):
    x1 = jnp.transpose(x1_nchw, (0, 2, 3, 1))
    x2 = jnp.transpose(x2_nchw, (0, 2, 3, 1))
    B, H1, W1, C1 = x1.shape
    _, H2, W2, C2 = x2.shape
    ah = _interp_matrix(H1, 2 * H1, 0)
    aw = _interp_matrix(W1, 2 * W1, 0)
    x1u = jnp.einsum("rh,bhwc->brwc", ah, x1)
    x1u = jnp.einsum("sw,brwc->brsc", aw, x1u)
    dY, dX = H2 - 2 * H1, W2 - 2 * W1
    x1u = jnp.pad(x1u, ((0, 0), (dY // 2, dY - dY // 2),
                        (dX // 2, dX - dX // 2), (0, 0)))
    x = jnp.concatenate([x2, x1u], axis=-1)

    def cbr(x, w, s, t):
        y = jax.lax.conv_general_dilated(
            x, w, (1, 1), "SAME",
            dimension_numbers=("NHWC", "HWIO", "NHWC"),
            precision=jax.lax.Precision.HIGHEST)
        return jnp.maximum(y * s + t, 0.0)

    x = cbr(x, params["w1"], params["s1"], params["t1"])
    x = cbr(x, params["w2"], params["s2"], params["t2"])
    return jnp.transpose(x, (0, 3, 1, 2))


if __name__ == "__main__":
    key = jax.random.PRNGKey(0)
    k1, k2, kp = jax.random.split(key, 3)

    B, in_ch, out_ch = 2, 8, 4
    H1 = W1 = 8                                   # x1 spatial; x2 is 2x that
    x1 = jax.random.normal(k1, (B, in_ch // 2, H1, W1), jnp.float32)
    x2 = jax.random.normal(k2, (B, in_ch // 2, 2 * H1, 2 * W1), jnp.float32)

    params = init_up_params(kp, in_ch, out_ch)

    out = jax.block_until_ready(jax.jit(up_forward)(params, x1, x2))

    assert out.shape == (B, out_ch, 2 * H1, 2 * W1), out.shape
    assert bool(jnp.all(jnp.isfinite(out)))
    assert bool(jnp.all(out >= 0.0))              # ReLU output

    ref = _reference_up(params, x1, x2)
    rel_err = jnp.linalg.norm(out - ref) / (jnp.linalg.norm(ref) + 1e-6)
    assert float(rel_err) < 2e-2, float(rel_err)

    print("KERNEL_OK")
</pallas_src>

<mosaic_0001>
module attributes {stable_mosaic.version = 11 : i64} {
  func.func @_up_block_kernel(%arg0: i32, %arg1: memref<1x8x8x128xf32, #tpu.memory_space<vmem>>, %arg2: memref<1x16x16x128xf32, #tpu.memory_space<vmem>>, %arg3: memref<18x8xf32, #tpu.memory_space<vmem>>, %arg4: memref<18x8xf32, #tpu.memory_space<vmem>>, %arg5: memref<9x256x128xf32, #tpu.memory_space<vmem>>, %arg6: memref<1x128xf32, #tpu.memory_space<vmem>>, %arg7: memref<1x128xf32, #tpu.memory_space<vmem>>, %arg8: memref<9x128x128xf32, #tpu.memory_space<vmem>>, %arg9: memref<1x128xf32, #tpu.memory_space<vmem>>, %arg10: memref<1x128xf32, #tpu.memory_space<vmem>>, %arg11: memref<1x16x16x128xf32, #tpu.memory_space<vmem>>, %arg12: memref<18x18x256xf32, #tpu.memory_space<vmem>>, %arg13: memref<18x18x128xf32, #tpu.memory_space<vmem>>) attributes {dimension_semantics = [#tpu.dimension_semantics<parallel>], iteration_bounds = array<i64: 2>, scalar_prefetch = 0 : i64, scratch_operands = 2 : i64, tpu.core_type = #tpu.core_type<tc>, window_params = [{transform_indices = @transform_0, window_bounds = array<i64: 1, 8, 8, 128>}, {transform_indices = @transform_1, window_bounds = array<i64: 1, 16, 16, 128>}, {pipeline_mode = #tpu.pipeline_mode<synchronous>, transform_indices = @transform_2, window_bounds = array<i64: 18, 8>}, {pipeline_mode = #tpu.pipeline_mode<synchronous>, transform_indices = @transform_3, window_bounds = array<i64: 18, 8>}, {pipeline_mode = #tpu.pipeline_mode<synchronous>, transform_indices = @transform_4, window_bounds = array<i64: 9, 256, 128>}, {pipeline_mode = #tpu.pipeline_mode<synchronous>, transform_indices = @transform_5, window_bounds = array<i64: 1, 128>}, {pipeline_mode = #tpu.pipeline_mode<synchronous>, transform_indices = @transform_6, window_bounds = array<i64: 1, 128>}, {pipeline_mode = #tpu.pipeline_mode<synchronous>, transform_indices = @transform_7, window_bounds = array<i64: 9, 128, 128>}, {pipeline_mode = #tpu.pipeline_mode<synchronous>, transform_indices = @transform_8, window_bounds = array<i64: 1, 128>}, {pipeline_mode = #tpu.pipeline_mode<synchronous>, transform_indices = @transform_9, window_bounds = array<i64: 1, 128>}, {transform_indices = @transform_10, window_bounds = array<i64: 1, 16, 16, 128>}]} {
    %cst = arith.constant 0.000000e+00 : f32
    %0 = vector.broadcast %cst : f32 to vector<1x18x256xf32>
    %cst_0 = arith.constant 0.000000e+00 : f32
    %1 = vector.broadcast %cst_0 : f32 to vector<18x1x256xf32>
    %c0 = arith.constant 0 : index
    %c0_1 = arith.constant 0 : index
    %c0_2 = arith.constant 0 : index
    %2 = vector.load %arg12[%c0, %c0_1, %c0_2] : memref<18x18x256xf32, #tpu.memory_space<vmem>>, vector<1x18x256xf32>
    tpu.vector_store %arg12[%c0, %c0_1, %c0_2], %0 {strides = array<i32>} : memref<18x18x256xf32, #tpu.memory_space<vmem>>, vector<1x18x256xf32>,
    %c17 = arith.constant 17 : index
    %c0_3 = arith.constant 0 : index
    %c0_4 = arith.constant 0 : index
    %3 = vector.load %arg12[%c17, %c0_3, %c0_4] : memref<18x18x256xf32, #tpu.memory_space<vmem>>, vector<1x18x256xf32>
    tpu.vector_store %arg12[%c17, %c0_3, %c0_4], %0 {strides = array<i32>} : memref<18x18x256xf32, #tpu.memory_space<vmem>>, vector<1x18x256xf32>,
    %c0_5 = arith.constant 0 : index
    %c0_6 = arith.constant 0 : index
    %c0_7 = arith.constant 0 : index
    %4 = vector.load %arg12[%c0_5, %c0_6, %c0_7] : memref<18x18x256xf32, #tpu.memory_space<vmem>>, vector<18x1x256xf32>
    tpu.vector_store %arg12[%c0_5, %c0_6, %c0_7], %1 {strides = array<i32>} : memref<18x18x256xf32, #tpu.memory_space<vmem>>, vector<18x1x256xf32>,
    %c0_8 = arith.constant 0 : index
    %c17_9 = arith.constant 17 : index
    %c0_10 = arith.constant 0 : index
    %5 = vector.load %arg12[%c0_8, %c17_9, %c0_10] : memref<18x18x256xf32, #tpu.memory_space<vmem>>, vector<18x1x256xf32>
    tpu.vector_store %arg12[%c0_8, %c17_9, %c0_10], %1 {strides = array<i32>} : memref<18x18x256xf32, #tpu.memory_space<vmem>>, vector<18x1x256xf32>,
    %cst_11 = arith.constant 0.000000e+00 : f32
    %6 = vector.broadcast %cst_11 : f32 to vector<1x18x128xf32>
    %cst_12 = arith.constant 0.000000e+00 : f32
    %7 = vector.broadcast %cst_12 : f32 to vector<18x1x128xf32>
    %c0_13 = arith.constant 0 : index
    %c0_14 = arith.constant 0 : index
    %c0_15 = arith.constant 0 : index
    %8 = vector.load %arg13[%c0_13, %c0_14, %c0_15] : memref<18x18x128xf32, #tpu.memory_space<vmem>>, vector<1x18x128xf32>
    tpu.vector_store %arg13[%c0_13, %c0_14, %c0_15], %6 {strides = array<i32>} : memref<18x18x128xf32, #tpu.memory_space<vmem>>, vector<1x18x128xf32>,
    %c17_16 = arith.constant 17 : index
    %c0_17 = arith.constant 0 : index
    %c0_18 = arith.constant 0 : index
    %9 = vector.load %arg13[%c17_16, %c0_17, %c0_18] : memref<18x18x128xf32, #tpu.memory_space<vmem>>, vector<1x18x128xf32>
    tpu.vector_store %arg13[%c17_16, %c0_17, %c0_18], %6 {strides = array<i32>} : memref<18x18x128xf32, #tpu.memory_space<vmem>>, vector<1x18x128xf32>,
    %c0_19 = arith.constant 0 : index
    %c0_20 = arith.constant 0 : index
    %c0_21 = arith.constant 0 : index
    %10 = vector.load %arg13[%c0_19, %c0_20, %c0_21] : memref<18x18x128xf32, #tpu.memory_space<vmem>>, vector<18x1x128xf32>
    tpu.vector_store %arg13[%c0_19, %c0_20, %c0_21], %7 {strides = array<i32>} : memref<18x18x128xf32, #tpu.memory_space<vmem>>, vector<18x1x128xf32>,
    %c0_22 = arith.constant 0 : index
    %c17_23 = arith.constant 17 : index
    %c0_24 = arith.constant 0 : index
    %11 = vector.load %arg13[%c0_22, %c17_23, %c0_24] : memref<18x18x128xf32, #tpu.memory_space<vmem>>, vector<18x1x128xf32>
    tpu.vector_store %arg13[%c0_22, %c17_23, %c0_24], %7 {strides = array<i32>} : memref<18x18x128xf32, #tpu.memory_space<vmem>>, vector<18x1x128xf32>,
    %c0_25 = arith.constant 0 : index
    %c0_26 = arith.constant 0 : index
    %c0_27 = arith.constant 0 : index
    %c0_28 = arith.constant 0 : index
    %12 = vector.load %arg1[%c0_25, %c0_26, %c0_27, %c0_28] : memref<1x8x8x128xf32, #tpu.memory_space<vmem>>, vector<1x8x8x128xf32>
    %13 = vector.shape_cast %12 : vector<1x8x8x128xf32> to vector<8x8x128xf32>
    %c0_29 = arith.constant 0 : index
    %c0_30 = arith.constant 0 : index
    %14 = vector.load %arg4[%c0_29, %c0_30] : memref<18x8xf32, #tpu.memory_space<vmem>>, vector<18x8xf32>
    %15 = vector.shape_cast %14 : vector<18x8xf32> to vector<1x18x8xf32>
    %16 = vector.shape_cast %15 : vector<1x18x8xf32> to vector<1x18x8xf32>
    %17 = vector.broadcast %16 : vector<1x18x8xf32> to vector<8x18x8xf32>
    %cst_31 = arith.constant dense<0.000000e+00> : vector<8x18x128xf32>
    %18 = tpu.matmul %17, %13, %cst_31 {dimension_numbers = #tpu.dot_dimension_numbers<[2], [1], [1], [2], [0, 0, 0, 1, 1, 2], [0], [0]>} : vector<8x18x8xf32>, vector<8x8x128xf32>, vector<8x18x128xf32> -> vector<8x18x128xf32>
    %c0_32 = arith.constant 0 : index
    %c0_33 = arith.constant 0 : index
    %19 = vector.load %arg3[%c0_32, %c0_33] : memref<18x8xf32, #tpu.memory_space<vmem>>, vector<18x8xf32>
    %20 = vector.shape_cast %18 : vector<8x18x128xf32> to vector<8x2304xf32>
    %cst_34 = arith.constant dense<0.000000e+00> : vector<18x2304xf32>
    %21 = tpu.matmul %19, %20, %cst_34 {dimension_numbers = #tpu.dot_dimension_numbers<[1], [0], [0], [1], [0, 0, 1, 1], [], []>} : vector<18x8xf32>, vector<8x2304xf32>, vector<18x2304xf32> -> vector<18x2304xf32>
    %c0_35 = arith.constant 0 : index
    %c0_36 = arith.constant 0 : index
    %c0_37 = arith.constant 0 : index
    %c0_38 = arith.constant 0 : index
    %22 = vector.load %arg2[%c0_35, %c0_36, %c0_37, %c0_38] : memref<1x16x16x128xf32, #tpu.memory_space<vmem>>, vector<1x16x16x128xf32>
    %23 = vector.shape_cast %22 : vector<1x16x16x128xf32> to vector<16x16x128xf32>
    %c1 = arith.constant 1 : index
    %c1_39 = arith.constant 1 : index
    %c0_40 = arith.constant 0 : index
    %24 = vector.load %arg12[%c1, %c1_39, %c0_40] : memref<18x18x256xf32, #tpu.memory_space<vmem>>, vector<16x16x128xf32>
    tpu.vector_store %arg12[%c1, %c1_39, %c0_40], %23 {strides = array<i32>} : memref<18x18x256xf32, #tpu.memory_space<vmem>>, vector<16x16x128xf32>,
    %25 = vector.shape_cast %21 : vector<18x2304xf32> to vector<18x18x128xf32>
    %c0_41 = arith.constant 0 : index
    %c0_42 = arith.constant 0 : index
    %c128 = arith.constant 128 : index
    %26 = vector.load %arg12[%c0_41, %c0_42, %c128] : memref<18x18x256xf32, #tpu.memory_space<vmem>>, vector<18x18x128xf32>
    tpu.vector_store %arg12[%c0_41, %c0_42, %c128], %25 {strides = array<i32>} : memref<18x18x256xf32, #tpu.memory_space<vmem>>, vector<18x18x128xf32>,
    %c0_43 = arith.constant 0 : index
    %c0_44 = arith.constant 0 : index
    %27 = vector.load %arg6[%c0_43, %c0_44] : memref<1x128xf32, #tpu.memory_space<vmem>>, vector<1x128xf32>
    %c0_45 = arith.constant 0 : index
    %c0_46 = arith.constant 0 : index
    %28 = vector.load %arg7[%c0_45, %c0_46] : memref<1x128xf32, #tpu.memory_space<vmem>>, vector<1x128xf32>
    %cst_47 = arith.constant 0.000000e+00 : f32
    %29 = vector.broadcast %cst_47 : f32 to vector<256x128xf32>
    %c0_48 = arith.constant 0 : index
    %c0_49 = arith.constant 0 : index
    %c0_50 = arith.constant 0 : index
    %30 = vector.load %arg12[%c0_48, %c0_49, %c0_50] : memref<18x18x256xf32, #tpu.memory_space<vmem>>, vector<16x16x256xf32>
    %31 = vector.shape_cast %30 : vector<16x16x256xf32> to vector<256x256xf32>
    %c0_51 = arith.constant 0 : index
    %c0_52 = arith.constant 0 : index
    %c0_53 = arith.constant 0 : index
    %32 = vector.load %arg5[%c0_51, %c0_52, %c0_53] : memref<9x256x128xf32, #tpu.memory_space<vmem>>, vector<1x256x128xf32>
    %33 = vector.shape_cast %32 : vector<1x256x128xf32> to vector<256x128xf32>
    %cst_54 = arith.constant dense<0.000000e+00> : vector<256x128xf32>
    %34 = tpu.matmul %31, %33, %cst_54 {dimension_numbers = #tpu.dot_dimension_numbers<[1], [0], [0], [1], [0, 0, 1, 1], [], []>} : vector<256x256xf32>, vector<256x128xf32>, vector<256x128xf32> -> vector<256x128xf32>
    %35 = arith.addf %29, %34 : vector<256x128xf32>
    %c0_55 = arith.constant 0 : index
    %c1_56 = arith.constant 1 : index
    %c0_57 = arith.constant 0 : index
    %36 = vector.load %arg12[%c0_55, %c1_56, %c0_57] : memref<18x18x256xf32, #tpu.memory_space<vmem>>, vector<16x16x256xf32>
    %37 = vector.shape_cast %36 : vector<16x16x256xf32> to vector<256x256xf32>
    %c1_58 = arith.constant 1 : index
    %c0_59 = arith.constant 0 : index
    %c0_60 = arith.constant 0 : index
    %38 = vector.load %arg5[%c1_58, %c0_59, %c0_60] : memref<9x256x128xf32, #tpu.memory_space<vmem>>, vector<1x256x128xf32>
    %39 = vector.shape_cast %38 : vector<1x256x128xf32> to vector<256x128xf32>
    %cst_61 = arith.constant dense<0.000000e+00> : vector<256x128xf32>
    %40 = tpu.matmul %37, %39, %cst_61 {dimension_numbers = #tpu.dot_dimension_numbers<[1], [0], [0], [1], [0, 0, 1, 1], [], []>} : vector<256x256xf32>, vector<256x128xf32>, vector<256x128xf32> -> vector<256x128xf32>
    %41 = arith.addf %35, %40 : vector<256x128xf32>
    %c0_62 = arith.constant 0 : index
    %c2 = arith.constant 2 : index
    %c0_63 = arith.constant 0 : index
    %42 = vector.load %arg12[%c0_62, %c2, %c0_63] : memref<18x18x256xf32, #tpu.memory_space<vmem>>, vector<16x16x256xf32>
    %43 = vector.shape_cast %42 : vector<16x16x256xf32> to vector<256x256xf32>
    %c2_64 = arith.constant 2 : index
    %c0_65 = arith.constant 0 : index
    %c0_66 = arith.constant 0 : index
    %44 = vector.load %arg5[%c2_64, %c0_65, %c0_66] : memref<9x256x128xf32, #tpu.memory_space<vmem>>, vector<1x256x128xf32>
    %45 = vector.shape_cast %44 : vector<1x256x128xf32> to vector<256x128xf32>
    %cst_67 = arith.constant dense<0.000000e+00> : vector<256x128xf32>
    %46 = tpu.matmul %43, %45, %cst_67 {dimension_numbers = #tpu.dot_dimension_numbers<[1], [0], [0], [1], [0, 0, 1, 1], [], []>} : vector<256x256xf32>, vector<256x128xf32>, vector<256x128xf32> -> vector<256x128xf32>
    %47 = arith.addf %41, %46 : vector<256x128xf32>
    %c1_68 = arith.constant 1 : index
    %c0_69 = arith.constant 0 : index
    %c0_70 = arith.constant 0 : index
    %48 = vector.load %arg12[%c1_68, %c0_69, %c0_70] : memref<18x18x256xf32, #tpu.memory_space<vmem>>, vector<16x16x256xf32>
    %49 = vector.shape_cast %48 : vector<16x16x256xf32> to vector<256x256xf32>
    %c3 = arith.constant 3 : index
    %c0_71 = arith.constant 0 : index
    %c0_72 = arith.constant 0 : index
    %50 = vector.load %arg5[%c3, %c0_71, %c0_72] : memref<9x256x128xf32, #tpu.memory_space<vmem>>, vector<1x256x128xf32>
    %51 = vector.shape_cast %50 : vector<1x256x128xf32> to vector<256x128xf32>
    %cst_73 = arith.constant dense<0.000000e+00> : vector<256x128xf32>
    %52 = tpu.matmul %49, %51, %cst_73 {dimension_numbers = #tpu.dot_dimension_numbers<[1], [0], [0], [1], [0, 0, 1, 1], [], []>} : vector<256x256xf32>, vector<256x128xf32>, vector<256x128xf32> -> vector<256x128xf32>
    %53 = arith.addf %47, %52 : vector<256x128xf32>
    %c1_74 = arith.constant 1 : index
    %c1_75 = arith.constant 1 : index
    %c0_76 = arith.constant 0 : index
    %54 = vector.load %arg12[%c1_74, %c1_75, %c0_76] : memref<18x18x256xf32, #tpu.memory_space<vmem>>, vector<16x16x256xf32>
    %55 = vector.shape_cast %54 : vector<16x16x256xf32> to vector<256x256xf32>
    %c4 = arith.constant 4 : index
    %c0_77 = arith.constant 0 : index
    %c0_78 = arith.constant 0 : index
    %56 = vector.load %arg5[%c4, %c0_77, %c0_78] : memref<9x256x128xf32, #tpu.memory_space<vmem>>, vector<1x256x128xf32>
    %57 = vector.shape_cast %56 : vector<1x256x128xf32> to vector<256x128xf32>
    %cst_79 = arith.constant dense<0.000000e+00> : vector<256x128xf32>
    %58 = tpu.matmul %55, %57, %cst_79 {dimension_numbers = #tpu.dot_dimension_numbers<[1], [0], [0], [1], [0, 0, 1, 1], [], []>} : vector<256x256xf32>, vector<256x128xf32>, vector<256x128xf32> -> vector<256x128xf32>
    %59 = arith.addf %53, %58 : vector<256x128xf32>
    %c1_80 = arith.constant 1 : index
    %c2_81 = arith.constant 2 : index
    %c0_82 = arith.constant 0 : index
    %60 = vector.load %arg12[%c1_80, %c2_81, %c0_82] : memref<18x18x256xf32, #tpu.memory_space<vmem>>, vector<16x16x256xf32>
    %61 = vector.shape_cast %60 : vector<16x16x256xf32> to vector<256x256xf32>
    %c5 = arith.constant 5 : index
    %c0_83 = arith.constant 0 : index
    %c0_84 = arith.constant 0 : index
    %62 = vector.load %arg5[%c5, %c0_83, %c0_84] : memref<9x256x128xf32, #tpu.memory_space<vmem>>, vector<1x256x128xf32>
    %63 = vector.shape_cast %62 : vector<1x256x128xf32> to vector<256x128xf32>
    %cst_85 = arith.constant dense<0.000000e+00> : vector<256x128xf32>
    %64 = tpu.matmul %61, %63, %cst_85 {dimension_numbers = #tpu.dot_dimension_numbers<[1], [0], [0], [1], [0, 0, 1, 1], [], []>} : vector<256x256xf32>, vector<256x128xf32>, vector<256x128xf32> -> vector<256x128xf32>
    %65 = arith.addf %59, %64 : vector<256x128xf32>
    %c2_86 = arith.constant 2 : index
    %c0_87 = arith.constant 0 : index
    %c0_88 = arith.constant 0 : index
    %66 = vector.load %arg12[%c2_86, %c0_87, %c0_88] : memref<18x18x256xf32, #tpu.memory_space<vmem>>, vector<16x16x256xf32>
    %67 = vector.shape_cast %66 : vector<16x16x256xf32> to vector<256x256xf32>
    %c6 = arith.constant 6 : index
    %c0_89 = arith.constant 0 : index
    %c0_90 = arith.constant 0 : index
    %68 = vector.load %arg5[%c6, %c0_89, %c0_90] : memref<9x256x128xf32, #tpu.memory_space<vmem>>, vector<1x256x128xf32>
    %69 = vector.shape_cast %68 : vector<1x256x128xf32> to vector<256x128xf32>
    %cst_91 = arith.constant dense<0.000000e+00> : vector<256x128xf32>
    %70 = tpu.matmul %67, %69, %cst_91 {dimension_numbers = #tpu.dot_dimension_numbers<[1], [0], [0], [1], [0, 0, 1, 1], [], []>} : vector<256x256xf32>, vector<256x128xf32>, vector<256x128xf32> -> vector<256x128xf32>
    %71 = arith.addf %65, %70 : vector<256x128xf32>
    %c2_92 = arith.constant 2 : index
    %c1_93 = arith.constant 1 : index
    %c0_94 = arith.constant 0 : index
    %72 = vector.load %arg12[%c2_92, %c1_93, %c0_94] : memref<18x18x256xf32, #tpu.memory_space<vmem>>, vector<16x16x256xf32>
    %73 = vector.shape_cast %72 : vector<16x16x256xf32> to vector<256x256xf32>
    %c7 = arith.constant 7 : index
    %c0_95 = arith.constant 0 : index
    %c0_96 = arith.constant 0 : index
    %74 = vector.load %arg5[%c7, %c0_95, %c0_96] : memref<9x256x128xf32, #tpu.memory_space<vmem>>, vector<1x256x128xf32>
    %75 = vector.shape_cast %74 : vector<1x256x128xf32> to vector<256x128xf32>
    %cst_97 = arith.constant dense<0.000000e+00> : vector<256x128xf32>
    %76 = tpu.matmul %73, %75, %cst_97 {dimension_numbers = #tpu.dot_dimension_numbers<[1], [0], [0], [1], [0, 0, 1, 1], [], []>} : vector<256x256xf32>, vector<256x128xf32>, vector<256x128xf32> -> vector<256x128xf32>
    %77 = arith.addf %71, %76 : vector<256x128xf32>
    %c2_98 = arith.constant 2 : index
    %c2_99 = arith.constant 2 : index
    %c0_100 = arith.constant 0 : index
    %78 = vector.load %arg12[%c2_98, %c2_99, %c0_100] : memref<18x18x256xf32, #tpu.memory_space<vmem>>, vector<16x16x256xf32>
    %79 = vector.shape_cast %78 : vector<16x16x256xf32> to vector<256x256xf32>
    %c8 = arith.constant 8 : index
    %c0_101 = arith.constant 0 : index
    %c0_102 = arith.constant 0 : index
    %80 = vector.load %arg5[%c8, %c0_101, %c0_102] : memref<9x256x128xf32, #tpu.memory_space<vmem>>, vector<1x256x128xf32>
    %81 = vector.shape_cast %80 : vector<1x256x128xf32> to vector<256x128xf32>
    %cst_103 = arith.constant dense<0.000000e+00> : vector<256x128xf32>
    %82 = tpu.matmul %79, %81, %cst_103 {dimension_numbers = #tpu.dot_dimension_numbers<[1], [0], [0], [1], [0, 0, 1, 1], [], []>} : vector<256x256xf32>, vector<256x128xf32>, vector<256x128xf32> -> vector<256x128xf32>
    %83 = arith.addf %77, %82 : vector<256x128xf32>
    %84 = vector.broadcast %27 : vector<1x128xf32> to vector<256x128xf32>
    %85 = arith.mulf %83, %84 : vector<256x128xf32>
    %86 = vector.broadcast %28 : vector<1x128xf32> to vector<256x128xf32>
    %87 = arith.addf %85, %86 : vector<256x128xf32>
    %cst_104 = arith.constant 0.000000e+00 : f32
    %88 = vector.broadcast %cst_104 : f32 to vector<256x128xf32>
    %89 = arith.maximumf %87, %88 : vector<256x128xf32>
    %90 = vector.shape_cast %89 : vector<256x128xf32> to vector<16x16x128xf32>
    %c1_105 = arith.constant 1 : index
    %c1_106 = arith.constant 1 : index
    %c0_107 = arith.constant 0 : index
    %91 = vector.load %arg13[%c1_105, %c1_106, %c0_107] : memref<18x18x128xf32, #tpu.memory_space<vmem>>, vector<16x16x128xf32>
    tpu.vector_store %arg13[%c1_105, %c1_106, %c0_107], %90 {strides = array<i32>} : memref<18x18x128xf32, #tpu.memory_space<vmem>>, vector<16x16x128xf32>,
    %c0_108 = arith.constant 0 : index
    %c0_109 = arith.constant 0 : index
    %92 = vector.load %arg9[%c0_108, %c0_109] : memref<1x128xf32, #tpu.memory_space<vmem>>, vector<1x128xf32>
    %c0_110 = arith.constant 0 : index
    %c0_111 = arith.constant 0 : index
    %93 = vector.load %arg10[%c0_110, %c0_111] : memref<1x128xf32, #tpu.memory_space<vmem>>, vector<1x128xf32>
    %cst_112 = arith.constant 0.000000e+00 : f32
    %94 = vector.broadcast %cst_112 : f32 to vector<256x128xf32>
    %c0_113 = arith.constant 0 : index
    %c0_114 = arith.constant 0 : index
    %c0_115 = arith.constant 0 : index
    %95 = vector.load %arg13[%c0_113, %c0_114, %c0_115] : memref<18x18x128xf32, #tpu.memory_space<vmem>>, vector<16x16x128xf32>
    %96 = vector.shape_cast %95 : vector<16x16x128xf32> to vector<256x128xf32>
    %c0_116 = arith.constant 0 : index
    %c0_117 = arith.constant 0 : index
    %c0_118 = arith.constant 0 : index
    %97 = vector.load %arg8[%c0_116, %c0_117, %c0_118] : memref<9x128x128xf32, #tpu.memory_space<vmem>>, vector<1x128x128xf32>
    %98 = vector.shape_cast %97 : vector<1x128x128xf32> to vector<128x128xf32>
    %cst_119 = arith.constant dense<0.000000e+00> : vector<256x128xf32>
    %99 = tpu.matmul %96, %98, %cst_119 {dimension_numbers = #tpu.dot_dimension_numbers<[1], [0], [0], [1], [0, 0, 1, 1], [], []>} : vector<256x128xf32>, vector<128x128xf32>, vector<256x128xf32> -> vector<256x128xf32>
    %100 = arith.addf %94, %99 : vector<256x128xf32>
    %c0_120 = arith.constant 0 : index
    %c1_121 = arith.constant 1 : index
    %c0_122 = arith.constant 0 : index
    %101 = vector.load %arg13[%c0_120, %c1_121, %c0_122] : memref<18x18x128xf32, #tpu.memory_space<vmem>>, vector<16x16x128xf32>
    %102 = vector.shape_cast %101 : vector<16x16x128xf32> to vector<256x128xf32>
    %c1_123 = arith.constant 1 : index
    %c0_124 = arith.constant 0 : index
    %c0_125 = arith.constant 0 : index
    %103 = vector.load %arg8[%c1_123, %c0_124, %c0_125] : memref<9x128x128xf32, #tpu.memory_space<vmem>>, vector<1x128x128xf32>
    %104 = vector.shape_cast %103 : vector<1x128x128xf32> to vector<128x128xf32>
    %cst_126 = arith.constant dense<0.000000e+00> : vector<256x128xf32>
    %105 = tpu.matmul %102, %104, %cst_126 {dimension_numbers = #tpu.dot_dimension_numbers<[1], [0], [0], [1], [0, 0, 1, 1], [], []>} : vector<256x128xf32>, vector<128x128xf32>, vector<256x128xf32> -> vector<256x128xf32>
    %106 = arith.addf %100, %105 : vector<256x128xf32>
    %c0_127 = arith.constant 0 : index
    %c2_128 = arith.constant 2 : index
    %c0_129 = arith.constant 0 : index
    %107 = vector.load %arg13[%c0_127, %c2_128, %c0_129] : memref<18x18x128xf32, #tpu.memory_space<vmem>>, vector<16x16x128xf32>
    %108 = vector.shape_cast %107 : vector<16x16x128xf32> to vector<256x128xf32>
    %c2_130 = arith.constant 2 : index
    %c0_131 = arith.constant 0 : index
    %c0_132 = arith.constant 0 : index
    %109 = vector.load %arg8[%c2_130, %c0_131, %c0_132] : memref<9x128x128xf32, #tpu.memory_space<vmem>>, vector<1x128x128xf32>
    %110 = vector.shape_cast %109 : vector<1x128x128xf32> to vector<128x128xf32>
    %cst_133 = arith.constant dense<0.000000e+00> : vector<256x128xf32>
    %111 = tpu.matmul %108, %110, %cst_133 {dimension_numbers = #tpu.dot_dimension_numbers<[1], [0], [0], [1], [0, 0, 1, 1], [], []>} : vector<256x128xf32>, vector<128x128xf32>, vector<256x128xf32> -> vector<256x128xf32>
    %112 = arith.addf %106, %111 : vector<256x128xf32>
    %c1_134 = arith.constant 1 : index
    %c0_135 = arith.constant 0 : index
    %c0_136 = arith.constant 0 : index
    %113 = vector.load %arg13[%c1_134, %c0_135, %c0_136] : memref<18x18x128xf32, #tpu.memory_space<vmem>>, vector<16x16x128xf32>
    %114 = vector.shape_cast %113 : vector<16x16x128xf32> to vector<256x128xf32>
    %c3_137 = arith.constant 3 : index
    %c0_138 = arith.constant 0 : index
    %c0_139 = arith.constant 0 : index
    %115 = vector.load %arg8[%c3_137, %c0_138, %c0_139] : memref<9x128x128xf32, #tpu.memory_space<vmem>>, vector<1x128x128xf32>
    %116 = vector.shape_cast %115 : vector<1x128x128xf32> to vector<128x128xf32>
    %cst_140 = arith.constant dense<0.000000e+00> : vector<256x128xf32>
    %117 = tpu.matmul %114, %116, %cst_140 {dimension_numbers = #tpu.dot_dimension_numbers<[1], [0], [0], [1], [0, 0, 1, 1], [], []>} : vector<256x128xf32>, vector<128x128xf32>, vector<256x128xf32> -> vector<256x128xf32>
    %118 = arith.addf %112, %117 : vector<256x128xf32>
    %c1_141 = arith.constant 1 : index
    %c1_142 = arith.constant 1 : index
    %c0_143 = arith.constant 0 : index
    %119 = vector.load %arg13[%c1_141, %c1_142, %c0_143] : memref<18x18x128xf32, #tpu.memory_space<vmem>>, vector<16x16x128xf32>
    %120 = vector.shape_cast %119 : vector<16x16x128xf32> to vector<256x128xf32>
    %c4_144 = arith.constant 4 : index
    %c0_145 = arith.constant 0 : index
    %c0_146 = arith.constant 0 : index
    %121 = vector.load %arg8[%c4_144, %c0_145, %c0_146] : memref<9x128x128xf32, #tpu.memory_space<vmem>>, vector<1x128x128xf32>
    %122 = vector.shape_cast %121 : vector<1x128x128xf32> to vector<128x128xf32>
    %cst_147 = arith.constant dense<0.000000e+00> : vector<256x128xf32>
    %123 = tpu.matmul %120, %122, %cst_147 {dimension_numbers = #tpu.dot_dimension_numbers<[1], [0], [0], [1], [0, 0, 1, 1], [], []>} : vector<256x128xf32>, vector<128x128xf32>, vector<256x128xf32> -> vector<256x128xf32>
    %124 = arith.addf %118, %123 : vector<256x128xf32>
    %c1_148 = arith.constant 1 : index
    %c2_149 = arith.constant 2 : index
    %c0_150 = arith.constant 0 : index
    %125 = vector.load %arg13[%c1_148, %c2_149, %c0_150] : memref<18x18x128xf32, #tpu.memory_space<vmem>>, vector<16x16x128xf32>
    %126 = vector.shape_cast %125 : vector<16x16x128xf32> to vector<256x128xf32>
    %c5_151 = arith.constant 5 : index
    %c0_152 = arith.constant 0 : index
    %c0_153 = arith.constant 0 : index
    %127 = vector.load %arg8[%c5_151, %c0_152, %c0_153] : memref<9x128x128xf32, #tpu.memory_space<vmem>>, vector<1x128x128xf32>
    %128 = vector.shape_cast %127 : vector<1x128x128xf32> to vector<128x128xf32>
    %cst_154 = arith.constant dense<0.000000e+00> : vector<256x128xf32>
    %129 = tpu.matmul %126, %128, %cst_154 {dimension_numbers = #tpu.dot_dimension_numbers<[1], [0], [0], [1], [0, 0, 1, 1], [], []>} : vector<256x128xf32>, vector<128x128xf32>, vector<256x128xf32> -> vector<256x128xf32>
    %130 = arith.addf %124, %129 : vector<256x128xf32>
    %c2_155 = arith.constant 2 : index
    %c0_156 = arith.constant 0 : index
    %c0_157 = arith.constant 0 : index
    %131 = vector.load %arg13[%c2_155, %c0_156, %c0_157] : memref<18x18x128xf32, #tpu.memory_space<vmem>>, vector<16x16x128xf32>
    %132 = vector.shape_cast %131 : vector<16x16x128xf32> to vector<256x128xf32>
    %c6_158 = arith.constant 6 : index
    %c0_159 = arith.constant 0 : index
    %c0_160 = arith.constant 0 : index
    %133 = vector.load %arg8[%c6_158, %c0_159, %c0_160] : memref<9x128x128xf32, #tpu.memory_space<vmem>>, vector<1x128x128xf32>
    %134 = vector.shape_cast %133 : vector<1x128x128xf32> to vector<128x128xf32>
    %cst_161 = arith.constant dense<0.000000e+00> : vector<256x128xf32>
    %135 = tpu.matmul %132, %134, %cst_161 {dimension_numbers = #tpu.dot_dimension_numbers<[1], [0], [0], [1], [0, 0, 1, 1], [], []>} : vector<256x128xf32>, vector<128x128xf32>, vector<256x128xf32> -> vector<256x128xf32>
    %136 = arith.addf %130, %135 : vector<256x128xf32>
    %c2_162 = arith.constant 2 : index
    %c1_163 = arith.constant 1 : index
    %c0_164 = arith.constant 0 : index
    %137 = vector.load %arg13[%c2_162, %c1_163, %c0_164] : memref<18x18x128xf32, #tpu.memory_space<vmem>>, vector<16x16x128xf32>
    %138 = vector.shape_cast %137 : vector<16x16x128xf32> to vector<256x128xf32>
    %c7_165 = arith.constant 7 : index
    %c0_166 = arith.constant 0 : index
    %c0_167 = arith.constant 0 : index
    %139 = vector.load %arg8[%c7_165, %c0_166, %c0_167] : memref<9x128x128xf32, #tpu.memory_space<vmem>>, vector<1x128x128xf32>
    %140 = vector.shape_cast %139 : vector<1x128x128xf32> to vector<128x128xf32>
    %cst_168 = arith.constant dense<0.000000e+00> : vector<256x128xf32>
    %141 = tpu.matmul %138, %140, %cst_168 {dimension_numbers = #tpu.dot_dimension_numbers<[1], [0], [0], [1], [0, 0, 1, 1], [], []>} : vector<256x128xf32>, vector<128x128xf32>, vector<256x128xf32> -> vector<256x128xf32>
    %142 = arith.addf %136, %141 : vector<256x128xf32>
    %c2_169 = arith.constant 2 : index
    %c2_170 = arith.constant 2 : index
    %c0_171 = arith.constant 0 : index
    %143 = vector.load %arg13[%c2_169, %c2_170, %c0_171] : memref<18x18x128xf32, #tpu.memory_space<vmem>>, vector<16x16x128xf32>
    %144 = vector.shape_cast %143 : vector<16x16x128xf32> to vector<256x128xf32>
    %c8_172 = arith.constant 8 : index
    %c0_173 = arith.constant 0 : index
    %c0_174 = arith.constant 0 : index
    %145 = vector.load %arg8[%c8_172, %c0_173, %c0_174] : memref<9x128x128xf32, #tpu.memory_space<vmem>>, vector<1x128x128xf32>
    %146 = vector.shape_cast %145 : vector<1x128x128xf32> to vector<128x128xf32>
    %cst_175 = arith.constant dense<0.000000e+00> : vector<256x128xf32>
    %147 = tpu.matmul %144, %146, %cst_175 {dimension_numbers = #tpu.dot_dimension_numbers<[1], [0], [0], [1], [0, 0, 1, 1], [], []>} : vector<256x128xf32>, vector<128x128xf32>, vector<256x128xf32> -> vector<256x128xf32>
    %148 = arith.addf %142, %147 : vector<256x128xf32>
    %149 = vector.broadcast %92 : vector<1x128xf32> to vector<256x128xf32>
    %150 = arith.mulf %148, %149 : vector<256x128xf32>
    %151 = vector.broadcast %93 : vector<1x128xf32> to vector<256x128xf32>
    %152 = arith.addf %150, %151 : vector<256x128xf32>
    %cst_176 = arith.constant 0.000000e+00 : f32
    %153 = vector.broadcast %cst_176 : f32 to vector<256x128xf32>
    %154 = arith.maximumf %152, %153 : vector<256x128xf32>
    %155 = vector.shape_cast %154 : vector<256x128xf32> to vector<16x16x128xf32>
    %c0_177 = arith.constant 0 : index
    %c0_178 = arith.constant 0 : index
    %c0_179 = arith.constant 0 : index
    %c0_180 = arith.constant 0 : index
    %156 = vector.load %arg11[%c0_177, %c0_178, %c0_179, %c0_180] : memref<1x16x16x128xf32, #tpu.memory_space<vmem>>, vector<1x16x16x128xf32>
    %157 = vector.shape_cast %156 : vector<1x16x16x128xf32> to vector<16x16x128xf32>
    %158 = vector.shape_cast %155 : vector<16x16x128xf32> to vector<1x16x16x128xf32>
    tpu.vector_store %arg11[%c0_177, %c0_178, %c0_179, %c0_180], %158 {strides = array<i32>} : memref<1x16x16x128xf32, #tpu.memory_space<vmem>>, vector<1x16x16x128xf32>,
    return
  }
  func.func @transform_0(%arg0: i32) -> (i32, i32, i32, i32) {
    %c0_i32 = arith.constant 0 : i32
    %c0_i32_0 = arith.constant 0 : i32
    %c0_i32_1 = arith.constant 0 : i32
    %c0_i32_2 = arith.constant 0 : i32
    return %arg0, %c0_i32, %c0_i32_0, %c0_i32_1 : i32, i32, i32, i32
  }
  func.func @transform_1(%arg0: i32) -> (i32, i32, i32, i32) {
    %c0_i32 = arith.constant 0 : i32
    %c0_i32_0 = arith.constant 0 : i32
    %c0_i32_1 = arith.constant 0 : i32
    %c0_i32_2 = arith.constant 0 : i32
    return %arg0, %c0_i32, %c0_i32_0, %c0_i32_1 : i32, i32, i32, i32
  }
  func.func @transform_2(%arg0: i32) -> (i32, i32) {
    %c0_i32 = arith.constant 0 : i32
    %c0_i32_0 = arith.constant 0 : i32
    %c0_i32_1 = arith.constant 0 : i32
    return %c0_i32, %c0_i32_0 : i32, i32
  }
  func.func @transform_3(%arg0: i32) -> (i32, i32) {
    %c0_i32 = arith.constant 0 : i32
    %c0_i32_0 = arith.constant 0 : i32
    %c0_i32_1 = arith.constant 0 : i32
    return %c0_i32, %c0_i32_0 : i32, i32
  }
  func.func @transform_4(%arg0: i32) -> (i32, i32, i32) {
    %c0_i32 = arith.constant 0 : i32
    %c0_i32_0 = arith.constant 0 : i32
    %c0_i32_1 = arith.constant 0 : i32
    %c0_i32_2 = arith.constant 0 : i32
    return %c0_i32, %c0_i32_0, %c0_i32_1 : i32, i32, i32
  }
  func.func @transform_5(%arg0: i32) -> (i32, i32) {
    %c0_i32 = arith.constant 0 : i32
    %c0_i32_0 = arith.constant 0 : i32
    %c0_i32_1 = arith.constant 0 : i32
    return %c0_i32, %c0_i32_0 : i32, i32
  }
  func.func @transform_6(%arg0: i32) -> (i32, i32) {
    %c0_i32 = arith.constant 0 : i32
    %c0_i32_0 = arith.constant 0 : i32
    %c0_i32_1 = arith.constant 0 : i32
    return %c0_i32, %c0_i32_0 : i32, i32
  }
  func.func @transform_7(%arg0: i32) -> (i32, i32, i32) {
    %c0_i32 = arith.constant 0 : i32
    %c0_i32_0 = arith.constant 0 : i32
    %c0_i32_1 = arith.constant 0 : i32
    %c0_i32_2 = arith.constant 0 : i32
    return %c0_i32, %c0_i32_0, %c0_i32_1 : i32, i32, i32
  }
  func.func @transform_8(%arg0: i32) -> (i32, i32) {
    %c0_i32 = arith.constant 0 : i32
    %c0_i32_0 = arith.constant 0 : i32
    %c0_i32_1 = arith.constant 0 : i32
    return %c0_i32, %c0_i32_0 : i32, i32
  }
  func.func @transform_9(%arg0: i32) -> (i32, i32) {
    %c0_i32 = arith.constant 0 : i32
    %c0_i32_0 = arith.constant 0 : i32
    %c0_i32_1 = arith.constant 0 : i32
    return %c0_i32, %c0_i32_0 : i32, i32
  }
  func.func @transform_10(%arg0: i32) -> (i32, i32, i32, i32) {
    %c0_i32 = arith.constant 0 : i32
    %c0_i32_0 = arith.constant 0 : i32
    %c0_i32_1 = arith.constant 0 : i32
    %c0_i32_2 = arith.constant 0 : i32
    return %arg0, %c0_i32, %c0_i32_0, %c0_i32_1 : i32, i32, i32, i32
  }
}

</mosaic_0001>

<llo_original>
// kernel: up_forward.1
$region0: #{up_forward.1}
  #allocation0 [shape = 'u32[]', space=smem, size = 0x4, offset = 0x4, fixed_abs, tag = 'smem constant byte address 0x4 - core index']
  #allocation1 [shape = 'u32[72,128]{1,0:T(1,128)}', space=vmem, size = 0x9000, scoped, tag = 'internal scratch']
  #allocation2 [shape = 'f32[18,18,256]{2,1,0:T(8,128)}', space=vmem, size = 0x6c000, scoped, tag = 'scratch operand']
  #allocation3 [shape = 'f32[18,18,128]{2,1,0:T(8,128)}', space=vmem, size = 0x36000, scoped, tag = 'scratch operand']
  %s0 = inlined_call_operand.vmem [shape: f32[2,8,8,128], index: 0, kind: input, shape index: {}]
  %s1 = inlined_call_operand.vmem [shape: f32[2,16,16,128], index: 1, kind: input, shape index: {}]
  %s2 = inlined_call_operand.vmem [shape: f32[18,8], index: 2, kind: input, shape index: {}, may-alias: {2,3}]
  %s3 = inlined_call_operand.vmem [shape: f32[18,8], index: 3, kind: input, shape index: {}, may-alias: {2,3}]
  %s4 = inlined_call_operand.vmem [shape: f32[9,256,128], index: 4, kind: input, shape index: {}]
  %s5 = inlined_call_operand.vmem [shape: f32[1,128], index: 5, kind: input, shape index: {}]
  %s6 = inlined_call_operand.vmem [shape: f32[1,128], index: 6, kind: input, shape index: {}]
  %s7 = inlined_call_operand.vmem [shape: f32[9,128,128], index: 7, kind: input, shape index: {}]
  %s8 = inlined_call_operand.vmem [shape: f32[1,128], index: 8, kind: input, shape index: {}]
  %s9 = inlined_call_operand.vmem [shape: f32[1,128], index: 9, kind: input, shape index: {}]
  %s10 = inlined_call_operand.vmem [shape: f32[2,16,16,128], index: 10, kind: output, shape index: {}]
  %s11 = sld [smem:[#allocation0]]
  $region73: #{up_forward.1} parent=0
    _
  %s13 = ssub.s32 1, %s11
  %s14 = scalar_select 0, %s13, %s11
  loop: start=0, step=1, limit=4
  $region2: #{up_forward.1} parent=0 // loop_pre_header
    _
  $region3: #{up_forward.1} parent=0 // loop_header
    %s16 = sphi 0, %s20
    %p17 = scmp.ge.s32.totalorder %s16, 4
    %s26 = sphi 0, %s28
    %s29 = sphi 0, %s26
    %s30 = sphi 0, %s29
    %s46 = sphi 0, %s30
    %s52 = sphi 0, %s54
    %s55 = sphi 0, %s52
    %s56 = sphi 0, %s55
    %s72 = sphi 0, %s56
    %s76 = sphi 0, %s76
    %s78 = sphi 0, %s76
    %s79 = sphi 0, %s78
    %s93 = sphi 0, %s79
    %s97 = sphi 0, %s97
    %s99 = sphi 0, %s97
    %s100 = sphi 0, %s99
    %s114 = sphi 0, %s100
    %s118 = sphi 0, %s118
    %s120 = sphi 0, %s118
    %s121 = sphi 0, %s120
    %s135 = sphi 0, %s121
    %s139 = sphi 0, %s139
    %s141 = sphi 0, %s139
    %s142 = sphi 0, %s141
    %s156 = sphi 0, %s142
    %s160 = sphi 0, %s160
    %s162 = sphi 0, %s160
    %s163 = sphi 0, %s162
    %s177 = sphi 0, %s163
    %s181 = sphi 0, %s181
    %s183 = sphi 0, %s181
    %s184 = sphi 0, %s183
    %s198 = sphi 0, %s184
    %s202 = sphi 0, %s202
    %s204 = sphi 0, %s202
    %s205 = sphi 0, %s204
    %s219 = sphi 0, %s205
    %s223 = sphi 0, %s223
    %s225 = sphi 0, %s223
    %s226 = sphi 0, %s225
    %s240 = sphi 0, %s226
    %s246 = sphi 0, %s248
    %s249 = sphi 0, %s246
    %s250 = sphi 0, %s249
    %s266 = sphi 0, %s250
  $region4: #{up_forward.1} parent=0 // loop_header_branch
    %19 = sbr.rel (%p17) target = $region8
  $region5: #{up_forward.1} parent=0 // loop_body
    %s21 = ssub.s32 %s16, 1
    %s22 = ssub.s32 %s16, 2
    %s23 = sadd.s32 %s16, 1
    %s24 = ssub.s32 %s16, %s23
    %p25 = scmp.eq.s32.totalorder %s24, 0
    %s27 = sadd.s32 %s26, 1
    %s28 = scalar_select %p25, %s26, %s27
    %p31 = pneg %p25
    %p32 = scmp.eq.s32.totalorder %s16, 1
    %p33 = por %p31, %p32
    %p34 = scmp.ne.s32.totalorder %s26, %s29
    %p35 = scmp.eq.s32.totalorder %s16, 0
    %p36 = por %p34, %p35
    %p37 = scmp.ne.s32.totalorder %s26, %s29
    %p38 = scmp.eq.s32.totalorder %s21, 1
    %p39 = por %p37, %p38
    %p40 = scmp.ne.s32.totalorder %s29, %s30
    %p41 = scmp.eq.s32.totalorder %s21, 0
    %p42 = por %p40, %p41
    %p43 = scmp.ne.s32.totalorder %s29, %s30
    %p44 = scmp.eq.s32.totalorder %s22, 1
    %p45 = por %p43, %p44
    %p47 = scmp.ne.s32.totalorder %s30, %s46
    %p48 = scmp.eq.s32.totalorder %s22, 0
    %p49 = por %p47, %p48
    %s50 = ssub.s32 %s16, %s23
    %p51 = scmp.eq.s32.totalorder %s50, 0
    %s53 = sadd.s32 %s52, 1
    %s54 = scalar_select %p51, %s52, %s53
    %p57 = pneg %p51
    %p58 = scmp.eq.s32.totalorder %s16, 1
    %p59 = por %p57, %p58
    %p60 = scmp.ne.s32.totalorder %s52, %s55
    %p61 = scmp.eq.s32.totalorder %s16, 0
    %p62 = por %p60, %p61
    %p63 = scmp.ne.s32.totalorder %s52, %s55
    %p64 = scmp.eq.s32.totalorder %s21, 1
    %p65 = por %p63, %p64
    %p66 = scmp.ne.s32.totalorder %s55, %s56
    %p67 = scmp.eq.s32.totalorder %s21, 0
    %p68 = por %p66, %p67
    %p69 = scmp.ne.s32.totalorder %s55, %s56
    %p70 = scmp.eq.s32.totalorder %s22, 1
    %p71 = por %p69, %p70
    %p73 = scmp.ne.s32.totalorder %s56, %s72
    %p74 = scmp.eq.s32.totalorder %s22, 0
    %p75 = por %p73, %p74
    %s77 = sadd.s32 %s76, 1
    %p80 = scmp.eq.s32.totalorder %s16, 1
    %p81 = scmp.ne.s32.totalorder %s76, %s78
    %p82 = scmp.eq.s32.totalorder %s16, 0
    %p83 = por %p81, %p82
    %p84 = scmp.ne.s32.totalorder %s76, %s78
    %p85 = scmp.eq.s32.totalorder %s21, 1
    %p86 = por %p84, %p85
    %p87 = scmp.ne.s32.totalorder %s78, %s79
    %p88 = scmp.eq.s32.totalorder %s21, 0
    %p89 = por %p87, %p88
    %p90 = scmp.ne.s32.totalorder %s78, %s79
    %p91 = scmp.eq.s32.totalorder %s22, 1
    %p92 = por %p90, %p91
    %p94 = scmp.ne.s32.totalorder %s79, %s93
    %p95 = scmp.eq.s32.totalorder %s22, 0
    %p96 = por %p94, %p95
    %s98 = sadd.s32 %s97, 1
    %p101 = scmp.eq.s32.totalorder %s16, 1
    %p102 = scmp.ne.s32.totalorder %s97, %s99
    %p103 = scmp.eq.s32.totalorder %s16, 0
    %p104 = por %p102, %p103
    %p105 = scmp.ne.s32.totalorder %s97, %s99
    %p106 = scmp.eq.s32.totalorder %s21, 1
    %p107 = por %p105, %p106
    %p108 = scmp.ne.s32.totalorder %s99, %s100
    %p109 = scmp.eq.s32.totalorder %s21, 0
    %p110 = por %p108, %p109
    %p111 = scmp.ne.s32.totalorder %s99, %s100
    %p112 = scmp.eq.s32.totalorder %s22, 1
    %p113 = por %p111, %p112
    %p115 = scmp.ne.s32.totalorder %s100, %s114
    %p116 = scmp.eq.s32.totalorder %s22, 0
    %p117 = por %p115, %p116
    %s119 = sadd.s32 %s118, 1
    %p122 = scmp.eq.s32.totalorder %s16, 1
    %p123 = scmp.ne.s32.totalorder %s118, %s120
    %p124 = scmp.eq.s32.totalorder %s16, 0
    %p125 = por %p123, %p124
    %p126 = scmp.ne.s32.totalorder %s118, %s120
    %p127 = scmp.eq.s32.totalorder %s21, 1
    %p128 = por %p126, %p127
    %p129 = scmp.ne.s32.totalorder %s120, %s121
    %p130 = scmp.eq.s32.totalorder %s21, 0
    %p131 = por %p129, %p130
    %p132 = scmp.ne.s32.totalorder %s120, %s121
    %p133 = scmp.eq.s32.totalorder %s22, 1
    %p134 = por %p132, %p133
    %p136 = scmp.ne.s32.totalorder %s121, %s135
    %p137 = scmp.eq.s32.totalorder %s22, 0
    %p138 = por %p136, %p137
    %s140 = sadd.s32 %s139, 1
    %p143 = scmp.eq.s32.totalorder %s16, 1
    %p144 = scmp.ne.s32.totalorder %s139, %s141
    %p145 = scmp.eq.s32.totalorder %s16, 0
    %p146 = por %p144, %p145
    %p147 = scmp.ne.s32.totalorder %s139, %s141
    %p148 = scmp.eq.s32.totalorder %s21, 1
    %p149 = por %p147, %p148
    %p150 = scmp.ne.s32.totalorder %s141, %s142
    %p151 = scmp.eq.s32.totalorder %s21, 0
    %p152 = por %p150, %p151
    %p153 = scmp.ne.s32.totalorder %s141, %s142
    %p154 = scmp.eq.s32.totalorder %s22, 1
    %p155 = por %p153, %p154
    %p157 = scmp.ne.s32.totalorder %s142, %s156
    %p158 = scmp.eq.s32.totalorder %s22, 0
    %p159 = por %p157, %p158
    %s161 = sadd.s32 %s160, 1
    %p164 = scmp.eq.s32.totalorder %s16, 1
    %p165 = scmp.ne.s32.totalorder %s160, %s162
    %p166 = scmp.eq.s32.totalorder %s16, 0
    %p167 = por %p165, %p166
    %p168 = scmp.ne.s32.totalorder %s160, %s162
    %p169 = scmp.eq.s32.totalorder %s21, 1
    %p170 = por %p168, %p169
    %p171 = scmp.ne.s32.totalorder %s162, %s163
    %p172 = scmp.eq.s32.totalorder %s21, 0
    %p173 = por %p171, %p172
    %p174 = scmp.ne.s32.totalorder %s162, %s163
    %p175 = scmp.eq.s32.totalorder %s22, 1
    %p176 = por %p174, %p175
    %p178 = scmp.ne.s32.totalorder %s163, %s177
    %p179 = scmp.eq.s32.totalorder %s22, 0
    %p180 = por %p178, %p179
    %s182 = sadd.s32 %s181, 1
    %p185 = scmp.eq.s32.totalorder %s16, 1
    %p186 = scmp.ne.s32.totalorder %s181, %s183
    %p187 = scmp.eq.s32.totalorder %s16, 0
    %p188 = por %p186, %p187
    %p189 = scmp.ne.s32.totalorder %s181, %s183
    %p190 = scmp.eq.s32.totalorder %s21, 1
    %p191 = por %p189, %p190
    %p192 = scmp.ne.s32.totalorder %s183, %s184
    %p193 = scmp.eq.s32.totalorder %s21, 0
    %p194 = por %p192, %p193
    %p195 = scmp.ne.s32.totalorder %s183, %s184
    %p196 = scmp.eq.s32.totalorder %s22, 1
    %p197 = por %p195, %p196
    %p199 = scmp.ne.s32.totalorder %s184, %s198
    %p200 = scmp.eq.s32.totalorder %s22, 0
    %p201 = por %p199, %p200
    %s203 = sadd.s32 %s202, 1
    %p206 = scmp.eq.s32.totalorder %s16, 1
    %p207 = scmp.ne.s32.totalorder %s202, %s204
    %p208 = scmp.eq.s32.totalorder %s16, 0
    %p209 = por %p207, %p208
    %p210 = scmp.ne.s32.totalorder %s202, %s204
    %p211 = scmp.eq.s32.totalorder %s21, 1
    %p212 = por %p210, %p211
    %p213 = scmp.ne.s32.totalorder %s204, %s205
    %p214 = scmp.eq.s32.totalorder %s21, 0
    %p215 = por %p213, %p214
    %p216 = scmp.ne.s32.totalorder %s204, %s205
    %p217 = scmp.eq.s32.totalorder %s22, 1
    %p218 = por %p216, %p217
    %p220 = scmp.ne.s32.totalorder %s205, %s219
    %p221 = scmp.eq.s32.totalorder %s22, 0
    %p222 = por %p220, %p221
    %s224 = sadd.s32 %s223, 1
    %p227 = scmp.eq.s32.totalorder %s16, 1
    %p228 = scmp.ne.s32.totalorder %s223, %s225
    %p229 = scmp.eq.s32.totalorder %s16, 0
    %p230 = por %p228, %p229
    %p231 = scmp.ne.s32.totalorder %s223, %s225
    %p232 = scmp.eq.s32.totalorder %s21, 1
    %p233 = por %p231, %p232
    %p234 = scmp.ne.s32.totalorder %s225, %s226
    %p235 = scmp.eq.s32.totalorder %s21, 0
    %p236 = por %p234, %p235
    %p237 = scmp.ne.s32.totalorder %s225, %s226
    %p238 = scmp.eq.s32.totalorder %s22, 1
    %p239 = por %p237, %p238
    %p241 = scmp.ne.s32.totalorder %s226, %s240
    %p242 = scmp.eq.s32.totalorder %s22, 0
    %p243 = por %p241, %p242
    %s244 = ssub.s32 %s16, %s23
    %p245 = scmp.eq.s32.totalorder %s244, 0
    %s247 = sadd.s32 %s246, 1
    %s248 = scalar_select %p245, %s246, %s247
    %p251 = pneg %p245
    %p252 = scmp.eq.s32.totalorder %s16, 1
    %p253 = por %p251, %p252
    %p254 = scmp.ne.s32.totalorder %s246, %s249
    %p255 = scmp.eq.s32.totalorder %s16, 0
    %p256 = por %p254, %p255
    %p257 = scmp.ne.s32.totalorder %s246, %s249
    %p258 = scmp.eq.s32.totalorder %s21, 1
    %p259 = por %p257, %p258
    %p260 = scmp.ne.s32.totalorder %s249, %s250
    %p261 = scmp.eq.s32.totalorder %s21, 0
    %p262 = por %p260, %p261
    %p263 = scmp.ne.s32.totalorder %s249, %s250
    %p264 = scmp.eq.s32.totalorder %s22, 1
    %p265 = por %p263, %p264
    %p267 = scmp.ne.s32.totalorder %s250, %s266
    %p268 = scmp.eq.s32.totalorder %s22, 0
    %p269 = por %p267, %p268
    %p270 = scmp.le.s32.totalorder 1, %s16
    %p271 = scmp.lt.s32.totalorder %s16, 3
    %p272 = pnand %p270, %p271
    %p273 = pneg %p272
    // Predicated region
    $region9: #{up_forward.1} parent=5 // pred_check
      _
    $region10: #{up_forward.1} parent=5 // pred_check_branch
      %275 = sbr.rel (%p272) target = $region12
    $region11: #{up_forward.1} parent=5 // pred_region
      %s276 = ssub.s32 %s16, 1
      // Predicated region
      $region13: #{up_forward.1} parent=11 // pred_check
        %p277 = pneg %p89
      $region14: #{up_forward.1} parent=11 // pred_check_branch
        %279 = sbr.rel (%p277) target = $region16
      $region15: #{up_forward.1} parent=11 // pred_region
        _
      $region16: #{up_forward.1} parent=11 // pred_fallthru
        _
      // Predicated region
      $region17: #{up_forward.1} parent=11 // pred_check
        %p280 = pneg %p110
      $region18: #{up_forward.1} parent=11 // pred_check_branch
        %282 = sbr.rel (%p280) target = $region20
      $region19: #{up_forward.1} parent=11 // pred_region
        _
      $region20: #{up_forward.1} parent=11 // pred_fallthru
        _
      // Predicated region
      $region21: #{up_forward.1} parent=11 // pred_check
        %p283 = pneg %p131
      $region22: #{up_forward.1} parent=11 // pred_check_branch
        %285 = sbr.rel (%p283) target = $region24
      $region23: #{up_forward.1} parent=11 // pred_region
        _
      $region24: #{up_forward.1} parent=11 // pred_fallthru
        _
      // Predicated region
      $region25: #{up_forward.1} parent=11 // pred_check
        %p286 = pneg %p152
      $region26: #{up_forward.1} parent=11 // pred_check_branch
        %288 = sbr.rel (%p286) target = $region28
      $region27: #{up_forward.1} parent=11 // pred_region
        _
      $region28: #{up_forward.1} parent=11 // pred_fallthru
        _
      // Predicated region
      $region29: #{up_forward.1} parent=11 // pred_check
        %p289 = pneg %p173
      $region30: #{up_forward.1} parent=11 // pred_check_branch
        %291 = sbr.rel (%p289) target = $region32
      $region31: #{up_forward.1} parent=11 // pred_region
        _
      $region32: #{up_forward.1} parent=11 // pred_fallthru
        _
      // Predicated region
      $region33: #{up_forward.1} parent=11 // pred_check
        %p292 = pneg %p194
      $region34: #{up_forward.1} parent=11 // pred_check_branch
        %294 = sbr.rel (%p292) target = $region36
      $region35: #{up_forward.1} parent=11 // pred_region
        _
      $region36: #{up_forward.1} parent=11 // pred_fallthru
        _
      // Predicated region
      $region37: #{up_forward.1} parent=11 // pred_check
        %p295 = pneg %p215
      $region38: #{up_forward.1} parent=11 // pred_check_branch
        %297 = sbr.rel (%p295) target = $region40
      $region39: #{up_forward.1} parent=11 // pred_region
        _
      $region40: #{up_forward.1} parent=11 // pred_fallthru
        _
      // Predicated region
      $region41: #{up_forward.1} parent=11 // pred_check
        %p298 = pneg %p236
      $region42: #{up_forward.1} parent=11 // pred_check_branch
        %300 = sbr.rel (%p298) target = $region44
      $region43: #{up_forward.1} parent=11 // pred_region
        _
      $region44: #{up_forward.1} parent=11 // pred_fallthru
        _
    $region12: #{up_forward.1} parent=5 // pred_fallthru
      _
    %p301 = scmp.lt.s32.totalorder %s16, 2
    // Predicated region
    $region45: #{up_forward.1} parent=5 // pred_check
      %p302 = pneg %p301
    $region46: #{up_forward.1} parent=5 // pred_check_branch
      %304 = sbr.rel (%p302) target = $region48
    $region47: #{up_forward.1} parent=5 // pred_region
      // Predicated region
      $region49: #{up_forward.1} parent=47 // pred_check
        %p305 = pneg %p36
      $region50: #{up_forward.1} parent=47 // pred_check_branch
        %307 = sbr.rel (%p305) target = $region52
      $region51: #{up_forward.1} parent=47 // pred_region
        %p308 = scmp.lt.s32.totalorder %s16, 1
        %s309 = scalar_select %p308, %s16, 1
        %s310 = smul.addr %s309, 8
        %s311 = smul.addr %s310, 8
        %s312 = scalar_lea.vmem %s0, %s311
      $region52: #{up_forward.1} parent=47 // pred_fallthru
        _
      // Predicated region
      $region53: #{up_forward.1} parent=47 // pred_check
        %p313 = pneg %p62
      $region54: #{up_forward.1} parent=47 // pred_check_branch
        %315 = sbr.rel (%p313) target = $region56
      $region55: #{up_forward.1} parent=47 // pred_region
        %p316 = scmp.lt.s32.totalorder %s16, 1
        %s317 = scalar_select %p316, %s16, 1
        %s318 = smul.addr %s317, 32
        %s319 = smul.addr %s318, 8
        %s320 = scalar_lea.vmem %s1, %s319
      $region56: #{up_forward.1} parent=47 // pred_fallthru
        _
    $region48: #{up_forward.1} parent=5 // pred_fallthru
      _
    %p321 = scmp.le.s32.totalorder 1, %s16
    %p322 = scmp.lt.s32.totalorder %s16, 3
    %p323 = pnand %p321, %p322
    %p324 = pneg %p323
    // Predicated region
    $region57: #{up_forward.1} parent=5 // pred_check
      _
    $region58: #{up_forward.1} parent=5 // pred_check_branch
      %326 = sbr.rel (%p323) target = $region60
    $region59: #{up_forward.1} parent=5 // pred_region
      %s327 = ssub.s32 %s16, 1
      %p328 = scmp.lt.s32.totalorder %s21, 1
      %s329 = scalar_select %p328, %s21, 1
      %s330 = smul.addr %s329, 8
      %s331 = smul.addr %s330, 8
      %s332 = scalar_lea.vmem %s0, %s331
      %p333 = pneg %p42
      %p334 = pneg %p39
      %p335 = scmp.lt.s32.totalorder %s21, 1
      %s336 = scalar_select %p335, %s21, 1
      %s337 = smul.addr %s336, 32
      %s338 = smul.addr %s337, 8
      %s339 = scalar_lea.vmem %s1, %s338
      %p340 = pneg %p68
      %p341 = pneg %p65
      %p342 = pneg %p89
      %p343 = pneg %p86
      %p344 = pneg %p110
      %p345 = pneg %p107
      %p346 = pneg %p131
      %p347 = pneg %p128
      %p348 = pneg %p152
      %p349 = pneg %p149
      %p350 = pneg %p173
      %p351 = pneg %p170
      %p352 = pneg %p194
      %p353 = pneg %p191
      %p354 = pneg %p215
      %p355 = pneg %p212
      %p356 = pneg %p236
      %p357 = pneg %p233
      %p358 = pneg %p262
      %p359 = pneg %p259
      %p360 = scmp.lt.s32.totalorder %s21, 1
      %s361 = scalar_select %p360, %s21, 1
      %s362 = smul.addr %s361, 32
      %s363 = smul.addr %s362, 8
      %s364 = scalar_lea.vmem %s10, %s363
      %p365 = scmp.lt.s32.totalorder %s21, 1
      %s366 = scalar_select %p365, %s21, 1
      %s367 = smul.addr %s366, 8
      %s368 = smul.addr %s367, 8
      %s369 = scalar_lea.vmem %s0, %s368
      %p370 = scmp.lt.s32.totalorder %s21, 1
      %s371 = scalar_select %p370, %s21, 1
      %s372 = smul.addr %s371, 32
      %s373 = smul.addr %s372, 8
      %s374 = scalar_lea.vmem %s1, %s373
      %p375 = scmp.lt.s32.totalorder %s21, 1
      %s376 = scalar_select %p375, %s21, 1
      %s377 = smul.addr %s376, 32
      %s378 = smul.addr %s377, 8
      %s379 = scalar_lea.vmem %s10, %s378
      %380 = vst [vmem:[#allocation2] sm:$0xff] 0.0
      %381 = vst [vmem:[#allocation2 + $0x8] sm:$0xff] 0.0
      %382 = vst [vmem:[#allocation2 + $0x10] sm:$0xff] 0.0
      %383 = vst [vmem:[#allocation2 + $0x18] sm:$0xff] 0.0
      %384 = vst [vmem:[#allocation2 + $0x20] sm:$0x3] 0.0
      %385 = vst [vmem:[#allocation2 + $0x28] sm:$0x3] 0.0
      %s386 = scalar_lea.vmem [#allocation2], 816
      %387 = vst [vmem:[%s386] sm:$0xff] 0.0
      %388 = vst [vmem:[%s386 + $0x8] sm:$0xff] 0.0
      %389 = vst [vmem:[%s386 + $0x10] sm:$0xff] 0.0
      %390 = vst [vmem:[%s386 + $0x18] sm:$0xff] 0.0
      %391 = vst [vmem:[%s386 + $0x20] sm:$0x3] 0.0
      %392 = vst [vmem:[%s386 + $0x28] sm:$0x3] 0.0
      %v393 = vlaneseq
      %vm394 = vcmp.ge.s32.totalorder %v393, 0
      %vm395 = vcmp.lt.s32.totalorder %v393, 256
      %vm396 = vmand %vm394, %vm395
      %397 = vst.msk [vmem:[#allocation2] ss:$8 sm:$0x3] %vm396, 0.0
      %398 = vst.msk [vmem:[#allocation2] ss:$8 sm:$0x0] %vm396, 0.0
      %s399 = scalar_lea.vmem [#allocation2], 48
      %400 = vst.msk [vmem:[%s399] ss:$8 sm:$0x3] %vm396, 0.0
      %401 = vst.msk [vmem:[%s399] ss:$8 sm:$0x0] %vm396, 0.0
      %s402 = scalar_lea.vmem [#allocation2], 96
      %403 = vst.msk [vmem:[%s402] ss:$8 sm:$0x3] %vm396, 0.0
      %404 = vst.msk [vmem:[%s402] ss:$8 sm:$0x0] %vm396, 0.0
      %s405 = scalar_lea.vmem [#allocation2], 144
      %406 = vst.msk [vmem:[%s405] ss:$8 sm:$0x3] %vm396, 0.0
      %407 = vst.msk [vmem:[%s405] ss:$8 sm:$0x0] %vm396, 0.0
      %s408 = scalar_lea.vmem [#allocation2], 192
      %409 = vst.msk [vmem:[%s408] ss:$8 sm:$0x3] %vm396, 0.0
      %410 = vst.msk [vmem:[%s408] ss:$8 sm:$0x0] %vm396, 0.0
      %s411 = scalar_lea.vmem [#allocation2], 240
      %412 = vst.msk [vmem:[%s411] ss:$8 sm:$0x3] %vm396, 0.0
      %413 = vst.msk [vmem:[%s411] ss:$8 sm:$0x0] %vm396, 0.0
      %s414 = scalar_lea.vmem [#allocation2], 288
      %415 = vst.msk [vmem:[%s414] ss:$8 sm:$0x3] %vm396, 0.0
      %416 = vst.msk [vmem:[%s414] ss:$8 sm:$0x0] %vm396, 0.0
      %s417 = scalar_lea.vmem [#allocation2], 336
      %418 = vst.msk [vmem:[%s417] ss:$8 sm:$0x3] %vm396, 0.0
      %419 = vst.msk [vmem:[%s417] ss:$8 sm:$0x0] %vm396, 0.0
      %s420 = scalar_lea.vmem [#allocation2], 384
      %421 = vst.msk [vmem:[%s420] ss:$8 sm:$0x3] %vm396, 0.0
      %422 = vst.msk [vmem:[%s420] ss:$8 sm:$0x0] %vm396, 0.0
      %s423 = scalar_lea.vmem [#allocation2], 432
      %424 = vst.msk [vmem:[%s423] ss:$8 sm:$0x3] %vm396, 0.0
      %425 = vst.msk [vmem:[%s423] ss:$8 sm:$0x0] %vm396, 0.0
      %s426 = scalar_lea.vmem [#allocation2], 480
      %427 = vst.msk [vmem:[%s426] ss:$8 sm:$0x3] %vm396, 0.0
      %428 = vst.msk [vmem:[%s426] ss:$8 sm:$0x0] %vm396, 0.0
      %s429 = scalar_lea.vmem [#allocation2], 528
      %430 = vst.msk [vmem:[%s429] ss:$8 sm:$0x3] %vm396, 0.0
      %431 = vst.msk [vmem:[%s429] ss:$8 sm:$0x0] %vm396, 0.0
      %s432 = scalar_lea.vmem [#allocation2], 576
      %433 = vst.msk [vmem:[%s432] ss:$8 sm:$0x3] %vm396, 0.0
      %434 = vst.msk [vmem:[%s432] ss:$8 sm:$0x0] %vm396, 0.0
      %s435 = scalar_lea.vmem [#allocation2], 624
      %436 = vst.msk [vmem:[%s435] ss:$8 sm:$0x3] %vm396, 0.0
      %437 = vst.msk [vmem:[%s435] ss:$8 sm:$0x0] %vm396, 0.0
      %s438 = scalar_lea.vmem [#allocation2], 672
      %439 = vst.msk [vmem:[%s438] ss:$8 sm:$0x3] %vm396, 0.0
      %440 = vst.msk [vmem:[%s438] ss:$8 sm:$0x0] %vm396, 0.0
      %s441 = scalar_lea.vmem [#allocation2], 720
      %442 = vst.msk [vmem:[%s441] ss:$8 sm:$0x3] %vm396, 0.0
      %443 = vst.msk [vmem:[%s441] ss:$8 sm:$0x0] %vm396, 0.0
      %s444 = scalar_lea.vmem [#allocation2], 768
      %445 = vst.msk [vmem:[%s444] ss:$8 sm:$0x3] %vm396, 0.0
      %446 = vst.msk [vmem:[%s444] ss:$8 sm:$0x0] %vm396, 0.0
      %s447 = scalar_lea.vmem [#allocation2], 816
      %448 = vst.msk [vmem:[%s447] ss:$8 sm:$0x3] %vm396, 0.0
      %449 = vst.msk [vmem:[%s447] ss:$8 sm:$0x0] %vm396, 0.0
      %s450 = scalar_lea.vmem [#allocation2], 33
      %451 = vst.msk [vmem:[%s450] ss:$8 sm:$0x3] %vm396, 0.0
      %452 = vst.msk [vmem:[%s450] ss:$8 sm:$0x0] %vm396, 0.0
      %s453 = scalar_lea.vmem [#allocation2], 81
      %454 = vst.msk [vmem:[%s453] ss:$8 sm:$0x3] %vm396, 0.0
      %455 = vst.msk [vmem:[%s453] ss:$8 sm:$0x0] %vm396, 0.0
      %s456 = scalar_lea.vmem [#allocation2], 129
      %457 = vst.msk [vmem:[%s456] ss:$8 sm:$0x3] %vm396, 0.0
      %458 = vst.msk [vmem:[%s456] ss:$8 sm:$0x0] %vm396, 0.0
      %s459 = scalar_lea.vmem [#allocation2], 177
      %460 = vst.msk [vmem:[%s459] ss:$8 sm:$0x3] %vm396, 0.0
      %461 = vst.msk [vmem:[%s459] ss:$8 sm:$0x0] %vm396, 0.0
      %s462 = scalar_lea.vmem [#allocation2], 225
      %463 = vst.msk [vmem:[%s462] ss:$8 sm:$0x3] %vm396, 0.0
      %464 = vst.msk [vmem:[%s462] ss:$8 sm:$0x0] %vm396, 0.0
      %s465 = scalar_lea.vmem [#allocation2], 273
      %466 = vst.msk [vmem:[%s465] ss:$8 sm:$0x3] %vm396, 0.0
      %467 = vst.msk [vmem:[%s465] ss:$8 sm:$0x0] %vm396, 0.0
      %s468 = scalar_lea.vmem [#allocation2], 321
      %469 = vst.msk [vmem:[%s468] ss:$8 sm:$0x3] %vm396, 0.0
      %470 = vst.msk [vmem:[%s468] ss:$8 sm:$0x0] %vm396, 0.0
      %s471 = scalar_lea.vmem [#allocation2], 369
      %472 = vst.msk [vmem:[%s471] ss:$8 sm:$0x3] %vm396, 0.0
      %473 = vst.msk [vmem:[%s471] ss:$8 sm:$0x0] %vm396, 0.0
      %s474 = scalar_lea.vmem [#allocation2], 417
      %475 = vst.msk [vmem:[%s474] ss:$8 sm:$0x3] %vm396, 0.0
      %476 = vst.msk [vmem:[%s474] ss:$8 sm:$0x0] %vm396, 0.0
      %s477 = scalar_lea.vmem [#allocation2], 465
      %478 = vst.msk [vmem:[%s477] ss:$8 sm:$0x3] %vm396, 0.0
      %479 = vst.msk [vmem:[%s477] ss:$8 sm:$0x0] %vm396, 0.0
      %s480 = scalar_lea.vmem [#allocation2], 513
      %481 = vst.msk [vmem:[%s480] ss:$8 sm:$0x3] %vm396, 0.0
      %482 = vst.msk [vmem:[%s480] ss:$8 sm:$0x0] %vm396, 0.0
      %s483 = scalar_lea.vmem [#allocation2], 561
      %484 = vst.msk [vmem:[%s483] ss:$8 sm:$0x3] %vm396, 0.0
      %485 = vst.msk [vmem:[%s483] ss:$8 sm:$0x0] %vm396, 0.0
      %s486 = scalar_lea.vmem [#allocation2], 609
      %487 = vst.msk [vmem:[%s486] ss:$8 sm:$0x3] %vm396, 0.0
      %488 = vst.msk [vmem:[%s486] ss:$8 sm:$0x0] %vm396, 0.0
      %s489 = scalar_lea.vmem [#allocation2], 657
      %490 = vst.msk [vmem:[%s489] ss:$8 sm:$0x3] %vm396, 0.0
      %491 = vst.msk [vmem:[%s489] ss:$8 sm:$0x0] %vm396, 0.0
      %s492 = scalar_lea.vmem [#allocation2], 705
      %493 = vst.msk [vmem:[%s492] ss:$8 sm:$0x3] %vm396, 0.0
      %494 = vst.msk [vmem:[%s492] ss:$8 sm:$0x0] %vm396, 0.0
      %s495 = scalar_lea.vmem [#allocation2], 753
      %496 = vst.msk [vmem:[%s495] ss:$8 sm:$0x3] %vm396, 0.0
      %497 = vst.msk [vmem:[%s495] ss:$8 sm:$0x0] %vm396, 0.0
      %s498 = scalar_lea.vmem [#allocation2], 801
      %499 = vst.msk [vmem:[%s498] ss:$8 sm:$0x3] %vm396, 0.0
      %500 = vst.msk [vmem:[%s498] ss:$8 sm:$0x0] %vm396, 0.0
      %s501 = scalar_lea.vmem [#allocation2], 849
      %502 = vst.msk [vmem:[%s501] ss:$8 sm:$0x3] %vm396, 0.0
      %503 = vst.msk [vmem:[%s501] ss:$8 sm:$0x0] %vm396, 0.0
      %504 = vst [vmem:[#allocation3] sm:$0xff] 0.0
      %505 = vst [vmem:[#allocation3 + $0x8] sm:$0xff] 0.0
      %506 = vst [vmem:[#allocation3 + $0x10] sm:$0x3] 0.0
      %s507 = scalar_lea.vmem [#allocation3], 408
      %508 = vst [vmem:[%s507] sm:$0xff] 0.0
      %509 = vst [vmem:[%s507 + $0x8] sm:$0xff] 0.0
      %510 = vst [vmem:[%s507 + $0x10] sm:$0x3] 0.0
      %511 = vst [vmem:[#allocation3] sm:$0x1] 0.0
      %512 = vst [vmem:[#allocation3 + $0x18] sm:$0x1] 0.0
      %513 = vst [vmem:[#allocation3 + $0x30] sm:$0x1] 0.0
      %514 = vst [vmem:[#allocation3 + $0x48] sm:$0x1] 0.0
      %515 = vst [vmem:[#allocation3 + $0x60] sm:$0x1] 0.0
      %516 = vst [vmem:[#allocation3 + $0x78] sm:$0x1] 0.0
      %517 = vst [vmem:[#allocation3 + $0x90] sm:$0x1] 0.0
      %518 = vst [vmem:[#allocation3 + $0xa8] sm:$0x1] 0.0
      %519 = vst [vmem:[#allocation3 + $0xc0] sm:$0x1] 0.0
      %520 = vst [vmem:[#allocation3 + $0xd8] sm:$0x1] 0.0
      %521 = vst [vmem:[#allocation3 + $0xf0] sm:$0x1] 0.0
      %522 = vst [vmem:[#allocation3 + $0x108] sm:$0x1] 0.0
      %523 = vst [vmem:[#allocation3 + $0x120] sm:$0x1] 0.0
      %524 = vst [vmem:[#allocation3 + $0x138] sm:$0x1] 0.0
      %525 = vst [vmem:[#allocation3 + $0x150] sm:$0x1] 0.0
      %526 = vst [vmem:[#allocation3 + $0x168] sm:$0x1] 0.0
      %527 = vst [vmem:[#allocation3 + $0x180] sm:$0x1] 0.0
      %528 = vst [vmem:[#allocation3 + $0x198] sm:$0x1] 0.0
      %529 = vst [vmem:[#allocation3 + $0x11] sm:$0x1] 0.0
      %530 = vst [vmem:[#allocation3 + $0x29] sm:$0x1] 0.0
      %531 = vst [vmem:[#allocation3 + $0x41] sm:$0x1] 0.0
      %532 = vst [vmem:[#allocation3 + $0x59] sm:$0x1] 0.0
      %533 = vst [vmem:[#allocation3 + $0x71] sm:$0x1] 0.0
      %534 = vst [vmem:[#allocation3 + $0x89] sm:$0x1] 0.0
      %535 = vst [vmem:[#allocation3 + $0xa1] sm:$0x1] 0.0
      %536 = vst [vmem:[#allocation3 + $0xb9] sm:$0x1] 0.0
      %537 = vst [vmem:[#allocation3 + $0xd1] sm:$0x1] 0.0
      %538 = vst [vmem:[#allocation3 + $0xe9] sm:$0x1] 0.0
      %539 = vst [vmem:[#allocation3 + $0x101] sm:$0x1] 0.0
      %540 = vst [vmem:[#allocation3 + $0x119] sm:$0x1] 0.0
      %541 = vst [vmem:[#allocation3 + $0x131] sm:$0x1] 0.0
      %542 = vst [vmem:[#allocation3 + $0x149] sm:$0x1] 0.0
      %543 = vst [vmem:[#allocation3 + $0x161] sm:$0x1] 0.0
      %544 = vst [vmem:[#allocation3 + $0x179] sm:$0x1] 0.0
      %545 = vst [vmem:[#allocation3 + $0x191] sm:$0x1] 0.0
      %546 = vst [vmem:[#allocation3 + $0x1a9] sm:$0x1] 0.0
      %v547 = vld [vmem:[%s369] sm:$0xff]
      %v548 = vld [vmem:[%s369 + $0x8] sm:$0xff]
      %v549 = vld [vmem:[%s369 + $0x10] sm:$0xff]
      %v550 = vld [vmem:[%s369 + $0x18] sm:$0xff]
      %v551 = vld [vmem:[%s369 + $0x20] sm:$0xff]
      %v552 = vld [vmem:[%s369 + $0x28] sm:$0xff]
      %v553 = vld [vmem:[%s369 + $0x30] sm:$0xff]
      %v554 = vld [vmem:[%s369 + $0x38] sm:$0xff]
      %v555 = vld [vmem:[%s3] sm:$0xff]
      %v556 = vld [vmem:[%s3 + $0x8] sm:$0xff]
      %v557 = vld [vmem:[%s3 + $0x10] sm:$0x3]
      %vm558 = vcmask 64512
      %v560 = vsel %vm558, %v555, 0
      %v563 = vsel %vm558, %v556, 0
      %v566 = vsel %vm558, %v557, 0
      %568 = vmatpush.msra.mxu0 0.0
      %569 = vmatpush.msra.mxu0 0.0
      %570 = vmatpush.msra.mxu0 0.0
      %571 = vmatpush.msra.mxu0 0.0
      %572 = vmatpush.msra.mxu0 0.0
      %573 = vmatpush.msra.mxu0 0.0
      %574 = vmatpush.msra.mxu0 0.0
      %575 = vmatpush.msra.mxu0 0.0
      %576 = vmatpush.msra.mxu0 0.0
      %577 = vmatpush.msra.mxu0 0.0
      %578 = vmatpush.msra.mxu0 0.0
      %579 = vmatpush.msra.mxu0 0.0
      %580 = vmatpush.msra.mxu0 0.0
      %581 = vmatpush.msra.mxu0 0.0
      %582 = vmatpush.msra.mxu0 0.0
      %583 = vmatpush.msra.mxu0 %v547
      %584 = vmatmul.f32.gmra.mxu0 %v560
      %v585 = vpop.f32.mrf.mxu0
      %v586 = vadd.f32 0.0, %v585
      %587 = vmatmul.f32.gmra.mxu0 %v563
      %v588 = vpop.f32.mrf.mxu0
      %v589 = vadd.f32 0.0, %v588
      %590 = vmatmul.f32.gmra.mxu0 %v566
      %v591 = vpop.f32.mrf.mxu0
      %v592 = vadd.f32 0.0, %v591
      %593 = vdwg.mxu0
      %594 = vmatpush.msra.mxu0 0.0
      %595 = vmatpush.msra.mxu0 0.0
      %596 = vmatpush.msra.mxu0 0.0
      %597 = vmatpush.msra.mxu0 0.0
      %598 = vmatpush.msra.mxu0 0.0
      %599 = vmatpush.msra.mxu0 0.0
      %600 = vmatpush.msra.mxu0 0.0
      %601 = vmatpush.msra.mxu0 0.0
      %602 = vmatpush.msra.mxu0 0.0
      %603 = vmatpush.msra.mxu0 0.0
      %604 = vmatpush.msra.mxu0 0.0
      %605 = vmatpush.msra.mxu0 0.0
      %606 = vmatpush.msra.mxu0 0.0
      %607 = vmatpush.msra.mxu0 0.0
      %608 = vmatpush.msra.mxu0 0.0
      %609 = vmatpush.msra.mxu0 %v548
      %610 = vmatmul.f32.gmra.mxu0 %v560
      %v611 = vpop.f32.mrf.mxu0
      %v612 = vadd.f32 0.0, %v611
      %613 = vmatmul.f32.gmra.mxu0 %v563
      %v614 = vpop.f32.mrf.mxu0
      %v615 = vadd.f32 0.0, %v614
      %616 = vmatmul.f32.gmra.mxu0 %v566
      %v617 = vpop.f32.mrf.mxu0
      %v618 = vadd.f32 0.0, %v617
      %619 = vdwg.mxu0
      %620 = vmatpush.msra.mxu0 0.0
      %621 = vmatpush.msra.mxu0 0.0
      %622 = vmatpush.msra.mxu0 0.0
      %623 = vmatpush.msra.mxu0 0.0
      %624 = vmatpush.msra.mxu0 0.0
      %625 = vmatpush.msra.mxu0 0.0
      %626 = vmatpush.msra.mxu0 0.0
      %627 = vmatpush.msra.mxu0 0.0
      %628 = vmatpush.msra.mxu0 0.0
      %629 = vmatpush.msra.mxu0 0.0
      %630 = vmatpush.msra.mxu0 0.0
      %631 = vmatpush.msra.mxu0 0.0
      %632 = vmatpush.msra.mxu0 0.0
      %633 = vmatpush.msra.mxu0 0.0
      %634 = vmatpush.msra.mxu0 0.0
      %635 = vmatpush.msra.mxu0 %v549
      %636 = vmatmul.f32.gmra.mxu0 %v560
      %v637 = vpop.f32.mrf.mxu0
      %v638 = vadd.f32 0.0, %v637
      %639 = vmatmul.f32.gmra.mxu0 %v563
      %v640 = vpop.f32.mrf.mxu0
      %v641 = vadd.f32 0.0, %v640
      %642 = vmatmul.f32.gmra.mxu0 %v566
      %v643 = vpop.f32.mrf.mxu0
      %v644 = vadd.f32 0.0, %v643
      %645 = vdwg.mxu0
      %646 = vmatpush.msra.mxu0 0.0
      %647 = vmatpush.msra.mxu0 0.0
      %648 = vmatpush.msra.mxu0 0.0
      %649 = vmatpush.msra.mxu0 0.0
      %650 = vmatpush.msra.mxu0 0.0
      %651 = vmatpush.msra.mxu0 0.0
      %652 = vmatpush.msra.mxu0 0.0
      %653 = vmatpush.msra.mxu0 0.0
      %654 = vmatpush.msra.mxu0 0.0
      %655 = vmatpush.msra.mxu0 0.0
      %656 = vmatpush.msra.mxu0 0.0
      %657 = vmatpush.msra.mxu0 0.0
      %658 = vmatpush.msra.mxu0 0.0
      %659 = vmatpush.msra.mxu0 0.0
      %660 = vmatpush.msra.mxu0 0.0
      %661 = vmatpush.msra.mxu0 %v550
      %662 = vmatmul.f32.gmra.mxu0 %v560
      %v663 = vpop.f32.mrf.mxu0
      %v664 = vadd.f32 0.0, %v663
      %665 = vmatmul.f32.gmra.mxu0 %v563
      %v666 = vpop.f32.mrf.mxu0
      %v667 = vadd.f32 0.0, %v666
      %668 = vmatmul.f32.gmra.mxu0 %v566
      %v669 = vpop.f32.mrf.mxu0
      %v670 = vadd.f32 0.0, %v669
      %671 = vdwg.mxu0
      %672 = vmatpush.msra.mxu0 0.0
      %673 = vmatpush.msra.mxu0 0.0
      %674 = vmatpush.msra.mxu0 0.0
      %675 = vmatpush.msra.mxu0 0.0
      %676 = vmatpush.msra.mxu0 0.0
      %677 = vmatpush.msra.mxu0 0.0
      %678 = vmatpush.msra.mxu0 0.0
      %679 = vmatpush.msra.mxu0 0.0
      %680 = vmatpush.msra.mxu0 0.0
      %681 = vmatpush.msra.mxu0 0.0
      %682 = vmatpush.msra.mxu0 0.0
      %683 = vmatpush.msra.mxu0 0.0
      %684 = vmatpush.msra.mxu0 0.0
      %685 = vmatpush.msra.mxu0 0.0
      %686 = vmatpush.msra.mxu0 0.0
      %687 = vmatpush.msra.mxu0 %v551
      %688 = vmatmul.f32.gmra.mxu0 %v560
      %v689 = vpop.f32.mrf.mxu0
      %v690 = vadd.f32 0.0, %v689
      %691 = vmatmul.f32.gmra.mxu0 %v563
      %v692 = vpop.f32.mrf.mxu0
      %v693 = vadd.f32 0.0, %v692
      %694 = vmatmul.f32.gmra.mxu0 %v566
      %v695 = vpop.f32.mrf.mxu0
      %v696 = vadd.f32 0.0, %v695
      %697 = vdwg.mxu0
      %698 = vmatpush.msra.mxu0 0.0
      %699 = vmatpush.msra.mxu0 0.0
      %700 = vmatpush.msra.mxu0 0.0
      %701 = vmatpush.msra.mxu0 0.0
      %702 = vmatpush.msra.mxu0 0.0
      %703 = vmatpush.msra.mxu0 0.0
      %704 = vmatpush.msra.mxu0 0.0
      %705 = vmatpush.msra.mxu0 0.0
      %706 = vmatpush.msra.mxu0 0.0
      %707 = vmatpush.msra.mxu0 0.0
      %708 = vmatpush.msra.mxu0 0.0
      %709 = vmatpush.msra.mxu0 0.0
      %710 = vmatpush.msra.mxu0 0.0
      %711 = vmatpush.msra.mxu0 0.0
      %712 = vmatpush.msra.mxu0 0.0
      %713 = vmatpush.msra.mxu0 %v552
      %714 = vmatmul.f32.gmra.mxu0 %v560
      %v715 = vpop.f32.mrf.mxu0
      %v716 = vadd.f32 0.0, %v715
      %717 = vmatmul.f32.gmra.mxu0 %v563
      %v718 = vpop.f32.mrf.mxu0
      %v719 = vadd.f32 0.0, %v718
      %720 = vmatmul.f32.gmra.mxu0 %v566
      %v721 = vpop.f32.mrf.mxu0
      %v722 = vadd.f32 0.0, %v721
      %723 = vdwg.mxu0
      %724 = vmatpush.msra.mxu0 0.0
      %725 = vmatpush.msra.mxu0 0.0
      %726 = vmatpush.msra.mxu0 0.0
      %727 = vmatpush.msra.mxu0 0.0
      %728 = vmatpush.msra.mxu0 0.0
      %729 = vmatpush.msra.mxu0 0.0
      %730 = vmatpush.msra.mxu0 0.0
      %731 = vmatpush.msra.mxu0 0.0
      %732 = vmatpush.msra.mxu0 0.0
      %733 = vmatpush.msra.mxu0 0.0
      %734 = vmatpush.msra.mxu0 0.0
      %735 = vmatpush.msra.mxu0 0.0
      %736 = vmatpush.msra.mxu0 0.0
      %737 = vmatpush.msra.mxu0 0.0
      %738 = vmatpush.msra.mxu0 0.0
      %739 = vmatpush.msra.mxu0 %v553
      %740 = vmatmul.f32.gmra.mxu0 %v560
      %v741 = vpop.f32.mrf.mxu0
      %v742 = vadd.f32 0.0, %v741
      %743 = vmatmul.f32.gmra.mxu0 %v563
      %v744 = vpop.f32.mrf.mxu0
      %v745 = vadd.f32 0.0, %v744
      %746 = vmatmul.f32.gmra.mxu0 %v566
      %v747 = vpop.f32.mrf.mxu0
      %v748 = vadd.f32 0.0, %v747
      %749 = vdwg.mxu0
      %750 = vmatpush.msra.mxu0 0.0
      %751 = vmatpush.msra.mxu0 0.0
      %752 = vmatpush.msra.mxu0 0.0
      %753 = vmatpush.msra.mxu0 0.0
      %754 = vmatpush.msra.mxu0 0.0
      %755 = vmatpush.msra.mxu0 0.0
      %756 = vmatpush.msra.mxu0 0.0
      %757 = vmatpush.msra.mxu0 0.0
      %758 = vmatpush.msra.mxu0 0.0
      %759 = vmatpush.msra.mxu0 0.0
      %760 = vmatpush.msra.mxu0 0.0
      %761 = vmatpush.msra.mxu0 0.0
      %762 = vmatpush.msra.mxu0 0.0
      %763 = vmatpush.msra.mxu0 0.0
      %764 = vmatpush.msra.mxu0 0.0
      %765 = vmatpush.msra.mxu0 %v554
      %766 = vmatmul.f32.gmra.mxu0 %v560
      %v767 = vpop.f32.mrf.mxu0
      %v768 = vadd.f32 0.0, %v767
      %769 = vmatmul.f32.gmra.mxu0 %v563
      %v770 = vpop.f32.mrf.mxu0
      %v771 = vadd.f32 0.0, %v770
      %772 = vmatmul.f32.gmra.mxu0 %v566
      %v773 = vpop.f32.mrf.mxu0
      %v774 = vadd.f32 0.0, %v773
      %775 = vdwg.mxu0
      %v776 = vld [vmem:[%s2] sm:$0xff]
      %v777 = vld [vmem:[%s2 + $0x8] sm:$0xff]
      %v778 = vld [vmem:[%s2 + $0x10] sm:$0x3]
      %v779 = vrot.slane %v638, 4
      %vm780 = vcmask 1047556
      %v781 = vsel %vm780, %v779, %v586
      %v782 = vrot.slane %v586, 4
      %v783 = vsel %vm780, %v638, %v782
      %v785 = vunpack.c.l.s4 1983009808
      %v786 = vunpack.c.0.s8 %v785
      %v787 = vperm.slane %v781, %v786
      %v789 = vunpack.c.l.s4 1983009808
      %v790 = vunpack.c.0.s8 %v789
      %v791 = vperm.slane %v783, %v790
      %v792 = vrot.slane %v664, 4
      %v793 = vsel %vm780, %v792, %v612
      %v794 = vrot.slane %v612, 4
      %v795 = vsel %vm780, %v664, %v794
      %v797 = vunpack.c.l.s4 1983009808
      %v798 = vunpack.c.0.s8 %v797
      %v799 = vperm.slane %v793, %v798
      %v801 = vunpack.c.l.s4 1983009808
      %v802 = vunpack.c.0.s8 %v801
      %v803 = vperm.slane %v795, %v802
      %v804 = vrot.slane %v742, 4
      %v805 = vsel %vm780, %v804, %v690
      %v806 = vrot.slane %v690, 4
      %v807 = vsel %vm780, %v742, %v806
      %v809 = vunpack.c.l.s4 1983009808
      %v810 = vunpack.c.0.s8 %v809
      %v811 = vperm.slane %v805, %v810
      %v813 = vunpack.c.l.s4 1983009808
      %v814 = vunpack.c.0.s8 %v813
      %v815 = vperm.slane %v807, %v814
      %v816 = vrot.slane %v768, 4
      %v817 = vsel %vm780, %v816, %v716
      %v818 = vrot.slane %v716, 4
      %v819 = vsel %vm780, %v768, %v818
      %v821 = vunpack.c.l.s4 1983009808
      %v822 = vunpack.c.0.s8 %v821
      %v823 = vperm.slane %v817, %v822
      %v825 = vunpack.c.l.s4 1983009808
      %v826 = vunpack.c.0.s8 %v825
      %v827 = vperm.slane %v819, %v826
      %v828 = vrot.slane %v799, 4
      %v829 = vsel %vm780, %v828, %v787
      %v830 = vrot.slane %v787, 4
      %v831 = vsel %vm780, %v799, %v830
      %v833 = vunpack.c.l.s4 1934713408
      %v834 = vunpack.c.0.s8 %v833
      %v835 = vperm.slane %v829, %v834
      %v837 = vunpack.c.l.s4 1934713408
      %v838 = vunpack.c.0.s8 %v837
      %v839 = vperm.slane %v831, %v838
      %v840 = vrot.slane %v803, 4
      %v841 = vsel %vm780, %v840, %v791
      %v842 = vrot.slane %v791, 4
      %v843 = vsel %vm780, %v803, %v842
      %v845 = vunpack.c.l.s4 1934713408
      %v846 = vunpack.c.0.s8 %v845
      %v847 = vperm.slane %v841, %v846
      %v849 = vunpack.c.l.s4 1934713408
      %v850 = vunpack.c.0.s8 %v849
      %v851 = vperm.slane %v843, %v850
      %v852 = vrot.slane %v823, 4
      %v853 = vsel %vm780, %v852, %v811
      %v854 = vrot.slane %v811, 4
      %v855 = vsel %vm780, %v823, %v854
      %v857 = vunpack.c.l.s4 1934713408
      %v858 = vunpack.c.0.s8 %v857
      %v859 = vperm.slane %v853, %v858
      %v861 = vunpack.c.l.s4 1934713408
      %v862 = vunpack.c.0.s8 %v861
      %v863 = vperm.slane %v855, %v862
      %v864 = vrot.slane %v827, 4
      %v865 = vsel %vm780, %v864, %v815
      %v866 = vrot.slane %v815, 4
      %v867 = vsel %vm780, %v827, %v866
      %v869 = vunpack.c.l.s4 1934713408
      %v870 = vunpack.c.0.s8 %v869
      %v871 = vperm.slane %v865, %v870
      %v873 = vunpack.c.l.s4 1934713408
      %v874 = vunpack.c.0.s8 %v873
      %v875 = vperm.slane %v867, %v874
      %v876 = vrot.slane %v859, 4
      %v877 = vsel %vm780, %v876, %v835
      %v878 = vrot.slane %v835, 4
      %v879 = vsel %vm780, %v859, %v878
      %v880 = vrot.slane %v863, 4
      %v881 = vsel %vm780, %v880, %v839
      %v882 = vrot.slane %v839, 4
      %v883 = vsel %vm780, %v863, %v882
      %v884 = vrot.slane %v871, 4
      %v885 = vsel %vm780, %v884, %v847
      %v886 = vrot.slane %v847, 4
      %v887 = vsel %vm780, %v871, %v886
      %v888 = vrot.slane %v875, 4
      %v889 = vsel %vm780, %v888, %v851
      %v890 = vrot.slane %v851, 4
      %v891 = vsel %vm780, %v875, %v890
      %v892 = vrot.slane %v641, 4
      %v893 = vsel %vm780, %v892, %v589
      %v894 = vrot.slane %v589, 4
      %v895 = vsel %vm780, %v641, %v894
      %v897 = vunpack.c.l.s4 1983009808
      %v898 = vunpack.c.0.s8 %v897
      %v899 = vperm.slane %v893, %v898
      %v901 = vunpack.c.l.s4 1983009808
      %v902 = vunpack.c.0.s8 %v901
      %v903 = vperm.slane %v895, %v902
      %v904 = vrot.slane %v667, 4
      %v905 = vsel %vm780, %v904, %v615
      %v906 = vrot.slane %v615, 4
      %v907 = vsel %vm780, %v667, %v906
      %v909 = vunpack.c.l.s4 1983009808
      %v910 = vunpack.c.0.s8 %v909
      %v911 = vperm.slane %v905, %v910
      %v913 = vunpack.c.l.s4 1983009808
      %v914 = vunpack.c.0.s8 %v913
      %v915 = vperm.slane %v907, %v914
      %v916 = vrot.slane %v745, 4
      %v917 = vsel %vm780, %v916, %v693
      %v918 = vrot.slane %v693, 4
      %v919 = vsel %vm780, %v745, %v918
      %v921 = vunpack.c.l.s4 1983009808
      %v922 = vunpack.c.0.s8 %v921
      %v923 = vperm.slane %v917, %v922
      %v925 = vunpack.c.l.s4 1983009808
      %v926 = vunpack.c.0.s8 %v925
      %v927 = vperm.slane %v919, %v926
      %v928 = vrot.slane %v771, 4
      %v929 = vsel %vm780, %v928, %v719
      %v930 = vrot.slane %v719, 4
      %v931 = vsel %vm780, %v771, %v930
      %v933 = vunpack.c.l.s4 1983009808
      %v934 = vunpack.c.0.s8 %v933
      %v935 = vperm.slane %v929, %v934
      %v937 = vunpack.c.l.s4 1983009808
      %v938 = vunpack.c.0.s8 %v937
      %v939 = vperm.slane %v931, %v938
      %v940 = vrot.slane %v911, 4
      %v941 = vsel %vm780, %v940, %v899
      %v942 = vrot.slane %v899, 4
      %v943 = vsel %vm780, %v911, %v942
      %v945 = vunpack.c.l.s4 1934713408
      %v946 = vunpack.c.0.s8 %v945
      %v947 = vperm.slane %v941, %v946
      %v949 = vunpack.c.l.s4 1934713408
      %v950 = vunpack.c.0.s8 %v949
      %v951 = vperm.slane %v943, %v950
      %v952 = vrot.slane %v915, 4
      %v953 = vsel %vm780, %v952, %v903
      %v954 = vrot.slane %v903, 4
      %v955 = vsel %vm780, %v915, %v954
      %v957 = vunpack.c.l.s4 1934713408
      %v958 = vunpack.c.0.s8 %v957
      %v959 = vperm.slane %v953, %v958
      %v961 = vunpack.c.l.s4 1934713408
      %v962 = vunpack.c.0.s8 %v961
      %v963 = vperm.slane %v955, %v962
      %v964 = vrot.slane %v935, 4
      %v965 = vsel %vm780, %v964, %v923
      %v966 = vrot.slane %v923, 4
      %v967 = vsel %vm780, %v935, %v966
      %v969 = vunpack.c.l.s4 1934713408
      %v970 = vunpack.c.0.s8 %v969
      %v971 = vperm.slane %v965, %v970
      %v973 = vunpack.c.l.s4 1934713408
      %v974 = vunpack.c.0.s8 %v973
      %v975 = vperm.slane %v967, %v974
      %v976 = vrot.slane %v939, 4
      %v977 = vsel %vm780, %v976, %v927
      %v978 = vrot.slane %v927, 4
      %v979 = vsel %vm780, %v939, %v978
      %v981 = vunpack.c.l.s4 1934713408
      %v982 = vunpack.c.0.s8 %v981
      %v983 = vperm.slane %v977, %v982
      %v985 = vunpack.c.l.s4 1934713408
      %v986 = vunpack.c.0.s8 %v985
      %v987 = vperm.slane %v979, %v986
      %v988 = vrot.slane %v971, 4
      %v989 = vsel %vm780, %v988, %v947
      %v990 = vrot.slane %v947, 4
      %v991 = vsel %vm780, %v971, %v990
      %v992 = vrot.slane %v975, 4
      %v993 = vsel %vm780, %v992, %v951
      %v994 = vrot.slane %v951, 4
      %v995 = vsel %vm780, %v975, %v994
      %v996 = vrot.slane %v983, 4
      %v997 = vsel %vm780, %v996, %v959
      %v998 = vrot.slane %v959, 4
      %v999 = vsel %vm780, %v983, %v998
      %v1000 = vrot.slane %v987, 4
      %v1001 = vsel %vm780, %v1000, %v963
      %v1002 = vrot.slane %v963, 4
      %v1003 = vsel %vm780, %v987, %v1002
      %v1004 = vrot.slane %v644, 4
      %v1005 = vsel %vm780, %v1004, %v592
      %v1007 = vunpack.c.l.s4 1983009808
      %v1008 = vunpack.c.0.s8 %v1007
      %v1009 = vperm.slane %v1005, %v1008
      %v1010 = vrot.slane %v670, 4
      %v1011 = vsel %vm780, %v1010, %v618
      %v1013 = vunpack.c.l.s4 1983009808
      %v1014 = vunpack.c.0.s8 %v1013
      %v1015 = vperm.slane %v1011, %v1014
      %v1016 = vrot.slane %v748, 4
      %v1017 = vsel %vm780, %v1016, %v696
      %v1019 = vunpack.c.l.s4 1983009808
      %v1020 = vunpack.c.0.s8 %v1019
      %v1021 = vperm.slane %v1017, %v1020
      %v1022 = vrot.slane %v774, 4
      %v1023 = vsel %vm780, %v1022, %v722
      %v1025 = vunpack.c.l.s4 1983009808
      %v1026 = vunpack.c.0.s8 %v1025
      %v1027 = vperm.slane %v1023, %v1026
      %v1028 = vrot.slane %v1015, 4
      %v1029 = vsel %vm780, %v1028, %v1009
      %v1031 = vunpack.c.l.s4 1934713408
      %v1032 = vunpack.c.0.s8 %v1031
      %v1033 = vperm.slane %v1029, %v1032
      %v1034 = vrot.slane %v1027, 4
      %v1035 = vsel %vm780, %v1034, %v1021
      %v1037 = vunpack.c.l.s4 1934713408
      %v1038 = vunpack.c.0.s8 %v1037
      %v1039 = vperm.slane %v1035, %v1038
      %v1040 = vrot.slane %v1039, 4
      %v1041 = vsel %vm780, %v1040, %v1033
      %v1042 = vrot.slane %v1033, 4
      %v1043 = vsel %vm780, %v1039, %v1042
      %v1045 = vsel %vm558, %v776, 0
      %v1048 = vsel %vm558, %v777, 0
      %v1051 = vsel %vm558, %v778, 0
      %1053 = vmatpush.msra.mxu0 0.0
      %1054 = vmatpush.msra.mxu0 0.0
      %1055 = vmatpush.msra.mxu0 0.0
      %1056 = vmatpush.msra.mxu0 0.0
      %1057 = vmatpush.msra.mxu0 0.0
      %1058 = vmatpush.msra.mxu0 0.0
      %1059 = vmatpush.msra.mxu0 0.0
      %1060 = vmatpush.msra.mxu0 0.0
      %1061 = vmatpush.msra.mxu0 0.0
      %1062 = vmatpush.msra.mxu0 0.0
      %1063 = vmatpush.msra.mxu0 0.0
      %1064 = vmatpush.msra.mxu0 0.0
      %1065 = vmatpush.msra.mxu0 0.0
      %1066 = vmatpush.msra.mxu0 0.0
      %1067 = vmatpush.msra.mxu0 0.0
      %1068 = vmatpush.msra.mxu0 %v877
      %1069 = vmatmul.f32.gmra.mxu0 %v1045
      %v1070 = vpop.f32.mrf.mxu0
      %v1071 = vadd.f32 0.0, %v1070
      %1072 = vmatmul.f32.gmra.mxu0 %v1048
      %v1073 = vpop.f32.mrf.mxu0
      %v1074 = vadd.f32 0.0, %v1073
      %1075 = vmatmul.f32.gmra.mxu0 %v1051
      %v1076 = vpop.f32.mrf.mxu0
      %v1077 = vadd.f32 0.0, %v1076
      %1078 = vdwg.mxu0
      %1079 = vmatpush.msra.mxu0 0.0
      %1080 = vmatpush.msra.mxu0 0.0
      %1081 = vmatpush.msra.mxu0 0.0
      %1082 = vmatpush.msra.mxu0 0.0
      %1083 = vmatpush.msra.mxu0 0.0
      %1084 = vmatpush.msra.mxu0 0.0
      %1085 = vmatpush.msra.mxu0 0.0
      %1086 = vmatpush.msra.mxu0 0.0
      %1087 = vmatpush.msra.mxu0 0.0
      %1088 = vmatpush.msra.mxu0 0.0
      %1089 = vmatpush.msra.mxu0 0.0
      %1090 = vmatpush.msra.mxu0 0.0
      %1091 = vmatpush.msra.mxu0 0.0
      %1092 = vmatpush.msra.mxu0 0.0
      %1093 = vmatpush.msra.mxu0 0.0
      %1094 = vmatpush.msra.mxu0 %v879
      %1095 = vmatmul.f32.gmra.mxu0 %v1045
      %v1096 = vpop.f32.mrf.mxu0
      %v1097 = vadd.f32 0.0, %v1096
      %1098 = vmatmul.f32.gmra.mxu0 %v1048
      %v1099 = vpop.f32.mrf.mxu0
      %v1100 = vadd.f32 0.0, %v1099
      %1101 = vmatmul.f32.gmra.mxu0 %v1051
      %v1102 = vpop.f32.mrf.mxu0
      %v1103 = vadd.f32 0.0, %v1102
      %1104 = vdwg.mxu0
      %1105 = vmatpush.msra.mxu0 0.0
      %1106 = vmatpush.msra.mxu0 0.0
      %1107 = vmatpush.msra.mxu0 0.0
      %1108 = vmatpush.msra.mxu0 0.0
      %1109 = vmatpush.msra.mxu0 0.0
      %1110 = vmatpush.msra.mxu0 0.0
      %1111 = vmatpush.msra.mxu0 0.0
      %1112 = vmatpush.msra.mxu0 0.0
      %1113 = vmatpush.msra.mxu0 0.0
      %1114 = vmatpush.msra.mxu0 0.0
      %1115 = vmatpush.msra.mxu0 0.0
      %1116 = vmatpush.msra.mxu0 0.0
      %1117 = vmatpush.msra.mxu0 0.0
      %1118 = vmatpush.msra.mxu0 0.0
      %1119 = vmatpush.msra.mxu0 0.0
      %1120 = vmatpush.msra.mxu0 %v881
      %1121 = vmatmul.f32.gmra.mxu0 %v1045
      %v1122 = vpop.f32.mrf.mxu0
      %v1123 = vadd.f32 0.0, %v1122
      %1124 = vmatmul.f32.gmra.mxu0 %v1048
      %v1125 = vpop.f32.mrf.mxu0
      %v1126 = vadd.f32 0.0, %v1125
      %1127 = vmatmul.f32.gmra.mxu0 %v1051
      %v1128 = vpop.f32.mrf.mxu0
      %v1129 = vadd.f32 0.0, %v1128
      %1130 = vdwg.mxu0
      %1131 = vmatpush.msra.mxu0 0.0
      %1132 = vmatpush.msra.mxu0 0.0
      %1133 = vmatpush.msra.mxu0 0.0
      %1134 = vmatpush.msra.mxu0 0.0
      %1135 = vmatpush.msra.mxu0 0.0
      %1136 = vmatpush.msra.mxu0 0.0
      %1137 = vmatpush.msra.mxu0 0.0
      %1138 = vmatpush.msra.mxu0 0.0
      %1139 = vmatpush.msra.mxu0 0.0
      %1140 = vmatpush.msra.mxu0 0.0
      %1141 = vmatpush.msra.mxu0 0.0
      %1142 = vmatpush.msra.mxu0 0.0
      %1143 = vmatpush.msra.mxu0 0.0
      %1144 = vmatpush.msra.mxu0 0.0
      %1145 = vmatpush.msra.mxu0 0.0
      %1146 = vmatpush.msra.mxu0 %v883
      %1147 = vmatmul.f32.gmra.mxu0 %v1045
      %v1148 = vpop.f32.mrf.mxu0
      %v1149 = vadd.f32 0.0, %v1148
      %1150 = vmatmul.f32.gmra.mxu0 %v1048
      %v1151 = vpop.f32.mrf.mxu0
      %v1152 = vadd.f32 0.0, %v1151
      %1153 = vmatmul.f32.gmra.mxu0 %v1051
      %v1154 = vpop.f32.mrf.mxu0
      %v1155 = vadd.f32 0.0, %v1154
      %1156 = vdwg.mxu0
      %1157 = vmatpush.msra.mxu0 0.0
      %1158 = vmatpush.msra.mxu0 0.0
      %1159 = vmatpush.msra.mxu0 0.0
      %1160 = vmatpush.msra.mxu0 0.0
      %1161 = vmatpush.msra.mxu0 0.0
      %1162 = vmatpush.msra.mxu0 0.0
      %1163 = vmatpush.msra.mxu0 0.0
      %1164 = vmatpush.msra.mxu0 0.0
      %1165 = vmatpush.msra.mxu0 0.0
      %1166 = vmatpush.msra.mxu0 0.0
      %1167 = vmatpush.msra.mxu0 0.0
      %1168 = vmatpush.msra.mxu0 0.0
      %1169 = vmatpush.msra.mxu0 0.0
      %1170 = vmatpush.msra.mxu0 0.0
      %1171 = vmatpush.msra.mxu0 0.0
      %1172 = vmatpush.msra.mxu0 %v885
      %1173 = vmatmul.f32.gmra.mxu0 %v1045
      %v1174 = vpop.f32.mrf.mxu0
      %v1175 = vadd.f32 0.0, %v1174
      %1176 = vmatmul.f32.gmra.mxu0 %v1048
      %v1177 = vpop.f32.mrf.mxu0
      %v1178 = vadd.f32 0.0, %v1177
      %1179 = vmatmul.f32.gmra.mxu0 %v1051
      %v1180 = vpop.f32.mrf.mxu0
      %v1181 = vadd.f32 0.0, %v1180
      %1182 = vdwg.mxu0
      %1183 = vmatpush.msra.mxu0 0.0
      %1184 = vmatpush.msra.mxu0 0.0
      %1185 = vmatpush.msra.mxu0 0.0
      %1186 = vmatpush.msra.mxu0 0.0
      %1187 = vmatpush.msra.mxu0 0.0
      %1188 = vmatpush.msra.mxu0 0.0
      %1189 = vmatpush.msra.mxu0 0.0
      %1190 = vmatpush.msra.mxu0 0.0
      %1191 = vmatpush.msra.mxu0 0.0
      %1192 = vmatpush.msra.mxu0 0.0
      %1193 = vmatpush.msra.mxu0 0.0
      %1194 = vmatpush.msra.mxu0 0.0
      %1195 = vmatpush.msra.mxu0 0.0
      %1196 = vmatpush.msra.mxu0 0.0
      %1197 = vmatpush.msra.mxu0 0.0
      %1198 = vmatpush.msra.mxu0 %v887
      %1199 = vmatmul.f32.gmra.mxu0 %v1045
      %v1200 = vpop.f32.mrf.mxu0
      %v1201 = vadd.f32 0.0, %v1200
      %1202 = vmatmul.f32.gmra.mxu0 %v1048
      %v1203 = vpop.f32.mrf.mxu0
      %v1204 = vadd.f32 0.0, %v1203
      %1205 = vmatmul.f32.gmra.mxu0 %v1051
      %v1206 = vpop.f32.mrf.mxu0
      %v1207 = vadd.f32 0.0, %v1206
      %1208 = vdwg.mxu0
      %1209 = vmatpush.msra.mxu0 0.0
      %1210 = vmatpush.msra.mxu0 0.0
      %1211 = vmatpush.msra.mxu0 0.0
      %1212 = vmatpush.msra.mxu0 0.0
      %1213 = vmatpush.msra.mxu0 0.0
      %1214 = vmatpush.msra.mxu0 0.0
      %1215 = vmatpush.msra.mxu0 0.0
      %1216 = vmatpush.msra.mxu0 0.0
      %1217 = vmatpush.msra.mxu0 0.0
      %1218 = vmatpush.msra.mxu0 0.0
      %1219 = vmatpush.msra.mxu0 0.0
      %1220 = vmatpush.msra.mxu0 0.0
      %1221 = vmatpush.msra.mxu0 0.0
      %1222 = vmatpush.msra.mxu0 0.0
      %1223 = vmatpush.msra.mxu0 0.0
      %1224 = vmatpush.msra.mxu0 %v889
      %1225 = vmatmul.f32.gmra.mxu0 %v1045
      %v1226 = vpop.f32.mrf.mxu0
      %v1227 = vadd.f32 0.0, %v1226
      %1228 = vmatmul.f32.gmra.mxu0 %v1048
      %v1229 = vpop.f32.mrf.mxu0
      %v1230 = vadd.f32 0.0, %v1229
      %1231 = vmatmul.f32.gmra.mxu0 %v1051
      %v1232 = vpop.f32.mrf.mxu0
      %v1233 = vadd.f32 0.0, %v1232
      %1234 = vdwg.mxu0
      %1235 = vmatpush.msra.mxu0 0.0
      %1236 = vmatpush.msra.mxu0 0.0
      %1237 = vmatpush.msra.mxu0 0.0
      %1238 = vmatpush.msra.mxu0 0.0
      %1239 = vmatpush.msra.mxu0 0.0
      %1240 = vmatpush.msra.mxu0 0.0
      %1241 = vmatpush.msra.mxu0 0.0
      %1242 = vmatpush.msra.mxu0 0.0
      %1243 = vmatpush.msra.mxu0 0.0
      %1244 = vmatpush.msra.mxu0 0.0
      %1245 = vmatpush.msra.mxu0 0.0
      %1246 = vmatpush.msra.mxu0 0.0
      %1247 = vmatpush.msra.mxu0 0.0
      %1248 = vmatpush.msra.mxu0 0.0
      %1249 = vmatpush.msra.mxu0 0.0
      %1250 = vmatpush.msra.mxu0 %v891
      %1251 = vmatmul.f32.gmra.mxu0 %v1045
      %v1252 = vpop.f32.mrf.mxu0
      %v1253 = vadd.f32 0.0, %v1252
      %1254 = vmatmul.f32.gmra.mxu0 %v1048
      %v1255 = vpop.f32.mrf.mxu0
      %v1256 = vadd.f32 0.0, %v1255
      %1257 = vmatmul.f32.gmra.mxu0 %v1051
      %v1258 = vpop.f32.mrf.mxu0
      %v1259 = vadd.f32 0.0, %v1258
      %1260 = vdwg.mxu0
      %1261 = vmatpush.msra.mxu0 0.0
      %1262 = vmatpush.msra.mxu0 0.0
      %1263 = vmatpush.msra.mxu0 0.0
      %1264 = vmatpush.msra.mxu0 0.0
      %1265 = vmatpush.msra.mxu0 0.0
      %1266 = vmatpush.msra.mxu0 0.0
      %1267 = vmatpush.msra.mxu0 0.0
      %1268 = vmatpush.msra.mxu0 0.0
      %1269 = vmatpush.msra.mxu0 0.0
      %1270 = vmatpush.msra.mxu0 0.0
      %1271 = vmatpush.msra.mxu0 0.0
      %1272 = vmatpush.msra.mxu0 0.0
      %1273 = vmatpush.msra.mxu0 0.0
      %1274 = vmatpush.msra.mxu0 0.0
      %1275 = vmatpush.msra.mxu0 0.0
      %1276 = vmatpush.msra.mxu0 %v989
      %1277 = vmatmul.f32.gmra.mxu0 %v1045
      %v1278 = vpop.f32.mrf.mxu0
      %v1279 = vadd.f32 0.0, %v1278
      %1280 = vmatmul.f32.gmra.mxu0 %v1048
      %v1281 = vpop.f32.mrf.mxu0
      %v1282 = vadd.f32 0.0, %v1281
      %1283 = vmatmul.f32.gmra.mxu0 %v1051
      %v1284 = vpop.f32.mrf.mxu0
      %v1285 = vadd.f32 0.0, %v1284
      %1286 = vdwg.mxu0
      %1287 = vmatpush.msra.mxu0 0.0
      %1288 = vmatpush.msra.mxu0 0.0
      %1289 = vmatpush.msra.mxu0 0.0
      %1290 = vmatpush.msra.mxu0 0.0
      %1291 = vmatpush.msra.mxu0 0.0
      %1292 = vmatpush.msra.mxu0 0.0
      %1293 = vmatpush.msra.mxu0 0.0
      %1294 = vmatpush.msra.mxu0 0.0
      %1295 = vmatpush.msra.mxu0 0.0
      %1296 = vmatpush.msra.mxu0 0.0
      %1297 = vmatpush.msra.mxu0 0.0
      %1298 = vmatpush.msra.mxu0 0.0
      %1299 = vmatpush.msra.mxu0 0.0
      %1300 = vmatpush.msra.mxu0 0.0
      %1301 = vmatpush.msra.mxu0 0.0
      %1302 = vmatpush.msra.mxu0 %v991
      %1303 = vmatmul.f32.gmra.mxu0 %v1045
      %v1304 = vpop.f32.mrf.mxu0
      %v1305 = vadd.f32 0.0, %v1304
      %1306 = vmatmul.f32.gmra.mxu0 %v1048
      %v1307 = vpop.f32.mrf.mxu0
      %v1308 = vadd.f32 0.0, %v1307
      %1309 = vmatmul.f32.gmra.mxu0 %v1051
      %v1310 = vpop.f32.mrf.mxu0
      %v1311 = vadd.f32 0.0, %v1310
      %1312 = vdwg.mxu0
      %1313 = vmatpush.msra.mxu0 0.0
      %1314 = vmatpush.msra.mxu0 0.0
      %1315 = vmatpush.msra.mxu0 0.0
      %1316 = vmatpush.msra.mxu0 0.0
      %1317 = vmatpush.msra.mxu0 0.0
      %1318 = vmatpush.msra.mxu0 0.0
      %1319 = vmatpush.msra.mxu0 0.0
      %1320 = vmatpush.msra.mxu0 0.0
      %1321 = vmatpush.msra.mxu0 0.0
      %1322 = vmatpush.msra.mxu0 0.0
      %1323 = vmatpush.msra.mxu0 0.0
      %1324 = vmatpush.msra.mxu0 0.0
      %1325 = vmatpush.msra.mxu0 0.0
      %1326 = vmatpush.msra.mxu0 0.0
      %1327 = vmatpush.msra.mxu0 0.0
      %1328 = vmatpush.msra.mxu0 %v993
      %1329 = vmatmul.f32.gmra.mxu0 %v1045
      %v1330 = vpop.f32.mrf.mxu0
      %v1331 = vadd.f32 0.0, %v1330
      %1332 = vmatmul.f32.gmra.mxu0 %v1048
      %v1333 = vpop.f32.mrf.mxu0
      %v1334 = vadd.f32 0.0, %v1333
      %1335 = vmatmul.f32.gmra.mxu0 %v1051
      %v1336 = vpop.f32.mrf.mxu0
      %v1337 = vadd.f32 0.0, %v1336
      %1338 = vdwg.mxu0
      %1339 = vmatpush.msra.mxu0 0.0
      %1340 = vmatpush.msra.mxu0 0.0
      %1341 = vmatpush.msra.mxu0 0.0
      %1342 = vmatpush.msra.mxu0 0.0
      %1343 = vmatpush.msra.mxu0 0.0
      %1344 = vmatpush.msra.mxu0 0.0
      %1345 = vmatpush.msra.mxu0 0.0
      %1346 = vmatpush.msra.mxu0 0.0
      %1347 = vmatpush.msra.mxu0 0.0
      %1348 = vmatpush.msra.mxu0 0.0
      %1349 = vmatpush.msra.mxu0 0.0
      %1350 = vmatpush.msra.mxu0 0.0
      %1351 = vmatpush.msra.mxu0 0.0
      %1352 = vmatpush.msra.mxu0 0.0
      %1353 = vmatpush.msra.mxu0 0.0
      %1354 = vmatpush.msra.mxu0 %v995
      %1355 = vmatmul.f32.gmra.mxu0 %v1045
      %v1356 = vpop.f32.mrf.mxu0
      %v1357 = vadd.f32 0.0, %v1356
      %1358 = vmatmul.f32.gmra.mxu0 %v1048
      %v1359 = vpop.f32.mrf.mxu0
      %v1360 = vadd.f32 0.0, %v1359
      %1361 = vmatmul.f32.gmra.mxu0 %v1051
      %v1362 = vpop.f32.mrf.mxu0
      %v1363 = vadd.f32 0.0, %v1362
      %1364 = vdwg.mxu0
      %1365 = vmatpush.msra.mxu0 0.0
      %1366 = vmatpush.msra.mxu0 0.0
      %1367 = vmatpush.msra.mxu0 0.0
      %1368 = vmatpush.msra.mxu0 0.0
      %1369 = vmatpush.msra.mxu0 0.0
      %1370 = vmatpush.msra.mxu0 0.0
      %1371 = vmatpush.msra.mxu0 0.0
      %1372 = vmatpush.msra.mxu0 0.0
      %1373 = vmatpush.msra.mxu0 0.0
      %1374 = vmatpush.msra.mxu0 0.0
      %1375 = vmatpush.msra.mxu0 0.0
      %1376 = vmatpush.msra.mxu0 0.0
      %1377 = vmatpush.msra.mxu0 0.0
      %1378 = vmatpush.msra.mxu0 0.0
      %1379 = vmatpush.msra.mxu0 0.0
      %1380 = vmatpush.msra.mxu0 %v997
      %1381 = vmatmul.f32.gmra.mxu0 %v1045
      %v1382 = vpop.f32.mrf.mxu0
      %v1383 = vadd.f32 0.0, %v1382
      %1384 = vmatmul.f32.gmra.mxu0 %v1048
      %v1385 = vpop.f32.mrf.mxu0
      %v1386 = vadd.f32 0.0, %v1385
      %1387 = vmatmul.f32.gmra.mxu0 %v1051
      %v1388 = vpop.f32.mrf.mxu0
      %v1389 = vadd.f32 0.0, %v1388
      %1390 = vdwg.mxu0
      %1391 = vmatpush.msra.mxu0 0.0
      %1392 = vmatpush.msra.mxu0 0.0
      %1393 = vmatpush.msra.mxu0 0.0
      %1394 = vmatpush.msra.mxu0 0.0
      %1395 = vmatpush.msra.mxu0 0.0
      %1396 = vmatpush.msra.mxu0 0.0
      %1397 = vmatpush.msra.mxu0 0.0
      %1398 = vmatpush.msra.mxu0 0.0
      %1399 = vmatpush.msra.mxu0 0.0
      %1400 = vmatpush.msra.mxu0 0.0
      %1401 = vmatpush.msra.mxu0 0.0
      %1402 = vmatpush.msra.mxu0 0.0
      %1403 = vmatpush.msra.mxu0 0.0
      %1404 = vmatpush.msra.mxu0 0.0
      %1405 = vmatpush.msra.mxu0 0.0
      %1406 = vmatpush.msra.mxu0 %v999
      %1407 = vmatmul.f32.gmra.mxu0 %v1045
      %v1408 = vpop.f32.mrf.mxu0
      %v1409 = vadd.f32 0.0, %v1408
      %1410 = vmatmul.f32.gmra.mxu0 %v1048
      %v1411 = vpop.f32.mrf.mxu0
      %v1412 = vadd.f32 0.0, %v1411
      %1413 = vmatmul.f32.gmra.mxu0 %v1051
      %v1414 = vpop.f32.mrf.mxu0
      %v1415 = vadd.f32 0.0, %v1414
      %1416 = vdwg.mxu0
      %1417 = vmatpush.msra.mxu0 0.0
      %1418 = vmatpush.msra.mxu0 0.0
      %1419 = vmatpush.msra.mxu0 0.0
      %1420 = vmatpush.msra.mxu0 0.0
      %1421 = vmatpush.msra.mxu0 0.0
      %1422 = vmatpush.msra.mxu0 0.0
      %1423 = vmatpush.msra.mxu0 0.0
      %1424 = vmatpush.msra.mxu0 0.0
      %1425 = vmatpush.msra.mxu0 0.0
      %1426 = vmatpush.msra.mxu0 0.0
      %1427 = vmatpush.msra.mxu0 0.0
      %1428 = vmatpush.msra.mxu0 0.0
      %1429 = vmatpush.msra.mxu0 0.0
      %1430 = vmatpush.msra.mxu0 0.0
      %1431 = vmatpush.msra.mxu0 0.0
      %1432 = vmatpush.msra.mxu0 %v1001
      %1433 = vmatmul.f32.gmra.mxu0 %v1045
      %v1434 = vpop.f32.mrf.mxu0
      %v1435 = vadd.f32 0.0, %v1434
      %1436 = vmatmul.f32.gmra.mxu0 %v1048
      %v1437 = vpop.f32.mrf.mxu0
      %v1438 = vadd.f32 0.0, %v1437
      %1439 = vmatmul.f32.gmra.mxu0 %v1051
      %v1440 = vpop.f32.mrf.mxu0
      %v1441 = vadd.f32 0.0, %v1440
      %1442 = vdwg.mxu0
      %1443 = vmatpush.msra.mxu0 0.0
      %1444 = vmatpush.msra.mxu0 0.0
      %1445 = vmatpush.msra.mxu0 0.0
      %1446 = vmatpush.msra.mxu0 0.0
      %1447 = vmatpush.msra.mxu0 0.0
      %1448 = vmatpush.msra.mxu0 0.0
      %1449 = vmatpush.msra.mxu0 0.0
      %1450 = vmatpush.msra.mxu0 0.0
      %1451 = vmatpush.msra.mxu0 0.0
      %1452 = vmatpush.msra.mxu0 0.0
      %1453 = vmatpush.msra.mxu0 0.0
      %1454 = vmatpush.msra.mxu0 0.0
      %1455 = vmatpush.msra.mxu0 0.0
      %1456 = vmatpush.msra.mxu0 0.0
      %1457 = vmatpush.msra.mxu0 0.0
      %1458 = vmatpush.msra.mxu0 %v1003
      %1459 = vmatmul.f32.gmra.mxu0 %v1045
      %v1460 = vpop.f32.mrf.mxu0
      %v1461 = vadd.f32 0.0, %v1460
      %1462 = vmatmul.f32.gmra.mxu0 %v1048
      %v1463 = vpop.f32.mrf.mxu0
      %v1464 = vadd.f32 0.0, %v1463
      %1465 = vmatmul.f32.gmra.mxu0 %v1051
      %v1466 = vpop.f32.mrf.mxu0
      %v1467 = vadd.f32 0.0, %v1466
      %1468 = vdwg.mxu0
      %1469 = vmatpush.msra.mxu0 0.0
      %1470 = vmatpush.msra.mxu0 0.0
      %1471 = vmatpush.msra.mxu0 0.0
      %1472 = vmatpush.msra.mxu0 0.0
      %1473 = vmatpush.msra.mxu0 0.0
      %1474 = vmatpush.msra.mxu0 0.0
      %1475 = vmatpush.msra.mxu0 0.0
      %1476 = vmatpush.msra.mxu0 0.0
      %1477 = vmatpush.msra.mxu0 0.0
      %1478 = vmatpush.msra.mxu0 0.0
      %1479 = vmatpush.msra.mxu0 0.0
      %1480 = vmatpush.msra.mxu0 0.0
      %1481 = vmatpush.msra.mxu0 0.0
      %1482 = vmatpush.msra.mxu0 0.0
      %1483 = vmatpush.msra.mxu0 0.0
      %1484 = vmatpush.msra.mxu0 %v1041
      %1485 = vmatmul.f32.gmra.mxu0 %v1045
      %v1486 = vpop.f32.mrf.mxu0
      %v1487 = vadd.f32 0.0, %v1486
      %1488 = vmatmul.f32.gmra.mxu0 %v1048
      %v1489 = vpop.f32.mrf.mxu0
      %v1490 = vadd.f32 0.0, %v1489
      %1491 = vmatmul.f32.gmra.mxu0 %v1051
      %v1492 = vpop.f32.mrf.mxu0
      %v1493 = vadd.f32 0.0, %v1492
      %1494 = vdwg.mxu0
      %1495 = vmatpush.msra.mxu0 0.0
      %1496 = vmatpush.msra.mxu0 0.0
      %1497 = vmatpush.msra.mxu0 0.0
      %1498 = vmatpush.msra.mxu0 0.0
      %1499 = vmatpush.msra.mxu0 0.0
      %1500 = vmatpush.msra.mxu0 0.0
      %1501 = vmatpush.msra.mxu0 0.0
      %1502 = vmatpush.msra.mxu0 0.0
      %1503 = vmatpush.msra.mxu0 0.0
      %1504 = vmatpush.msra.mxu0 0.0
      %1505 = vmatpush.msra.mxu0 0.0
      %1506 = vmatpush.msra.mxu0 0.0
      %1507 = vmatpush.msra.mxu0 0.0
      %1508 = vmatpush.msra.mxu0 0.0
      %1509 = vmatpush.msra.mxu0 0.0
      %1510 = vmatpush.msra.mxu0 %v1043
      %1511 = vmatmul.f32.gmra.mxu0 %v1045
      %v1512 = vpop.f32.mrf.mxu0
      %v1513 = vadd.f32 0.0, %v1512
      %1514 = vmatmul.f32.gmra.mxu0 %v1048
      %v1515 = vpop.f32.mrf.mxu0
      %v1516 = vadd.f32 0.0, %v1515
      %1517 = vmatmul.f32.gmra.mxu0 %v1051
      %v1518 = vpop.f32.mrf.mxu0
      %v1519 = vadd.f32 0.0, %v1518
      %1520 = vdwg.mxu0
      %v1521 = vld [vmem:[%s374] sm:$0xff]
      %v1522 = vld [vmem:[%s374 + $0x8] sm:$0xff]
      %v1523 = vld [vmem:[%s374 + $0x10] sm:$0xff]
      %v1524 = vld [vmem:[%s374 + $0x18] sm:$0xff]
      %v1525 = vld [vmem:[%s374 + $0x20] sm:$0xff]
      %v1526 = vld [vmem:[%s374 + $0x28] sm:$0xff]
      %v1527 = vld [vmem:[%s374 + $0x30] sm:$0xff]
      %v1528 = vld [vmem:[%s374 + $0x38] sm:$0xff]
      %v1529 = vld [vmem:[%s374 + $0x40] sm:$0xff]
      %v1530 = vld [vmem:[%s374 + $0x48] sm:$0xff]
      %v1531 = vld [vmem:[%s374 + $0x50] sm:$0xff]
      %v1532 = vld [vmem:[%s374 + $0x58] sm:$0xff]
      %v1533 = vld [vmem:[%s374 + $0x60] sm:$0xff]
      %v1534 = vld [vmem:[%s374 + $0x68] sm:$0xff]
      %v1535 = vld [vmem:[%s374 + $0x70] sm:$0xff]
      %v1536 = vld [vmem:[%s374 + $0x78] sm:$0xff]
      %v1537 = vld [vmem:[%s374 + $0x80] sm:$0xff]
      %v1538 = vld [vmem:[%s374 + $0x88] sm:$0xff]
      %v1539 = vld [vmem:[%s374 + $0x90] sm:$0xff]
      %v1540 = vld [vmem:[%s374 + $0x98] sm:$0xff]
      %v1541 = vld [vmem:[%s374 + $0xa0] sm:$0xff]
      %v1542 = vld [vmem:[%s374 + $0xa8] sm:$0xff]
      %v1543 = vld [vmem:[%s374 + $0xb0] sm:$0xff]
      %v1544 = vld [vmem:[%s374 + $0xb8] sm:$0xff]
      %v1545 = vld [vmem:[%s374 + $0xc0] sm:$0xff]
      %v1546 = vld [vmem:[%s374 + $0xc8] sm:$0xff]
      %v1547 = vld [vmem:[%s374 + $0xd0] sm:$0xff]
      %v1548 = vld [vmem:[%s374 + $0xd8] sm:$0xff]
      %v1549 = vld [vmem:[%s374 + $0xe0] sm:$0xff]
      %v1550 = vld [vmem:[%s374 + $0xe8] sm:$0xff]
      %v1551 = vld [vmem:[%s374 + $0xf0] sm:$0xff]
      %v1552 = vld [vmem:[%s374 + $0xf8] sm:$0xff]
      %vm1585 = vcmask 1040384
      %v1586 = vrot.slane %v1521, 7
      %v1587 = vrot.slane %v1522, 7
      %v1588 = vsel %vm1585, %v1586, %v1587
      %v1589 = vrot.slane %v1523, 7
      %v1590 = vrot.slane %v1524, 7
      %v1591 = vsel %vm1585, %v1589, %v1590
      %v1592 = vrot.slane %v1525, 7
      %v1593 = vrot.slane %v1526, 7
      %v1594 = vsel %vm1585, %v1592, %v1593
      %v1595 = vrot.slane %v1527, 7
      %v1596 = vrot.slane %v1528, 7
      %v1597 = vsel %vm1585, %v1595, %v1596
      %v1598 = vrot.slane %v1529, 7
      %v1599 = vrot.slane %v1530, 7
      %v1600 = vsel %vm1585, %v1598, %v1599
      %v1601 = vrot.slane %v1531, 7
      %v1602 = vrot.slane %v1532, 7
      %v1603 = vsel %vm1585, %v1601, %v1602
      %v1604 = vrot.slane %v1533, 7
      %v1605 = vrot.slane %v1534, 7
      %v1606 = vsel %vm1585, %v1604, %v1605
      %v1607 = vrot.slane %v1535, 7
      %v1608 = vrot.slane %v1536, 7
      %v1609 = vsel %vm1585, %v1607, %v1608
      %v1610 = vrot.slane %v1537, 7
      %v1611 = vrot.slane %v1538, 7
      %v1612 = vsel %vm1585, %v1610, %v1611
      %v1613 = vrot.slane %v1539, 7
      %v1614 = vrot.slane %v1540, 7
      %v1615 = vsel %vm1585, %v1613, %v1614
      %v1616 = vrot.slane %v1541, 7
      %v1617 = vrot.slane %v1542, 7
      %v1618 = vsel %vm1585, %v1616, %v1617
      %v1619 = vrot.slane %v1543, 7
      %v1620 = vrot.slane %v1544, 7
      %v1621 = vsel %vm1585, %v1619, %v1620
      %v1622 = vrot.slane %v1545, 7
      %v1623 = vrot.slane %v1546, 7
      %v1624 = vsel %vm1585, %v1622, %v1623
      %v1625 = vrot.slane %v1547, 7
      %v1626 = vrot.slane %v1548, 7
      %v1627 = vsel %vm1585, %v1625, %v1626
      %v1628 = vrot.slane %v1549, 7
      %v1629 = vrot.slane %v1550, 7
      %v1630 = vsel %vm1585, %v1628, %v1629
      %v1631 = vrot.slane %v1551, 7
      %v1632 = vrot.slane %v1552, 7
      %v1633 = vsel %vm1585, %v1631, %v1632
      %s1682 = scalar_lea.vmem [#allocation2], 48
      %1683 = vst [vmem:[%s1682] sm:$0xfe] %v1586
      %1684 = vst [vmem:[%s1682 + $0x10] sm:$0xff] %v1588
      %1685 = vst [vmem:[%s1682 + $0x20] sm:$0x1] %v1587
      %1686 = vst [vmem:[%s1682 + $0x30] sm:$0xfe] %v1589
      %1687 = vst [vmem:[%s1682 + $0x40] sm:$0xff] %v1591
      %1688 = vst [vmem:[%s1682 + $0x50] sm:$0x1] %v1590
      %1689 = vst [vmem:[%s1682 + $0x60] sm:$0xfe] %v1592
      %1690 = vst [vmem:[%s1682 + $0x70] sm:$0xff] %v1594
      %1691 = vst [vmem:[%s1682 + $0x80] sm:$0x1] %v1593
      %1692 = vst [vmem:[%s1682 + $0x90] sm:$0xfe] %v1595
      %1693 = vst [vmem:[%s1682 + $0xa0] sm:$0xff] %v1597
      %1694 = vst [vmem:[%s1682 + $0xb0] sm:$0x1] %v1596
      %1695 = vst [vmem:[%s1682 + $0xc0] sm:$0xfe] %v1598
      %1696 = vst [vmem:[%s1682 + $0xd0] sm:$0xff] %v1600
      %1697 = vst [vmem:[%s1682 + $0xe0] sm:$0x1] %v1599
      %1698 = vst [vmem:[%s1682 + $0xf0] sm:$0xfe] %v1601
      %1699 = vst [vmem:[%s1682 + $0x100] sm:$0xff] %v1603
      %1700 = vst [vmem:[%s1682 + $0x110] sm:$0x1] %v1602
      %1701 = vst [vmem:[%s1682 + $0x120] sm:$0xfe] %v1604
      %1702 = vst [vmem:[%s1682 + $0x130] sm:$0xff] %v1606
      %1703 = vst [vmem:[%s1682 + $0x140] sm:$0x1] %v1605
      %1704 = vst [vmem:[%s1682 + $0x150] sm:$0xfe] %v1607
      %1705 = vst [vmem:[%s1682 + $0x160] sm:$0xff] %v1609
      %1706 = vst [vmem:[%s1682 + $0x170] sm:$0x1] %v1608
      %1707 = vst [vmem:[%s1682 + $0x180] sm:$0xfe] %v1610
      %1708 = vst [vmem:[%s1682 + $0x190] sm:$0xff] %v1612
      %1709 = vst [vmem:[%s1682 + $0x1a0] sm:$0x1] %v1611
      %1710 = vst [vmem:[%s1682 + $0x1b0] sm:$0xfe] %v1613
      %1711 = vst [vmem:[%s1682 + $0x1c0] sm:$0xff] %v1615
      %1712 = vst [vmem:[%s1682 + $0x1d0] sm:$0x1] %v1614
      %1713 = vst [vmem:[%s1682 + $0x1e0] sm:$0xfe] %v1616
      %1714 = vst [vmem:[%s1682 + $0x1f0] sm:$0xff] %v1618
      %1715 = vst [vmem:[%s1682 + $0x200] sm:$0x1] %v1617
      %1716 = vst [vmem:[%s1682 + $0x210] sm:$0xfe] %v1619
      %1717 = vst [vmem:[%s1682 + $0x220] sm:$0xff] %v1621
      %1718 = vst [vmem:[%s1682 + $0x230] sm:$0x1] %v1620
      %1719 = vst [vmem:[%s1682 + $0x240] sm:$0xfe] %v1622
      %1720 = vst [vmem:[%s1682 + $0x250] sm:$0xff] %v1624
      %1721 = vst [vmem:[%s1682 + $0x260] sm:$0x1] %v1623
      %1722 = vst [vmem:[%s1682 + $0x270] sm:$0xfe] %v1625
      %1723 = vst [vmem:[%s1682 + $0x280] sm:$0xff] %v1627
      %1724 = vst [vmem:[%s1682 + $0x290] sm:$0x1] %v1626
      %1725 = vst [vmem:[%s1682 + $0x2a0] sm:$0xfe] %v1628
      %1726 = vst [vmem:[%s1682 + $0x2b0] sm:$0xff] %v1630
      %1727 = vst [vmem:[%s1682 + $0x2c0] sm:$0x1] %v1629
      %1728 = vst [vmem:[%s1682 + $0x2d0] sm:$0xfe] %v1631
      %1729 = vst [vmem:[%s1682 + $0x2e0] sm:$0xff] %v1633
      %1730 = vst [vmem:[%s1682 + $0x2f0] sm:$0x1] %v1632
      %v1731 = vrot.slane %v1123, 4
      %v1732 = vsel %vm780, %v1731, %v1071
      %v1733 = vrot.slane %v1071, 4
      %v1734 = vsel %vm780, %v1123, %v1733
      %v1736 = vunpack.c.l.s4 1983009808
      %v1737 = vunpack.c.0.s8 %v1736
      %v1738 = vperm.slane %v1732, %v1737
      %v1740 = vunpack.c.l.s4 1983009808
      %v1741 = vunpack.c.0.s8 %v1740
      %v1742 = vperm.slane %v1734, %v1741
      %v1743 = vrot.slane %v1149, 4
      %v1744 = vsel %vm780, %v1743, %v1097
      %v1745 = vrot.slane %v1097, 4
      %v1746 = vsel %vm780, %v1149, %v1745
      %v1748 = vunpack.c.l.s4 1983009808
      %v1749 = vunpack.c.0.s8 %v1748
      %v1750 = vperm.slane %v1744, %v1749
      %v1752 = vunpack.c.l.s4 1983009808
      %v1753 = vunpack.c.0.s8 %v1752
      %v1754 = vperm.slane %v1746, %v1753
      %v1755 = vrot.slane %v1227, 4
      %v1756 = vsel %vm780, %v1755, %v1175
      %v1757 = vrot.slane %v1175, 4
      %v1758 = vsel %vm780, %v1227, %v1757
      %v1760 = vunpack.c.l.s4 1983009808
      %v1761 = vunpack.c.0.s8 %v1760
      %v1762 = vperm.slane %v1756, %v1761
      %v1764 = vunpack.c.l.s4 1983009808
      %v1765 = vunpack.c.0.s8 %v1764
      %v1766 = vperm.slane %v1758, %v1765
      %v1767 = vrot.slane %v1253, 4
      %v1768 = vsel %vm780, %v1767, %v1201
      %v1769 = vrot.slane %v1201, 4
      %v1770 = vsel %vm780, %v1253, %v1769
      %v1772 = vunpack.c.l.s4 1983009808
      %v1773 = vunpack.c.0.s8 %v1772
      %v1774 = vperm.slane %v1768, %v1773
      %v1776 = vunpack.c.l.s4 1983009808
      %v1777 = vunpack.c.0.s8 %v1776
      %v1778 = vperm.slane %v1770, %v1777
      %v1779 = vrot.slane %v1750, 4
      %v1780 = vsel %vm780, %v1779, %v1738
      %v1781 = vrot.slane %v1738, 4
      %v1782 = vsel %vm780, %v1750, %v1781
      %v1784 = vunpack.c.l.s4 1934713408
      %v1785 = vunpack.c.0.s8 %v1784
      %v1786 = vperm.slane %v1780, %v1785
      %v1788 = vunpack.c.l.s4 1934713408
      %v1789 = vunpack.c.0.s8 %v1788
      %v1790 = vperm.slane %v1782, %v1789
      %v1791 = vrot.slane %v1754, 4
      %v1792 = vsel %vm780, %v1791, %v1742
      %v1793 = vrot.slane %v1742, 4
      %v1794 = vsel %vm780, %v1754, %v1793
      %v1796 = vunpack.c.l.s4 1934713408
      %v1797 = vunpack.c.0.s8 %v1796
      %v1798 = vperm.slane %v1792, %v1797
      %v1800 = vunpack.c.l.s4 1934713408
      %v1801 = vunpack.c.0.s8 %v1800
      %v1802 = vperm.slane %v1794, %v1801
      %v1803 = vrot.slane %v1774, 4
      %v1804 = vsel %vm780, %v1803, %v1762
      %v1805 = vrot.slane %v1762, 4
      %v1806 = vsel %vm780, %v1774, %v1805
      %v1808 = vunpack.c.l.s4 1934713408
      %v1809 = vunpack.c.0.s8 %v1808
      %v1810 = vperm.slane %v1804, %v1809
      %v1812 = vunpack.c.l.s4 1934713408
      %v1813 = vunpack.c.0.s8 %v1812
      %v1814 = vperm.slane %v1806, %v1813
      %v1815 = vrot.slane %v1778, 4
      %v1816 = vsel %vm780, %v1815, %v1766
      %v1817 = vrot.slane %v1766, 4
      %v1818 = vsel %vm780, %v1778, %v1817
      %v1820 = vunpack.c.l.s4 1934713408
      %v1821 = vunpack.c.0.s8 %v1820
      %v1822 = vperm.slane %v1816, %v1821
      %v1824 = vunpack.c.l.s4 1934713408
      %v1825 = vunpack.c.0.s8 %v1824
      %v1826 = vperm.slane %v1818, %v1825
      %v1827 = vrot.slane %v1810, 4
      %v1828 = vsel %vm780, %v1827, %v1786
      %v1829 = vrot.slane %v1786, 4
      %v1830 = vsel %vm780, %v1810, %v1829
      %v1831 = vrot.slane %v1814, 4
      %v1832 = vsel %vm780, %v1831, %v1790
      %v1833 = vrot.slane %v1790, 4
      %v1834 = vsel %vm780, %v1814, %v1833
      %v1835 = vrot.slane %v1822, 4
      %v1836 = vsel %vm780, %v1835, %v1798
      %v1837 = vrot.slane %v1798, 4
      %v1838 = vsel %vm780, %v1822, %v1837
      %v1839 = vrot.slane %v1826, 4
      %v1840 = vsel %vm780, %v1839, %v1802
      %v1841 = vrot.slane %v1802, 4
      %v1842 = vsel %vm780, %v1826, %v1841
      %v1843 = vrot.slane %v1331, 4
      %v1844 = vsel %vm780, %v1843, %v1279
      %v1845 = vrot.slane %v1279, 4
      %v1846 = vsel %vm780, %v1331, %v1845
      %v1848 = vunpack.c.l.s4 1983009808
      %v1849 = vunpack.c.0.s8 %v1848
      %v1850 = vperm.slane %v1844, %v1849
      %v1852 = vunpack.c.l.s4 1983009808
      %v1853 = vunpack.c.0.s8 %v1852
      %v1854 = vperm.slane %v1846, %v1853
      %v1855 = vrot.slane %v1357, 4
      %v1856 = vsel %vm780, %v1855, %v1305
      %v1857 = vrot.slane %v1305, 4
      %v1858 = vsel %vm780, %v1357, %v1857
      %v1860 = vunpack.c.l.s4 1983009808
      %v1861 = vunpack.c.0.s8 %v1860
      %v1862 = vperm.slane %v1856, %v1861
      %v1864 = vunpack.c.l.s4 1983009808
      %v1865 = vunpack.c.0.s8 %v1864
      %v1866 = vperm.slane %v1858, %v1865
      %v1867 = vrot.slane %v1435, 4
      %v1868 = vsel %vm780, %v1867, %v1383
      %v1869 = vrot.slane %v1383, 4
      %v1870 = vsel %vm780, %v1435, %v1869
      %v1872 = vunpack.c.l.s4 1983009808
      %v1873 = vunpack.c.0.s8 %v1872
      %v1874 = vperm.slane %v1868, %v1873
      %v1876 = vunpack.c.l.s4 1983009808
      %v1877 = vunpack.c.0.s8 %v1876
      %v1878 = vperm.slane %v1870, %v1877
      %v1879 = vrot.slane %v1461, 4
      %v1880 = vsel %vm780, %v1879, %v1409
      %v1881 = vrot.slane %v1409, 4
      %v1882 = vsel %vm780, %v1461, %v1881
      %v1884 = vunpack.c.l.s4 1983009808
      %v1885 = vunpack.c.0.s8 %v1884
      %v1886 = vperm.slane %v1880, %v1885
      %v1888 = vunpack.c.l.s4 1983009808
      %v1889 = vunpack.c.0.s8 %v1888
      %v1890 = vperm.slane %v1882, %v1889
      %v1891 = vrot.slane %v1862, 4
      %v1892 = vsel %vm780, %v1891, %v1850
      %v1893 = vrot.slane %v1850, 4
      %v1894 = vsel %vm780, %v1862, %v1893
      %v1896 = vunpack.c.l.s4 1934713408
      %v1897 = vunpack.c.0.s8 %v1896
      %v1898 = vperm.slane %v1892, %v1897
      %v1900 = vunpack.c.l.s4 1934713408
      %v1901 = vunpack.c.0.s8 %v1900
      %v1902 = vperm.slane %v1894, %v1901
      %v1903 = vrot.slane %v1866, 4
      %v1904 = vsel %vm780, %v1903, %v1854
      %v1905 = vrot.slane %v1854, 4
      %v1906 = vsel %vm780, %v1866, %v1905
      %v1908 = vunpack.c.l.s4 1934713408
      %v1909 = vunpack.c.0.s8 %v1908
      %v1910 = vperm.slane %v1904, %v1909
      %v1912 = vunpack.c.l.s4 1934713408
      %v1913 = vunpack.c.0.s8 %v1912
      %v1914 = vperm.slane %v1906, %v1913
      %v1915 = vrot.slane %v1886, 4
      %v1916 = vsel %vm780, %v1915, %v1874
      %v1917 = vrot.slane %v1874, 4
      %v1918 = vsel %vm780, %v1886, %v1917
      %v1920 = vunpack.c.l.s4 1934713408
      %v1921 = vunpack.c.0.s8 %v1920
      %v1922 = vperm.slane %v1916, %v1921
      %v1924 = vunpack.c.l.s4 1934713408
      %v1925 = vunpack.c.0.s8 %v1924
      %v1926 = vperm.slane %v1918, %v1925
      %v1927 = vrot.slane %v1890, 4
      %v1928 = vsel %vm780, %v1927, %v1878
      %v1929 = vrot.slane %v1878, 4
      %v1930 = vsel %vm780, %v1890, %v1929
      %v1932 = vunpack.c.l.s4 1934713408
      %v1933 = vunpack.c.0.s8 %v1932
      %v1934 = vperm.slane %v1928, %v1933
      %v1936 = vunpack.c.l.s4 1934713408
      %v1937 = vunpack.c.0.s8 %v1936
      %v1938 = vperm.slane %v1930, %v1937
      %v1939 = vrot.slane %v1922, 4
      %v1940 = vsel %vm780, %v1939, %v1898
      %v1941 = vrot.slane %v1898, 4
      %v1942 = vsel %vm780, %v1922, %v1941
      %v1943 = vrot.slane %v1926, 4
      %v1944 = vsel %vm780, %v1943, %v1902
      %v1945 = vrot.slane %v1902, 4
      %v1946 = vsel %vm780, %v1926, %v1945
      %v1947 = vrot.slane %v1934, 4
      %v1948 = vsel %vm780, %v1947, %v1910
      %v1949 = vrot.slane %v1910, 4
      %v1950 = vsel %vm780, %v1934, %v1949
      %v1951 = vrot.slane %v1938, 4
      %v1952 = vsel %vm780, %v1951, %v1914
      %v1953 = vrot.slane %v1914, 4
      %v1954 = vsel %vm780, %v1938, %v1953
      %v1955 = vrot.slane %v1487, 4
      %v1956 = vsel %vm780, 0.0, %v1955
      %v1958 = vunpack.c.l.s4 1983009808
      %v1959 = vunpack.c.0.s8 %v1958
      %v1960 = vperm.slane %v1487, %v1959
      %v1962 = vunpack.c.l.s4 1983009808
      %v1963 = vunpack.c.0.s8 %v1962
      %v1964 = vperm.slane %v1956, %v1963
      %v1965 = vrot.slane %v1513, 4
      %v1966 = vsel %vm780, 0.0, %v1965
      %v1968 = vunpack.c.l.s4 1983009808
      %v1969 = vunpack.c.0.s8 %v1968
      %v1970 = vperm.slane %v1513, %v1969
      %v1972 = vunpack.c.l.s4 1983009808
      %v1973 = vunpack.c.0.s8 %v1972
      %v1974 = vperm.slane %v1966, %v1973
      %v1975 = vrot.slane %v1970, 4
      %v1976 = vsel %vm780, %v1975, %v1960
      %v1977 = vrot.slane %v1960, 4
      %v1978 = vsel %vm780, %v1970, %v1977
      %v1980 = vunpack.c.l.s4 1934713408
      %v1981 = vunpack.c.0.s8 %v1980
      %v1982 = vperm.slane %v1976, %v1981
      %v1984 = vunpack.c.l.s4 1934713408
      %v1985 = vunpack.c.0.s8 %v1984
      %v1986 = vperm.slane %v1978, %v1985
      %v1987 = vrot.slane %v1974, 4
      %v1988 = vsel %vm780, %v1987, %v1964
      %v1989 = vrot.slane %v1964, 4
      %v1990 = vsel %vm780, %v1974, %v1989
      %v1992 = vunpack.c.l.s4 1934713408
      %v1993 = vunpack.c.0.s8 %v1992
      %v1994 = vperm.slane %v1988, %v1993
      %v1996 = vunpack.c.l.s4 1934713408
      %v1997 = vunpack.c.0.s8 %v1996
      %v1998 = vperm.slane %v1990, %v1997
      %v1999 = vrot.slane %v1982, 4
      %v2000 = vsel %vm780, 0.0, %v1999
      %v2001 = vrot.slane %v1986, 4
      %v2002 = vsel %vm780, 0.0, %v2001
      %v2003 = vrot.slane %v1994, 4
      %v2004 = vsel %vm780, 0.0, %v2003
      %v2005 = vrot.slane %v1998, 4
      %v2006 = vsel %vm780, 0.0, %v2005
      %v2007 = vrot.slane %v1126, 4
      %v2008 = vsel %vm780, %v2007, %v1074
      %v2009 = vrot.slane %v1074, 4
      %v2010 = vsel %vm780, %v1126, %v2009
      %v2012 = vunpack.c.l.s4 1983009808
      %v2013 = vunpack.c.0.s8 %v2012
      %v2014 = vperm.slane %v2008, %v2013
      %v2016 = vunpack.c.l.s4 1983009808
      %v2017 = vunpack.c.0.s8 %v2016
      %v2018 = vperm.slane %v2010, %v2017
      %v2019 = vrot.slane %v1152, 4
      %v2020 = vsel %vm780, %v2019, %v1100
      %v2021 = vrot.slane %v1100, 4
      %v2022 = vsel %vm780, %v1152, %v2021
      %v2024 = vunpack.c.l.s4 1983009808
      %v2025 = vunpack.c.0.s8 %v2024
      %v2026 = vperm.slane %v2020, %v2025
      %v2028 = vunpack.c.l.s4 1983009808
      %v2029 = vunpack.c.0.s8 %v2028
      %v2030 = vperm.slane %v2022, %v2029
      %v2031 = vrot.slane %v1230, 4
      %v2032 = vsel %vm780, %v2031, %v1178
      %v2033 = vrot.slane %v1178, 4
      %v2034 = vsel %vm780, %v1230, %v2033
      %v2036 = vunpack.c.l.s4 1983009808
      %v2037 = vunpack.c.0.s8 %v2036
      %v2038 = vperm.slane %v2032, %v2037
      %v2040 = vunpack.c.l.s4 1983009808
      %v2041 = vunpack.c.0.s8 %v2040
      %v2042 = vperm.slane %v2034, %v2041
      %v2043 = vrot.slane %v1256, 4
      %v2044 = vsel %vm780, %v2043, %v1204
      %v2045 = vrot.slane %v1204, 4
      %v2046 = vsel %vm780, %v1256, %v2045
      %v2048 = vunpack.c.l.s4 1983009808
      %v2049 = vunpack.c.0.s8 %v2048
      %v2050 = vperm.slane %v2044, %v2049
      %v2052 = vunpack.c.l.s4 1983009808
      %v2053 = vunpack.c.0.s8 %v2052
      %v2054 = vperm.slane %v2046, %v2053
      %v2055 = vrot.slane %v2026, 4
      %v2056 = vsel %vm780, %v2055, %v2014
      %v2057 = vrot.slane %v2014, 4
      %v2058 = vsel %vm780, %v2026, %v2057
      %v2060 = vunpack.c.l.s4 1934713408
      %v2061 = vunpack.c.0.s8 %v2060
      %v2062 = vperm.slane %v2056, %v2061
      %v2064 = vunpack.c.l.s4 1934713408
      %v2065 = vunpack.c.0.s8 %v2064
      %v2066 = vperm.slane %v2058, %v2065
      %v2067 = vrot.slane %v2030, 4
      %v2068 = vsel %vm780, %v2067, %v2018
      %v2069 = vrot.slane %v2018, 4
      %v2070 = vsel %vm780, %v2030, %v2069
      %v2072 = vunpack.c.l.s4 1934713408
      %v2073 = vunpack.c.0.s8 %v2072
      %v2074 = vperm.slane %v2068, %v2073
      %v2076 = vunpack.c.l.s4 1934713408
      %v2077 = vunpack.c.0.s8 %v2076
      %v2078 = vperm.slane %v2070, %v2077
      %v2079 = vrot.slane %v2050, 4
      %v2080 = vsel %vm780, %v2079, %v2038
      %v2081 = vrot.slane %v2038, 4
      %v2082 = vsel %vm780, %v2050, %v2081
      %v2084 = vunpack.c.l.s4 1934713408
      %v2085 = vunpack.c.0.s8 %v2084
      %v2086 = vperm.slane %v2080, %v2085
      %v2088 = vunpack.c.l.s4 1934713408
      %v2089 = vunpack.c.0.s8 %v2088
      %v2090 = vperm.slane %v2082, %v2089
      %v2091 = vrot.slane %v2054, 4
      %v2092 = vsel %vm780, %v2091, %v2042
      %v2093 = vrot.slane %v2042, 4
      %v2094 = vsel %vm780, %v2054, %v2093
      %v2096 = vunpack.c.l.s4 1934713408
      %v2097 = vunpack.c.0.s8 %v2096
      %v2098 = vperm.slane %v2092, %v2097
      %v2100 = vunpack.c.l.s4 1934713408
      %v2101 = vunpack.c.0.s8 %v2100
      %v2102 = vperm.slane %v2094, %v2101
      %v2103 = vrot.slane %v2086, 4
      %v2104 = vsel %vm780, %v2103, %v2062
      %v2105 = vrot.slane %v2062, 4
      %v2106 = vsel %vm780, %v2086, %v2105
      %v2107 = vrot.slane %v2090, 4
      %v2108 = vsel %vm780, %v2107, %v2066
      %v2109 = vrot.slane %v2066, 4
      %v2110 = vsel %vm780, %v2090, %v2109
      %v2111 = vrot.slane %v2098, 4
      %v2112 = vsel %vm780, %v2111, %v2074
      %v2113 = vrot.slane %v2074, 4
      %v2114 = vsel %vm780, %v2098, %v2113
      %v2115 = vrot.slane %v2102, 4
      %v2116 = vsel %vm780, %v2115, %v2078
      %v2117 = vrot.slane %v2078, 4
      %v2118 = vsel %vm780, %v2102, %v2117
      %v2119 = vrot.slane %v1334, 4
      %v2120 = vsel %vm780, %v2119, %v1282
      %v2121 = vrot.slane %v1282, 4
      %v2122 = vsel %vm780, %v1334, %v2121
      %v2124 = vunpack.c.l.s4 1983009808
      %v2125 = vunpack.c.0.s8 %v2124
      %v2126 = vperm.slane %v2120, %v2125
      %v2128 = vunpack.c.l.s4 1983009808
      %v2129 = vunpack.c.0.s8 %v2128
      %v2130 = vperm.slane %v2122, %v2129
      %v2131 = vrot.slane %v1360, 4
      %v2132 = vsel %vm780, %v2131, %v1308
      %v2133 = vrot.slane %v1308, 4
      %v2134 = vsel %vm780, %v1360, %v2133
      %v2136 = vunpack.c.l.s4 1983009808
      %v2137 = vunpack.c.0.s8 %v2136
      %v2138 = vperm.slane %v2132, %v2137
      %v2140 = vunpack.c.l.s4 1983009808
      %v2141 = vunpack.c.0.s8 %v2140
      %v2142 = vperm.slane %v2134, %v2141
      %v2143 = vrot.slane %v1438, 4
      %v2144 = vsel %vm780, %v2143, %v1386
      %v2145 = vrot.slane %v1386, 4
      %v2146 = vsel %vm780, %v1438, %v2145
      %v2148 = vunpack.c.l.s4 1983009808
      %v2149 = vunpack.c.0.s8 %v2148
      %v2150 = vperm.slane %v2144, %v2149
      %v2152 = vunpack.c.l.s4 1983009808
      %v2153 = vunpack.c.0.s8 %v2152
      %v2154 = vperm.slane %v2146, %v2153
      %v2155 = vrot.slane %v1464, 4
      %v2156 = vsel %vm780, %v2155, %v1412
      %v2157 = vrot.slane %v1412, 4
      %v2158 = vsel %vm780, %v1464, %v2157
      %v2160 = vunpack.c.l.s4 1983009808
      %v2161 = vunpack.c.0.s8 %v2160
      %v2162 = vperm.slane %v2156, %v2161
      %v2164 = vunpack.c.l.s4 1983009808
      %v2165 = vunpack.c.0.s8 %v2164
      %v2166 = vperm.slane %v2158, %v2165
      %v2167 = vrot.slane %v2138, 4
      %v2168 = vsel %vm780, %v2167, %v2126
      %v2169 = vrot.slane %v2126, 4
      %v2170 = vsel %vm780, %v2138, %v2169
      %v2172 = vunpack.c.l.s4 1934713408
      %v2173 = vunpack.c.0.s8 %v2172
      %v2174 = vperm.slane %v2168, %v2173
      %v2176 = vunpack.c.l.s4 1934713408
      %v2177 = vunpack.c.0.s8 %v2176
      %v2178 = vperm.slane %v2170, %v2177
      %v2179 = vrot.slane %v2142, 4
      %v2180 = vsel %vm780, %v2179, %v2130
      %v2181 = vrot.slane %v2130, 4
      %v2182 = vsel %vm780, %v2142, %v2181
      %v2184 = vunpack.c.l.s4 1934713408
      %v2185 = vunpack.c.0.s8 %v2184
      %v2186 = vperm.slane %v2180, %v2185
      %v2188 = vunpack.c.l.s4 1934713408
      %v2189 = vunpack.c.0.s8 %v2188
      %v2190 = vperm.slane %v2182, %v2189
      %v2191 = vrot.slane %v2162, 4
      %v2192 = vsel %vm780, %v2191, %v2150
      %v2193 = vrot.slane %v2150, 4
      %v2194 = vsel %vm780, %v2162, %v2193
      %v2196 = vunpack.c.l.s4 1934713408
      %v2197 = vunpack.c.0.s8 %v2196
      %v2198 = vperm.slane %v2192, %v2197
      %v2200 = vunpack.c.l.s4 1934713408
      %v2201 = vunpack.c.0.s8 %v2200
      %v2202 = vperm.slane %v2194, %v2201
      %v2203 = vrot.slane %v2166, 4
      %v2204 = vsel %vm780, %v2203, %v2154
      %v2205 = vrot.slane %v2154, 4
      %v2206 = vsel %vm780, %v2166, %v2205
      %v2208 = vunpack.c.l.s4 1934713408
      %v2209 = vunpack.c.0.s8 %v2208
      %v2210 = vperm.slane %v2204, %v2209
      %v2212 = vunpack.c.l.s4 1934713408
      %v2213 = vunpack.c.0.s8 %v2212
      %v2214 = vperm.slane %v2206, %v2213
      %v2215 = vrot.slane %v2198, 4
      %v2216 = vsel %vm780, %v2215, %v2174
      %v2217 = vrot.slane %v2174, 4
      %v2218 = vsel %vm780, %v2198, %v2217
      %v2219 = vrot.slane %v2202, 4
      %v2220 = vsel %vm780, %v2219, %v2178
      %v2221 = vrot.slane %v2178, 4
      %v2222 = vsel %vm780, %v2202, %v2221
      %v2223 = vrot.slane %v2210, 4
      %v2224 = vsel %vm780, %v2223, %v2186
      %v2225 = vrot.slane %v2186, 4
      %v2226 = vsel %vm780, %v2210, %v2225
      %v2227 = vrot.slane %v2214, 4
      %v2228 = vsel %vm780, %v2227, %v2190
      %v2229 = vrot.slane %v2190, 4
      %v2230 = vsel %vm780, %v2214, %v2229
      %v2231 = vrot.slane %v1490, 4
      %v2232 = vsel %vm780, 0.0, %v2231
      %v2234 = vunpack.c.l.s4 1983009808
      %v2235 = vunpack.c.0.s8 %v2234
      %v2236 = vperm.slane %v1490, %v2235
      %v2238 = vunpack.c.l.s4 1983009808
      %v2239 = vunpack.c.0.s8 %v2238
      %v2240 = vperm.slane %v2232, %v2239
      %v2241 = vrot.slane %v1516, 4
      %v2242 = vsel %vm780, 0.0, %v2241
      %v2244 = vunpack.c.l.s4 1983009808
      %v2245 = vunpack.c.0.s8 %v2244
      %v2246 = vperm.slane %v1516, %v2245
      %v2248 = vunpack.c.l.s4 1983009808
      %v2249 = vunpack.c.0.s8 %v2248
      %v2250 = vperm.slane %v2242, %v2249
      %v2251 = vrot.slane %v2246, 4
      %v2252 = vsel %vm780, %v2251, %v2236
      %v2253 = vrot.slane %v2236, 4
      %v2254 = vsel %vm780, %v2246, %v2253
      %v2256 = vunpack.c.l.s4 1934713408
      %v2257 = vunpack.c.0.s8 %v2256
      %v2258 = vperm.slane %v2252, %v2257
      %v2260 = vunpack.c.l.s4 1934713408
      %v2261 = vunpack.c.0.s8 %v2260
      %v2262 = vperm.slane %v2254, %v2261
      %v2263 = vrot.slane %v2250, 4
      %v2264 = vsel %vm780, %v2263, %v2240
      %v2265 = vrot.slane %v2240, 4
      %v2266 = vsel %vm780, %v2250, %v2265
      %v2268 = vunpack.c.l.s4 1934713408
      %v2269 = vunpack.c.0.s8 %v2268
      %v2270 = vperm.slane %v2264, %v2269
      %v2272 = vunpack.c.l.s4 1934713408
      %v2273 = vunpack.c.0.s8 %v2272
      %v2274 = vperm.slane %v2266, %v2273
      %v2275 = vrot.slane %v2258, 4
      %v2276 = vsel %vm780, 0.0, %v2275
      %v2277 = vrot.slane %v2262, 4
      %v2278 = vsel %vm780, 0.0, %v2277
      %v2279 = vrot.slane %v2270, 4
      %v2280 = vsel %vm780, 0.0, %v2279
      %v2281 = vrot.slane %v2274, 4
      %v2282 = vsel %vm780, 0.0, %v2281
      %v2283 = vrot.slane %v1129, 4
      %v2284 = vsel %vm780, %v2283, %v1077
      %v2286 = vunpack.c.l.s4 1983009808
      %v2287 = vunpack.c.0.s8 %v2286
      %v2288 = vperm.slane %v2284, %v2287
      %v2289 = vrot.slane %v1155, 4
      %v2290 = vsel %vm780, %v2289, %v1103
      %v2292 = vunpack.c.l.s4 1983009808
      %v2293 = vunpack.c.0.s8 %v2292
      %v2294 = vperm.slane %v2290, %v2293
      %v2295 = vrot.slane %v1233, 4
      %v2296 = vsel %vm780, %v2295, %v1181
      %v2298 = vunpack.c.l.s4 1983009808
      %v2299 = vunpack.c.0.s8 %v2298
      %v2300 = vperm.slane %v2296, %v2299
      %v2301 = vrot.slane %v1259, 4
      %v2302 = vsel %vm780, %v2301, %v1207
      %v2304 = vunpack.c.l.s4 1983009808
      %v2305 = vunpack.c.0.s8 %v2304
      %v2306 = vperm.slane %v2302, %v2305
      %v2307 = vrot.slane %v2294, 4
      %v2308 = vsel %vm780, %v2307, %v2288
      %v2310 = vunpack.c.l.s4 1934713408
      %v2311 = vunpack.c.0.s8 %v2310
      %v2312 = vperm.slane %v2308, %v2311
      %v2313 = vrot.slane %v2306, 4
      %v2314 = vsel %vm780, %v2313, %v2300
      %v2316 = vunpack.c.l.s4 1934713408
      %v2317 = vunpack.c.0.s8 %v2316
      %v2318 = vperm.slane %v2314, %v2317
      %v2319 = vrot.slane %v2318, 4
      %v2320 = vsel %vm780, %v2319, %v2312
      %v2321 = vrot.slane %v2312, 4
      %v2322 = vsel %vm780, %v2318, %v2321
      %v2323 = vrot.slane %v1337, 4
      %v2324 = vsel %vm780, %v2323, %v1285
      %v2326 = vunpack.c.l.s4 1983009808
      %v2327 = vunpack.c.0.s8 %v2326
      %v2328 = vperm.slane %v2324, %v2327
      %v2329 = vrot.slane %v1363, 4
      %v2330 = vsel %vm780, %v2329, %v1311
      %v2332 = vunpack.c.l.s4 1983009808
      %v2333 = vunpack.c.0.s8 %v2332
      %v2334 = vperm.slane %v2330, %v2333
      %v2335 = vrot.slane %v1441, 4
      %v2336 = vsel %vm780, %v2335, %v1389
      %v2338 = vunpack.c.l.s4 1983009808
      %v2339 = vunpack.c.0.s8 %v2338
      %v2340 = vperm.slane %v2336, %v2339
      %v2341 = vrot.slane %v1467, 4
      %v2342 = vsel %vm780, %v2341, %v1415
      %v2344 = vunpack.c.l.s4 1983009808
      %v2345 = vunpack.c.0.s8 %v2344
      %v2346 = vperm.slane %v2342, %v2345
      %v2347 = vrot.slane %v2334, 4
      %v2348 = vsel %vm780, %v2347, %v2328
      %v2350 = vunpack.c.l.s4 1934713408
      %v2351 = vunpack.c.0.s8 %v2350
      %v2352 = vperm.slane %v2348, %v2351
      %v2353 = vrot.slane %v2346, 4
      %v2354 = vsel %vm780, %v2353, %v2340
      %v2356 = vunpack.c.l.s4 1934713408
      %v2357 = vunpack.c.0.s8 %v2356
      %v2358 = vperm.slane %v2354, %v2357
      %v2359 = vrot.slane %v2358, 4
      %v2360 = vsel %vm780, %v2359, %v2352
      %v2361 = vrot.slane %v2352, 4
      %v2362 = vsel %vm780, %v2358, %v2361
      %v2363 = vrot.slane %v1519, 4
      %v2364 = vsel %vm780, %v2363, %v1493
      %v2366 = vunpack.c.l.s4 1934713408
      %v2367 = vunpack.c.0.s8 %v2366
      %v2368 = vperm.slane %v2364, %v2367
      %v2369 = vrot.slane %v2368, 4
      %v2370 = vsel %vm780, 0.0, %v2369
      %2371 = vst [vmem:[#allocation2 + $0x8] sm:$0xff] %v1828
      %2372 = vst [vmem:[#allocation2 + $0x18] sm:$0xff] %v1940
      %2373 = vst [vmem:[#allocation2 + $0x28] sm:$0x3] %v1982
      %2374 = vst [vmem:[#allocation2 + $0x38] sm:$0xff] %v1830
      %2375 = vst [vmem:[#allocation2 + $0x48] sm:$0xff] %v1942
      %2376 = vst [vmem:[#allocation2 + $0x58] sm:$0x3] %v2000
      %2377 = vst [vmem:[#allocation2 + $0x68] sm:$0xff] %v1832
      %2378 = vst [vmem:[#allocation2 + $0x78] sm:$0xff] %v1944
      %2379 = vst [vmem:[#allocation2 + $0x88] sm:$0x3] %v1986
      %2380 = vst [vmem:[#allocation2 + $0x98] sm:$0xff] %v1834
      %2381 = vst [vmem:[#allocation2 + $0xa8] sm:$0xff] %v1946
      %2382 = vst [vmem:[#allocation2 + $0xb8] sm:$0x3] %v2002
      %2383 = vst [vmem:[#allocation2 + $0xc8] sm:$0xff] %v1836
      %2384 = vst [vmem:[#allocation2 + $0xd8] sm:$0xff] %v1948
      %2385 = vst [vmem:[#allocation2 + $0xe8] sm:$0x3] %v1994
      %2386 = vst [vmem:[#allocation2 + $0xf8] sm:$0xff] %v1838
      %2387 = vst [vmem:[#allocation2 + $0x108] sm:$0xff] %v1950
      %2388 = vst [vmem:[#allocation2 + $0x118] sm:$0x3] %v2004
      %2389 = vst [vmem:[#allocation2 + $0x128] sm:$0xff] %v1840
      %2390 = vst [vmem:[#allocation2 + $0x138] sm:$0xff] %v1952
      %2391 = vst [vmem:[#allocation2 + $0x148] sm:$0x3] %v1998
      %2392 = vst [vmem:[#allocation2 + $0x158] sm:$0xff] %v1842
      %2393 = vst [vmem:[#allocation2 + $0x168] sm:$0xff] %v1954
      %2394 = vst [vmem:[#allocation2 + $0x178] sm:$0x3] %v2006
      %2395 = vst [vmem:[#allocation2 + $0x188] sm:$0xff] %v2104
      %2396 = vst [vmem:[#allocation2 + $0x198] sm:$0xff] %v2216
      %2397 = vst [vmem:[#allocation2 + $0x1a8] sm:$0x3] %v2258
      %2398 = vst [vmem:[#allocation2 + $0x1b8] sm:$0xff] %v2106
      %2399 = vst [vmem:[#allocation2 + $0x1c8] sm:$0xff] %v2218
      %2400 = vst [vmem:[#allocation2 + $0x1d8] sm:$0x3] %v2276
      %2401 = vst [vmem:[#allocation2 + $0x1e8] sm:$0xff] %v2108
      %2402 = vst [vmem:[#allocation2 + $0x1f8] sm:$0xff] %v2220
      %2403 = vst [vmem:[#allocation2 + $0x208] sm:$0x3] %v2262
      %2404 = vst [vmem:[#allocation2 + $0x218] sm:$0xff] %v2110
      %2405 = vst [vmem:[#allocation2 + $0x228] sm:$0xff] %v2222
      %2406 = vst [vmem:[#allocation2 + $0x238] sm:$0x3] %v2278
      %2407 = vst [vmem:[#allocation2 + $0x248] sm:$0xff] %v2112
      %2408 = vst [vmem:[#allocation2 + $0x258] sm:$0xff] %v2224
      %2409 = vst [vmem:[#allocation2 + $0x268] sm:$0x3] %v2270
      %2410 = vst [vmem:[#allocation2 + $0x278] sm:$0xff] %v2114
      %2411 = vst [vmem:[#allocation2 + $0x288] sm:$0xff] %v2226
      %2412 = vst [vmem:[#allocation2 + $0x298] sm:$0x3] %v2280
      %2413 = vst [vmem:[#allocation2 + $0x2a8] sm:$0xff] %v2116
      %2414 = vst [vmem:[#allocation2 + $0x2b8] sm:$0xff] %v2228
      %2415 = vst [vmem:[#allocation2 + $0x2c8] sm:$0x3] %v2274
      %2416 = vst [vmem:[#allocation2 + $0x2d8] sm:$0xff] %v2118
      %2417 = vst [vmem:[#allocation2 + $0x2e8] sm:$0xff] %v2230
      %2418 = vst [vmem:[#allocation2 + $0x2f8] sm:$0x3] %v2282
      %2419 = vst [vmem:[#allocation2 + $0x308] sm:$0xff] %v2320
      %2420 = vst [vmem:[#allocation2 + $0x318] sm:$0xff] %v2360
      %2421 = vst [vmem:[#allocation2 + $0x328] sm:$0x3] %v2368
      %2422 = vst [vmem:[#allocation2 + $0x338] sm:$0xff] %v2322
      %2423 = vst [vmem:[#allocation2 + $0x348] sm:$0xff] %v2362
      %2424 = vst [vmem:[#allocation2 + $0x358] sm:$0x3] %v2370
      %v2425 = vld [vmem:[%s5] sm:$0x1]
      %v2426 = vld [vmem:[%s6] sm:$0x1]
      %v2427 = vld [vmem:[#allocation2] sm:$0xff]
      %v2428 = vld [vmem:[#allocation2 + $0x8] sm:$0xff]
      %v2429 = vld [vmem:[#allocation2 + $0x10] sm:$0xff]
      %v2430 = vld [vmem:[#allocation2 + $0x18] sm:$0xff]
      %v2431 = vld [vmem:[#allocation2 + $0x30] sm:$0xff]
      %v2432 = vld [vmem:[#allocation2 + $0x38] sm:$0xff]
      %v2433 = vld [vmem:[#allocation2 + $0x40] sm:$0xff]
      %v2434 = vld [vmem:[#allocation2 + $0x48] sm:$0xff]
      %v2435 = vld [vmem:[#allocation2 + $0x60] sm:$0xff]
      %v2436 = vld [vmem:[#allocation2 + $0x68] sm:$0xff]
      %v2437 = vld [vmem:[#allocation2 + $0x70] sm:$0xff]
      %v2438 = vld [vmem:[#allocation2 + $0x78] sm:$0xff]
      %v2439 = vld [vmem:[#allocation2 + $0x90] sm:$0xff]
      %v2440 = vld [vmem:[#allocation2 + $0x98] sm:$0xff]
      %v2441 = vld [vmem:[#allocation2 + $0xa0] sm:$0xff]
      %v2442 = vld [vmem:[#allocation2 + $0xa8] sm:$0xff]
      %v2443 = vld [vmem:[#allocation2 + $0xc0] sm:$0xff]
      %v2444 = vld [vmem:[#allocation2 + $0xc8] sm:$0xff]
      %v2445 = vld [vmem:[#allocation2 + $0xd0] sm:$0xff]
      %v2446 = vld [vmem:[#allocation2 + $0xd8] sm:$0xff]
      %v2447 = vld [vmem:[#allocation2 + $0xf0] sm:$0xff]
      %v2448 = vld [vmem:[#allocation2 + $0xf8] sm:$0xff]
      %v2449 = vld [vmem:[#allocation2 + $0x100] sm:$0xff]
      %v2450 = vld [vmem:[#allocation2 + $0x108] sm:$0xff]
      %v2451 = vld [vmem:[#allocation2 + $0x120] sm:$0xff]
      %v2452 = vld [vmem:[#allocation2 + $0x128] sm:$0xff]
      %v2453 = vld [vmem:[#allocation2 + $0x130] sm:$0xff]
      %v2454 = vld [vmem:[#allocation2 + $0x138] sm:$0xff]
      %v2455 = vld [vmem:[#allocation2 + $0x150] sm:$0xff]
      %v2456 = vld [vmem:[#allocation2 + $0x158] sm:$0xff]
      %v2457 = vld [vmem:[#allocation2 + $0x160] sm:$0xff]
      %v2458 = vld [vmem:[#allocation2 + $0x168] sm:$0xff]
      %v2459 = vld [vmem:[#allocation2 + $0x180] sm:$0xff]
      %v2460 = vld [vmem:[#allocation2 + $0x188] sm:$0xff]
      %v2461 = vld [vmem:[#allocation2 + $0x190] sm:$0xff]
      %v2462 = vld [vmem:[#allocation2 + $0x198] sm:$0xff]
      %v2463 = vld [vmem:[#allocation2 + $0x1b0] sm:$0xff]
      %v2464 = vld [vmem:[#allocation2 + $0x1b8] sm:$0xff]
      %v2465 = vld [vmem:[#allocation2 + $0x1c0] sm:$0xff]
      %v2466 = vld [vmem:[#allocation2 + $0x1c8] sm:$0xff]
      %v2467 = vld [vmem:[#allocation2 + $0x1e0] sm:$0xff]
      %v2468 = vld [vmem:[#allocation2 + $0x1e8] sm:$0xff]
      %v2469 = vld [vmem:[#allocation2 + $0x1f0] sm:$0xff]
      %v2470 = vld [vmem:[#allocation2 + $0x1f8] sm:$0xff]
      %v2471 = vld [vmem:[#allocation2 + $0x210] sm:$0xff]
      %v2472 = vld [vmem:[#allocation2 + $0x218] sm:$0xff]
      %v2473 = vld [vmem:[#allocation2 + $0x220] sm:$0xff]
      %v2474 = vld [vmem:[#allocation2 + $0x228] sm:$0xff]
      %v2475 = vld [vmem:[#allocation2 + $0x240] sm:$0xff]
      %v2476 = vld [vmem:[#allocation2 + $0x248] sm:$0xff]
      %v2477 = vld [vmem:[#allocation2 + $0x250] sm:$0xff]
      %v2478 = vld [vmem:[#allocation2 + $0x258] sm:$0xff]
      %v2479 = vld [vmem:[#allocation2 + $0x270] sm:$0xff]
      %v2480 = vld [vmem:[#allocation2 + $0x278] sm:$0xff]
      %v2481 = vld [vmem:[#allocation2 + $0x280] sm:$0xff]
      %v2482 = vld [vmem:[#allocation2 + $0x288] sm:$0xff]
      %v2483 = vld [vmem:[#allocation2 + $0x2a0] sm:$0xff]
      %v2484 = vld [vmem:[#allocation2 + $0x2a8] sm:$0xff]
      %v2485 = vld [vmem:[#allocation2 + $0x2b0] sm:$0xff]
      %v2486 = vld [vmem:[#allocation2 + $0x2b8] sm:$0xff]
      %v2487 = vld [vmem:[#allocation2 + $0x2d0] sm:$0xff]
      %v2488 = vld [vmem:[#allocation2 + $0x2d8] sm:$0xff]
      %v2489 = vld [vmem:[#allocation2 + $0x2e0] sm:$0xff]
      %v2490 = vld [vmem:[#allocation2 + $0x2e8] sm:$0xff]
      %v2491 = vld [vmem:[%s4] sm:$0xff]
      %v2492 = vld [vmem:[%s4 + $0x8] sm:$0xff]
      %v2493 = vld [vmem:[%s4 + $0x10] sm:$0xff]
      %v2494 = vld [vmem:[%s4 + $0x18] sm:$0xff]
      %v2495 = vld [vmem:[%s4 + $0x20] sm:$0xff]
      %v2496 = vld [vmem:[%s4 + $0x28] sm:$0xff]
      %v2497 = vld [vmem:[%s4 + $0x30] sm:$0xff]
      %v2498 = vld [vmem:[%s4 + $0x38] sm:$0xff]
      %v2499 = vld [vmem:[%s4 + $0x40] sm:$0xff]
      %v2500 = vld [vmem:[%s4 + $0x48] sm:$0xff]
      %v2501 = vld [vmem:[%s4 + $0x50] sm:$0xff]
      %v2502 = vld [vmem:[%s4 + $0x58] sm:$0xff]
      %v2503 = vld [vmem:[%s4 + $0x60] sm:$0xff]
      %v2504 = vld [vmem:[%s4 + $0x68] sm:$0xff]
      %v2505 = vld [vmem:[%s4 + $0x70] sm:$0xff]
      %v2506 = vld [vmem:[%s4 + $0x78] sm:$0xff]
      %v2507 = vld [vmem:[%s4 + $0x80] sm:$0xff]
      %v2508 = vld [vmem:[%s4 + $0x88] sm:$0xff]
      %v2509 = vld [vmem:[%s4 + $0x90] sm:$0xff]
      %v2510 = vld [vmem:[%s4 + $0x98] sm:$0xff]
      %v2511 = vld [vmem:[%s4 + $0xa0] sm:$0xff]
      %v2512 = vld [vmem:[%s4 + $0xa8] sm:$0xff]
      %v2513 = vld [vmem:[%s4 + $0xb0] sm:$0xff]
      %v2514 = vld [vmem:[%s4 + $0xb8] sm:$0xff]
      %v2515 = vld [vmem:[%s4 + $0xc0] sm:$0xff]
      %v2516 = vld [vmem:[%s4 + $0xc8] sm:$0xff]
      %v2517 = vld [vmem:[%s4 + $0xd0] sm:$0xff]
      %v2518 = vld [vmem:[%s4 + $0xd8] sm:$0xff]
      %v2519 = vld [vmem:[%s4 + $0xe0] sm:$0xff]
      %v2520 = vld [vmem:[%s4 + $0xe8] sm:$0xff]
      %v2521 = vld [vmem:[%s4 + $0xf0] sm:$0xff]
      %v2522 = vld [vmem:[%s4 + $0xf8] sm:$0xff]
      %v2523 = vld [vmem:[#allocation2] sm:$0xfe]
      %v2524 = vld [vmem:[#allocation2 + $0x8] sm:$0xfe]
      %v2525 = vld [vmem:[#allocation2 + $0x20] sm:$0x1]
      %v2526 = vld [vmem:[#allocation2 + $0x28] sm:$0x1]
      %v2527 = vld [vmem:[#allocation2 + $0x30] sm:$0xfe]
      %v2528 = vld [vmem:[#allocation2 + $0x38] sm:$0xfe]
      %v2529 = vld [vmem:[#allocation2 + $0x50] sm:$0x1]
      %v2530 = vld [vmem:[#allocation2 + $0x58] sm:$0x1]
      %v2531 = vld [vmem:[#allocation2 + $0x60] sm:$0xfe]
      %v2532 = vld [vmem:[#allocation2 + $0x68] sm:$0xfe]
      %v2533 = vld [vmem:[#allocation2 + $0x80] sm:$0x1]
      %v2534 = vld [vmem:[#allocation2 + $0x88] sm:$0x1]
      %v2535 = vld [vmem:[#allocation2 + $0x90] sm:$0xfe]
      %v2536 = vld [vmem:[#allocation2 + $0x98] sm:$0xfe]
      %v2537 = vld [vmem:[#allocation2 + $0xb0] sm:$0x1]
      %v2538 = vld [vmem:[#allocation2 + $0xb8] sm:$0x1]
      %v2539 = vld [vmem:[#allocation2 + $0xc0] sm:$0xfe]
      %v2540 = vld [vmem:[#allocation2 + $0xc8] sm:$0xfe]
      %v2541 = vld [vmem:[#allocation2 + $0xe0] sm:$0x1]
      %v2542 = vld [vmem:[#allocation2 + $0xe8] sm:$0x1]
      %v2543 = vld [vmem:[#allocation2 + $0xf0] sm:$0xfe]
      %v2544 = vld [vmem:[#allocation2 + $0xf8] sm:$0xfe]
      %v2545 = vld [vmem:[#allocation2 + $0x110] sm:$0x1]
      %v2546 = vld [vmem:[#allocation2 + $0x118] sm:$0x1]
      %v2547 = vld [vmem:[#allocation2 + $0x120] sm:$0xfe]
      %v2548 = vld [vmem:[#allocation2 + $0x128] sm:$0xfe]
      %v2549 = vld [vmem:[#allocation2 + $0x140] sm:$0x1]
      %v2550 = vld [vmem:[#allocation2 + $0x148] sm:$0x1]
      %v2551 = vld [vmem:[#allocation2 + $0x150] sm:$0xfe]
      %v2552 = vld [vmem:[#allocation2 + $0x158] sm:$0xfe]
      %v2553 = vld [vmem:[#allocation2 + $0x170] sm:$0x1]
      %v2554 = vld [vmem:[#allocation2 + $0x178] sm:$0x1]
      %v2555 = vld [vmem:[#allocation2 + $0x180] sm:$0xfe]
      %v2556 = vld [vmem:[#allocation2 + $0x188] sm:$0xfe]
      %v2557 = vld [vmem:[#allocation2 + $0x1a0] sm:$0x1]
      %v2558 = vld [vmem:[#allocation2 + $0x1a8] sm:$0x1]
      %v2559 = vld [vmem:[#allocation2 + $0x1b0] sm:$0xfe]
      %v2560 = vld [vmem:[#allocation2 + $0x1b8] sm:$0xfe]
      %v2561 = vld [vmem:[#allocation2 + $0x1d0] sm:$0x1]
      %v2562 = vld [vmem:[#allocation2 + $0x1d8] sm:$0x1]
      %v2563 = vld [vmem:[#allocation2 + $0x1e0] sm:$0xfe]
      %v2564 = vld [vmem:[#allocation2 + $0x1e8] sm:$0xfe]
      %v2565 = vld [vmem:[#allocation2 + $0x200] sm:$0x1]
      %v2566 = vld [vmem:[#allocation2 + $0x208] sm:$0x1]
      %v2567 = vld [vmem:[#allocation2 + $0x210] sm:$0xfe]
      %v2568 = vld [vmem:[#allocation2 + $0x218] sm:$0xfe]
      %v2569 = vld [vmem:[#allocation2 + $0x230] sm:$0x1]
      %v2570 = vld [vmem:[#allocation2 + $0x238] sm:$0x1]
      %v2571 = vld [vmem:[#allocation2 + $0x240] sm:$0xfe]
      %v2572 = vld [vmem:[#allocation2 + $0x248] sm:$0xfe]
      %v2573 = vld [vmem:[#allocation2 + $0x260] sm:$0x1]
      %v2574 = vld [vmem:[#allocation2 + $0x268] sm:$0x1]
      %v2575 = vld [vmem:[#allocation2 + $0x270] sm:$0xfe]
      %v2576 = vld [vmem:[#allocation2 + $0x278] sm:$0xfe]
      %v2577 = vld [vmem:[#allocation2 + $0x290] sm:$0x1]
      %v2578 = vld [vmem:[#allocation2 + $0x298] sm:$0x1]
      %v2579 = vld [vmem:[#allocation2 + $0x2a0] sm:$0xfe]
      %v2580 = vld [vmem:[#allocation2 + $0x2a8] sm:$0xfe]
      %v2581 = vld [vmem:[#allocation2 + $0x2c0] sm:$0x1]
      %v2582 = vld [vmem:[#allocation2 + $0x2c8] sm:$0x1]
      %v2583 = vld [vmem:[#allocation2 + $0x2d0] sm:$0xfe]
      %v2584 = vld [vmem:[#allocation2 + $0x2d8] sm:$0xfe]
      %v2585 = vld [vmem:[#allocation2 + $0x2f0] sm:$0x1]
      %v2586 = vld [vmem:[#allocation2 + $0x2f8] sm:$0x1]
      %vm2683 = vcmask 1046528
      %v2684 = vrot.slane %v2523, 1
      %v2685 = vrot.slane %v2429, 1
      %v2686 = vsel %vm2683, %v2684, %v2685
      %v2687 = vrot.slane %v2524, 1
      %v2688 = vrot.slane %v2430, 1
      %v2689 = vsel %vm2683, %v2687, %v2688
      %v2690 = vrot.slane %v2525, 1
      %v2691 = vsel %vm2683, %v2685, %v2690
      %v2692 = vrot.slane %v2526, 1
      %v2693 = vsel %vm2683, %v2688, %v2692
      %v2694 = vrot.slane %v2527, 1
      %v2695 = vrot.slane %v2433, 1
      %v2696 = vsel %vm2683, %v2694, %v2695
      %v2697 = vrot.slane %v2528, 1
      %v2698 = vrot.slane %v2434, 1
      %v2699 = vsel %vm2683, %v2697, %v2698
      %v2700 = vrot.slane %v2529, 1
      %v2701 = vsel %vm2683, %v2695, %v2700
      %v2702 = vrot.slane %v2530, 1
      %v2703 = vsel %vm2683, %v2698, %v2702
      %v2704 = vrot.slane %v2531, 1
      %v2705 = vrot.slane %v2437, 1
      %v2706 = vsel %vm2683, %v2704, %v2705
      %v2707 = vrot.slane %v2532, 1
      %v2708 = vrot.slane %v2438, 1
      %v2709 = vsel %vm2683, %v2707, %v2708
      %v2710 = vrot.slane %v2533, 1
      %v2711 = vsel %vm2683, %v2705, %v2710
      %v2712 = vrot.slane %v2534, 1
      %v2713 = vsel %vm2683, %v2708, %v2712
      %v2714 = vrot.slane %v2535, 1
      %v2715 = vrot.slane %v2441, 1
      %v2716 = vsel %vm2683, %v2714, %v2715
      %v2717 = vrot.slane %v2536, 1
      %v2718 = vrot.slane %v2442, 1
      %v2719 = vsel %vm2683, %v2717, %v2718
      %v2720 = vrot.slane %v2537, 1
      %v2721 = vsel %vm2683, %v2715, %v2720
      %v2722 = vrot.slane %v2538, 1
      %v2723 = vsel %vm2683, %v2718, %v2722
      %v2724 = vrot.slane %v2539, 1
      %v2725 = vrot.slane %v2445, 1
      %v2726 = vsel %vm2683, %v2724, %v2725
      %v2727 = vrot.slane %v2540, 1
      %v2728 = vrot.slane %v2446, 1
      %v2729 = vsel %vm2683, %v2727, %v2728
      %v2730 = vrot.slane %v2541, 1
      %v2731 = vsel %vm2683, %v2725, %v2730
      %v2732 = vrot.slane %v2542, 1
      %v2733 = vsel %vm2683, %v2728, %v2732
      %v2734 = vrot.slane %v2543, 1
      %v2735 = vrot.slane %v2449, 1
      %v2736 = vsel %vm2683, %v2734, %v2735
      %v2737 = vrot.slane %v2544, 1
      %v2738 = vrot.slane %v2450, 1
      %v2739 = vsel %vm2683, %v2737, %v2738
      %v2740 = vrot.slane %v2545, 1
      %v2741 = vsel %vm2683, %v2735, %v2740
      %v2742 = vrot.slane %v2546, 1
      %v2743 = vsel %vm2683, %v2738, %v2742
      %v2744 = vrot.slane %v2547, 1
      %v2745 = vrot.slane %v2453, 1
      %v2746 = vsel %vm2683, %v2744, %v2745
      %v2747 = vrot.slane %v2548, 1
      %v2748 = vrot.slane %v2454, 1
      %v2749 = vsel %vm2683, %v2747, %v2748
      %v2750 = vrot.slane %v2549, 1
      %v2751 = vsel %vm2683, %v2745, %v2750
      %v2752 = vrot.slane %v2550, 1
      %v2753 = vsel %vm2683, %v2748, %v2752
      %v2754 = vrot.slane %v2551, 1
      %v2755 = vrot.slane %v2457, 1
      %v2756 = vsel %vm2683, %v2754, %v2755
      %v2757 = vrot.slane %v2552, 1
      %v2758 = vrot.slane %v2458, 1
      %v2759 = vsel %vm2683, %v2757, %v2758
      %v2760 = vrot.slane %v2553, 1
      %v2761 = vsel %vm2683, %v2755, %v2760
      %v2762 = vrot.slane %v2554, 1
      %v2763 = vsel %vm2683, %v2758, %v2762
      %v2764 = vrot.slane %v2555, 1
      %v2765 = vrot.slane %v2461, 1
      %v2766 = vsel %vm2683, %v2764, %v2765
      %v2767 = vrot.slane %v2556, 1
      %v2768 = vrot.slane %v2462, 1
      %v2769 = vsel %vm2683, %v2767, %v2768
      %v2770 = vrot.slane %v2557, 1
      %v2771 = vsel %vm2683, %v2765, %v2770
      %v2772 = vrot.slane %v2558, 1
      %v2773 = vsel %vm2683, %v2768, %v2772
      %v2774 = vrot.slane %v2559, 1
      %v2775 = vrot.slane %v2465, 1
      %v2776 = vsel %vm2683, %v2774, %v2775
      %v2777 = vrot.slane %v2560, 1
      %v2778 = vrot.slane %v2466, 1
      %v2779 = vsel %vm2683, %v2777, %v2778
      %v2780 = vrot.slane %v2561, 1
      %v2781 = vsel %vm2683, %v2775, %v2780
      %v2782 = vrot.slane %v2562, 1
      %v2783 = vsel %vm2683, %v2778, %v2782
      %v2784 = vrot.slane %v2563, 1
      %v2785 = vrot.slane %v2469, 1
      %v2786 = vsel %vm2683, %v2784, %v2785
      %v2787 = vrot.slane %v2564, 1
      %v2788 = vrot.slane %v2470, 1
      %v2789 = vsel %vm2683, %v2787, %v2788
      %v2790 = vrot.slane %v2565, 1
      %v2791 = vsel %vm2683, %v2785, %v2790
      %v2792 = vrot.slane %v2566, 1
      %v2793 = vsel %vm2683, %v2788, %v2792
      %v2794 = vrot.slane %v2567, 1
      %v2795 = vrot.slane %v2473, 1
      %v2796 = vsel %vm2683, %v2794, %v2795
      %v2797 = vrot.slane %v2568, 1
      %v2798 = vrot.slane %v2474, 1
      %v2799 = vsel %vm2683, %v2797, %v2798
      %v2800 = vrot.slane %v2569, 1
      %v2801 = vsel %vm2683, %v2795, %v2800
      %v2802 = vrot.slane %v2570, 1
      %v2803 = vsel %vm2683, %v2798, %v2802
      %v2804 = vrot.slane %v2571, 1
      %v2805 = vrot.slane %v2477, 1
      %v2806 = vsel %vm2683, %v2804, %v2805
      %v2807 = vrot.slane %v2572, 1
      %v2808 = vrot.slane %v2478, 1
      %v2809 = vsel %vm2683, %v2807, %v2808
      %v2810 = vrot.slane %v2573, 1
      %v2811 = vsel %vm2683, %v2805, %v2810
      %v2812 = vrot.slane %v2574, 1
      %v2813 = vsel %vm2683, %v2808, %v2812
      %v2814 = vrot.slane %v2575, 1
      %v2815 = vrot.slane %v2481, 1
      %v2816 = vsel %vm2683, %v2814, %v2815
      %v2817 = vrot.slane %v2576, 1
      %v2818 = vrot.slane %v2482, 1
      %v2819 = vsel %vm2683, %v2817, %v2818
      %v2820 = vrot.slane %v2577, 1
      %v2821 = vsel %vm2683, %v2815, %v2820
      %v2822 = vrot.slane %v2578, 1
      %v2823 = vsel %vm2683, %v2818, %v2822
      %v2824 = vrot.slane %v2579, 1
      %v2825 = vrot.slane %v2485, 1
      %v2826 = vsel %vm2683, %v2824, %v2825
      %v2827 = vrot.slane %v2580, 1
      %v2828 = vrot.slane %v2486, 1
      %v2829 = vsel %vm2683, %v2827, %v2828
      %v2830 = vrot.slane %v2581, 1
      %v2831 = vsel %vm2683, %v2825, %v2830
      %v2832 = vrot.slane %v2582, 1
      %v2833 = vsel %vm2683, %v2828, %v2832
      %v2834 = vrot.slane %v2583, 1
      %v2835 = vrot.slane %v2489, 1
      %v2836 = vsel %vm2683, %v2834, %v2835
      %v2837 = vrot.slane %v2584, 1
      %v2838 = vrot.slane %v2490, 1
      %v2839 = vsel %vm2683, %v2837, %v2838
      %v2840 = vrot.slane %v2585, 1
      %v2841 = vsel %vm2683, %v2835, %v2840
      %v2842 = vrot.slane %v2586, 1
      %v2843 = vsel %vm2683, %v2838, %v2842
      %s2908 = scalar_lea.vmem %s4, 256
      %v2909 = vld [vmem:[%s2908] sm:$0xff]
      %v2910 = vld [vmem:[%s2908 + $0x8] sm:$0xff]
      %v2911 = vld [vmem:[%s2908 + $0x10] sm:$0xff]
      %v2912 = vld [vmem:[%s2908 + $0x18] sm:$0xff]
      %v2913 = vld [vmem:[%s2908 + $0x20] sm:$0xff]
      %v2914 = vld [vmem:[%s2908 + $0x28] sm:$0xff]
      %v2915 = vld [vmem:[%s2908 + $0x30] sm:$0xff]
      %v2916 = vld [vmem:[%s2908 + $0x38] sm:$0xff]
      %v2917 = vld [vmem:[%s2908 + $0x40] sm:$0xff]
      %v2918 = vld [vmem:[%s2908 + $0x48] sm:$0xff]
      %v2919 = vld [vmem:[%s2908 + $0x50] sm:$0xff]
      %v2920 = vld [vmem:[%s2908 + $0x58] sm:$0xff]
      %v2921 = vld [vmem:[%s2908 + $0x60] sm:$0xff]
      %v2922 = vld [vmem:[%s2908 + $0x68] sm:$0xff]
      %v2923 = vld [vmem:[%s2908 + $0x70] sm:$0xff]
      %v2924 = vld [vmem:[%s2908 + $0x78] sm:$0xff]
      %v2925 = vld [vmem:[%s2908 + $0x80] sm:$0xff]
      %v2926 = vld [vmem:[%s2908 + $0x88] sm:$0xff]
      %v2927 = vld [vmem:[%s2908 + $0x90] sm:$0xff]
      %v2928 = vld [vmem:[%s2908 + $0x98] sm:$0xff]
      %v2929 = vld [vmem:[%s2908 + $0xa0] sm:$0xff]
      %v2930 = vld [vmem:[%s2908 + $0xa8] sm:$0xff]
      %v2931 = vld [vmem:[%s2908 + $0xb0] sm:$0xff]
      %v2932 = vld [vmem:[%s2908 + $0xb8] sm:$0xff]
      %v2933 = vld [vmem:[%s2908 + $0xc0] sm:$0xff]
      %v2934 = vld [vmem:[%s2908 + $0xc8] sm:$0xff]
      %v2935 = vld [vmem:[%s2908 + $0xd0] sm:$0xff]
      %v2936 = vld [vmem:[%s2908 + $0xd8] sm:$0xff]
      %v2937 = vld [vmem:[%s2908 + $0xe0] sm:$0xff]
      %v2938 = vld [vmem:[%s2908 + $0xe8] sm:$0xff]
      %v2939 = vld [vmem:[%s2908 + $0xf0] sm:$0xff]
      %v2940 = vld [vmem:[%s2908 + $0xf8] sm:$0xff]
      %2941 = vmatpush.msra.mxu0 %v2924
      %2942 = vmatpush.msra.mxu0 %v2923
      %2943 = vmatpush.msra.mxu0 %v2922
      %2944 = vmatpush.msra.mxu0 %v2921
      %2945 = vmatpush.msra.mxu0 %v2920
      %2946 = vmatpush.msra.mxu0 %v2919
      %2947 = vmatpush.msra.mxu0 %v2918
      %2948 = vmatpush.msra.mxu0 %v2917
      %2949 = vmatpush.msra.mxu0 %v2916
      %2950 = vmatpush.msra.mxu0 %v2915
      %2951 = vmatpush.msra.mxu0 %v2914
      %2952 = vmatpush.msra.mxu0 %v2913
      %2953 = vmatpush.msra.mxu0 %v2912
      %2954 = vmatpush.msra.mxu0 %v2911
      %2955 = vmatpush.msra.mxu0 %v2910
      %2956 = vmatpush.msra.mxu0 %v2909
      %2957 = vmatmul.f32.gmra.mxu0 %v2686
      %v2958 = vpop.f32.mrf.mxu0
      %v2959 = vadd.f32 0.0, %v2958
      %2960 = vmatmul.f32.gmra.mxu0 %v2691
      %v2961 = vpop.f32.mrf.mxu0
      %v2962 = vadd.f32 0.0, %v2961
      %2963 = vmatmul.f32.gmra.mxu0 %v2696
      %v2964 = vpop.f32.mrf.mxu0
      %v2965 = vadd.f32 0.0, %v2964
      %2966 = vmatmul.f32.gmra.mxu0 %v2701
      %v2967 = vpop.f32.mrf.mxu0
      %v2968 = vadd.f32 0.0, %v2967
      %2969 = vmatmul.f32.gmra.mxu0 %v2706
      %v2970 = vpop.f32.mrf.mxu0
      %v2971 = vadd.f32 0.0, %v2970
      %2972 = vmatmul.f32.gmra.mxu0 %v2711
      %v2973 = vpop.f32.mrf.mxu0
      %v2974 = vadd.f32 0.0, %v2973
      %2975 = vmatmul.f32.gmra.mxu0 %v2716
      %v2976 = vpop.f32.mrf.mxu0
      %v2977 = vadd.f32 0.0, %v2976
      %2978 = vmatmul.f32.gmra.mxu0 %v2721
      %v2979 = vpop.f32.mrf.mxu0
      %v2980 = vadd.f32 0.0, %v2979
      %2981 = vmatmul.f32.gmra.mxu0 %v2726
      %v2982 = vpop.f32.mrf.mxu0
      %v2983 = vadd.f32 0.0, %v2982
      %2984 = vmatmul.f32.gmra.mxu0 %v2731
      %v2985 = vpop.f32.mrf.mxu0
      %v2986 = vadd.f32 0.0, %v2985
      %2987 = vmatmul.f32.gmra.mxu0 %v2736
      %v2988 = vpop.f32.mrf.mxu0
      %v2989 = vadd.f32 0.0, %v2988
      %2990 = vmatmul.f32.gmra.mxu0 %v2741
      %v2991 = vpop.f32.mrf.mxu0
      %v2992 = vadd.f32 0.0, %v2991
      %2993 = vmatmul.f32.gmra.mxu0 %v2746
      %v2994 = vpop.f32.mrf.mxu0
      %v2995 = vadd.f32 0.0, %v2994
      %2996 = vmatmul.f32.gmra.mxu0 %v2751
      %v2997 = vpop.f32.mrf.mxu0
      %v2998 = vadd.f32 0.0, %v2997
      %2999 = vmatmul.f32.gmra.mxu0 %v2756
      %v3000 = vpop.f32.mrf.mxu0
      %v3001 = vadd.f32 0.0, %v3000
      %3002 = vmatmul.f32.gmra.mxu0 %v2761
      %v3003 = vpop.f32.mrf.mxu0
      %v3004 = vadd.f32 0.0, %v3003
      %3005 = vmatmul.f32.gmra.mxu0 %v2766
      %v3006 = vpop.f32.mrf.mxu0
      %v3007 = vadd.f32 0.0, %v3006
      %3008 = vmatmul.f32.gmra.mxu0 %v2771
      %v3009 = vpop.f32.mrf.mxu0
      %v3010 = vadd.f32 0.0, %v3009
      %3011 = vmatmul.f32.gmra.mxu0 %v2776
      %v3012 = vpop.f32.mrf.mxu0
      %v3013 = vadd.f32 0.0, %v3012
      %3014 = vmatmul.f32.gmra.mxu0 %v2781
      %v3015 = vpop.f32.mrf.mxu0
      %v3016 = vadd.f32 0.0, %v3015
      %3017 = vmatmul.f32.gmra.mxu0 %v2786
      %v3018 = vpop.f32.mrf.mxu0
      %v3019 = vadd.f32 0.0, %v3018
      %3020 = vmatmul.f32.gmra.mxu0 %v2791
      %v3021 = vpop.f32.mrf.mxu0
      %v3022 = vadd.f32 0.0, %v3021
      %3023 = vmatmul.f32.gmra.mxu0 %v2796
      %v3024 = vpop.f32.mrf.mxu0
      %v3025 = vadd.f32 0.0, %v3024
      %3026 = vmatmul.f32.gmra.mxu0 %v2801
      %v3027 = vpop.f32.mrf.mxu0
      %v3028 = vadd.f32 0.0, %v3027
      %3029 = vmatmul.f32.gmra.mxu0 %v2806
      %v3030 = vpop.f32.mrf.mxu0
      %v3031 = vadd.f32 0.0, %v3030
      %3032 = vmatmul.f32.gmra.mxu0 %v2811
      %v3033 = vpop.f32.mrf.mxu0
      %v3034 = vadd.f32 0.0, %v3033
      %3035 = vmatmul.f32.gmra.mxu0 %v2816
      %v3036 = vpop.f32.mrf.mxu0
      %v3037 = vadd.f32 0.0, %v3036
      %3038 = vmatmul.f32.gmra.mxu0 %v2821
      %v3039 = vpop.f32.mrf.mxu0
      %v3040 = vadd.f32 0.0, %v3039
      %3041 = vmatmul.f32.gmra.mxu0 %v2826
      %v3042 = vpop.f32.mrf.mxu0
      %v3043 = vadd.f32 0.0, %v3042
      %3044 = vmatmul.f32.gmra.mxu0 %v2831
      %v3045 = vpop.f32.mrf.mxu0
      %v3046 = vadd.f32 0.0, %v3045
      %3047 = vmatmul.f32.gmra.mxu0 %v2836
      %v3048 = vpop.f32.mrf.mxu0
      %v3049 = vadd.f32 0.0, %v3048
      %3050 = vmatmul.f32.gmra.mxu0 %v2841
      %v3051 = vpop.f32.mrf.mxu0
      %v3052 = vadd.f32 0.0, %v3051
      %3053 = vdwg.mxu0
      %3054 = vmatpush.msra.mxu0 %v2940
      %3055 = vmatpush.msra.mxu0 %v2939
      %3056 = vmatpush.msra.mxu0 %v2938
      %3057 = vmatpush.msra.mxu0 %v2937
      %3058 = vmatpush.msra.mxu0 %v2936
      %3059 = vmatpush.msra.mxu0 %v2935
      %3060 = vmatpush.msra.mxu0 %v2934
      %3061 = vmatpush.msra.mxu0 %v2933
      %3062 = vmatpush.msra.mxu0 %v2932
      %3063 = vmatpush.msra.mxu0 %v2931
      %3064 = vmatpush.msra.mxu0 %v2930
      %3065 = vmatpush.msra.mxu0 %v2929
      %3066 = vmatpush.msra.mxu0 %v2928
      %3067 = vmatpush.msra.mxu0 %v2927
      %3068 = vmatpush.msra.mxu0 %v2926
      %3069 = vmatpush.msra.mxu0 %v2925
      %3070 = vmatmul.f32.gmra.mxu0 %v2689
      %v3071 = vpop.f32.mrf.mxu0
      %v3072 = vadd.f32 %v2959, %v3071
      %3073 = vmatmul.f32.gmra.mxu0 %v2693
      %v3074 = vpop.f32.mrf.mxu0
      %v3075 = vadd.f32 %v2962, %v3074
      %3076 = vmatmul.f32.gmra.mxu0 %v2699
      %v3077 = vpop.f32.mrf.mxu0
      %v3078 = vadd.f32 %v2965, %v3077
      %3079 = vmatmul.f32.gmra.mxu0 %v2703
      %v3080 = vpop.f32.mrf.mxu0
      %v3081 = vadd.f32 %v2968, %v3080
      %3082 = vmatmul.f32.gmra.mxu0 %v2709
      %v3083 = vpop.f32.mrf.mxu0
      %v3084 = vadd.f32 %v2971, %v3083
      %3085 = vmatmul.f32.gmra.mxu0 %v2713
      %v3086 = vpop.f32.mrf.mxu0
      %v3087 = vadd.f32 %v2974, %v3086
      %3088 = vmatmul.f32.gmra.mxu0 %v2719
      %v3089 = vpop.f32.mrf.mxu0
      %v3090 = vadd.f32 %v2977, %v3089
      %3091 = vmatmul.f32.gmra.mxu0 %v2723
      %v3092 = vpop.f32.mrf.mxu0
      %v3093 = vadd.f32 %v2980, %v3092
      %3094 = vmatmul.f32.gmra.mxu0 %v2729
      %v3095 = vpop.f32.mrf.mxu0
      %v3096 = vadd.f32 %v2983, %v3095
      %3097 = vmatmul.f32.gmra.mxu0 %v2733
      %v3098 = vpop.f32.mrf.mxu0
      %v3099 = vadd.f32 %v2986, %v3098
      %3100 = vmatmul.f32.gmra.mxu0 %v2739
      %v3101 = vpop.f32.mrf.mxu0
      %v3102 = vadd.f32 %v2989, %v3101
      %3103 = vmatmul.f32.gmra.mxu0 %v2743
      %v3104 = vpop.f32.mrf.mxu0
      %v3105 = vadd.f32 %v2992, %v3104
      %3106 = vmatmul.f32.gmra.mxu0 %v2749
      %v3107 = vpop.f32.mrf.mxu0
      %v3108 = vadd.f32 %v2995, %v3107
      %3109 = vmatmul.f32.gmra.mxu0 %v2753
      %v3110 = vpop.f32.mrf.mxu0
      %v3111 = vadd.f32 %v2998, %v3110
      %3112 = vmatmul.f32.gmra.mxu0 %v2759
      %v3113 = vpop.f32.mrf.mxu0
      %v3114 = vadd.f32 %v3001, %v3113
      %3115 = vmatmul.f32.gmra.mxu0 %v2763
      %v3116 = vpop.f32.mrf.mxu0
      %v3117 = vadd.f32 %v3004, %v3116
      %3118 = vmatmul.f32.gmra.mxu0 %v2769
      %v3119 = vpop.f32.mrf.mxu0
      %v3120 = vadd.f32 %v3007, %v3119
      %3121 = vmatmul.f32.gmra.mxu0 %v2773
      %v3122 = vpop.f32.mrf.mxu0
      %v3123 = vadd.f32 %v3010, %v3122
      %3124 = vmatmul.f32.gmra.mxu0 %v2779
      %v3125 = vpop.f32.mrf.mxu0
      %v3126 = vadd.f32 %v3013, %v3125
      %3127 = vmatmul.f32.gmra.mxu0 %v2783
      %v3128 = vpop.f32.mrf.mxu0
      %v3129 = vadd.f32 %v3016, %v3128
      %3130 = vmatmul.f32.gmra.mxu0 %v2789
      %v3131 = vpop.f32.mrf.mxu0
      %v3132 = vadd.f32 %v3019, %v3131
      %3133 = vmatmul.f32.gmra.mxu0 %v2793
      %v3134 = vpop.f32.mrf.mxu0
      %v3135 = vadd.f32 %v3022, %v3134
      %3136 = vmatmul.f32.gmra.mxu0 %v2799
      %v3137 = vpop.f32.mrf.mxu0
      %v3138 = vadd.f32 %v3025, %v3137
      %3139 = vmatmul.f32.gmra.mxu0 %v2803
      %v3140 = vpop.f32.mrf.mxu0
      %v3141 = vadd.f32 %v3028, %v3140
      %3142 = vmatmul.f32.gmra.mxu0 %v2809
      %v3143 = vpop.f32.mrf.mxu0
      %v3144 = vadd.f32 %v3031, %v3143
      %3145 = vmatmul.f32.gmra.mxu0 %v2813
      %v3146 = vpop.f32.mrf.mxu0
      %v3147 = vadd.f32 %v3034, %v3146
      %3148 = vmatmul.f32.gmra.mxu0 %v2819
      %v3149 = vpop.f32.mrf.mxu0
      %v3150 = vadd.f32 %v3037, %v3149
      %3151 = vmatmul.f32.gmra.mxu0 %v2823
      %v3152 = vpop.f32.mrf.mxu0
      %v3153 = vadd.f32 %v3040, %v3152
      %3154 = vmatmul.f32.gmra.mxu0 %v2829
      %v3155 = vpop.f32.mrf.mxu0
      %v3156 = vadd.f32 %v3043, %v3155
      %3157 = vmatmul.f32.gmra.mxu0 %v2833
      %v3158 = vpop.f32.mrf.mxu0
      %v3159 = vadd.f32 %v3046, %v3158
      %3160 = vmatmul.f32.gmra.mxu0 %v2839
      %v3161 = vpop.f32.mrf.mxu0
      %v3162 = vadd.f32 %v3049, %v3161
      %3163 = vmatmul.f32.gmra.mxu0 %v2843
      %v3164 = vpop.f32.mrf.mxu0
      %v3165 = vadd.f32 %v3052, %v3164
      %3166 = vdwg.mxu0
      %3167 = vmatpush.msra.mxu0 %v2506
      %3168 = vmatpush.msra.mxu0 %v2505
      %3169 = vmatpush.msra.mxu0 %v2504
      %3170 = vmatpush.msra.mxu0 %v2503
      %3171 = vmatpush.msra.mxu0 %v2502
      %3172 = vmatpush.msra.mxu0 %v2501
      %3173 = vmatpush.msra.mxu0 %v2500
      %3174 = vmatpush.msra.mxu0 %v2499
      %3175 = vmatpush.msra.mxu0 %v2498
      %3176 = vmatpush.msra.mxu0 %v2497
      %3177 = vmatpush.msra.mxu0 %v2496
      %3178 = vmatpush.msra.mxu0 %v2495
      %3179 = vmatpush.msra.mxu0 %v2494
      %3180 = vmatpush.msra.mxu0 %v2493
      %3181 = vmatpush.msra.mxu0 %v2492
      %3182 = vmatpush.msra.mxu0 %v2491
      %3183 = vmatmul.f32.gmra.mxu0 %v2427
      %v3184 = vpop.f32.mrf.mxu0
      %v3185 = vadd.f32 %v3072, %v3184
      %3186 = vmatmul.f32.gmra.mxu0 %v2429
      %v3187 = vpop.f32.mrf.mxu0
      %v3188 = vadd.f32 %v3075, %v3187
      %3189 = vmatmul.f32.gmra.mxu0 %v2431
      %v3190 = vpop.f32.mrf.mxu0
      %v3191 = vadd.f32 %v3078, %v3190
      %3192 = vmatmul.f32.gmra.mxu0 %v2433
      %v3193 = vpop.f32.mrf.mxu0
      %v3194 = vadd.f32 %v3081, %v3193
      %3195 = vmatmul.f32.gmra.mxu0 %v2435
      %v3196 = vpop.f32.mrf.mxu0
      %v3197 = vadd.f32 %v3084, %v3196
      %3198 = vmatmul.f32.gmra.mxu0 %v2437
      %v3199 = vpop.f32.mrf.mxu0
      %v3200 = vadd.f32 %v3087, %v3199
      %3201 = vmatmul.f32.gmra.mxu0 %v2439
      %v3202 = vpop.f32.mrf.mxu0
      %v3203 = vadd.f32 %v3090, %v3202
      %3204 = vmatmul.f32.gmra.mxu0 %v2441
      %v3205 = vpop.f32.mrf.mxu0
      %v3206 = vadd.f32 %v3093, %v3205
      %3207 = vmatmul.f32.gmra.mxu0 %v2443
      %v3208 = vpop.f32.mrf.mxu0
      %v3209 = vadd.f32 %v3096, %v3208
      %3210 = vmatmul.f32.gmra.mxu0 %v2445
      %v3211 = vpop.f32.mrf.mxu0
      %v3212 = vadd.f32 %v3099, %v3211
      %3213 = vmatmul.f32.gmra.mxu0 %v2447
      %v3214 = vpop.f32.mrf.mxu0
      %v3215 = vadd.f32 %v3102, %v3214
      %3216 = vmatmul.f32.gmra.mxu0 %v2449
      %v3217 = vpop.f32.mrf.mxu0
      %v3218 = vadd.f32 %v3105, %v3217
      %3219 = vmatmul.f32.gmra.mxu0 %v2451
      %v3220 = vpop.f32.mrf.mxu0
      %v3221 = vadd.f32 %v3108, %v3220
      %3222 = vmatmul.f32.gmra.mxu0 %v2453
      %v3223 = vpop.f32.mrf.mxu0
      %v3224 = vadd.f32 %v3111, %v3223
      %3225 = vmatmul.f32.gmra.mxu0 %v2455
      %v3226 = vpop.f32.mrf.mxu0
      %v3227 = vadd.f32 %v3114, %v3226
      %3228 = vmatmul.f32.gmra.mxu0 %v2457
      %v3229 = vpop.f32.mrf.mxu0
      %v3230 = vadd.f32 %v3117, %v3229
      %3231 = vmatmul.f32.gmra.mxu0 %v2459
      %v3232 = vpop.f32.mrf.mxu0
      %v3233 = vadd.f32 %v3120, %v3232
      %3234 = vmatmul.f32.gmra.mxu0 %v2461
      %v3235 = vpop.f32.mrf.mxu0
      %v3236 = vadd.f32 %v3123, %v3235
      %3237 = vmatmul.f32.gmra.mxu0 %v2463
      %v3238 = vpop.f32.mrf.mxu0
      %v3239 = vadd.f32 %v3126, %v3238
      %3240 = vmatmul.f32.gmra.mxu0 %v2465
      %v3241 = vpop.f32.mrf.mxu0
      %v3242 = vadd.f32 %v3129, %v3241
      %3243 = vmatmul.f32.gmra.mxu0 %v2467
      %v3244 = vpop.f32.mrf.mxu0
      %v3245 = vadd.f32 %v3132, %v3244
      %3246 = vmatmul.f32.gmra.mxu0 %v2469
      %v3247 = vpop.f32.mrf.mxu0
      %v3248 = vadd.f32 %v3135, %v3247
      %3249 = vmatmul.f32.gmra.mxu0 %v2471
      %v3250 = vpop.f32.mrf.mxu0
      %v3251 = vadd.f32 %v3138, %v3250
      %3252 = vmatmul.f32.gmra.mxu0 %v2473
      %v3253 = vpop.f32.mrf.mxu0
      %v3254 = vadd.f32 %v3141, %v3253
      %3255 = vmatmul.f32.gmra.mxu0 %v2475
      %v3256 = vpop.f32.mrf.mxu0
      %v3257 = vadd.f32 %v3144, %v3256
      %3258 = vmatmul.f32.gmra.mxu0 %v2477
      %v3259 = vpop.f32.mrf.mxu0
      %v3260 = vadd.f32 %v3147, %v3259
      %3261 = vmatmul.f32.gmra.mxu0 %v2479
      %v3262 = vpop.f32.mrf.mxu0
      %v3263 = vadd.f32 %v3150, %v3262
      %3264 = vmatmul.f32.gmra.mxu0 %v2481
      %v3265 = vpop.f32.mrf.mxu0
      %v3266 = vadd.f32 %v3153, %v3265
      %3267 = vmatmul.f32.gmra.mxu0 %v2483
      %v3268 = vpop.f32.mrf.mxu0
      %v3269 = vadd.f32 %v3156, %v3268
      %3270 = vmatmul.f32.gmra.mxu0 %v2485
      %v3271 = vpop.f32.mrf.mxu0
      %v3272 = vadd.f32 %v3159, %v3271
      %3273 = vmatmul.f32.gmra.mxu0 %v2487
      %v3274 = vpop.f32.mrf.mxu0
      %v3275 = vadd.f32 %v3162, %v3274
      %3276 = vmatmul.f32.gmra.mxu0 %v2489
      %v3277 = vpop.f32.mrf.mxu0
      %v3278 = vadd.f32 %v3165, %v3277
      %3279 = vdwg.mxu0
      %3280 = vmatpush.msra.mxu0 %v2522
      %3281 = vmatpush.msra.mxu0 %v2521
      %3282 = vmatpush.msra.mxu0 %v2520
      %3283 = vmatpush.msra.mxu0 %v2519
      %3284 = vmatpush.msra.mxu0 %v2518
      %3285 = vmatpush.msra.mxu0 %v2517
      %3286 = vmatpush.msra.mxu0 %v2516
      %3287 = vmatpush.msra.mxu0 %v2515
      %3288 = vmatpush.msra.mxu0 %v2514
      %3289 = vmatpush.msra.mxu0 %v2513
      %3290 = vmatpush.msra.mxu0 %v2512
      %3291 = vmatpush.msra.mxu0 %v2511
      %3292 = vmatpush.msra.mxu0 %v2510
      %3293 = vmatpush.msra.mxu0 %v2509
      %3294 = vmatpush.msra.mxu0 %v2508
      %3295 = vmatpush.msra.mxu0 %v2507
      %3296 = vmatmul.f32.gmra.mxu0 %v2428
      %v3297 = vpop.f32.mrf.mxu0
      %v3298 = vadd.f32 %v3185, %v3297
      %3299 = vmatmul.f32.gmra.mxu0 %v2430
      %v3300 = vpop.f32.mrf.mxu0
      %v3301 = vadd.f32 %v3188, %v3300
      %3302 = vmatmul.f32.gmra.mxu0 %v2432
      %v3303 = vpop.f32.mrf.mxu0
      %v3304 = vadd.f32 %v3191, %v3303
      %3305 = vmatmul.f32.gmra.mxu0 %v2434
      %v3306 = vpop.f32.mrf.mxu0
      %v3307 = vadd.f32 %v3194, %v3306
      %3308 = vmatmul.f32.gmra.mxu0 %v2436
      %v3309 = vpop.f32.mrf.mxu0
      %v3310 = vadd.f32 %v3197, %v3309
      %3311 = vmatmul.f32.gmra.mxu0 %v2438
      %v3312 = vpop.f32.mrf.mxu0
      %v3313 = vadd.f32 %v3200, %v3312
      %3314 = vmatmul.f32.gmra.mxu0 %v2440
      %v3315 = vpop.f32.mrf.mxu0
      %v3316 = vadd.f32 %v3203, %v3315
      %3317 = vmatmul.f32.gmra.mxu0 %v2442
      %v3318 = vpop.f32.mrf.mxu0
      %v3319 = vadd.f32 %v3206, %v3318
      %3320 = vmatmul.f32.gmra.mxu0 %v2444
      %v3321 = vpop.f32.mrf.mxu0
      %v3322 = vadd.f32 %v3209, %v3321
      %3323 = vmatmul.f32.gmra.mxu0 %v2446
      %v3324 = vpop.f32.mrf.mxu0
      %v3325 = vadd.f32 %v3212, %v3324
      %3326 = vmatmul.f32.gmra.mxu0 %v2448
      %v3327 = vpop.f32.mrf.mxu0
      %v3328 = vadd.f32 %v3215, %v3327
      %3329 = vmatmul.f32.gmra.mxu0 %v2450
      %v3330 = vpop.f32.mrf.mxu0
      %v3331 = vadd.f32 %v3218, %v3330
      %3332 = vmatmul.f32.gmra.mxu0 %v2452
      %v3333 = vpop.f32.mrf.mxu0
      %v3334 = vadd.f32 %v3221, %v3333
      %3335 = vmatmul.f32.gmra.mxu0 %v2454
      %v3336 = vpop.f32.mrf.mxu0
      %v3337 = vadd.f32 %v3224, %v3336
      %3338 = vmatmul.f32.gmra.mxu0 %v2456
      %v3339 = vpop.f32.mrf.mxu0
      %v3340 = vadd.f32 %v3227, %v3339
      %3341 = vmatmul.f32.gmra.mxu0 %v2458
      %v3342 = vpop.f32.mrf.mxu0
      %v3343 = vadd.f32 %v3230, %v3342
      %3344 = vmatmul.f32.gmra.mxu0 %v2460
      %v3345 = vpop.f32.mrf.mxu0
      %v3346 = vadd.f32 %v3233, %v3345
      %3347 = vmatmul.f32.gmra.mxu0 %v2462
      %v3348 = vpop.f32.mrf.mxu0
      %v3349 = vadd.f32 %v3236, %v3348
      %3350 = vmatmul.f32.gmra.mxu0 %v2464
      %v3351 = vpop.f32.mrf.mxu0
      %v3352 = vadd.f32 %v3239, %v3351
      %3353 = vmatmul.f32.gmra.mxu0 %v2466
      %v3354 = vpop.f32.mrf.mxu0
      %v3355 = vadd.f32 %v3242, %v3354
      %3356 = vmatmul.f32.gmra.mxu0 %v2468
      %v3357 = vpop.f32.mrf.mxu0
      %v3358 = vadd.f32 %v3245, %v3357
      %3359 = vmatmul.f32.gmra.mxu0 %v2470
      %v3360 = vpop.f32.mrf.mxu0
      %v3361 = vadd.f32 %v3248, %v3360
      %3362 = vmatmul.f32.gmra.mxu0 %v2472
      %v3363 = vpop.f32.mrf.mxu0
      %v3364 = vadd.f32 %v3251, %v3363
      %3365 = vmatmul.f32.gmra.mxu0 %v2474
      %v3366 = vpop.f32.mrf.mxu0
      %v3367 = vadd.f32 %v3254, %v3366
      %3368 = vmatmul.f32.gmra.mxu0 %v2476
      %v3369 = vpop.f32.mrf.mxu0
      %v3370 = vadd.f32 %v3257, %v3369
      %3371 = vmatmul.f32.gmra.mxu0 %v2478
      %v3372 = vpop.f32.mrf.mxu0
      %v3373 = vadd.f32 %v3260, %v3372
      %3374 = vmatmul.f32.gmra.mxu0 %v2480
      %v3375 = vpop.f32.mrf.mxu0
      %v3376 = vadd.f32 %v3263, %v3375
      %3377 = vmatmul.f32.gmra.mxu0 %v2482
      %v3378 = vpop.f32.mrf.mxu0
      %v3379 = vadd.f32 %v3266, %v3378
      %3380 = vmatmul.f32.gmra.mxu0 %v2484
      %v3381 = vpop.f32.mrf.mxu0
      %v3382 = vadd.f32 %v3269, %v3381
      %3383 = vmatmul.f32.gmra.mxu0 %v2486
      %v3384 = vpop.f32.mrf.mxu0
      %v3385 = vadd.f32 %v3272, %v3384
      %3386 = vmatmul.f32.gmra.mxu0 %v2488
      %v3387 = vpop.f32.mrf.mxu0
      %v3388 = vadd.f32 %v3275, %v3387
      %3389 = vmatmul.f32.gmra.mxu0 %v2490
      %v3390 = vpop.f32.mrf.mxu0
      %v3391 = vadd.f32 %v3278, %v3390
      %3392 = vdwg.mxu0
      %v3393 = vld [vmem:[#allocation2] sm:$0xfc]
      %v3394 = vld [vmem:[#allocation2 + $0x8] sm:$0xfc]
      %v3395 = vld [vmem:[#allocation2 + $0x20] sm:$0x3]
      %v3396 = vld [vmem:[#allocation2 + $0x28] sm:$0x3]
      %v3397 = vld [vmem:[#allocation2 + $0x30] sm:$0xfc]
      %v3398 = vld [vmem:[#allocation2 + $0x38] sm:$0xfc]
      %v3399 = vld [vmem:[#allocation2 + $0x50] sm:$0x3]
      %v3400 = vld [vmem:[#allocation2 + $0x58] sm:$0x3]
      %v3401 = vld [vmem:[#allocation2 + $0x60] sm:$0xfc]
      %v3402 = vld [vmem:[#allocation2 + $0x68] sm:$0xfc]
      %v3403 = vld [vmem:[#allocation2 + $0x80] sm:$0x3]
      %v3404 = vld [vmem:[#allocation2 + $0x88] sm:$0x3]
      %v3405 = vld [vmem:[#allocation2 + $0x90] sm:$0xfc]
      %v3406 = vld [vmem:[#allocation2 + $0x98] sm:$0xfc]
      %v3407 = vld [vmem:[#allocation2 + $0xb0] sm:$0x3]
      %v3408 = vld [vmem:[#allocation2 + $0xb8] sm:$0x3]
      %v3409 = vld [vmem:[#allocation2 + $0xc0] sm:$0xfc]
      %v3410 = vld [vmem:[#allocation2 + $0xc8] sm:$0xfc]
      %v3411 = vld [vmem:[#allocation2 + $0xe0] sm:$0x3]
      %v3412 = vld [vmem:[#allocation2 + $0xe8] sm:$0x3]
      %v3413 = vld [vmem:[#allocation2 + $0xf0] sm:$0xfc]
      %v3414 = vld [vmem:[#allocation2 + $0xf8] sm:$0xfc]
      %v3415 = vld [vmem:[#allocation2 + $0x110] sm:$0x3]
      %v3416 = vld [vmem:[#allocation2 + $0x118] sm:$0x3]
      %v3417 = vld [vmem:[#allocation2 + $0x120] sm:$0xfc]
      %v3418 = vld [vmem:[#allocation2 + $0x128] sm:$0xfc]
      %v3419 = vld [vmem:[#allocation2 + $0x140] sm:$0x3]
      %v3420 = vld [vmem:[#allocation2 + $0x148] sm:$0x3]
      %v3421 = vld [vmem:[#allocation2 + $0x150] sm:$0xfc]
      %v3422 = vld [vmem:[#allocation2 + $0x158] sm:$0xfc]
      %v3423 = vld [vmem:[#allocation2 + $0x170] sm:$0x3]
      %v3424 = vld [vmem:[#allocation2 + $0x178] sm:$0x3]
      %v3425 = vld [vmem:[#allocation2 + $0x180] sm:$0xfc]
      %v3426 = vld [vmem:[#allocation2 + $0x188] sm:$0xfc]
      %v3427 = vld [vmem:[#allocation2 + $0x1a0] sm:$0x3]
      %v3428 = vld [vmem:[#allocation2 + $0x1a8] sm:$0x3]
      %v3429 = vld [vmem:[#allocation2 + $0x1b0] sm:$0xfc]
      %v3430 = vld [vmem:[#allocation2 + $0x1b8] sm:$0xfc]
      %v3431 = vld [vmem:[#allocation2 + $0x1d0] sm:$0x3]
      %v3432 = vld [vmem:[#allocation2 + $0x1d8] sm:$0x3]
      %v3433 = vld [vmem:[#allocation2 + $0x1e0] sm:$0xfc]
      %v3434 = vld [vmem:[#allocation2 + $0x1e8] sm:$0xfc]
      %v3435 = vld [vmem:[#allocation2 + $0x200] sm:$0x3]
      %v3436 = vld [vmem:[#allocation2 + $0x208] sm:$0x3]
      %v3437 = vld [vmem:[#allocation2 + $0x210] sm:$0xfc]
      %v3438 = vld [vmem:[#allocation2 + $0x218] sm:$0xfc]
      %v3439 = vld [vmem:[#allocation2 + $0x230] sm:$0x3]
      %v3440 = vld [vmem:[#allocation2 + $0x238] sm:$0x3]
      %v3441 = vld [vmem:[#allocation2 + $0x240] sm:$0xfc]
      %v3442 = vld [vmem:[#allocation2 + $0x248] sm:$0xfc]
      %v3443 = vld [vmem:[#allocation2 + $0x260] sm:$0x3]
      %v3444 = vld [vmem:[#allocation2 + $0x268] sm:$0x3]
      %v3445 = vld [vmem:[#allocation2 + $0x270] sm:$0xfc]
      %v3446 = vld [vmem:[#allocation2 + $0x278] sm:$0xfc]
      %v3447 = vld [vmem:[#allocation2 + $0x290] sm:$0x3]
      %v3448 = vld [vmem:[#allocation2 + $0x298] sm:$0x3]
      %v3449 = vld [vmem:[#allocation2 + $0x2a0] sm:$0xfc]
      %v3450 = vld [vmem:[#allocation2 + $0x2a8] sm:$0xfc]
      %v3451 = vld [vmem:[#allocation2 + $0x2c0] sm:$0x3]
      %v3452 = vld [vmem:[#allocation2 + $0x2c8] sm:$0x3]
      %v3453 = vld [vmem:[#allocation2 + $0x2d0] sm:$0xfc]
      %v3454 = vld [vmem:[#allocation2 + $0x2d8] sm:$0xfc]
      %v3455 = vld [vmem:[#allocation2 + $0x2f0] sm:$0x3]
      %v3456 = vld [vmem:[#allocation2 + $0x2f8] sm:$0x3]
      %vm3521 = vcmask 1045504
      %v3522 = vrot.slane %v3393, 2
      %v3523 = vrot.slane %v2429, 2
      %v3524 = vsel %vm3521, %v3522, %v3523
      %v3525 = vrot.slane %v3394, 2
      %v3526 = vrot.slane %v2430, 2
      %v3527 = vsel %vm3521, %v3525, %v3526
      %v3528 = vrot.slane %v3395, 2
      %v3529 = vsel %vm3521, %v3523, %v3528
      %v3530 = vrot.slane %v3396, 2
      %v3531 = vsel %vm3521, %v3526, %v3530
      %v3532 = vrot.slane %v3397, 2
      %v3533 = vrot.slane %v2433, 2
      %v3534 = vsel %vm3521, %v3532, %v3533
      %v3535 = vrot.slane %v3398, 2
      %v3536 = vrot.slane %v2434, 2
      %v3537 = vsel %vm3521, %v3535, %v3536
      %v3538 = vrot.slane %v3399, 2
      %v3539 = vsel %vm3521, %v3533, %v3538
      %v3540 = vrot.slane %v3400, 2
      %v3541 = vsel %vm3521, %v3536, %v3540
      %v3542 = vrot.slane %v3401, 2
      %v3543 = vrot.slane %v2437, 2
      %v3544 = vsel %vm3521, %v3542, %v3543
      %v3545 = vrot.slane %v3402, 2
      %v3546 = vrot.slane %v2438, 2
      %v3547 = vsel %vm3521, %v3545, %v3546
      %v3548 = vrot.slane %v3403, 2
      %v3549 = vsel %vm3521, %v3543, %v3548
      %v3550 = vrot.slane %v3404, 2
      %v3551 = vsel %vm3521, %v3546, %v3550
      %v3552 = vrot.slane %v3405, 2
      %v3553 = vrot.slane %v2441, 2
      %v3554 = vsel %vm3521, %v3552, %v3553
      %v3555 = vrot.slane %v3406, 2
      %v3556 = vrot.slane %v2442, 2
      %v3557 = vsel %vm3521, %v3555, %v3556
      %v3558 = vrot.slane %v3407, 2
      %v3559 = vsel %vm3521, %v3553, %v3558
      %v3560 = vrot.slane %v3408, 2
      %v3561 = vsel %vm3521, %v3556, %v3560
      %v3562 = vrot.slane %v3409, 2
      %v3563 = vrot.slane %v2445, 2
      %v3564 = vsel %vm3521, %v3562, %v3563
      %v3565 = vrot.slane %v3410, 2
      %v3566 = vrot.slane %v2446, 2
      %v3567 = vsel %vm3521, %v3565, %v3566
      %v3568 = vrot.slane %v3411, 2
      %v3569 = vsel %vm3521, %v3563, %v3568
      %v3570 = vrot.slane %v3412, 2
      %v3571 = vsel %vm3521, %v3566, %v3570
      %v3572 = vrot.slane %v3413, 2
      %v3573 = vrot.slane %v2449, 2
      %v3574 = vsel %vm3521, %v3572, %v3573
      %v3575 = vrot.slane %v3414, 2
      %v3576 = vrot.slane %v2450, 2
      %v3577 = vsel %vm3521, %v3575, %v3576
      %v3578 = vrot.slane %v3415, 2
      %v3579 = vsel %vm3521, %v3573, %v3578
      %v3580 = vrot.slane %v3416, 2
      %v3581 = vsel %vm3521, %v3576, %v3580
      %v3582 = vrot.slane %v3417, 2
      %v3583 = vrot.slane %v2453, 2
      %v3584 = vsel %vm3521, %v3582, %v3583
      %v3585 = vrot.slane %v3418, 2
      %v3586 = vrot.slane %v2454, 2
      %v3587 = vsel %vm3521, %v3585, %v3586
      %v3588 = vrot.slane %v3419, 2
      %v3589 = vsel %vm3521, %v3583, %v3588
      %v3590 = vrot.slane %v3420, 2
      %v3591 = vsel %vm3521, %v3586, %v3590
      %v3592 = vrot.slane %v3421, 2
      %v3593 = vrot.slane %v2457, 2
      %v3594 = vsel %vm3521, %v3592, %v3593
      %v3595 = vrot.slane %v3422, 2
      %v3596 = vrot.slane %v2458, 2
      %v3597 = vsel %vm3521, %v3595, %v3596
      %v3598 = vrot.slane %v3423, 2
      %v3599 = vsel %vm3521, %v3593, %v3598
      %v3600 = vrot.slane %v3424, 2
      %v3601 = vsel %vm3521, %v3596, %v3600
      %v3602 = vrot.slane %v3425, 2
      %v3603 = vrot.slane %v2461, 2
      %v3604 = vsel %vm3521, %v3602, %v3603
      %v3605 = vrot.slane %v3426, 2
      %v3606 = vrot.slane %v2462, 2
      %v3607 = vsel %vm3521, %v3605, %v3606
      %v3608 = vrot.slane %v3427, 2
      %v3609 = vsel %vm3521, %v3603, %v3608
      %v3610 = vrot.slane %v3428, 2
      %v3611 = vsel %vm3521, %v3606, %v3610
      %v3612 = vrot.slane %v3429, 2
      %v3613 = vrot.slane %v2465, 2
      %v3614 = vsel %vm3521, %v3612, %v3613
      %v3615 = vrot.slane %v3430, 2
      %v3616 = vrot.slane %v2466, 2
      %v3617 = vsel %vm3521, %v3615, %v3616
      %v3618 = vrot.slane %v3431, 2
      %v3619 = vsel %vm3521, %v3613, %v3618
      %v3620 = vrot.slane %v3432, 2
      %v3621 = vsel %vm3521, %v3616, %v3620
      %v3622 = vrot.slane %v3433, 2
      %v3623 = vrot.slane %v2469, 2
      %v3624 = vsel %vm3521, %v3622, %v3623
      %v3625 = vrot.slane %v3434, 2
      %v3626 = vrot.slane %v2470, 2
      %v3627 = vsel %vm3521, %v3625, %v3626
      %v3628 = vrot.slane %v3435, 2
      %v3629 = vsel %vm3521, %v3623, %v3628
      %v3630 = vrot.slane %v3436, 2
      %v3631 = vsel %vm3521, %v3626, %v3630
      %v3632 = vrot.slane %v3437, 2
      %v3633 = vrot.slane %v2473, 2
      %v3634 = vsel %vm3521, %v3632, %v3633
      %v3635 = vrot.slane %v3438, 2
      %v3636 = vrot.slane %v2474, 2
      %v3637 = vsel %vm3521, %v3635, %v3636
      %v3638 = vrot.slane %v3439, 2
      %v3639 = vsel %vm3521, %v3633, %v3638
      %v3640 = vrot.slane %v3440, 2
      %v3641 = vsel %vm3521, %v3636, %v3640
      %v3642 = vrot.slane %v3441, 2
      %v3643 = vrot.slane %v2477, 2
      %v3644 = vsel %vm3521, %v3642, %v3643
      %v3645 = vrot.slane %v3442, 2
      %v3646 = vrot.slane %v2478, 2
      %v3647 = vsel %vm3521, %v3645, %v3646
      %v3648 = vrot.slane %v3443, 2
      %v3649 = vsel %vm3521, %v3643, %v3648
      %v3650 = vrot.slane %v3444, 2
      %v3651 = vsel %vm3521, %v3646, %v3650
      %v3652 = vrot.slane %v3445, 2
      %v3653 = vrot.slane %v2481, 2
      %v3654 = vsel %vm3521, %v3652, %v3653
      %v3655 = vrot.slane %v3446, 2
      %v3656 = vrot.slane %v2482, 2
      %v3657 = vsel %vm3521, %v3655, %v3656
      %v3658 = vrot.slane %v3447, 2
      %v3659 = vsel %vm3521, %v3653, %v3658
      %v3660 = vrot.slane %v3448, 2
      %v3661 = vsel %vm3521, %v3656, %v3660
      %v3662 = vrot.slane %v3449, 2
      %v3663 = vrot.slane %v2485, 2
      %v3664 = vsel %vm3521, %v3662, %v3663
      %v3665 = vrot.slane %v3450, 2
      %v3666 = vrot.slane %v2486, 2
      %v3667 = vsel %vm3521, %v3665, %v3666
      %v3668 = vrot.slane %v3451, 2
      %v3669 = vsel %vm3521, %v3663, %v3668
      %v3670 = vrot.slane %v3452, 2
      %v3671 = vsel %vm3521, %v3666, %v3670
      %v3672 = vrot.slane %v3453, 2
      %v3673 = vrot.slane %v2489, 2
      %v3674 = vsel %vm3521, %v3672, %v3673
      %v3675 = vrot.slane %v3454, 2
      %v3676 = vrot.slane %v2490, 2
      %v3677 = vsel %vm3521, %v3675, %v3676
      %v3678 = vrot.slane %v3455, 2
      %v3679 = vsel %vm3521, %v3673, %v3678
      %v3680 = vrot.slane %v3456, 2
      %v3681 = vsel %vm3521, %v3676, %v3680
      %s3746 = scalar_lea.vmem %s4, 512
      %v3747 = vld [vmem:[%s3746] sm:$0xff]
      %v3748 = vld [vmem:[%s3746 + $0x8] sm:$0xff]
      %v3749 = vld [vmem:[%s3746 + $0x10] sm:$0xff]
      %v3750 = vld [vmem:[%s3746 + $0x18] sm:$0xff]
      %v3751 = vld [vmem:[%s3746 + $0x20] sm:$0xff]
      %v3752 = vld [vmem:[%s3746 + $0x28] sm:$0xff]
      %v3753 = vld [vmem:[%s3746 + $0x30] sm:$0xff]
      %v3754 = vld [vmem:[%s3746 + $0x38] sm:$0xff]
      %v3755 = vld [vmem:[%s3746 + $0x40] sm:$0xff]
      %v3756 = vld [vmem:[%s3746 + $0x48] sm:$0xff]
      %v3757 = vld [vmem:[%s3746 + $0x50] sm:$0xff]
      %v3758 = vld [vmem:[%s3746 + $0x58] sm:$0xff]
      %v3759 = vld [vmem:[%s3746 + $0x60] sm:$0xff]
      %v3760 = vld [vmem:[%s3746 + $0x68] sm:$0xff]
      %v3761 = vld [vmem:[%s3746 + $0x70] sm:$0xff]
      %v3762 = vld [vmem:[%s3746 + $0x78] sm:$0xff]
      %v3763 = vld [vmem:[%s3746 + $0x80] sm:$0xff]
      %v3764 = vld [vmem:[%s3746 + $0x88] sm:$0xff]
      %v3765 = vld [vmem:[%s3746 + $0x90] sm:$0xff]
      %v3766 = vld [vmem:[%s3746 + $0x98] sm:$0xff]
      %v3767 = vld [vmem:[%s3746 + $0xa0] sm:$0xff]
      %v3768 = vld [vmem:[%s3746 + $0xa8] sm:$0xff]
      %v3769 = vld [vmem:[%s3746 + $0xb0] sm:$0xff]
      %v3770 = vld [vmem:[%s3746 + $0xb8] sm:$0xff]
      %v3771 = vld [vmem:[%s3746 + $0xc0] sm:$0xff]
      %v3772 = vld [vmem:[%s3746 + $0xc8] sm:$0xff]
      %v3773 = vld [vmem:[%s3746 + $0xd0] sm:$0xff]
      %v3774 = vld [vmem:[%s3746 + $0xd8] sm:$0xff]
      %v3775 = vld [vmem:[%s3746 + $0xe0] sm:$0xff]
      %v3776 = vld [vmem:[%s3746 + $0xe8] sm:$0xff]
      %v3777 = vld [vmem:[%s3746 + $0xf0] sm:$0xff]
      %v3778 = vld [vmem:[%s3746 + $0xf8] sm:$0xff]
      %3779 = vmatpush.msra.mxu0 %v3762
      %3780 = vmatpush.msra.mxu0 %v3761
      %3781 = vmatpush.msra.mxu0 %v3760
      %3782 = vmatpush.msra.mxu0 %v3759
      %3783 = vmatpush.msra.mxu0 %v3758
      %3784 = vmatpush.msra.mxu0 %v3757
      %3785 = vmatpush.msra.mxu0 %v3756
      %3786 = vmatpush.msra.mxu0 %v3755
      %3787 = vmatpush.msra.mxu0 %v3754
      %3788 = vmatpush.msra.mxu0 %v3753
      %3789 = vmatpush.msra.mxu0 %v3752
      %3790 = vmatpush.msra.mxu0 %v3751
      %3791 = vmatpush.msra.mxu0 %v3750
      %3792 = vmatpush.msra.mxu0 %v3749
      %3793 = vmatpush.msra.mxu0 %v3748
      %3794 = vmatpush.msra.mxu0 %v3747
      %3795 = vmatmul.f32.gmra.mxu0 %v3524
      %v3796 = vpop.f32.mrf.mxu0
      %v3797 = vadd.f32 0.0, %v3796
      %3798 = vmatmul.f32.gmra.mxu0 %v3529
      %v3799 = vpop.f32.mrf.mxu0
      %v3800 = vadd.f32 0.0, %v3799
      %3801 = vmatmul.f32.gmra.mxu0 %v3534
      %v3802 = vpop.f32.mrf.mxu0
      %v3803 = vadd.f32 0.0, %v3802
      %3804 = vmatmul.f32.gmra.mxu0 %v3539
      %v3805 = vpop.f32.mrf.mxu0
      %v3806 = vadd.f32 0.0, %v3805
      %3807 = vmatmul.f32.gmra.mxu0 %v3544
      %v3808 = vpop.f32.mrf.mxu0
      %v3809 = vadd.f32 0.0, %v3808
      %3810 = vmatmul.f32.gmra.mxu0 %v3549
      %v3811 = vpop.f32.mrf.mxu0
      %v3812 = vadd.f32 0.0, %v3811
      %3813 = vmatmul.f32.gmra.mxu0 %v3554
      %v3814 = vpop.f32.mrf.mxu0
      %v3815 = vadd.f32 0.0, %v3814
      %3816 = vmatmul.f32.gmra.mxu0 %v3559
      %v3817 = vpop.f32.mrf.mxu0
      %v3818 = vadd.f32 0.0, %v3817
      %3819 = vmatmul.f32.gmra.mxu0 %v3564
      %v3820 = vpop.f32.mrf.mxu0
      %v3821 = vadd.f32 0.0, %v3820
      %3822 = vmatmul.f32.gmra.mxu0 %v3569
      %v3823 = vpop.f32.mrf.mxu0
      %v3824 = vadd.f32 0.0, %v3823
      %3825 = vmatmul.f32.gmra.mxu0 %v3574
      %v3826 = vpop.f32.mrf.mxu0
      %v3827 = vadd.f32 0.0, %v3826
      %3828 = vmatmul.f32.gmra.mxu0 %v3579
      %v3829 = vpop.f32.mrf.mxu0
      %v3830 = vadd.f32 0.0, %v3829
      %3831 = vmatmul.f32.gmra.mxu0 %v3584
      %v3832 = vpop.f32.mrf.mxu0
      %v3833 = vadd.f32 0.0, %v3832
      %3834 = vmatmul.f32.gmra.mxu0 %v3589
      %v3835 = vpop.f32.mrf.mxu0
      %v3836 = vadd.f32 0.0, %v3835
      %3837 = vmatmul.f32.gmra.mxu0 %v3594
      %v3838 = vpop.f32.mrf.mxu0
      %v3839 = vadd.f32 0.0, %v3838
      %3840 = vmatmul.f32.gmra.mxu0 %v3599
      %v3841 = vpop.f32.mrf.mxu0
      %v3842 = vadd.f32 0.0, %v3841
      %3843 = vmatmul.f32.gmra.mxu0 %v3604
      %v3844 = vpop.f32.mrf.mxu0
      %v3845 = vadd.f32 0.0, %v3844
      %3846 = vmatmul.f32.gmra.mxu0 %v3609
      %v3847 = vpop.f32.mrf.mxu0
      %v3848 = vadd.f32 0.0, %v3847
      %3849 = vmatmul.f32.gmra.mxu0 %v3614
      %v3850 = vpop.f32.mrf.mxu0
      %v3851 = vadd.f32 0.0, %v3850
      %3852 = vmatmul.f32.gmra.mxu0 %v3619
      %v3853 = vpop.f32.mrf.mxu0
      %v3854 = vadd.f32 0.0, %v3853
      %3855 = vmatmul.f32.gmra.mxu0 %v3624
      %v3856 = vpop.f32.mrf.mxu0
      %v3857 = vadd.f32 0.0, %v3856
      %3858 = vmatmul.f32.gmra.mxu0 %v3629
      %v3859 = vpop.f32.mrf.mxu0
      %v3860 = vadd.f32 0.0, %v3859
      %3861 = vmatmul.f32.gmra.mxu0 %v3634
      %v3862 = vpop.f32.mrf.mxu0
      %v3863 = vadd.f32 0.0, %v3862
      %3864 = vmatmul.f32.gmra.mxu0 %v3639
      %v3865 = vpop.f32.mrf.mxu0
      %v3866 = vadd.f32 0.0, %v3865
      %3867 = vmatmul.f32.gmra.mxu0 %v3644
      %v3868 = vpop.f32.mrf.mxu0
      %v3869 = vadd.f32 0.0, %v3868
      %3870 = vmatmul.f32.gmra.mxu0 %v3649
      %v3871 = vpop.f32.mrf.mxu0
      %v3872 = vadd.f32 0.0, %v3871
      %3873 = vmatmul.f32.gmra.mxu0 %v3654
      %v3874 = vpop.f32.mrf.mxu0
      %v3875 = vadd.f32 0.0, %v3874
      %3876 = vmatmul.f32.gmra.mxu0 %v3659
      %v3877 = vpop.f32.mrf.mxu0
      %v3878 = vadd.f32 0.0, %v3877
      %3879 = vmatmul.f32.gmra.mxu0 %v3664
      %v3880 = vpop.f32.mrf.mxu0
      %v3881 = vadd.f32 0.0, %v3880
      %3882 = vmatmul.f32.gmra.mxu0 %v3669
      %v3883 = vpop.f32.mrf.mxu0
      %v3884 = vadd.f32 0.0, %v3883
      %3885 = vmatmul.f32.gmra.mxu0 %v3674
      %v3886 = vpop.f32.mrf.mxu0
      %v3887 = vadd.f32 0.0, %v3886
      %3888 = vmatmul.f32.gmra.mxu0 %v3679
      %v3889 = vpop.f32.mrf.mxu0
      %v3890 = vadd.f32 0.0, %v3889
      %3891 = vdwg.mxu0
      %3892 = vmatpush.msra.mxu0 %v3778
      %3893 = vmatpush.msra.mxu0 %v3777
      %3894 = vmatpush.msra.mxu0 %v3776
      %3895 = vmatpush.msra.mxu0 %v3775
      %3896 = vmatpush.msra.mxu0 %v3774
      %3897 = vmatpush.msra.mxu0 %v3773
      %3898 = vmatpush.msra.mxu0 %v3772
      %3899 = vmatpush.msra.mxu0 %v3771
      %3900 = vmatpush.msra.mxu0 %v3770
      %3901 = vmatpush.msra.mxu0 %v3769
      %3902 = vmatpush.msra.mxu0 %v3768
      %3903 = vmatpush.msra.mxu0 %v3767
      %3904 = vmatpush.msra.mxu0 %v3766
      %3905 = vmatpush.msra.mxu0 %v3765
      %3906 = vmatpush.msra.mxu0 %v3764
      %3907 = vmatpush.msra.mxu0 %v3763
      %3908 = vmatmul.f32.gmra.mxu0 %v3527
      %v3909 = vpop.f32.mrf.mxu0
      %v3910 = vadd.f32 %v3797, %v3909
      %3911 = vmatmul.f32.gmra.mxu0 %v3531
      %v3912 = vpop.f32.mrf.mxu0
      %v3913 = vadd.f32 %v3800, %v3912
      %3914 = vmatmul.f32.gmra.mxu0 %v3537
      %v3915 = vpop.f32.mrf.mxu0
      %v3916 = vadd.f32 %v3803, %v3915
      %3917 = vmatmul.f32.gmra.mxu0 %v3541
      %v3918 = vpop.f32.mrf.mxu0
      %v3919 = vadd.f32 %v3806, %v3918
      %3920 = vmatmul.f32.gmra.mxu0 %v3547
      %v3921 = vpop.f32.mrf.mxu0
      %v3922 = vadd.f32 %v3809, %v3921
      %3923 = vmatmul.f32.gmra.mxu0 %v3551
      %v3924 = vpop.f32.mrf.mxu0
      %v3925 = vadd.f32 %v3812, %v3924
      %3926 = vmatmul.f32.gmra.mxu0 %v3557
      %v3927 = vpop.f32.mrf.mxu0
      %v3928 = vadd.f32 %v3815, %v3927
      %3929 = vmatmul.f32.gmra.mxu0 %v3561
      %v3930 = vpop.f32.mrf.mxu0
      %v3931 = vadd.f32 %v3818, %v3930
      %3932 = vmatmul.f32.gmra.mxu0 %v3567
      %v3933 = vpop.f32.mrf.mxu0
      %v3934 = vadd.f32 %v3821, %v3933
      %3935 = vmatmul.f32.gmra.mxu0 %v3571
      %v3936 = vpop.f32.mrf.mxu0
      %v3937 = vadd.f32 %v3824, %v3936
      %3938 = vmatmul.f32.gmra.mxu0 %v3577
      %v3939 = vpop.f32.mrf.mxu0
      %v3940 = vadd.f32 %v3827, %v3939
      %3941 = vmatmul.f32.gmra.mxu0 %v3581
      %v3942 = vpop.f32.mrf.mxu0
      %v3943 = vadd.f32 %v3830, %v3942
      %3944 = vmatmul.f32.gmra.mxu0 %v3587
      %v3945 = vpop.f32.mrf.mxu0
      %v3946 = vadd.f32 %v3833, %v3945
      %3947 = vmatmul.f32.gmra.mxu0 %v3591
      %v3948 = vpop.f32.mrf.mxu0
      %v3949 = vadd.f32 %v3836, %v3948
      %3950 = vmatmul.f32.gmra.mxu0 %v3597
      %v3951 = vpop.f32.mrf.mxu0
      %v3952 = vadd.f32 %v3839, %v3951
      %3953 = vmatmul.f32.gmra.mxu0 %v3601
      %v3954 = vpop.f32.mrf.mxu0
      %v3955 = vadd.f32 %v3842, %v3954
      %3956 = vmatmul.f32.gmra.mxu0 %v3607
      %v3957 = vpop.f32.mrf.mxu0
      %v3958 = vadd.f32 %v3845, %v3957
      %3959 = vmatmul.f32.gmra.mxu0 %v3611
      %v3960 = vpop.f32.mrf.mxu0
      %v3961 = vadd.f32 %v3848, %v3960
      %3962 = vmatmul.f32.gmra.mxu0 %v3617
      %v3963 = vpop.f32.mrf.mxu0
      %v3964 = vadd.f32 %v3851, %v3963
      %3965 = vmatmul.f32.gmra.mxu0 %v3621
      %v3966 = vpop.f32.mrf.mxu0
      %v3967 = vadd.f32 %v3854, %v3966
      %3968 = vmatmul.f32.gmra.mxu0 %v3627
      %v3969 = vpop.f32.mrf.mxu0
      %v3970 = vadd.f32 %v3857, %v3969
      %3971 = vmatmul.f32.gmra.mxu0 %v3631
      %v3972 = vpop.f32.mrf.mxu0
      %v3973 = vadd.f32 %v3860, %v3972
      %3974 = vmatmul.f32.gmra.mxu0 %v3637
      %v3975 = vpop.f32.mrf.mxu0
      %v3976 = vadd.f32 %v3863, %v3975
      %3977 = vmatmul.f32.gmra.mxu0 %v3641
      %v3978 = vpop.f32.mrf.mxu0
      %v3979 = vadd.f32 %v3866, %v3978
      %3980 = vmatmul.f32.gmra.mxu0 %v3647
      %v3981 = vpop.f32.mrf.mxu0
      %v3982 = vadd.f32 %v3869, %v3981
      %3983 = vmatmul.f32.gmra.mxu0 %v3651
      %v3984 = vpop.f32.mrf.mxu0
      %v3985 = vadd.f32 %v3872, %v3984
      %3986 = vmatmul.f32.gmra.mxu0 %v3657
      %v3987 = vpop.f32.mrf.mxu0
      %v3988 = vadd.f32 %v3875, %v3987
      %3989 = vmatmul.f32.gmra.mxu0 %v3661
      %v3990 = vpop.f32.mrf.mxu0
      %v3991 = vadd.f32 %v3878, %v3990
      %3992 = vmatmul.f32.gmra.mxu0 %v3667
      %v3993 = vpop.f32.mrf.mxu0
      %v3994 = vadd.f32 %v3881, %v3993
      %3995 = vmatmul.f32.gmra.mxu0 %v3671
      %v3996 = vpop.f32.mrf.mxu0
      %v3997 = vadd.f32 %v3884, %v3996
      %3998 = vmatmul.f32.gmra.mxu0 %v3677
      %v3999 = vpop.f32.mrf.mxu0
      %v4000 = vadd.f32 %v3887, %v3999
      %4001 = vmatmul.f32.gmra.mxu0 %v3681
      %v4002 = vpop.f32.mrf.mxu0
      %v4003 = vadd.f32 %v3890, %v4002
      %4004 = vdwg.mxu0
      %v4005 = vadd.f32 %v3298, %v3910
      %v4006 = vadd.f32 %v3301, %v3913
      %v4007 = vadd.f32 %v3304, %v3916
      %v4008 = vadd.f32 %v3307, %v3919
      %v4009 = vadd.f32 %v3310, %v3922
      %v4010 = vadd.f32 %v3313, %v3925
      %v4011 = vadd.f32 %v3316, %v3928
      %v4012 = vadd.f32 %v3319, %v3931
      %v4013 = vadd.f32 %v3322, %v3934
      %v4014 = vadd.f32 %v3325, %v3937
      %v4015 = vadd.f32 %v3328, %v3940
      %v4016 = vadd.f32 %v3331, %v3943
      %v4017 = vadd.f32 %v3334, %v3946
      %v4018 = vadd.f32 %v3337, %v3949
      %v4019 = vadd.f32 %v3340, %v3952
      %v4020 = vadd.f32 %v3343, %v3955
      %v4021 = vadd.f32 %v3346, %v3958
      %v4022 = vadd.f32 %v3349, %v3961
      %v4023 = vadd.f32 %v3352, %v3964
      %v4024 = vadd.f32 %v3355, %v3967
      %v4025 = vadd.f32 %v3358, %v3970
      %v4026 = vadd.f32 %v3361, %v3973
      %v4027 = vadd.f32 %v3364, %v3976
      %v4028 = vadd.f32 %v3367, %v3979
      %v4029 = vadd.f32 %v3370, %v3982
      %v4030 = vadd.f32 %v3373, %v3985
      %v4031 = vadd.f32 %v3376, %v3988
      %v4032 = vadd.f32 %v3379, %v3991
      %v4033 = vadd.f32 %v3382, %v3994
      %v4034 = vadd.f32 %v3385, %v3997
      %v4035 = vadd.f32 %v3388, %v4000
      %v4036 = vadd.f32 %v3391, %v4003
      %v4037 = vld [vmem:[%s1682] sm:$0xff]
      %v4038 = vld [vmem:[%s1682 + $0x8] sm:$0xff]
      %v4039 = vld [vmem:[%s1682 + $0x10] sm:$0xff]
      %v4040 = vld [vmem:[%s1682 + $0x18] sm:$0xff]
      %v4041 = vld [vmem:[%s1682 + $0x30] sm:$0xff]
      %v4042 = vld [vmem:[%s1682 + $0x38] sm:$0xff]
      %v4043 = vld [vmem:[%s1682 + $0x40] sm:$0xff]
      %v4044 = vld [vmem:[%s1682 + $0x48] sm:$0xff]
      %v4045 = vld [vmem:[%s1682 + $0x60] sm:$0xff]
      %v4046 = vld [vmem:[%s1682 + $0x68] sm:$0xff]
      %v4047 = vld [vmem:[%s1682 + $0x70] sm:$0xff]
      %v4048 = vld [vmem:[%s1682 + $0x78] sm:$0xff]
      %v4049 = vld [vmem:[%s1682 + $0x90] sm:$0xff]
      %v4050 = vld [vmem:[%s1682 + $0x98] sm:$0xff]
      %v4051 = vld [vmem:[%s1682 + $0xa0] sm:$0xff]
      %v4052 = vld [vmem:[%s1682 + $0xa8] sm:$0xff]
      %v4053 = vld [vmem:[%s1682 + $0xc0] sm:$0xff]
      %v4054 = vld [vmem:[%s1682 + $0xc8] sm:$0xff]
      %v4055 = vld [vmem:[%s1682 + $0xd0] sm:$0xff]
      %v4056 = vld [vmem:[%s1682 + $0xd8] sm:$0xff]
      %v4057 = vld [vmem:[%s1682 + $0xf0] sm:$0xff]
      %v4058 = vld [vmem:[%s1682 + $0xf8] sm:$0xff]
      %v4059 = vld [vmem:[%s1682 + $0x100] sm:$0xff]
      %v4060 = vld [vmem:[%s1682 + $0x108] sm:$0xff]
      %v4061 = vld [vmem:[%s1682 + $0x120] sm:$0xff]
      %v4062 = vld [vmem:[%s1682 + $0x128] sm:$0xff]
      %v4063 = vld [vmem:[%s1682 + $0x130] sm:$0xff]
      %v4064 = vld [vmem:[%s1682 + $0x138] sm:$0xff]
      %v4065 = vld [vmem:[%s1682 + $0x150] sm:$0xff]
      %v4066 = vld [vmem:[%s1682 + $0x158] sm:$0xff]
      %v4067 = vld [vmem:[%s1682 + $0x160] sm:$0xff]
      %v4068 = vld [vmem:[%s1682 + $0x168] sm:$0xff]
      %v4069 = vld [vmem:[%s1682 + $0x180] sm:$0xff]
      %v4070 = vld [vmem:[%s1682 + $0x188] sm:$0xff]
      %v4071 = vld [vmem:[%s1682 + $0x190] sm:$0xff]
      %v4072 = vld [vmem:[%s1682 + $0x198] sm:$0xff]
      %v4073 = vld [vmem:[%s1682 + $0x1b0] sm:$0xff]
      %v4074 = vld [vmem:[%s1682 + $0x1b8] sm:$0xff]
      %v4075 = vld [vmem:[%s1682 + $0x1c0] sm:$0xff]
      %v4076 = vld [vmem:[%s1682 + $0x1c8] sm:$0xff]
      %v4077 = vld [vmem:[%s1682 + $0x1e0] sm:$0xff]
      %v4078 = vld [vmem:[%s1682 + $0x1e8] sm:$0xff]
      %v4079 = vld [vmem:[%s1682 + $0x1f0] sm:$0xff]
      %v4080 = vld [vmem:[%s1682 + $0x1f8] sm:$0xff]
      %v4081 = vld [vmem:[%s1682 + $0x210] sm:$0xff]
      %v4082 = vld [vmem:[%s1682 + $0x218] sm:$0xff]
      %v4083 = vld [vmem:[%s1682 + $0x220] sm:$0xff]
      %v4084 = vld [vmem:[%s1682 + $0x228] sm:$0xff]
      %v4085 = vld [vmem:[%s1682 + $0x240] sm:$0xff]
      %v4086 = vld [vmem:[%s1682 + $0x248] sm:$0xff]
      %v4087 = vld [vmem:[%s1682 + $0x250] sm:$0xff]
      %v4088 = vld [vmem:[%s1682 + $0x258] sm:$0xff]
      %v4089 = vld [vmem:[%s1682 + $0x270] sm:$0xff]
      %v4090 = vld [vmem:[%s1682 + $0x278] sm:$0xff]
      %v4091 = vld [vmem:[%s1682 + $0x280] sm:$0xff]
      %v4092 = vld [vmem:[%s1682 + $0x288] sm:$0xff]
      %v4093 = vld [vmem:[%s1682 + $0x2a0] sm:$0xff]
      %v4094 = vld [vmem:[%s1682 + $0x2a8] sm:$0xff]
      %v4095 = vld [vmem:[%s1682 + $0x2b0] sm:$0xff]
      %v4096 = vld [vmem:[%s1682 + $0x2b8] sm:$0xff]
      %v4097 = vld [vmem:[%s1682 + $0x2d0] sm:$0xff]
      %v4098 = vld [vmem:[%s1682 + $0x2d8] sm:$0xff]
      %v4099 = vld [vmem:[%s1682 + $0x2e0] sm:$0xff]
      %v4100 = vld [vmem:[%s1682 + $0x2e8] sm:$0xff]
      %s4101 = scalar_lea.vmem %s4, 768
      %v4102 = vld [vmem:[%s4101] sm:$0xff]
      %v4103 = vld [vmem:[%s4101 + $0x8] sm:$0xff]
      %v4104 = vld [vmem:[%s4101 + $0x10] sm:$0xff]
      %v4105 = vld [vmem:[%s4101 + $0x18] sm:$0xff]
      %v4106 = vld [vmem:[%s4101 + $0x20] sm:$0xff]
      %v4107 = vld [vmem:[%s4101 + $0x28] sm:$0xff]
      %v4108 = vld [vmem:[%s4101 + $0x30] sm:$0xff]
      %v4109 = vld [vmem:[%s4101 + $0x38] sm:$0xff]
      %v4110 = vld [vmem:[%s4101 + $0x40] sm:$0xff]
      %v4111 = vld [vmem:[%s4101 + $0x48] sm:$0xff]
      %v4112 = vld [vmem:[%s4101 + $0x50] sm:$0xff]
      %v4113 = vld [vmem:[%s4101 + $0x58] sm:$0xff]
      %v4114 = vld [vmem:[%s4101 + $0x60] sm:$0xff]
      %v4115 = vld [vmem:[%s4101 + $0x68] sm:$0xff]
      %v4116 = vld [vmem:[%s4101 + $0x70] sm:$0xff]
      %v4117 = vld [vmem:[%s4101 + $0x78] sm:$0xff]
      %v4118 = vld [vmem:[%s4101 + $0x80] sm:$0xff]
      %v4119 = vld [vmem:[%s4101 + $0x88] sm:$0xff]
      %v4120 = vld [vmem:[%s4101 + $0x90] sm:$0xff]
      %v4121 = vld [vmem:[%s4101 + $0x98] sm:$0xff]
      %v4122 = vld [vmem:[%s4101 + $0xa0] sm:$0xff]
      %v4123 = vld [vmem:[%s4101 + $0xa8] sm:$0xff]
      %v4124 = vld [vmem:[%s4101 + $0xb0] sm:$0xff]
      %v4125 = vld [vmem:[%s4101 + $0xb8] sm:$0xff]
      %v4126 = vld [vmem:[%s4101 + $0xc0] sm:$0xff]
      %v4127 = vld [vmem:[%s4101 + $0xc8] sm:$0xff]
      %v4128 = vld [vmem:[%s4101 + $0xd0] sm:$0xff]
      %v4129 = vld [vmem:[%s4101 + $0xd8] sm:$0xff]
      %v4130 = vld [vmem:[%s4101 + $0xe0] sm:$0xff]
      %v4131 = vld [vmem:[%s4101 + $0xe8] sm:$0xff]
      %v4132 = vld [vmem:[%s4101 + $0xf0] sm:$0xff]
      %v4133 = vld [vmem:[%s4101 + $0xf8] sm:$0xff]
      %4134 = vmatpush.msra.mxu0 %v4117
      %4135 = vmatpush.msra.mxu0 %v4116
      %4136 = vmatpush.msra.mxu0 %v4115
      %4137 = vmatpush.msra.mxu0 %v4114
      %4138 = vmatpush.msra.mxu0 %v4113
      %4139 = vmatpush.msra.mxu0 %v4112
      %4140 = vmatpush.msra.mxu0 %v4111
      %4141 = vmatpush.msra.mxu0 %v4110
      %4142 = vmatpush.msra.mxu0 %v4109
      %4143 = vmatpush.msra.mxu0 %v4108
      %4144 = vmatpush.msra.mxu0 %v4107
      %4145 = vmatpush.msra.mxu0 %v4106
      %4146 = vmatpush.msra.mxu0 %v4105
      %4147 = vmatpush.msra.mxu0 %v4104
      %4148 = vmatpush.msra.mxu0 %v4103
      %4149 = vmatpush.msra.mxu0 %v4102
      %4150 = vmatmul.f32.gmra.mxu0 %v4037
      %v4151 = vpop.f32.mrf.mxu0
      %v4152 = vadd.f32 0.0, %v4151
      %4153 = vmatmul.f32.gmra.mxu0 %v4039
      %v4154 = vpop.f32.mrf.mxu0
      %v4155 = vadd.f32 0.0, %v4154
      %4156 = vmatmul.f32.gmra.mxu0 %v4041
      %v4157 = vpop.f32.mrf.mxu0
      %v4158 = vadd.f32 0.0, %v4157
      %4159 = vmatmul.f32.gmra.mxu0 %v4043
      %v4160 = vpop.f32.mrf.mxu0
      %v4161 = vadd.f32 0.0, %v4160
      %4162 = vmatmul.f32.gmra.mxu0 %v4045
      %v4163 = vpop.f32.mrf.mxu0
      %v4164 = vadd.f32 0.0, %v4163
      %4165 = vmatmul.f32.gmra.mxu0 %v4047
      %v4166 = vpop.f32.mrf.mxu0
      %v4167 = vadd.f32 0.0, %v4166
      %4168 = vmatmul.f32.gmra.mxu0 %v4049
      %v4169 = vpop.f32.mrf.mxu0
      %v4170 = vadd.f32 0.0, %v4169
      %4171 = vmatmul.f32.gmra.mxu0 %v4051
      %v4172 = vpop.f32.mrf.mxu0
      %v4173 = vadd.f32 0.0, %v4172
      %4174 = vmatmul.f32.gmra.mxu0 %v4053
      %v4175 = vpop.f32.mrf.mxu0
      %v4176 = vadd.f32 0.0, %v4175
      %4177 = vmatmul.f32.gmra.mxu0 %v4055
      %v4178 = vpop.f32.mrf.mxu0
      %v4179 = vadd.f32 0.0, %v4178
      %4180 = vmatmul.f32.gmra.mxu0 %v4057
      %v4181 = vpop.f32.mrf.mxu0
      %v4182 = vadd.f32 0.0, %v4181
      %4183 = vmatmul.f32.gmra.mxu0 %v4059
      %v4184 = vpop.f32.mrf.mxu0
      %v4185 = vadd.f32 0.0, %v4184
      %4186 = vmatmul.f32.gmra.mxu0 %v4061
      %v4187 = vpop.f32.mrf.mxu0
      %v4188 = vadd.f32 0.0, %v4187
      %4189 = vmatmul.f32.gmra.mxu0 %v4063
      %v4190 = vpop.f32.mrf.mxu0
      %v4191 = vadd.f32 0.0, %v4190
      %4192 = vmatmul.f32.gmra.mxu0 %v4065
      %v4193 = vpop.f32.mrf.mxu0
      %v4194 = vadd.f32 0.0, %v4193
      %4195 = vmatmul.f32.gmra.mxu0 %v4067
      %v4196 = vpop.f32.mrf.mxu0
      %v4197 = vadd.f32 0.0, %v4196
      %4198 = vmatmul.f32.gmra.mxu0 %v4069
      %v4199 = vpop.f32.mrf.mxu0
      %v4200 = vadd.f32 0.0, %v4199
      %4201 = vmatmul.f32.gmra.mxu0 %v4071
      %v4202 = vpop.f32.mrf.mxu0
      %v4203 = vadd.f32 0.0, %v4202
      %4204 = vmatmul.f32.gmra.mxu0 %v4073
      %v4205 = vpop.f32.mrf.mxu0
      %v4206 = vadd.f32 0.0, %v4205
      %4207 = vmatmul.f32.gmra.mxu0 %v4075
      %v4208 = vpop.f32.mrf.mxu0
      %v4209 = vadd.f32 0.0, %v4208
      %4210 = vmatmul.f32.gmra.mxu0 %v4077
      %v4211 = vpop.f32.mrf.mxu0
      %v4212 = vadd.f32 0.0, %v4211
      %4213 = vmatmul.f32.gmra.mxu0 %v4079
      %v4214 = vpop.f32.mrf.mxu0
      %v4215 = vadd.f32 0.0, %v4214
      %4216 = vmatmul.f32.gmra.mxu0 %v4081
      %v4217 = vpop.f32.mrf.mxu0
      %v4218 = vadd.f32 0.0, %v4217
      %4219 = vmatmul.f32.gmra.mxu0 %v4083
      %v4220 = vpop.f32.mrf.mxu0
      %v4221 = vadd.f32 0.0, %v4220
      %4222 = vmatmul.f32.gmra.mxu0 %v4085
      %v4223 = vpop.f32.mrf.mxu0
      %v4224 = vadd.f32 0.0, %v4223
      %4225 = vmatmul.f32.gmra.mxu0 %v4087
      %v4226 = vpop.f32.mrf.mxu0
      %v4227 = vadd.f32 0.0, %v4226
      %4228 = vmatmul.f32.gmra.mxu0 %v4089
      %v4229 = vpop.f32.mrf.mxu0
      %v4230 = vadd.f32 0.0, %v4229
      %4231 = vmatmul.f32.gmra.mxu0 %v4091
      %v4232 = vpop.f32.mrf.mxu0
      %v4233 = vadd.f32 0.0, %v4232
      %4234 = vmatmul.f32.gmra.mxu0 %v4093
      %v4235 = vpop.f32.mrf.mxu0
      %v4236 = vadd.f32 0.0, %v4235
      %4237 = vmatmul.f32.gmra.mxu0 %v4095
      %v4238 = vpop.f32.mrf.mxu0
      %v4239 = vadd.f32 0.0, %v4238
      %4240 = vmatmul.f32.gmra.mxu0 %v4097
      %v4241 = vpop.f32.mrf.mxu0
      %v4242 = vadd.f32 0.0, %v4241
      %4243 = vmatmul.f32.gmra.mxu0 %v4099
      %v4244 = vpop.f32.mrf.mxu0
      %v4245 = vadd.f32 0.0, %v4244
      %4246 = vdwg.mxu0
      %4247 = vmatpush.msra.mxu0 %v4133
      %4248 = vmatpush.msra.mxu0 %v4132
      %4249 = vmatpush.msra.mxu0 %v4131
      %4250 = vmatpush.msra.mxu0 %v4130
      %4251 = vmatpush.msra.mxu0 %v4129
      %4252 = vmatpush.msra.mxu0 %v4128
      %4253 = vmatpush.msra.mxu0 %v4127
      %4254 = vmatpush.msra.mxu0 %v4126
      %4255 = vmatpush.msra.mxu0 %v4125
      %4256 = vmatpush.msra.mxu0 %v4124
      %4257 = vmatpush.msra.mxu0 %v4123
      %4258 = vmatpush.msra.mxu0 %v4122
      %4259 = vmatpush.msra.mxu0 %v4121
      %4260 = vmatpush.msra.mxu0 %v4120
      %4261 = vmatpush.msra.mxu0 %v4119
      %4262 = vmatpush.msra.mxu0 %v4118
      %4263 = vmatmul.f32.gmra.mxu0 %v4038
      %v4264 = vpop.f32.mrf.mxu0
      %v4265 = vadd.f32 %v4152, %v4264
      %4266 = vmatmul.f32.gmra.mxu0 %v4040
      %v4267 = vpop.f32.mrf.mxu0
      %v4268 = vadd.f32 %v4155, %v4267
      %4269 = vmatmul.f32.gmra.mxu0 %v4042
      %v4270 = vpop.f32.mrf.mxu0
      %v4271 = vadd.f32 %v4158, %v4270
      %4272 = vmatmul.f32.gmra.mxu0 %v4044
      %v4273 = vpop.f32.mrf.mxu0
      %v4274 = vadd.f32 %v4161, %v4273
      %4275 = vmatmul.f32.gmra.mxu0 %v4046
      %v4276 = vpop.f32.mrf.mxu0
      %v4277 = vadd.f32 %v4164, %v4276
      %4278 = vmatmul.f32.gmra.mxu0 %v4048
      %v4279 = vpop.f32.mrf.mxu0
      %v4280 = vadd.f32 %v4167, %v4279
      %4281 = vmatmul.f32.gmra.mxu0 %v4050
      %v4282 = vpop.f32.mrf.mxu0
      %v4283 = vadd.f32 %v4170, %v4282
      %4284 = vmatmul.f32.gmra.mxu0 %v4052
      %v4285 = vpop.f32.mrf.mxu0
      %v4286 = vadd.f32 %v4173, %v4285
      %4287 = vmatmul.f32.gmra.mxu0 %v4054
      %v4288 = vpop.f32.mrf.mxu0
      %v4289 = vadd.f32 %v4176, %v4288
      %4290 = vmatmul.f32.gmra.mxu0 %v4056
      %v4291 = vpop.f32.mrf.mxu0
      %v4292 = vadd.f32 %v4179, %v4291
      %4293 = vmatmul.f32.gmra.mxu0 %v4058
      %v4294 = vpop.f32.mrf.mxu0
      %v4295 = vadd.f32 %v4182, %v4294
      %4296 = vmatmul.f32.gmra.mxu0 %v4060
      %v4297 = vpop.f32.mrf.mxu0
      %v4298 = vadd.f32 %v4185, %v4297
      %4299 = vmatmul.f32.gmra.mxu0 %v4062
      %v4300 = vpop.f32.mrf.mxu0
      %v4301 = vadd.f32 %v4188, %v4300
      %4302 = vmatmul.f32.gmra.mxu0 %v4064
      %v4303 = vpop.f32.mrf.mxu0
      %v4304 = vadd.f32 %v4191, %v4303
      %4305 = vmatmul.f32.gmra.mxu0 %v4066
      %v4306 = vpop.f32.mrf.mxu0
      %v4307 = vadd.f32 %v4194, %v4306
      %4308 = vmatmul.f32.gmra.mxu0 %v4068
      %v4309 = vpop.f32.mrf.mxu0
      %v4310 = vadd.f32 %v4197, %v4309
      %4311 = vmatmul.f32.gmra.mxu0 %v4070
      %v4312 = vpop.f32.mrf.mxu0
      %v4313 = vadd.f32 %v4200, %v4312
      %4314 = vmatmul.f32.gmra.mxu0 %v4072
      %v4315 = vpop.f32.mrf.mxu0
      %v4316 = vadd.f32 %v4203, %v4315
      %4317 = vmatmul.f32.gmra.mxu0 %v4074
      %v4318 = vpop.f32.mrf.mxu0
      %v4319 = vadd.f32 %v4206, %v4318
      %4320 = vmatmul.f32.gmra.mxu0 %v4076
      %v4321 = vpop.f32.mrf.mxu0
      %v4322 = vadd.f32 %v4209, %v4321
      %4323 = vmatmul.f32.gmra.mxu0 %v4078
      %v4324 = vpop.f32.mrf.mxu0
      %v4325 = vadd.f32 %v4212, %v4324
      %4326 = vmatmul.f32.gmra.mxu0 %v4080
      %v4327 = vpop.f32.mrf.mxu0
      %v4328 = vadd.f32 %v4215, %v4327
      %4329 = vmatmul.f32.gmra.mxu0 %v4082
      %v4330 = vpop.f32.mrf.mxu0
      %v4331 = vadd.f32 %v4218, %v4330
      %4332 = vmatmul.f32.gmra.mxu0 %v4084
      %v4333 = vpop.f32.mrf.mxu0
      %v4334 = vadd.f32 %v4221, %v4333
      %4335 = vmatmul.f32.gmra.mxu0 %v4086
      %v4336 = vpop.f32.mrf.mxu0
      %v4337 = vadd.f32 %v4224, %v4336
      %4338 = vmatmul.f32.gmra.mxu0 %v4088
      %v4339 = vpop.f32.mrf.mxu0
      %v4340 = vadd.f32 %v4227, %v4339
      %4341 = vmatmul.f32.gmra.mxu0 %v4090
      %v4342 = vpop.f32.mrf.mxu0
      %v4343 = vadd.f32 %v4230, %v4342
      %4344 = vmatmul.f32.gmra.mxu0 %v4092
      %v4345 = vpop.f32.mrf.mxu0
      %v4346 = vadd.f32 %v4233, %v4345
      %4347 = vmatmul.f32.gmra.mxu0 %v4094
      %v4348 = vpop.f32.mrf.mxu0
      %v4349 = vadd.f32 %v4236, %v4348
      %4350 = vmatmul.f32.gmra.mxu0 %v4096
      %v4351 = vpop.f32.mrf.mxu0
      %v4352 = vadd.f32 %v4239, %v4351
      %4353 = vmatmul.f32.gmra.mxu0 %v4098
      %v4354 = vpop.f32.mrf.mxu0
      %v4355 = vadd.f32 %v4242, %v4354
      %4356 = vmatmul.f32.gmra.mxu0 %v4100
      %v4357 = vpop.f32.mrf.mxu0
      %v4358 = vadd.f32 %v4245, %v4357
      %4359 = vdwg.mxu0
      %v4360 = vadd.f32 %v4005, %v4265
      %v4361 = vadd.f32 %v4006, %v4268
      %v4362 = vadd.f32 %v4007, %v4271
      %v4363 = vadd.f32 %v4008, %v4274
      %v4364 = vadd.f32 %v4009, %v4277
      %v4365 = vadd.f32 %v4010, %v4280
      %v4366 = vadd.f32 %v4011, %v4283
      %v4367 = vadd.f32 %v4012, %v4286
      %v4368 = vadd.f32 %v4013, %v4289
      %v4369 = vadd.f32 %v4014, %v4292
      %v4370 = vadd.f32 %v4015, %v4295
      %v4371 = vadd.f32 %v4016, %v4298
      %v4372 = vadd.f32 %v4017, %v4301
      %v4373 = vadd.f32 %v4018, %v4304
      %v4374 = vadd.f32 %v4019, %v4307
      %v4375 = vadd.f32 %v4020, %v4310
      %v4376 = vadd.f32 %v4021, %v4313
      %v4377 = vadd.f32 %v4022, %v4316
      %v4378 = vadd.f32 %v4023, %v4319
      %v4379 = vadd.f32 %v4024, %v4322
      %v4380 = vadd.f32 %v4025, %v4325
      %v4381 = vadd.f32 %v4026, %v4328
      %v4382 = vadd.f32 %v4027, %v4331
      %v4383 = vadd.f32 %v4028, %v4334
      %v4384 = vadd.f32 %v4029, %v4337
      %v4385 = vadd.f32 %v4030, %v4340
      %v4386 = vadd.f32 %v4031, %v4343
      %v4387 = vadd.f32 %v4032, %v4346
      %v4388 = vadd.f32 %v4033, %v4349
      %v4389 = vadd.f32 %v4034, %v4352
      %v4390 = vadd.f32 %v4035, %v4355
      %v4391 = vadd.f32 %v4036, %v4358
      %v4392 = vld [vmem:[%s1682] sm:$0xfe]
      %v4393 = vld [vmem:[%s1682 + $0x8] sm:$0xfe]
      %v4394 = vld [vmem:[%s1682 + $0x10] sm:$0xff]
      %v4395 = vld [vmem:[%s1682 + $0x18] sm:$0xff]
      %v4396 = vld [vmem:[%s1682 + $0x20] sm:$0x1]
      %v4397 = vld [vmem:[%s1682 + $0x28] sm:$0x1]
      %v4398 = vld [vmem:[%s1682 + $0x30] sm:$0xfe]
      %v4399 = vld [vmem:[%s1682 + $0x38] sm:$0xfe]
      %v4400 = vld [vmem:[%s1682 + $0x40] sm:$0xff]
      %v4401 = vld [vmem:[%s1682 + $0x48] sm:$0xff]
      %v4402 = vld [vmem:[%s1682 + $0x50] sm:$0x1]
      %v4403 = vld [vmem:[%s1682 + $0x58] sm:$0x1]
      %v4404 = vld [vmem:[%s1682 + $0x60] sm:$0xfe]
      %v4405 = vld [vmem:[%s1682 + $0x68] sm:$0xfe]
      %v4406 = vld [vmem:[%s1682 + $0x70] sm:$0xff]
      %v4407 = vld [vmem:[%s1682 + $0x78] sm:$0xff]
      %v4408 = vld [vmem:[%s1682 + $0x80] sm:$0x1]
      %v4409 = vld [vmem:[%s1682 + $0x88] sm:$0x1]
      %v4410 = vld [vmem:[%s1682 + $0x90] sm:$0xfe]
      %v4411 = vld [vmem:[%s1682 + $0x98] sm:$0xfe]
      %v4412 = vld [vmem:[%s1682 + $0xa0] sm:$0xff]
      %v4413 = vld [vmem:[%s1682 + $0xa8] sm:$0xff]
      %v4414 = vld [vmem:[%s1682 + $0xb0] sm:$0x1]
      %v4415 = vld [vmem:[%s1682 + $0xb8] sm:$0x1]
      %v4416 = vld [vmem:[%s1682 + $0xc0] sm:$0xfe]
      %v4417 = vld [vmem:[%s1682 + $0xc8] sm:$0xfe]
      %v4418 = vld [vmem:[%s1682 + $0xd0] sm:$0xff]
      %v4419 = vld [vmem:[%s1682 + $0xd8] sm:$0xff]
      %v4420 = vld [vmem:[%s1682 + $0xe0] sm:$0x1]
      %v4421 = vld [vmem:[%s1682 + $0xe8] sm:$0x1]
      %v4422 = vld [vmem:[%s1682 + $0xf0] sm:$0xfe]
      %v4423 = vld [vmem:[%s1682 + $0xf8] sm:$0xfe]
      %v4424 = vld [vmem:[%s1682 + $0x100] sm:$0xff]
      %v4425 = vld [vmem:[%s1682 + $0x108] sm:$0xff]
      %v4426 = vld [vmem:[%s1682 + $0x110] sm:$0x1]
      %v4427 = vld [vmem:[%s1682 + $0x118] sm:$0x1]
      %v4428 = vld [vmem:[%s1682 + $0x120] sm:$0xfe]
      %v4429 = vld [vmem:[%s1682 + $0x128] sm:$0xfe]
      %v4430 = vld [vmem:[%s1682 + $0x130] sm:$0xff]
      %v4431 = vld [vmem:[%s1682 + $0x138] sm:$0xff]
      %v4432 = vld [vmem:[%s1682 + $0x140] sm:$0x1]
      %v4433 = vld [vmem:[%s1682 + $0x148] sm:$0x1]
      %v4434 = vld [vmem:[%s1682 + $0x150] sm:$0xfe]
      %v4435 = vld [vmem:[%s1682 + $0x158] sm:$0xfe]
      %v4436 = vld [vmem:[%s1682 + $0x160] sm:$0xff]
      %v4437 = vld [vmem:[%s1682 + $0x168] sm:$0xff]
      %v4438 = vld [vmem:[%s1682 + $0x170] sm:$0x1]
      %v4439 = vld [vmem:[%s1682 + $0x178] sm:$0x1]
      %v4440 = vld [vmem:[%s1682 + $0x180] sm:$0xfe]
      %v4441 = vld [vmem:[%s1682 + $0x188] sm:$0xfe]
      %v4442 = vld [vmem:[%s1682 + $0x190] sm:$0xff]
      %v4443 = vld [vmem:[%s1682 + $0x198] sm:$0xff]
      %v4444 = vld [vmem:[%s1682 + $0x1a0] sm:$0x1]
      %v4445 = vld [vmem:[%s1682 + $0x1a8] sm:$0x1]
      %v4446 = vld [vmem:[%s1682 + $0x1b0] sm:$0xfe]
      %v4447 = vld [vmem:[%s1682 + $0x1b8] sm:$0xfe]
      %v4448 = vld [vmem:[%s1682 + $0x1c0] sm:$0xff]
      %v4449 = vld [vmem:[%s1682 + $0x1c8] sm:$0xff]
      %v4450 = vld [vmem:[%s1682 + $0x1d0] sm:$0x1]
      %v4451 = vld [vmem:[%s1682 + $0x1d8] sm:$0x1]
      %v4452 = vld [vmem:[%s1682 + $0x1e0] sm:$0xfe]
      %v4453 = vld [vmem:[%s1682 + $0x1e8] sm:$0xfe]
      %v4454 = vld [vmem:[%s1682 + $0x1f0] sm:$0xff]
      %v4455 = vld [vmem:[%s1682 + $0x1f8] sm:$0xff]
      %v4456 = vld [vmem:[%s1682 + $0x200] sm:$0x1]
      %v4457 = vld [vmem:[%s1682 + $0x208] sm:$0x1]
      %v4458 = vld [vmem:[%s1682 + $0x210] sm:$0xfe]
      %v4459 = vld [vmem:[%s1682 + $0x218] sm:$0xfe]
      %v4460 = vld [vmem:[%s1682 + $0x220] sm:$0xff]
      %v4461 = vld [vmem:[%s1682 + $0x228] sm:$0xff]
      %v4462 = vld [vmem:[%s1682 + $0x230] sm:$0x1]
      %v4463 = vld [vmem:[%s1682 + $0x238] sm:$0x1]
      %v4464 = vld [vmem:[%s1682 + $0x240] sm:$0xfe]
      %v4465 = vld [vmem:[%s1682 + $0x248] sm:$0xfe]
      %v4466 = vld [vmem:[%s1682 + $0x250] sm:$0xff]
      %v4467 = vld [vmem:[%s1682 + $0x258] sm:$0xff]
      %v4468 = vld [vmem:[%s1682 + $0x260] sm:$0x1]
      %v4469 = vld [vmem:[%s1682 + $0x268] sm:$0x1]
      %v4470 = vld [vmem:[%s1682 + $0x270] sm:$0xfe]
      %v4471 = vld [vmem:[%s1682 + $0x278] sm:$0xfe]
      %v4472 = vld [vmem:[%s1682 + $0x280] sm:$0xff]
      %v4473 = vld [vmem:[%s1682 + $0x288] sm:$0xff]
      %v4474 = vld [vmem:[%s1682 + $0x290] sm:$0x1]
      %v4475 = vld [vmem:[%s1682 + $0x298] sm:$0x1]
      %v4476 = vld [vmem:[%s1682 + $0x2a0] sm:$0xfe]
      %v4477 = vld [vmem:[%s1682 + $0x2a8] sm:$0xfe]
      %v4478 = vld [vmem:[%s1682 + $0x2b0] sm:$0xff]
      %v4479 = vld [vmem:[%s1682 + $0x2b8] sm:$0xff]
      %v4480 = vld [vmem:[%s1682 + $0x2c0] sm:$0x1]
      %v4481 = vld [vmem:[%s1682 + $0x2c8] sm:$0x1]
      %v4482 = vld [vmem:[%s1682 + $0x2d0] sm:$0xfe]
      %v4483 = vld [vmem:[%s1682 + $0x2d8] sm:$0xfe]
      %v4484 = vld [vmem:[%s1682 + $0x2e0] sm:$0xff]
      %v4485 = vld [vmem:[%s1682 + $0x2e8] sm:$0xff]
      %v4486 = vld [vmem:[%s1682 + $0x2f0] sm:$0x1]
      %v4487 = vld [vmem:[%s1682 + $0x2f8] sm:$0x1]
      %v4584 = vrot.slane %v4392, 1
      %v4585 = vrot.slane %v4394, 1
      %v4586 = vsel %vm2683, %v4584, %v4585
      %v4587 = vrot.slane %v4393, 1
      %v4588 = vrot.slane %v4395, 1
      %v4589 = vsel %vm2683, %v4587, %v4588
      %v4590 = vrot.slane %v4396, 1
      %v4591 = vsel %vm2683, %v4585, %v4590
      %v4592 = vrot.slane %v4397, 1
      %v4593 = vsel %vm2683, %v4588, %v4592
      %v4594 = vrot.slane %v4398, 1
      %v4595 = vrot.slane %v4400, 1
      %v4596 = vsel %vm2683, %v4594, %v4595
      %v4597 = vrot.slane %v4399, 1
      %v4598 = vrot.slane %v4401, 1
      %v4599 = vsel %vm2683, %v4597, %v4598
      %v4600 = vrot.slane %v4402, 1
      %v4601 = vsel %vm2683, %v4595, %v4600
      %v4602 = vrot.slane %v4403, 1
      %v4603 = vsel %vm2683, %v4598, %v4602
      %v4604 = vrot.slane %v4404, 1
      %v4605 = vrot.slane %v4406, 1
      %v4606 = vsel %vm2683, %v4604, %v4605
      %v4607 = vrot.slane %v4405, 1
      %v4608 = vrot.slane %v4407, 1
      %v4609 = vsel %vm2683, %v4607, %v4608
      %v4610 = vrot.slane %v4408, 1
      %v4611 = vsel %vm2683, %v4605, %v4610
      %v4612 = vrot.slane %v4409, 1
      %v4613 = vsel %vm2683, %v4608, %v4612
      %v4614 = vrot.slane %v4410, 1
      %v4615 = vrot.slane %v4412, 1
      %v4616 = vsel %vm2683, %v4614, %v4615
      %v4617 = vrot.slane %v4411, 1
      %v4618 = vrot.slane %v4413, 1
      %v4619 = vsel %vm2683, %v4617, %v4618
      %v4620 = vrot.slane %v4414, 1
      %v4621 = vsel %vm2683, %v4615, %v4620
      %v4622 = vrot.slane %v4415, 1
      %v4623 = vsel %vm2683, %v4618, %v4622
      %v4624 = vrot.slane %v4416, 1
      %v4625 = vrot.slane %v4418, 1
      %v4626 = vsel %vm2683, %v4624, %v4625
      %v4627 = vrot.slane %v4417, 1
      %v4628 = vrot.slane %v4419, 1
      %v4629 = vsel %vm2683, %v4627, %v4628
      %v4630 = vrot.slane %v4420, 1
      %v4631 = vsel %vm2683, %v4625, %v4630
      %v4632 = vrot.slane %v4421, 1
      %v4633 = vsel %vm2683, %v4628, %v4632
      %v4634 = vrot.slane %v4422, 1
      %v4635 = vrot.slane %v4424, 1
      %v4636 = vsel %vm2683, %v4634, %v4635
      %v4637 = vrot.slane %v4423, 1
      %v4638 = vrot.slane %v4425, 1
      %v4639 = vsel %vm2683, %v4637, %v4638
      %v4640 = vrot.slane %v4426, 1
      %v4641 = vsel %vm2683, %v4635, %v4640
      %v4642 = vrot.slane %v4427, 1
      %v4643 = vsel %vm2683, %v4638, %v4642
      %v4644 = vrot.slane %v4428, 1
      %v4645 = vrot.slane %v4430, 1
      %v4646 = vsel %vm2683, %v4644, %v4645
      %v4647 = vrot.slane %v4429, 1
      %v4648 = vrot.slane %v4431, 1
      %v4649 = vsel %vm2683, %v4647, %v4648
      %v4650 = vrot.slane %v4432, 1
      %v4651 = vsel %vm2683, %v4645, %v4650
      %v4652 = vrot.slane %v4433, 1
      %v4653 = vsel %vm2683, %v4648, %v4652
      %v4654 = vrot.slane %v4434, 1
      %v4655 = vrot.slane %v4436, 1
      %v4656 = vsel %vm2683, %v4654, %v4655
      %v4657 = vrot.slane %v4435, 1
      %v4658 = vrot.slane %v4437, 1
      %v4659 = vsel %vm2683, %v4657, %v4658
      %v4660 = vrot.slane %v4438, 1
      %v4661 = vsel %vm2683, %v4655, %v4660
      %v4662 = vrot.slane %v4439, 1
      %v4663 = vsel %vm2683, %v4658, %v4662
      %v4664 = vrot.slane %v4440, 1
      %v4665 = vrot.slane %v4442, 1
      %v4666 = vsel %vm2683, %v4664, %v4665
      %v4667 = vrot.slane %v4441, 1
      %v4668 = vrot.slane %v4443, 1
      %v4669 = vsel %vm2683, %v4667, %v4668
      %v4670 = vrot.slane %v4444, 1
      %v4671 = vsel %vm2683, %v4665, %v4670
      %v4672 = vrot.slane %v4445, 1
      %v4673 = vsel %vm2683, %v4668, %v4672
      %v4674 = vrot.slane %v4446, 1
      %v4675 = vrot.slane %v4448, 1
      %v4676 = vsel %vm2683, %v4674, %v4675
      %v4677 = vrot.slane %v4447, 1
      %v4678 = vrot.slane %v4449, 1
      %v4679 = vsel %vm2683, %v4677, %v4678
      %v4680 = vrot.slane %v4450, 1
      %v4681 = vsel %vm2683, %v4675, %v4680
      %v4682 = vrot.slane %v4451, 1
      %v4683 = vsel %vm2683, %v4678, %v4682
      %v4684 = vrot.slane %v4452, 1
      %v4685 = vrot.slane %v4454, 1
      %v4686 = vsel %vm2683, %v4684, %v4685
      %v4687 = vrot.slane %v4453, 1
      %v4688 = vrot.slane %v4455, 1
      %v4689 = vsel %vm2683, %v4687, %v4688
      %v4690 = vrot.slane %v4456, 1
      %v4691 = vsel %vm2683, %v4685, %v4690
      %v4692 = vrot.slane %v4457, 1
      %v4693 = vsel %vm2683, %v4688, %v4692
      %v4694 = vrot.slane %v4458, 1
      %v4695 = vrot.slane %v4460, 1
      %v4696 = vsel %vm2683, %v4694, %v4695
      %v4697 = vrot.slane %v4459, 1
      %v4698 = vrot.slane %v4461, 1
      %v4699 = vsel %vm2683, %v4697, %v4698
      %v4700 = vrot.slane %v4462, 1
      %v4701 = vsel %vm2683, %v4695, %v4700
      %v4702 = vrot.slane %v4463, 1
      %v4703 = vsel %vm2683, %v4698, %v4702
      %v4704 = vrot.slane %v4464, 1
      %v4705 = vrot.slane %v4466, 1
      %v4706 = vsel %vm2683, %v4704, %v4705
      %v4707 = vrot.slane %v4465, 1
      %v4708 = vrot.slane %v4467, 1
      %v4709 = vsel %vm2683, %v4707, %v4708
      %v4710 = vrot.slane %v4468, 1
      %v4711 = vsel %vm2683, %v4705, %v4710
      %v4712 = vrot.slane %v4469, 1
      %v4713 = vsel %vm2683, %v4708, %v4712
      %v4714 = vrot.slane %v4470, 1
      %v4715 = vrot.slane %v4472, 1
      %v4716 = vsel %vm2683, %v4714, %v4715
      %v4717 = vrot.slane %v4471, 1
      %v4718 = vrot.slane %v4473, 1
      %v4719 = vsel %vm2683, %v4717, %v4718
      %v4720 = vrot.slane %v4474, 1
      %v4721 = vsel %vm2683, %v4715, %v4720
      %v4722 = vrot.slane %v4475, 1
      %v4723 = vsel %vm2683, %v4718, %v4722
      %v4724 = vrot.slane %v4476, 1
      %v4725 = vrot.slane %v4478, 1
      %v4726 = vsel %vm2683, %v4724, %v4725
      %v4727 = vrot.slane %v4477, 1
      %v4728 = vrot.slane %v4479, 1
      %v4729 = vsel %vm2683, %v4727, %v4728
      %v4730 = vrot.slane %v4480, 1
      %v4731 = vsel %vm2683, %v4725, %v4730
      %v4732 = vrot.slane %v4481, 1
      %v4733 = vsel %vm2683, %v4728, %v4732
      %v4734 = vrot.slane %v4482, 1
      %v4735 = vrot.slane %v4484, 1
      %v4736 = vsel %vm2683, %v4734, %v4735
      %v4737 = vrot.slane %v4483, 1
      %v4738 = vrot.slane %v4485, 1
      %v4739 = vsel %vm2683, %v4737, %v4738
      %v4740 = vrot.slane %v4486, 1
      %v4741 = vsel %vm2683, %v4735, %v4740
      %v4742 = vrot.slane %v4487, 1
      %v4743 = vsel %vm2683, %v4738, %v4742
      %s4808 = scalar_lea.vmem %s4, 1024
      %v4809 = vld [vmem:[%s4808] sm:$0xff]
      %v4810 = vld [vmem:[%s4808 + $0x8] sm:$0xff]
      %v4811 = vld [vmem:[%s4808 + $0x10] sm:$0xff]
      %v4812 = vld [vmem:[%s4808 + $0x18] sm:$0xff]
      %v4813 = vld [vmem:[%s4808 + $0x20] sm:$0xff]
      %v4814 = vld [vmem:[%s4808 + $0x28] sm:$0xff]
      %v4815 = vld [vmem:[%s4808 + $0x30] sm:$0xff]
      %v4816 = vld [vmem:[%s4808 + $0x38] sm:$0xff]
      %v4817 = vld [vmem:[%s4808 + $0x40] sm:$0xff]
      %v4818 = vld [vmem:[%s4808 + $0x48] sm:$0xff]
      %v4819 = vld [vmem:[%s4808 + $0x50] sm:$0xff]
      %v4820 = vld [vmem:[%s4808 + $0x58] sm:$0xff]
      %v4821 = vld [vmem:[%s4808 + $0x60] sm:$0xff]
      %v4822 = vld [vmem:[%s4808 + $0x68] sm:$0xff]
      %v4823 = vld [vmem:[%s4808 + $0x70] sm:$0xff]
      %v4824 = vld [vmem:[%s4808 + $0x78] sm:$0xff]
      %v4825 = vld [vmem:[%s4808 + $0x80] sm:$0xff]
      %v4826 = vld [vmem:[%s4808 + $0x88] sm:$0xff]
      %v4827 = vld [vmem:[%s4808 + $0x90] sm:$0xff]
      %v4828 = vld [vmem:[%s4808 + $0x98] sm:$0xff]
      %v4829 = vld [vmem:[%s4808 + $0xa0] sm:$0xff]
      %v4830 = vld [vmem:[%s4808 + $0xa8] sm:$0xff]
      %v4831 = vld [vmem:[%s4808 + $0xb0] sm:$0xff]
      %v4832 = vld [vmem:[%s4808 + $0xb8] sm:$0xff]
      %v4833 = vld [vmem:[%s4808 + $0xc0] sm:$0xff]
      %v4834 = vld [vmem:[%s4808 + $0xc8] sm:$0xff]
      %v4835 = vld [vmem:[%s4808 + $0xd0] sm:$0xff]
      %v4836 = vld [vmem:[%s4808 + $0xd8] sm:$0xff]
      %v4837 = vld [vmem:[%s4808 + $0xe0] sm:$0xff]
      %v4838 = vld [vmem:[%s4808 + $0xe8] sm:$0xff]
      %v4839 = vld [vmem:[%s4808 + $0xf0] sm:$0xff]
      %v4840 = vld [vmem:[%s4808 + $0xf8] sm:$0xff]
      %4841 = vmatpush.msra.mxu0 %v4824
      %4842 = vmatpush.msra.mxu0 %v4823
      %4843 = vmatpush.msra.mxu0 %v4822
      %4844 = vmatpush.msra.mxu0 %v4821
      %4845 = vmatpush.msra.mxu0 %v4820
      %4846 = vmatpush.msra.mxu0 %v4819
      %4847 = vmatpush.msra.mxu0 %v4818
      %4848 = vmatpush.msra.mxu0 %v4817
      %4849 = vmatpush.msra.mxu0 %v4816
      %4850 = vmatpush.msra.mxu0 %v4815
      %4851 = vmatpush.msra.mxu0 %v4814
      %4852 = vmatpush.msra.mxu0 %v4813
      %4853 = vmatpush.msra.mxu0 %v4812
      %4854 = vmatpush.msra.mxu0 %v4811
      %4855 = vmatpush.msra.mxu0 %v4810
      %4856 = vmatpush.msra.mxu0 %v4809
      %4857 = vmatmul.f32.gmra.mxu0 %v4586
      %v4858 = vpop.f32.mrf.mxu0
      %v4859 = vadd.f32 0.0, %v4858
      %4860 = vmatmul.f32.gmra.mxu0 %v4591
      %v4861 = vpop.f32.mrf.mxu0
      %v4862 = vadd.f32 0.0, %v4861
      %4863 = vmatmul.f32.gmra.mxu0 %v4596
      %v4864 = vpop.f32.mrf.mxu0
      %v4865 = vadd.f32 0.0, %v4864
      %4866 = vmatmul.f32.gmra.mxu0 %v4601
      %v4867 = vpop.f32.mrf.mxu0
      %v4868 = vadd.f32 0.0, %v4867
      %4869 = vmatmul.f32.gmra.mxu0 %v4606
      %v4870 = vpop.f32.mrf.mxu0
      %v4871 = vadd.f32 0.0, %v4870
      %4872 = vmatmul.f32.gmra.mxu0 %v4611
      %v4873 = vpop.f32.mrf.mxu0
      %v4874 = vadd.f32 0.0, %v4873
      %4875 = vmatmul.f32.gmra.mxu0 %v4616
      %v4876 = vpop.f32.mrf.mxu0
      %v4877 = vadd.f32 0.0, %v4876
      %4878 = vmatmul.f32.gmra.mxu0 %v4621
      %v4879 = vpop.f32.mrf.mxu0
      %v4880 = vadd.f32 0.0, %v4879
      %4881 = vmatmul.f32.gmra.mxu0 %v4626
      %v4882 = vpop.f32.mrf.mxu0
      %v4883 = vadd.f32 0.0, %v4882
      %4884 = vmatmul.f32.gmra.mxu0 %v4631
      %v4885 = vpop.f32.mrf.mxu0
      %v4886 = vadd.f32 0.0, %v4885
      %4887 = vmatmul.f32.gmra.mxu0 %v4636
      %v4888 = vpop.f32.mrf.mxu0
      %v4889 = vadd.f32 0.0, %v4888
      %4890 = vmatmul.f32.gmra.mxu0 %v4641
      %v4891 = vpop.f32.mrf.mxu0
      %v4892 = vadd.f32 0.0, %v4891
      %4893 = vmatmul.f32.gmra.mxu0 %v4646
      %v4894 = vpop.f32.mrf.mxu0
      %v4895 = vadd.f32 0.0, %v4894
      %4896 = vmatmul.f32.gmra.mxu0 %v4651
      %v4897 = vpop.f32.mrf.mxu0
      %v4898 = vadd.f32 0.0, %v4897
      %4899 = vmatmul.f32.gmra.mxu0 %v4656
      %v4900 = vpop.f32.mrf.mxu0
      %v4901 = vadd.f32 0.0, %v4900
      %4902 = vmatmul.f32.gmra.mxu0 %v4661
      %v4903 = vpop.f32.mrf.mxu0
      %v4904 = vadd.f32 0.0, %v4903
      %4905 = vmatmul.f32.gmra.mxu0 %v4666
      %v4906 = vpop.f32.mrf.mxu0
      %v4907 = vadd.f32 0.0, %v4906
      %4908 = vmatmul.f32.gmra.mxu0 %v4671
      %v4909 = vpop.f32.mrf.mxu0
      %v4910 = vadd.f32 0.0, %v4909
      %4911 = vmatmul.f32.gmra.mxu0 %v4676
      %v4912 = vpop.f32.mrf.mxu0
      %v4913 = vadd.f32 0.0, %v4912
      %4914 = vmatmul.f32.gmra.mxu0 %v4681
      %v4915 = vpop.f32.mrf.mxu0
      %v4916 = vadd.f32 0.0, %v4915
      %4917 = vmatmul.f32.gmra.mxu0 %v4686
      %v4918 = vpop.f32.mrf.mxu0
      %v4919 = vadd.f32 0.0, %v4918
      %4920 = vmatmul.f32.gmra.mxu0 %v4691
      %v4921 = vpop.f32.mrf.mxu0
      %v4922 = vadd.f32 0.0, %v4921
      %4923 = vmatmul.f32.gmra.mxu0 %v4696
      %v4924 = vpop.f32.mrf.mxu0
      %v4925 = vadd.f32 0.0, %v4924
      %4926 = vmatmul.f32.gmra.mxu0 %v4701
      %v4927 = vpop.f32.mrf.mxu0
      %v4928 = vadd.f32 0.0, %v4927
      %4929 = vmatmul.f32.gmra.mxu0 %v4706
      %v4930 = vpop.f32.mrf.mxu0
      %v4931 = vadd.f32 0.0, %v4930
      %4932 = vmatmul.f32.gmra.mxu0 %v4711
      %v4933 = vpop.f32.mrf.mxu0
      %v4934 = vadd.f32 0.0, %v4933
      %4935 = vmatmul.f32.gmra.mxu0 %v4716
      %v4936 = vpop.f32.mrf.mxu0
      %v4937 = vadd.f32 0.0, %v4936
      %4938 = vmatmul.f32.gmra.mxu0 %v4721
      %v4939 = vpop.f32.mrf.mxu0
      %v4940 = vadd.f32 0.0, %v4939
      %4941 = vmatmul.f32.gmra.mxu0 %v4726
      %v4942 = vpop.f32.mrf.mxu0
      %v4943 = vadd.f32 0.0, %v4942
      %4944 = vmatmul.f32.gmra.mxu0 %v4731
      %v4945 = vpop.f32.mrf.mxu0
      %v4946 = vadd.f32 0.0, %v4945
      %4947 = vmatmul.f32.gmra.mxu0 %v4736
      %v4948 = vpop.f32.mrf.mxu0
      %v4949 = vadd.f32 0.0, %v4948
      %4950 = vmatmul.f32.gmra.mxu0 %v4741
      %v4951 = vpop.f32.mrf.mxu0
      %v4952 = vadd.f32 0.0, %v4951
      %4953 = vdwg.mxu0
      %4954 = vmatpush.msra.mxu0 %v4840
      %4955 = vmatpush.msra.mxu0 %v4839
      %4956 = vmatpush.msra.mxu0 %v4838
      %4957 = vmatpush.msra.mxu0 %v4837
      %4958 = vmatpush.msra.mxu0 %v4836
      %4959 = vmatpush.msra.mxu0 %v4835
      %4960 = vmatpush.msra.mxu0 %v4834
      %4961 = vmatpush.msra.mxu0 %v4833
      %4962 = vmatpush.msra.mxu0 %v4832
      %4963 = vmatpush.msra.mxu0 %v4831
      %4964 = vmatpush.msra.mxu0 %v4830
      %4965 = vmatpush.msra.mxu0 %v4829
      %4966 = vmatpush.msra.mxu0 %v4828
      %4967 = vmatpush.msra.mxu0 %v4827
      %4968 = vmatpush.msra.mxu0 %v4826
      %4969 = vmatpush.msra.mxu0 %v4825
      %4970 = vmatmul.f32.gmra.mxu0 %v4589
      %v4971 = vpop.f32.mrf.mxu0
      %v4972 = vadd.f32 %v4859, %v4971
      %4973 = vmatmul.f32.gmra.mxu0 %v4593
      %v4974 = vpop.f32.mrf.mxu0
      %v4975 = vadd.f32 %v4862, %v4974
      %4976 = vmatmul.f32.gmra.mxu0 %v4599
      %v4977 = vpop.f32.mrf.mxu0
      %v4978 = vadd.f32 %v4865, %v4977
      %4979 = vmatmul.f32.gmra.mxu0 %v4603
      %v4980 = vpop.f32.mrf.mxu0
      %v4981 = vadd.f32 %v4868, %v4980
      %4982 = vmatmul.f32.gmra.mxu0 %v4609
      %v4983 = vpop.f32.mrf.mxu0
      %v4984 = vadd.f32 %v4871, %v4983
      %4985 = vmatmul.f32.gmra.mxu0 %v4613
      %v4986 = vpop.f32.mrf.mxu0
      %v4987 = vadd.f32 %v4874, %v4986
      %4988 = vmatmul.f32.gmra.mxu0 %v4619
      %v4989 = vpop.f32.mrf.mxu0
      %v4990 = vadd.f32 %v4877, %v4989
      %4991 = vmatmul.f32.gmra.mxu0 %v4623
      %v4992 = vpop.f32.mrf.mxu0
      %v4993 = vadd.f32 %v4880, %v4992
      %4994 = vmatmul.f32.gmra.mxu0 %v4629
      %v4995 = vpop.f32.mrf.mxu0
      %v4996 = vadd.f32 %v4883, %v4995
      %4997 = vmatmul.f32.gmra.mxu0 %v4633
      %v4998 = vpop.f32.mrf.mxu0
      %v4999 = vadd.f32 %v4886, %v4998
      %5000 = vmatmul.f32.gmra.mxu0 %v4639
      %v5001 = vpop.f32.mrf.mxu0
      %v5002 = vadd.f32 %v4889, %v5001
      %5003 = vmatmul.f32.gmra.mxu0 %v4643
      %v5004 = vpop.f32.mrf.mxu0
      %v5005 = vadd.f32 %v4892, %v5004
      %5006 = vmatmul.f32.gmra.mxu0 %v4649
      %v5007 = vpop.f32.mrf.mxu0
      %v5008 = vadd.f32 %v4895, %v5007
      %5009 = vmatmul.f32.gmra.mxu0 %v4653
      %v5010 = vpop.f32.mrf.mxu0
      %v5011 = vadd.f32 %v4898, %v5010
      %5012 = vmatmul.f32.gmra.mxu0 %v4659
      %v5013 = vpop.f32.mrf.mxu0
      %v5014 = vadd.f32 %v4901, %v5013
      %5015 = vmatmul.f32.gmra.mxu0 %v4663
      %v5016 = vpop.f32.mrf.mxu0
      %v5017 = vadd.f32 %v4904, %v5016
      %5018 = vmatmul.f32.gmra.mxu0 %v4669
      %v5019 = vpop.f32.mrf.mxu0
      %v5020 = vadd.f32 %v4907, %v5019
      %5021 = vmatmul.f32.gmra.mxu0 %v4673
      %v5022 = vpop.f32.mrf.mxu0
      %v5023 = vadd.f32 %v4910, %v5022
      %5024 = vmatmul.f32.gmra.mxu0 %v4679
      %v5025 = vpop.f32.mrf.mxu0
      %v5026 = vadd.f32 %v4913, %v5025
      %5027 = vmatmul.f32.gmra.mxu0 %v4683
      %v5028 = vpop.f32.mrf.mxu0
      %v5029 = vadd.f32 %v4916, %v5028
      %5030 = vmatmul.f32.gmra.mxu0 %v4689
      %v5031 = vpop.f32.mrf.mxu0
      %v5032 = vadd.f32 %v4919, %v5031
      %5033 = vmatmul.f32.gmra.mxu0 %v4693
      %v5034 = vpop.f32.mrf.mxu0
      %v5035 = vadd.f32 %v4922, %v5034
      %5036 = vmatmul.f32.gmra.mxu0 %v4699
      %v5037 = vpop.f32.mrf.mxu0
      %v5038 = vadd.f32 %v4925, %v5037
      %5039 = vmatmul.f32.gmra.mxu0 %v4703
      %v5040 = vpop.f32.mrf.mxu0
      %v5041 = vadd.f32 %v4928, %v5040
      %5042 = vmatmul.f32.gmra.mxu0 %v4709
      %v5043 = vpop.f32.mrf.mxu0
      %v5044 = vadd.f32 %v4931, %v5043
      %5045 = vmatmul.f32.gmra.mxu0 %v4713
      %v5046 = vpop.f32.mrf.mxu0
      %v5047 = vadd.f32 %v4934, %v5046
      %5048 = vmatmul.f32.gmra.mxu0 %v4719
      %v5049 = vpop.f32.mrf.mxu0
      %v5050 = vadd.f32 %v4937, %v5049
      %5051 = vmatmul.f32.gmra.mxu0 %v4723
      %v5052 = vpop.f32.mrf.mxu0
      %v5053 = vadd.f32 %v4940, %v5052
      %5054 = vmatmul.f32.gmra.mxu0 %v4729
      %v5055 = vpop.f32.mrf.mxu0
      %v5056 = vadd.f32 %v4943, %v5055
      %5057 = vmatmul.f32.gmra.mxu0 %v4733
      %v5058 = vpop.f32.mrf.mxu0
      %v5059 = vadd.f32 %v4946, %v5058
      %5060 = vmatmul.f32.gmra.mxu0 %v4739
      %v5061 = vpop.f32.mrf.mxu0
      %v5062 = vadd.f32 %v4949, %v5061
      %5063 = vmatmul.f32.gmra.mxu0 %v4743
      %v5064 = vpop.f32.mrf.mxu0
      %v5065 = vadd.f32 %v4952, %v5064
      %5066 = vdwg.mxu0
      %v5067 = vadd.f32 %v4360, %v4972
      %v5068 = vadd.f32 %v4361, %v4975
      %v5069 = vadd.f32 %v4362, %v4978
      %v5070 = vadd.f32 %v4363, %v4981
      %v5071 = vadd.f32 %v4364, %v4984
      %v5072 = vadd.f32 %v4365, %v4987
      %v5073 = vadd.f32 %v4366, %v4990
      %v5074 = vadd.f32 %v4367, %v4993
      %v5075 = vadd.f32 %v4368, %v4996
      %v5076 = vadd.f32 %v4369, %v4999
      %v5077 = vadd.f32 %v4370, %v5002
      %v5078 = vadd.f32 %v4371, %v5005
      %v5079 = vadd.f32 %v4372, %v5008
      %v5080 = vadd.f32 %v4373, %v5011
      %v5081 = vadd.f32 %v4374, %v5014
      %v5082 = vadd.f32 %v4375, %v5017
      %v5083 = vadd.f32 %v4376, %v5020
      %v5084 = vadd.f32 %v4377, %v5023
      %v5085 = vadd.f32 %v4378, %v5026
      %v5086 = vadd.f32 %v4379, %v5029
      %v5087 = vadd.f32 %v4380, %v5032
      %v5088 = vadd.f32 %v4381, %v5035
      %v5089 = vadd.f32 %v4382, %v5038
      %v5090 = vadd.f32 %v4383, %v5041
      %v5091 = vadd.f32 %v4384, %v5044
      %v5092 = vadd.f32 %v4385, %v5047
      %v5093 = vadd.f32 %v4386, %v5050
      %v5094 = vadd.f32 %v4387, %v5053
      %v5095 = vadd.f32 %v4388, %v5056
      %v5096 = vadd.f32 %v4389, %v5059
      %v5097 = vadd.f32 %v4390, %v5062
      %v5098 = vadd.f32 %v4391, %v5065
      %v5099 = vld [vmem:[%s1682] sm:$0xfc]
      %v5100 = vld [vmem:[%s1682 + $0x8] sm:$0xfc]
      %v5101 = vld [vmem:[%s1682 + $0x20] sm:$0x3]
      %v5102 = vld [vmem:[%s1682 + $0x28] sm:$0x3]
      %v5103 = vld [vmem:[%s1682 + $0x30] sm:$0xfc]
      %v5104 = vld [vmem:[%s1682 + $0x38] sm:$0xfc]
      %v5105 = vld [vmem:[%s1682 + $0x50] sm:$0x3]
      %v5106 = vld [vmem:[%s1682 + $0x58] sm:$0x3]
      %v5107 = vld [vmem:[%s1682 + $0x60] sm:$0xfc]
      %v5108 = vld [vmem:[%s1682 + $0x68] sm:$0xfc]
      %v5109 = vld [vmem:[%s1682 + $0x80] sm:$0x3]
      %v5110 = vld [vmem:[%s1682 + $0x88] sm:$0x3]
      %v5111 = vld [vmem:[%s1682 + $0x90] sm:$0xfc]
      %v5112 = vld [vmem:[%s1682 + $0x98] sm:$0xfc]
      %v5113 = vld [vmem:[%s1682 + $0xb0] sm:$0x3]
      %v5114 = vld [vmem:[%s1682 + $0xb8] sm:$0x3]
      %v5115 = vld [vmem:[%s1682 + $0xc0] sm:$0xfc]
      %v5116 = vld [vmem:[%s1682 + $0xc8] sm:$0xfc]
      %v5117 = vld [vmem:[%s1682 + $0xe0] sm:$0x3]
      %v5118 = vld [vmem:[%s1682 + $0xe8] sm:$0x3]
      %v5119 = vld [vmem:[%s1682 + $0xf0] sm:$0xfc]
      %v5120 = vld [vmem:[%s1682 + $0xf8] sm:$0xfc]
      %v5121 = vld [vmem:[%s1682 + $0x110] sm:$0x3]
      %v5122 = vld [vmem:[%s1682 + $0x118] sm:$0x3]
      %v5123 = vld [vmem:[%s1682 + $0x120] sm:$0xfc]
      %v5124 = vld [vmem:[%s1682 + $0x128] sm:$0xfc]
      %v5125 = vld [vmem:[%s1682 + $0x140] sm:$0x3]
      %v5126 = vld [vmem:[%s1682 + $0x148] sm:$0x3]
      %v5127 = vld [vmem:[%s1682 + $0x150] sm:$0xfc]
      %v5128 = vld [vmem:[%s1682 + $0x158] sm:$0xfc]
      %v5129 = vld [vmem:[%s1682 + $0x170] sm:$0x3]
      %v5130 = vld [vmem:[%s1682 + $0x178] sm:$0x3]
      %v5131 = vld [vmem:[%s1682 + $0x180] sm:$0xfc]
      %v5132 = vld [vmem:[%s1682 + $0x188] sm:$0xfc]
      %v5133 = vld [vmem:[%s1682 + $0x1a0] sm:$0x3]
      %v5134 = vld [vmem:[%s1682 + $0x1a8] sm:$0x3]
      %v5135 = vld [vmem:[%s1682 + $0x1b0] sm:$0xfc]
      %v5136 = vld [vmem:[%s1682 + $0x1b8] sm:$0xfc]
      %v5137 = vld [vmem:[%s1682 + $0x1d0] sm:$0x3]
      %v5138 = vld [vmem:[%s1682 + $0x1d8] sm:$0x3]
      %v5139 = vld [vmem:[%s1682 + $0x1e0] sm:$0xfc]
      %v5140 = vld [vmem:[%s1682 + $0x1e8] sm:$0xfc]
      %v5141 = vld [vmem:[%s1682 + $0x200] sm:$0x3]
      %v5142 = vld [vmem:[%s1682 + $0x208] sm:$0x3]
      %v5143 = vld [vmem:[%s1682 + $0x210] sm:$0xfc]
      %v5144 = vld [vmem:[%s1682 + $0x218] sm:$0xfc]
      %v5145 = vld [vmem:[%s1682 + $0x230] sm:$0x3]
      %v5146 = vld [vmem:[%s1682 + $0x238] sm:$0x3]
      %v5147 = vld [vmem:[%s1682 + $0x240] sm:$0xfc]
      %v5148 = vld [vmem:[%s1682 + $0x248] sm:$0xfc]
      %v5149 = vld [vmem:[%s1682 + $0x260] sm:$0x3]
      %v5150 = vld [vmem:[%s1682 + $0x268] sm:$0x3]
      %v5151 = vld [vmem:[%s1682 + $0x270] sm:$0xfc]
      %v5152 = vld [vmem:[%s1682 + $0x278] sm:$0xfc]
      %v5153 = vld [vmem:[%s1682 + $0x290] sm:$0x3]
      %v5154 = vld [vmem:[%s1682 + $0x298] sm:$0x3]
      %v5155 = vld [vmem:[%s1682 + $0x2a0] sm:$0xfc]
      %v5156 = vld [vmem:[%s1682 + $0x2a8] sm:$0xfc]
      %v5157 = vld [vmem:[%s1682 + $0x2c0] sm:$0x3]
      %v5158 = vld [vmem:[%s1682 + $0x2c8] sm:$0x3]
      %v5159 = vld [vmem:[%s1682 + $0x2d0] sm:$0xfc]
      %v5160 = vld [vmem:[%s1682 + $0x2d8] sm:$0xfc]
      %v5161 = vld [vmem:[%s1682 + $0x2f0] sm:$0x3]
      %v5162 = vld [vmem:[%s1682 + $0x2f8] sm:$0x3]
      %v5227 = vrot.slane %v5099, 2
      %v5228 = vrot.slane %v4394, 2
      %v5229 = vsel %vm3521, %v5227, %v5228
      %v5230 = vrot.slane %v5100, 2
      %v5231 = vrot.slane %v4395, 2
      %v5232 = vsel %vm3521, %v5230, %v5231
      %v5233 = vrot.slane %v5101, 2
      %v5234 = vsel %vm3521, %v5228, %v5233
      %v5235 = vrot.slane %v5102, 2
      %v5236 = vsel %vm3521, %v5231, %v5235
      %v5237 = vrot.slane %v5103, 2
      %v5238 = vrot.slane %v4400, 2
      %v5239 = vsel %vm3521, %v5237, %v5238
      %v5240 = vrot.slane %v5104, 2
      %v5241 = vrot.slane %v4401, 2
      %v5242 = vsel %vm3521, %v5240, %v5241
      %v5243 = vrot.slane %v5105, 2
      %v5244 = vsel %vm3521, %v5238, %v5243
      %v5245 = vrot.slane %v5106, 2
      %v5246 = vsel %vm3521, %v5241, %v5245
      %v5247 = vrot.slane %v5107, 2
      %v5248 = vrot.slane %v4406, 2
      %v5249 = vsel %vm3521, %v5247, %v5248
      %v5250 = vrot.slane %v5108, 2
      %v5251 = vrot.slane %v4407, 2
      %v5252 = vsel %vm3521, %v5250, %v5251
      %v5253 = vrot.slane %v5109, 2
      %v5254 = vsel %vm3521, %v5248, %v5253
      %v5255 = vrot.slane %v5110, 2
      %v5256 = vsel %vm3521, %v5251, %v5255
      %v5257 = vrot.slane %v5111, 2
      %v5258 = vrot.slane %v4412, 2
      %v5259 = vsel %vm3521, %v5257, %v5258
      %v5260 = vrot.slane %v5112, 2
      %v5261 = vrot.slane %v4413, 2
      %v5262 = vsel %vm3521, %v5260, %v5261
      %v5263 = vrot.slane %v5113, 2
      %v5264 = vsel %vm3521, %v5258, %v5263
      %v5265 = vrot.slane %v5114, 2
      %v5266 = vsel %vm3521, %v5261, %v5265
      %v5267 = vrot.slane %v5115, 2
      %v5268 = vrot.slane %v4418, 2
      %v5269 = vsel %vm3521, %v5267, %v5268
      %v5270 = vrot.slane %v5116, 2
      %v5271 = vrot.slane %v4419, 2
      %v5272 = vsel %vm3521, %v5270, %v5271
      %v5273 = vrot.slane %v5117, 2
      %v5274 = vsel %vm3521, %v5268, %v5273
      %v5275 = vrot.slane %v5118, 2
      %v5276 = vsel %vm3521, %v5271, %v5275
      %v5277 = vrot.slane %v5119, 2
      %v5278 = vrot.slane %v4424, 2
      %v5279 = vsel %vm3521, %v5277, %v5278
      %v5280 = vrot.slane %v5120, 2
      %v5281 = vrot.slane %v4425, 2
      %v5282 = vsel %vm3521, %v5280, %v5281
      %v5283 = vrot.slane %v5121, 2
      %v5284 = vsel %vm3521, %v5278, %v5283
      %v5285 = vrot.slane %v5122, 2
      %v5286 = vsel %vm3521, %v5281, %v5285
      %v5287 = vrot.slane %v5123, 2
      %v5288 = vrot.slane %v4430, 2
      %v5289 = vsel %vm3521, %v5287, %v5288
      %v5290 = vrot.slane %v5124, 2
      %v5291 = vrot.slane %v4431, 2
      %v5292 = vsel %vm3521, %v5290, %v5291
      %v5293 = vrot.slane %v5125, 2
      %v5294 = vsel %vm3521, %v5288, %v5293
      %v5295 = vrot.slane %v5126, 2
      %v5296 = vsel %vm3521, %v5291, %v5295
      %v5297 = vrot.slane %v5127, 2
      %v5298 = vrot.slane %v4436, 2
      %v5299 = vsel %vm3521, %v5297, %v5298
      %v5300 = vrot.slane %v5128, 2
      %v5301 = vrot.slane %v4437, 2
      %v5302 = vsel %vm3521, %v5300, %v5301
      %v5303 = vrot.slane %v5129, 2
      %v5304 = vsel %vm3521, %v5298, %v5303
      %v5305 = vrot.slane %v5130, 2
      %v5306 = vsel %vm3521, %v5301, %v5305
      %v5307 = vrot.slane %v5131, 2
      %v5308 = vrot.slane %v4442, 2
      %v5309 = vsel %vm3521, %v5307, %v5308
      %v5310 = vrot.slane %v5132, 2
      %v5311 = vrot.slane %v4443, 2
      %v5312 = vsel %vm3521, %v5310, %v5311
      %v5313 = vrot.slane %v5133, 2
      %v5314 = vsel %vm3521, %v5308, %v5313
      %v5315 = vrot.slane %v5134, 2
      %v5316 = vsel %vm3521, %v5311, %v5315
      %v5317 = vrot.slane %v5135, 2
      %v5318 = vrot.slane %v4448, 2
      %v5319 = vsel %vm3521, %v5317, %v5318
      %v5320 = vrot.slane %v5136, 2
      %v5321 = vrot.slane %v4449, 2
      %v5322 = vsel %vm3521, %v5320, %v5321
      %v5323 = vrot.slane %v5137, 2
      %v5324 = vsel %vm3521, %v5318, %v5323
      %v5325 = vrot.slane %v5138, 2
      %v5326 = vsel %vm3521, %v5321, %v5325
      %v5327 = vrot.slane %v5139, 2
      %v5328 = vrot.slane %v4454, 2
      %v5329 = vsel %vm3521, %v5327, %v5328
      %v5330 = vrot.slane %v5140, 2
      %v5331 = vrot.slane %v4455, 2
      %v5332 = vsel %vm3521, %v5330, %v5331
      %v5333 = vrot.slane %v5141, 2
      %v5334 = vsel %vm3521, %v5328, %v5333
      %v5335 = vrot.slane %v5142, 2
      %v5336 = vsel %vm3521, %v5331, %v5335
      %v5337 = vrot.slane %v5143, 2
      %v5338 = vrot.slane %v4460, 2
      %v5339 = vsel %vm3521, %v5337, %v5338
      %v5340 = vrot.slane %v5144, 2
      %v5341 = vrot.slane %v4461, 2
      %v5342 = vsel %vm3521, %v5340, %v5341
      %v5343 = vrot.slane %v5145, 2
      %v5344 = vsel %vm3521, %v5338, %v5343
      %v5345 = vrot.slane %v5146, 2
      %v5346 = vsel %vm3521, %v5341, %v5345
      %v5347 = vrot.slane %v5147, 2
      %v5348 = vrot.slane %v4466, 2
      %v5349 = vsel %vm3521, %v5347, %v5348
      %v5350 = vrot.slane %v5148, 2
      %v5351 = vrot.slane %v4467, 2
      %v5352 = vsel %vm3521, %v5350, %v5351
      %v5353 = vrot.slane %v5149, 2
      %v5354 = vsel %vm3521, %v5348, %v5353
      %v5355 = vrot.slane %v5150, 2
      %v5356 = vsel %vm3521, %v5351, %v5355
      %v5357 = vrot.slane %v5151, 2
      %v5358 = vrot.slane %v4472, 2
      %v5359 = vsel %vm3521, %v5357, %v5358
      %v5360 = vrot.slane %v5152, 2
      %v5361 = vrot.slane %v4473, 2
      %v5362 = vsel %vm3521, %v5360, %v5361
      %v5363 = vrot.slane %v5153, 2
      %v5364 = vsel %vm3521, %v5358, %v5363
      %v5365 = vrot.slane %v5154, 2
      %v5366 = vsel %vm3521, %v5361, %v5365
      %v5367 = vrot.slane %v5155, 2
      %v5368 = vrot.slane %v4478, 2
      %v5369 = vsel %vm3521, %v5367, %v5368
      %v5370 = vrot.slane %v5156, 2
      %v5371 = vrot.slane %v4479, 2
      %v5372 = vsel %vm3521, %v5370, %v5371
      %v5373 = vrot.slane %v5157, 2
      %v5374 = vsel %vm3521, %v5368, %v5373
      %v5375 = vrot.slane %v5158, 2
      %v5376 = vsel %vm3521, %v5371, %v5375
      %v5377 = vrot.slane %v5159, 2
      %v5378 = vrot.slane %v4484, 2
      %v5379 = vsel %vm3521, %v5377, %v5378
      %v5380 = vrot.slane %v5160, 2
      %v5381 = vrot.slane %v4485, 2
      %v5382 = vsel %vm3521, %v5380, %v5381
      %v5383 = vrot.slane %v5161, 2
      %v5384 = vsel %vm3521, %v5378, %v5383
      %v5385 = vrot.slane %v5162, 2
      %v5386 = vsel %vm3521, %v5381, %v5385
      %s5451 = scalar_lea.vmem %s4, 1280
      %v5452 = vld [vmem:[%s5451] sm:$0xff]
      %v5453 = vld [vmem:[%s5451 + $0x8] sm:$0xff]
      %v5454 = vld [vmem:[%s5451 + $0x10] sm:$0xff]
      %v5455 = vld [vmem:[%s5451 + $0x18] sm:$0xff]
      %v5456 = vld [vmem:[%s5451 + $0x20] sm:$0xff]
      %v5457 = vld [vmem:[%s5451 + $0x28] sm:$0xff]
      %v5458 = vld [vmem:[%s5451 + $0x30] sm:$0xff]
      %v5459 = vld [vmem:[%s5451 + $0x38] sm:$0xff]
      %v5460 = vld [vmem:[%s5451 + $0x40] sm:$0xff]
      %v5461 = vld [vmem:[%s5451 + $0x48] sm:$0xff]
      %v5462 = vld [vmem:[%s5451 + $0x50] sm:$0xff]
      %v5463 = vld [vmem:[%s5451 + $0x58] sm:$0xff]
      %v5464 = vld [vmem:[%s5451 + $0x60] sm:$0xff]
      %v5465 = vld [vmem:[%s5451 + $0x68] sm:$0xff]
      %v5466 = vld [vmem:[%s5451 + $0x70] sm:$0xff]
      %v5467 = vld [vmem:[%s5451 + $0x78] sm:$0xff]
      %v5468 = vld [vmem:[%s5451 + $0x80] sm:$0xff]
      %v5469 = vld [vmem:[%s5451 + $0x88] sm:$0xff]
      %v5470 = vld [vmem:[%s5451 + $0x90] sm:$0xff]
      %v5471 = vld [vmem:[%s5451 + $0x98] sm:$0xff]
      %v5472 = vld [vmem:[%s5451 + $0xa0] sm:$0xff]
      %v5473 = vld [vmem:[%s5451 + $0xa8] sm:$0xff]
      %v5474 = vld [vmem:[%s5451 + $0xb0] sm:$0xff]
      %v5475 = vld [vmem:[%s5451 + $0xb8] sm:$0xff]
      %v5476 = vld [vmem:[%s5451 + $0xc0] sm:$0xff]
      %v5477 = vld [vmem:[%s5451 + $0xc8] sm:$0xff]
      %v5478 = vld [vmem:[%s5451 + $0xd0] sm:$0xff]
      %v5479 = vld [vmem:[%s5451 + $0xd8] sm:$0xff]
      %v5480 = vld [vmem:[%s5451 + $0xe0] sm:$0xff]
      %v5481 = vld [vmem:[%s5451 + $0xe8] sm:$0xff]
      %v5482 = vld [vmem:[%s5451 + $0xf0] sm:$0xff]
      %v5483 = vld [vmem:[%s5451 + $0xf8] sm:$0xff]
      %5484 = vmatpush.msra.mxu0 %v5467
      %5485 = vmatpush.msra.mxu0 %v5466
      %5486 = vmatpush.msra.mxu0 %v5465
      %5487 = vmatpush.msra.mxu0 %v5464
      %5488 = vmatpush.msra.mxu0 %v5463
      %5489 = vmatpush.msra.mxu0 %v5462
      %5490 = vmatpush.msra.mxu0 %v5461
      %5491 = vmatpush.msra.mxu0 %v5460
      %5492 = vmatpush.msra.mxu0 %v5459
      %5493 = vmatpush.msra.mxu0 %v5458
      %5494 = vmatpush.msra.mxu0 %v5457
      %5495 = vmatpush.msra.mxu0 %v5456
      %5496 = vmatpush.msra.mxu0 %v5455
      %5497 = vmatpush.msra.mxu0 %v5454
      %5498 = vmatpush.msra.mxu0 %v5453
      %5499 = vmatpush.msra.mxu0 %v5452
      %5500 = vmatmul.f32.gmra.mxu0 %v5229
      %v5501 = vpop.f32.mrf.mxu0
      %v5502 = vadd.f32 0.0, %v5501
      %5503 = vmatmul.f32.gmra.mxu0 %v5234
      %v5504 = vpop.f32.mrf.mxu0
      %v5505 = vadd.f32 0.0, %v5504
      %5506 = vmatmul.f32.gmra.mxu0 %v5239
      %v5507 = vpop.f32.mrf.mxu0
      %v5508 = vadd.f32 0.0, %v5507
      %5509 = vmatmul.f32.gmra.mxu0 %v5244
      %v5510 = vpop.f32.mrf.mxu0
      %v5511 = vadd.f32 0.0, %v5510
      %5512 = vmatmul.f32.gmra.mxu0 %v5249
      %v5513 = vpop.f32.mrf.mxu0
      %v5514 = vadd.f32 0.0, %v5513
      %5515 = vmatmul.f32.gmra.mxu0 %v5254
      %v5516 = vpop.f32.mrf.mxu0
      %v5517 = vadd.f32 0.0, %v5516
      %5518 = vmatmul.f32.gmra.mxu0 %v5259
      %v5519 = vpop.f32.mrf.mxu0
      %v5520 = vadd.f32 0.0, %v5519
      %5521 = vmatmul.f32.gmra.mxu0 %v5264
      %v5522 = vpop.f32.mrf.mxu0
      %v5523 = vadd.f32 0.0, %v5522
      %5524 = vmatmul.f32.gmra.mxu0 %v5269
      %v5525 = vpop.f32.mrf.mxu0
      %v5526 = vadd.f32 0.0, %v5525
      %5527 = vmatmul.f32.gmra.mxu0 %v5274
      %v5528 = vpop.f32.mrf.mxu0
      %v5529 = vadd.f32 0.0, %v5528
      %5530 = vmatmul.f32.gmra.mxu0 %v5279
      %v5531 = vpop.f32.mrf.mxu0
      %v5532 = vadd.f32 0.0, %v5531
      %5533 = vmatmul.f32.gmra.mxu0 %v5284
      %v5534 = vpop.f32.mrf.mxu0
      %v5535 = vadd.f32 0.0, %v5534
      %5536 = vmatmul.f32.gmra.mxu0 %v5289
      %v5537 = vpop.f32.mrf.mxu0
      %v5538 = vadd.f32 0.0, %v5537
      %5539 = vmatmul.f32.gmra.mxu0 %v5294
      %v5540 = vpop.f32.mrf.mxu0
      %v5541 = vadd.f32 0.0, %v5540
      %5542 = vmatmul.f32.gmra.mxu0 %v5299
      %v5543 = vpop.f32.mrf.mxu0
      %v5544 = vadd.f32 0.0, %v5543
      %5545 = vmatmul.f32.gmra.mxu0 %v5304
      %v5546 = vpop.f32.mrf.mxu0
      %v5547 = vadd.f32 0.0, %v5546
      %5548 = vmatmul.f32.gmra.mxu0 %v5309
      %v5549 = vpop.f32.mrf.mxu0
      %v5550 = vadd.f32 0.0, %v5549
      %5551 = vmatmul.f32.gmra.mxu0 %v5314
      %v5552 = vpop.f32.mrf.mxu0
      %v5553 = vadd.f32 0.0, %v5552
      %5554 = vmatmul.f32.gmra.mxu0 %v5319
      %v5555 = vpop.f32.mrf.mxu0
      %v5556 = vadd.f32 0.0, %v5555
      %5557 = vmatmul.f32.gmra.mxu0 %v5324
      %v5558 = vpop.f32.mrf.mxu0
      %v5559 = vadd.f32 0.0, %v5558
      %5560 = vmatmul.f32.gmra.mxu0 %v5329
      %v5561 = vpop.f32.mrf.mxu0
      %v5562 = vadd.f32 0.0, %v5561
      %5563 = vmatmul.f32.gmra.mxu0 %v5334
      %v5564 = vpop.f32.mrf.mxu0
      %v5565 = vadd.f32 0.0, %v5564
      %5566 = vmatmul.f32.gmra.mxu0 %v5339
      %v5567 = vpop.f32.mrf.mxu0
      %v5568 = vadd.f32 0.0, %v5567
      %5569 = vmatmul.f32.gmra.mxu0 %v5344
      %v5570 = vpop.f32.mrf.mxu0
      %v5571 = vadd.f32 0.0, %v5570
      %5572 = vmatmul.f32.gmra.mxu0 %v5349
      %v5573 = vpop.f32.mrf.mxu0
      %v5574 = vadd.f32 0.0, %v5573
      %5575 = vmatmul.f32.gmra.mxu0 %v5354
      %v5576 = vpop.f32.mrf.mxu0
      %v5577 = vadd.f32 0.0, %v5576
      %5578 = vmatmul.f32.gmra.mxu0 %v5359
      %v5579 = vpop.f32.mrf.mxu0
      %v5580 = vadd.f32 0.0, %v5579
      %5581 = vmatmul.f32.gmra.mxu0 %v5364
      %v5582 = vpop.f32.mrf.mxu0
      %v5583 = vadd.f32 0.0, %v5582
      %5584 = vmatmul.f32.gmra.mxu0 %v5369
      %v5585 = vpop.f32.mrf.mxu0
      %v5586 = vadd.f32 0.0, %v5585
      %5587 = vmatmul.f32.gmra.mxu0 %v5374
      %v5588 = vpop.f32.mrf.mxu0
      %v5589 = vadd.f32 0.0, %v5588
      %5590 = vmatmul.f32.gmra.mxu0 %v5379
      %v5591 = vpop.f32.mrf.mxu0
      %v5592 = vadd.f32 0.0, %v5591
      %5593 = vmatmul.f32.gmra.mxu0 %v5384
      %v5594 = vpop.f32.mrf.mxu0
      %v5595 = vadd.f32 0.0, %v5594
      %5596 = vdwg.mxu0
      %5597 = vmatpush.msra.mxu0 %v5483
      %5598 = vmatpush.msra.mxu0 %v5482
      %5599 = vmatpush.msra.mxu0 %v5481
      %5600 = vmatpush.msra.mxu0 %v5480
      %5601 = vmatpush.msra.mxu0 %v5479
      %5602 = vmatpush.msra.mxu0 %v5478
      %5603 = vmatpush.msra.mxu0 %v5477
      %5604 = vmatpush.msra.mxu0 %v5476
      %5605 = vmatpush.msra.mxu0 %v5475
      %5606 = vmatpush.msra.mxu0 %v5474
      %5607 = vmatpush.msra.mxu0 %v5473
      %5608 = vmatpush.msra.mxu0 %v5472
      %5609 = vmatpush.msra.mxu0 %v5471
      %5610 = vmatpush.msra.mxu0 %v5470
      %5611 = vmatpush.msra.mxu0 %v5469
      %5612 = vmatpush.msra.mxu0 %v5468
      %5613 = vmatmul.f32.gmra.mxu0 %v5232
      %v5614 = vpop.f32.mrf.mxu0
      %v5615 = vadd.f32 %v5502, %v5614
      %5616 = vmatmul.f32.gmra.mxu0 %v5236
      %v5617 = vpop.f32.mrf.mxu0
      %v5618 = vadd.f32 %v5505, %v5617
      %5619 = vmatmul.f32.gmra.mxu0 %v5242
      %v5620 = vpop.f32.mrf.mxu0
      %v5621 = vadd.f32 %v5508, %v5620
      %5622 = vmatmul.f32.gmra.mxu0 %v5246
      %v5623 = vpop.f32.mrf.mxu0
      %v5624 = vadd.f32 %v5511, %v5623
      %5625 = vmatmul.f32.gmra.mxu0 %v5252
      %v5626 = vpop.f32.mrf.mxu0
      %v5627 = vadd.f32 %v5514, %v5626
      %5628 = vmatmul.f32.gmra.mxu0 %v5256
      %v5629 = vpop.f32.mrf.mxu0
      %v5630 = vadd.f32 %v5517, %v5629
      %5631 = vmatmul.f32.gmra.mxu0 %v5262
      %v5632 = vpop.f32.mrf.mxu0
      %v5633 = vadd.f32 %v5520, %v5632
      %5634 = vmatmul.f32.gmra.mxu0 %v5266
      %v5635 = vpop.f32.mrf.mxu0
      %v5636 = vadd.f32 %v5523, %v5635
      %5637 = vmatmul.f32.gmra.mxu0 %v5272
      %v5638 = vpop.f32.mrf.mxu0
      %v5639 = vadd.f32 %v5526, %v5638
      %5640 = vmatmul.f32.gmra.mxu0 %v5276
      %v5641 = vpop.f32.mrf.mxu0
      %v5642 = vadd.f32 %v5529, %v5641
      %5643 = vmatmul.f32.gmra.mxu0 %v5282
      %v5644 = vpop.f32.mrf.mxu0
      %v5645 = vadd.f32 %v5532, %v5644
      %5646 = vmatmul.f32.gmra.mxu0 %v5286
      %v5647 = vpop.f32.mrf.mxu0
      %v5648 = vadd.f32 %v5535, %v5647
      %5649 = vmatmul.f32.gmra.mxu0 %v5292
      %v5650 = vpop.f32.mrf.mxu0
      %v5651 = vadd.f32 %v5538, %v5650
      %5652 = vmatmul.f32.gmra.mxu0 %v5296
      %v5653 = vpop.f32.mrf.mxu0
      %v5654 = vadd.f32 %v5541, %v5653
      %5655 = vmatmul.f32.gmra.mxu0 %v5302
      %v5656 = vpop.f32.mrf.mxu0
      %v5657 = vadd.f32 %v5544, %v5656
      %5658 = vmatmul.f32.gmra.mxu0 %v5306
      %v5659 = vpop.f32.mrf.mxu0
      %v5660 = vadd.f32 %v5547, %v5659
      %5661 = vmatmul.f32.gmra.mxu0 %v5312
      %v5662 = vpop.f32.mrf.mxu0
      %v5663 = vadd.f32 %v5550, %v5662
      %5664 = vmatmul.f32.gmra.mxu0 %v5316
      %v5665 = vpop.f32.mrf.mxu0
      %v5666 = vadd.f32 %v5553, %v5665
      %5667 = vmatmul.f32.gmra.mxu0 %v5322
      %v5668 = vpop.f32.mrf.mxu0
      %v5669 = vadd.f32 %v5556, %v5668
      %5670 = vmatmul.f32.gmra.mxu0 %v5326
      %v5671 = vpop.f32.mrf.mxu0
      %v5672 = vadd.f32 %v5559, %v5671
      %5673 = vmatmul.f32.gmra.mxu0 %v5332
      %v5674 = vpop.f32.mrf.mxu0
      %v5675 = vadd.f32 %v5562, %v5674
      %5676 = vmatmul.f32.gmra.mxu0 %v5336
      %v5677 = vpop.f32.mrf.mxu0
      %v5678 = vadd.f32 %v5565, %v5677
      %5679 = vmatmul.f32.gmra.mxu0 %v5342
      %v5680 = vpop.f32.mrf.mxu0
      %v5681 = vadd.f32 %v5568, %v5680
      %5682 = vmatmul.f32.gmra.mxu0 %v5346
      %v5683 = vpop.f32.mrf.mxu0
      %v5684 = vadd.f32 %v5571, %v5683
      %5685 = vmatmul.f32.gmra.mxu0 %v5352
      %v5686 = vpop.f32.mrf.mxu0
      %v5687 = vadd.f32 %v5574, %v5686
      %5688 = vmatmul.f32.gmra.mxu0 %v5356
      %v5689 = vpop.f32.mrf.mxu0
      %v5690 = vadd.f32 %v5577, %v5689
      %5691 = vmatmul.f32.gmra.mxu0 %v5362
      %v5692 = vpop.f32.mrf.mxu0
      %v5693 = vadd.f32 %v5580, %v5692
      %5694 = vmatmul.f32.gmra.mxu0 %v5366
      %v5695 = vpop.f32.mrf.mxu0
      %v5696 = vadd.f32 %v5583, %v5695
      %5697 = vmatmul.f32.gmra.mxu0 %v5372
      %v5698 = vpop.f32.mrf.mxu0
      %v5699 = vadd.f32 %v5586, %v5698
      %5700 = vmatmul.f32.gmra.mxu0 %v5376
      %v5701 = vpop.f32.mrf.mxu0
      %v5702 = vadd.f32 %v5589, %v5701
      %5703 = vmatmul.f32.gmra.mxu0 %v5382
      %v5704 = vpop.f32.mrf.mxu0
      %v5705 = vadd.f32 %v5592, %v5704
      %5706 = vmatmul.f32.gmra.mxu0 %v5386
      %v5707 = vpop.f32.mrf.mxu0
      %v5708 = vadd.f32 %v5595, %v5707
      %5709 = vdwg.mxu0
      %v5710 = vadd.f32 %v5067, %v5615
      %v5711 = vadd.f32 %v5068, %v5618
      %v5712 = vadd.f32 %v5069, %v5621
      %v5713 = vadd.f32 %v5070, %v5624
      %v5714 = vadd.f32 %v5071, %v5627
      %v5715 = vadd.f32 %v5072, %v5630
      %v5716 = vadd.f32 %v5073, %v5633
      %v5717 = vadd.f32 %v5074, %v5636
      %v5718 = vadd.f32 %v5075, %v5639
      %v5719 = vadd.f32 %v5076, %v5642
      %v5720 = vadd.f32 %v5077, %v5645
      %v5721 = vadd.f32 %v5078, %v5648
      %v5722 = vadd.f32 %v5079, %v5651
      %v5723 = vadd.f32 %v5080, %v5654
      %v5724 = vadd.f32 %v5081, %v5657
      %v5725 = vadd.f32 %v5082, %v5660
      %v5726 = vadd.f32 %v5083, %v5663
      %v5727 = vadd.f32 %v5084, %v5666
      %v5728 = vadd.f32 %v5085, %v5669
      %v5729 = vadd.f32 %v5086, %v5672
      %v5730 = vadd.f32 %v5087, %v5675
      %v5731 = vadd.f32 %v5088, %v5678
      %v5732 = vadd.f32 %v5089, %v5681
      %v5733 = vadd.f32 %v5090, %v5684
      %v5734 = vadd.f32 %v5091, %v5687
      %v5735 = vadd.f32 %v5092, %v5690
      %v5736 = vadd.f32 %v5093, %v5693
      %v5737 = vadd.f32 %v5094, %v5696
      %v5738 = vadd.f32 %v5095, %v5699
      %v5739 = vadd.f32 %v5096, %v5702
      %v5740 = vadd.f32 %v5097, %v5705
      %v5741 = vadd.f32 %v5098, %v5708
      %s5742 = scalar_lea.vmem [#allocation2], 96
      %v5743 = vld [vmem:[%s5742] sm:$0xff]
      %v5744 = vld [vmem:[%s5742 + $0x8] sm:$0xff]
      %v5745 = vld [vmem:[%s5742 + $0x10] sm:$0xff]
      %v5746 = vld [vmem:[%s5742 + $0x18] sm:$0xff]
      %v5747 = vld [vmem:[%s5742 + $0x30] sm:$0xff]
      %v5748 = vld [vmem:[%s5742 + $0x38] sm:$0xff]
      %v5749 = vld [vmem:[%s5742 + $0x40] sm:$0xff]
      %v5750 = vld [vmem:[%s5742 + $0x48] sm:$0xff]
      %v5751 = vld [vmem:[%s5742 + $0x60] sm:$0xff]
      %v5752 = vld [vmem:[%s5742 + $0x68] sm:$0xff]
      %v5753 = vld [vmem:[%s5742 + $0x70] sm:$0xff]
      %v5754 = vld [vmem:[%s5742 + $0x78] sm:$0xff]
      %v5755 = vld [vmem:[%s5742 + $0x90] sm:$0xff]
      %v5756 = vld [vmem:[%s5742 + $0x98] sm:$0xff]
      %v5757 = vld [vmem:[%s5742 + $0xa0] sm:$0xff]
      %v5758 = vld [vmem:[%s5742 + $0xa8] sm:$0xff]
      %v5759 = vld [vmem:[%s5742 + $0xc0] sm:$0xff]
      %v5760 = vld [vmem:[%s5742 + $0xc8] sm:$0xff]
      %v5761 = vld [vmem:[%s5742 + $0xd0] sm:$0xff]
      %v5762 = vld [vmem:[%s5742 + $0xd8] sm:$0xff]
      %v5763 = vld [vmem:[%s5742 + $0xf0] sm:$0xff]
      %v5764 = vld [vmem:[%s5742 + $0xf8] sm:$0xff]
      %v5765 = vld [vmem:[%s5742 + $0x100] sm:$0xff]
      %v5766 = vld [vmem:[%s5742 + $0x108] sm:$0xff]
      %v5767 = vld [vmem:[%s5742 + $0x120] sm:$0xff]
      %v5768 = vld [vmem:[%s5742 + $0x128] sm:$0xff]
      %v5769 = vld [vmem:[%s5742 + $0x130] sm:$0xff]
      %v5770 = vld [vmem:[%s5742 + $0x138] sm:$0xff]
      %v5771 = vld [vmem:[%s5742 + $0x150] sm:$0xff]
      %v5772 = vld [vmem:[%s5742 + $0x158] sm:$0xff]
      %v5773 = vld [vmem:[%s5742 + $0x160] sm:$0xff]
      %v5774 = vld [vmem:[%s5742 + $0x168] sm:$0xff]
      %v5775 = vld [vmem:[%s5742 + $0x180] sm:$0xff]
      %v5776 = vld [vmem:[%s5742 + $0x188] sm:$0xff]
      %v5777 = vld [vmem:[%s5742 + $0x190] sm:$0xff]
      %v5778 = vld [vmem:[%s5742 + $0x198] sm:$0xff]
      %v5779 = vld [vmem:[%s5742 + $0x1b0] sm:$0xff]
      %v5780 = vld [vmem:[%s5742 + $0x1b8] sm:$0xff]
      %v5781 = vld [vmem:[%s5742 + $0x1c0] sm:$0xff]
      %v5782 = vld [vmem:[%s5742 + $0x1c8] sm:$0xff]
      %v5783 = vld [vmem:[%s5742 + $0x1e0] sm:$0xff]
      %v5784 = vld [vmem:[%s5742 + $0x1e8] sm:$0xff]
      %v5785 = vld [vmem:[%s5742 + $0x1f0] sm:$0xff]
      %v5786 = vld [vmem:[%s5742 + $0x1f8] sm:$0xff]
      %v5787 = vld [vmem:[%s5742 + $0x210] sm:$0xff]
      %v5788 = vld [vmem:[%s5742 + $0x218] sm:$0xff]
      %v5789 = vld [vmem:[%s5742 + $0x220] sm:$0xff]
      %v5790 = vld [vmem:[%s5742 + $0x228] sm:$0xff]
      %v5791 = vld [vmem:[%s5742 + $0x240] sm:$0xff]
      %v5792 = vld [vmem:[%s5742 + $0x248] sm:$0xff]
      %v5793 = vld [vmem:[%s5742 + $0x250] sm:$0xff]
      %v5794 = vld [vmem:[%s5742 + $0x258] sm:$0xff]
      %v5795 = vld [vmem:[%s5742 + $0x270] sm:$0xff]
      %v5796 = vld [vmem:[%s5742 + $0x278] sm:$0xff]
      %v5797 = vld [vmem:[%s5742 + $0x280] sm:$0xff]
      %v5798 = vld [vmem:[%s5742 + $0x288] sm:$0xff]
      %v5799 = vld [vmem:[%s5742 + $0x2a0] sm:$0xff]
      %v5800 = vld [vmem:[%s5742 + $0x2a8] sm:$0xff]
      %v5801 = vld [vmem:[%s5742 + $0x2b0] sm:$0xff]
      %v5802 = vld [vmem:[%s5742 + $0x2b8] sm:$0xff]
      %v5803 = vld [vmem:[%s5742 + $0x2d0] sm:$0xff]
      %v5804 = vld [vmem:[%s5742 + $0x2d8] sm:$0xff]
      %v5805 = vld [vmem:[%s5742 + $0x2e0] sm:$0xff]
      %v5806 = vld [vmem:[%s5742 + $0x2e8] sm:$0xff]
      %s5807 = scalar_lea.vmem %s4, 1536
      %v5808 = vld [vmem:[%s5807] sm:$0xff]
      %v5809 = vld [vmem:[%s5807 + $0x8] sm:$0xff]
      %v5810 = vld [vmem:[%s5807 + $0x10] sm:$0xff]
      %v5811 = vld [vmem:[%s5807 + $0x18] sm:$0xff]
      %v5812 = vld [vmem:[%s5807 + $0x20] sm:$0xff]
      %v5813 = vld [vmem:[%s5807 + $0x28] sm:$0xff]
      %v5814 = vld [vmem:[%s5807 + $0x30] sm:$0xff]
      %v5815 = vld [vmem:[%s5807 + $0x38] sm:$0xff]
      %v5816 = vld [vmem:[%s5807 + $0x40] sm:$0xff]
      %v5817 = vld [vmem:[%s5807 + $0x48] sm:$0xff]
      %v5818 = vld [vmem:[%s5807 + $0x50] sm:$0xff]
      %v5819 = vld [vmem:[%s5807 + $0x58] sm:$0xff]
      %v5820 = vld [vmem:[%s5807 + $0x60] sm:$0xff]
      %v5821 = vld [vmem:[%s5807 + $0x68] sm:$0xff]
      %v5822 = vld [vmem:[%s5807 + $0x70] sm:$0xff]
      %v5823 = vld [vmem:[%s5807 + $0x78] sm:$0xff]
      %v5824 = vld [vmem:[%s5807 + $0x80] sm:$0xff]
      %v5825 = vld [vmem:[%s5807 + $0x88] sm:$0xff]
      %v5826 = vld [vmem:[%s5807 + $0x90] sm:$0xff]
      %v5827 = vld [vmem:[%s5807 + $0x98] sm:$0xff]
      %v5828 = vld [vmem:[%s5807 + $0xa0] sm:$0xff]
      %v5829 = vld [vmem:[%s5807 + $0xa8] sm:$0xff]
      %v5830 = vld [vmem:[%s5807 + $0xb0] sm:$0xff]
      %v5831 = vld [vmem:[%s5807 + $0xb8] sm:$0xff]
      %v5832 = vld [vmem:[%s5807 + $0xc0] sm:$0xff]
      %v5833 = vld [vmem:[%s5807 + $0xc8] sm:$0xff]
      %v5834 = vld [vmem:[%s5807 + $0xd0] sm:$0xff]
      %v5835 = vld [vmem:[%s5807 + $0xd8] sm:$0xff]
      %v5836 = vld [vmem:[%s5807 + $0xe0] sm:$0xff]
      %v5837 = vld [vmem:[%s5807 + $0xe8] sm:$0xff]
      %v5838 = vld [vmem:[%s5807 + $0xf0] sm:$0xff]
      %v5839 = vld [vmem:[%s5807 + $0xf8] sm:$0xff]
      %5840 = vmatpush.msra.mxu0 %v5823
      %5841 = vmatpush.msra.mxu0 %v5822
      %5842 = vmatpush.msra.mxu0 %v5821
      %5843 = vmatpush.msra.mxu0 %v5820
      %5844 = vmatpush.msra.mxu0 %v5819
      %5845 = vmatpush.msra.mxu0 %v5818
      %5846 = vmatpush.msra.mxu0 %v5817
      %5847 = vmatpush.msra.mxu0 %v5816
      %5848 = vmatpush.msra.mxu0 %v5815
      %5849 = vmatpush.msra.mxu0 %v5814
      %5850 = vmatpush.msra.mxu0 %v5813
      %5851 = vmatpush.msra.mxu0 %v5812
      %5852 = vmatpush.msra.mxu0 %v5811
      %5853 = vmatpush.msra.mxu0 %v5810
      %5854 = vmatpush.msra.mxu0 %v5809
      %5855 = vmatpush.msra.mxu0 %v5808
      %5856 = vmatmul.f32.gmra.mxu0 %v5743
      %v5857 = vpop.f32.mrf.mxu0
      %v5858 = vadd.f32 0.0, %v5857
      %5859 = vmatmul.f32.gmra.mxu0 %v5745
      %v5860 = vpop.f32.mrf.mxu0
      %v5861 = vadd.f32 0.0, %v5860
      %5862 = vmatmul.f32.gmra.mxu0 %v5747
      %v5863 = vpop.f32.mrf.mxu0
      %v5864 = vadd.f32 0.0, %v5863
      %5865 = vmatmul.f32.gmra.mxu0 %v5749
      %v5866 = vpop.f32.mrf.mxu0
      %v5867 = vadd.f32 0.0, %v5866
      %5868 = vmatmul.f32.gmra.mxu0 %v5751
      %v5869 = vpop.f32.mrf.mxu0
      %v5870 = vadd.f32 0.0, %v5869
      %5871 = vmatmul.f32.gmra.mxu0 %v5753
      %v5872 = vpop.f32.mrf.mxu0
      %v5873 = vadd.f32 0.0, %v5872
      %5874 = vmatmul.f32.gmra.mxu0 %v5755
      %v5875 = vpop.f32.mrf.mxu0
      %v5876 = vadd.f32 0.0, %v5875
      %5877 = vmatmul.f32.gmra.mxu0 %v5757
      %v5878 = vpop.f32.mrf.mxu0
      %v5879 = vadd.f32 0.0, %v5878
      %5880 = vmatmul.f32.gmra.mxu0 %v5759
      %v5881 = vpop.f32.mrf.mxu0
      %v5882 = vadd.f32 0.0, %v5881
      %5883 = vmatmul.f32.gmra.mxu0 %v5761
      %v5884 = vpop.f32.mrf.mxu0
      %v5885 = vadd.f32 0.0, %v5884
      %5886 = vmatmul.f32.gmra.mxu0 %v5763
      %v5887 = vpop.f32.mrf.mxu0
      %v5888 = vadd.f32 0.0, %v5887
      %5889 = vmatmul.f32.gmra.mxu0 %v5765
      %v5890 = vpop.f32.mrf.mxu0
      %v5891 = vadd.f32 0.0, %v5890
      %5892 = vmatmul.f32.gmra.mxu0 %v5767
      %v5893 = vpop.f32.mrf.mxu0
      %v5894 = vadd.f32 0.0, %v5893
      %5895 = vmatmul.f32.gmra.mxu0 %v5769
      %v5896 = vpop.f32.mrf.mxu0
      %v5897 = vadd.f32 0.0, %v5896
      %5898 = vmatmul.f32.gmra.mxu0 %v5771
      %v5899 = vpop.f32.mrf.mxu0
      %v5900 = vadd.f32 0.0, %v5899
      %5901 = vmatmul.f32.gmra.mxu0 %v5773
      %v5902 = vpop.f32.mrf.mxu0
      %v5903 = vadd.f32 0.0, %v5902
      %5904 = vmatmul.f32.gmra.mxu0 %v5775
      %v5905 = vpop.f32.mrf.mxu0
      %v5906 = vadd.f32 0.0, %v5905
      %5907 = vmatmul.f32.gmra.mxu0 %v5777
      %v5908 = vpop.f32.mrf.mxu0
      %v5909 = vadd.f32 0.0, %v5908
      %5910 = vmatmul.f32.gmra.mxu0 %v5779
      %v5911 = vpop.f32.mrf.mxu0
      %v5912 = vadd.f32 0.0, %v5911
      %5913 = vmatmul.f32.gmra.mxu0 %v5781
      %v5914 = vpop.f32.mrf.mxu0
      %v5915 = vadd.f32 0.0, %v5914
      %5916 = vmatmul.f32.gmra.mxu0 %v5783
      %v5917 = vpop.f32.mrf.mxu0
      %v5918 = vadd.f32 0.0, %v5917
      %5919 = vmatmul.f32.gmra.mxu0 %v5785
      %v5920 = vpop.f32.mrf.mxu0
      %v5921 = vadd.f32 0.0, %v5920
      %5922 = vmatmul.f32.gmra.mxu0 %v5787
      %v5923 = vpop.f32.mrf.mxu0
      %v5924 = vadd.f32 0.0, %v5923
      %5925 = vmatmul.f32.gmra.mxu0 %v5789
      %v5926 = vpop.f32.mrf.mxu0
      %v5927 = vadd.f32 0.0, %v5926
      %5928 = vmatmul.f32.gmra.mxu0 %v5791
      %v5929 = vpop.f32.mrf.mxu0
      %v5930 = vadd.f32 0.0, %v5929
      %5931 = vmatmul.f32.gmra.mxu0 %v5793
      %v5932 = vpop.f32.mrf.mxu0
      %v5933 = vadd.f32 0.0, %v5932
      %5934 = vmatmul.f32.gmra.mxu0 %v5795
      %v5935 = vpop.f32.mrf.mxu0
      %v5936 = vadd.f32 0.0, %v5935
      %5937 = vmatmul.f32.gmra.mxu0 %v5797
      %v5938 = vpop.f32.mrf.mxu0
      %v5939 = vadd.f32 0.0, %v5938
      %5940 = vmatmul.f32.gmra.mxu0 %v5799
      %v5941 = vpop.f32.mrf.mxu0
      %v5942 = vadd.f32 0.0, %v5941
      %5943 = vmatmul.f32.gmra.mxu0 %v5801
      %v5944 = vpop.f32.mrf.mxu0
      %v5945 = vadd.f32 0.0, %v5944
      %5946 = vmatmul.f32.gmra.mxu0 %v5803
      %v5947 = vpop.f32.mrf.mxu0
      %v5948 = vadd.f32 0.0, %v5947
      %5949 = vmatmul.f32.gmra.mxu0 %v5805
      %v5950 = vpop.f32.mrf.mxu0
      %v5951 = vadd.f32 0.0, %v5950
      %5952 = vdwg.mxu0
      %5953 = vmatpush.msra.mxu0 %v5839
      %5954 = vmatpush.msra.mxu0 %v5838
      %5955 = vmatpush.msra.mxu0 %v5837
      %5956 = vmatpush.msra.mxu0 %v5836
      %5957 = vmatpush.msra.mxu0 %v5835
      %5958 = vmatpush.msra.mxu0 %v5834
      %5959 = vmatpush.msra.mxu0 %v5833
      %5960 = vmatpush.msra.mxu0 %v5832
      %5961 = vmatpush.msra.mxu0 %v5831
      %5962 = vmatpush.msra.mxu0 %v5830
      %5963 = vmatpush.msra.mxu0 %v5829
      %5964 = vmatpush.msra.mxu0 %v5828
      %5965 = vmatpush.msra.mxu0 %v5827
      %5966 = vmatpush.msra.mxu0 %v5826
      %5967 = vmatpush.msra.mxu0 %v5825
      %5968 = vmatpush.msra.mxu0 %v5824
      %5969 = vmatmul.f32.gmra.mxu0 %v5744
      %v5970 = vpop.f32.mrf.mxu0
      %v5971 = vadd.f32 %v5858, %v5970
      %5972 = vmatmul.f32.gmra.mxu0 %v5746
      %v5973 = vpop.f32.mrf.mxu0
      %v5974 = vadd.f32 %v5861, %v5973
      %5975 = vmatmul.f32.gmra.mxu0 %v5748
      %v5976 = vpop.f32.mrf.mxu0
      %v5977 = vadd.f32 %v5864, %v5976
      %5978 = vmatmul.f32.gmra.mxu0 %v5750
      %v5979 = vpop.f32.mrf.mxu0
      %v5980 = vadd.f32 %v5867, %v5979
      %5981 = vmatmul.f32.gmra.mxu0 %v5752
      %v5982 = vpop.f32.mrf.mxu0
      %v5983 = vadd.f32 %v5870, %v5982
      %5984 = vmatmul.f32.gmra.mxu0 %v5754
      %v5985 = vpop.f32.mrf.mxu0
      %v5986 = vadd.f32 %v5873, %v5985
      %5987 = vmatmul.f32.gmra.mxu0 %v5756
      %v5988 = vpop.f32.mrf.mxu0
      %v5989 = vadd.f32 %v5876, %v5988
      %5990 = vmatmul.f32.gmra.mxu0 %v5758
      %v5991 = vpop.f32.mrf.mxu0
      %v5992 = vadd.f32 %v5879, %v5991
      %5993 = vmatmul.f32.gmra.mxu0 %v5760
      %v5994 = vpop.f32.mrf.mxu0
      %v5995 = vadd.f32 %v5882, %v5994
      %5996 = vmatmul.f32.gmra.mxu0 %v5762
      %v5997 = vpop.f32.mrf.mxu0
      %v5998 = vadd.f32 %v5885, %v5997
      %5999 = vmatmul.f32.gmra.mxu0 %v5764
      %v6000 = vpop.f32.mrf.mxu0
      %v6001 = vadd.f32 %v5888, %v6000
      %6002 = vmatmul.f32.gmra.mxu0 %v5766
      %v6003 = vpop.f32.mrf.mxu0
      %v6004 = vadd.f32 %v5891, %v6003
      %6005 = vmatmul.f32.gmra.mxu0 %v5768
      %v6006 = vpop.f32.mrf.mxu0
      %v6007 = vadd.f32 %v5894, %v6006
      %6008 = vmatmul.f32.gmra.mxu0 %v5770
      %v6009 = vpop.f32.mrf.mxu0
      %v6010 = vadd.f32 %v5897, %v6009
      %6011 = vmatmul.f32.gmra.mxu0 %v5772
      %v6012 = vpop.f32.mrf.mxu0
      %v6013 = vadd.f32 %v5900, %v6012
      %6014 = vmatmul.f32.gmra.mxu0 %v5774
      %v6015 = vpop.f32.mrf.mxu0
      %v6016 = vadd.f32 %v5903, %v6015
      %6017 = vmatmul.f32.gmra.mxu0 %v5776
      %v6018 = vpop.f32.mrf.mxu0
      %v6019 = vadd.f32 %v5906, %v6018
      %6020 = vmatmul.f32.gmra.mxu0 %v5778
      %v6021 = vpop.f32.mrf.mxu0
      %v6022 = vadd.f32 %v5909, %v6021
      %6023 = vmatmul.f32.gmra.mxu0 %v5780
      %v6024 = vpop.f32.mrf.mxu0
      %v6025 = vadd.f32 %v5912, %v6024
      %6026 = vmatmul.f32.gmra.mxu0 %v5782
      %v6027 = vpop.f32.mrf.mxu0
      %v6028 = vadd.f32 %v5915, %v6027
      %6029 = vmatmul.f32.gmra.mxu0 %v5784
      %v6030 = vpop.f32.mrf.mxu0
      %v6031 = vadd.f32 %v5918, %v6030
      %6032 = vmatmul.f32.gmra.mxu0 %v5786
      %v6033 = vpop.f32.mrf.mxu0
      %v6034 = vadd.f32 %v5921, %v6033
      %6035 = vmatmul.f32.gmra.mxu0 %v5788
      %v6036 = vpop.f32.mrf.mxu0
      %v6037 = vadd.f32 %v5924, %v6036
      %6038 = vmatmul.f32.gmra.mxu0 %v5790
      %v6039 = vpop.f32.mrf.mxu0
      %v6040 = vadd.f32 %v5927, %v6039
      %6041 = vmatmul.f32.gmra.mxu0 %v5792
      %v6042 = vpop.f32.mrf.mxu0
      %v6043 = vadd.f32 %v5930, %v6042
      %6044 = vmatmul.f32.gmra.mxu0 %v5794
      %v6045 = vpop.f32.mrf.mxu0
      %v6046 = vadd.f32 %v5933, %v6045
      %6047 = vmatmul.f32.gmra.mxu0 %v5796
      %v6048 = vpop.f32.mrf.mxu0
      %v6049 = vadd.f32 %v5936, %v6048
      %6050 = vmatmul.f32.gmra.mxu0 %v5798
      %v6051 = vpop.f32.mrf.mxu0
      %v6052 = vadd.f32 %v5939, %v6051
      %6053 = vmatmul.f32.gmra.mxu0 %v5800
      %v6054 = vpop.f32.mrf.mxu0
      %v6055 = vadd.f32 %v5942, %v6054
      %6056 = vmatmul.f32.gmra.mxu0 %v5802
      %v6057 = vpop.f32.mrf.mxu0
      %v6058 = vadd.f32 %v5945, %v6057
      %6059 = vmatmul.f32.gmra.mxu0 %v5804
      %v6060 = vpop.f32.mrf.mxu0
      %v6061 = vadd.f32 %v5948, %v6060
      %6062 = vmatmul.f32.gmra.mxu0 %v5806
      %v6063 = vpop.f32.mrf.mxu0
      %v6064 = vadd.f32 %v5951, %v6063
      %6065 = vdwg.mxu0
      %v6066 = vadd.f32 %v5710, %v5971
      %v6067 = vadd.f32 %v5711, %v5974
      %v6068 = vadd.f32 %v5712, %v5977
      %v6069 = vadd.f32 %v5713, %v5980
      %v6070 = vadd.f32 %v5714, %v5983
      %v6071 = vadd.f32 %v5715, %v5986
      %v6072 = vadd.f32 %v5716, %v5989
      %v6073 = vadd.f32 %v5717, %v5992
      %v6074 = vadd.f32 %v5718, %v5995
      %v6075 = vadd.f32 %v5719, %v5998
      %v6076 = vadd.f32 %v5720, %v6001
      %v6077 = vadd.f32 %v5721, %v6004
      %v6078 = vadd.f32 %v5722, %v6007
      %v6079 = vadd.f32 %v5723, %v6010
      %v6080 = vadd.f32 %v5724, %v6013
      %v6081 = vadd.f32 %v5725, %v6016
      %v6082 = vadd.f32 %v5726, %v6019
      %v6083 = vadd.f32 %v5727, %v6022
      %v6084 = vadd.f32 %v5728, %v6025
      %v6085 = vadd.f32 %v5729, %v6028
      %v6086 = vadd.f32 %v5730, %v6031
      %v6087 = vadd.f32 %v5731, %v6034
      %v6088 = vadd.f32 %v5732, %v6037
      %v6089 = vadd.f32 %v5733, %v6040
      %v6090 = vadd.f32 %v5734, %v6043
      %v6091 = vadd.f32 %v5735, %v6046
      %v6092 = vadd.f32 %v5736, %v6049
      %v6093 = vadd.f32 %v5737, %v6052
      %v6094 = vadd.f32 %v5738, %v6055
      %v6095 = vadd.f32 %v5739, %v6058
      %v6096 = vadd.f32 %v5740, %v6061
      %v6097 = vadd.f32 %v5741, %v6064
      %v6098 = vld [vmem:[%s5742] sm:$0xfe]
      %v6099 = vld [vmem:[%s5742 + $0x8] sm:$0xfe]
      %v6100 = vld [vmem:[%s5742 + $0x10] sm:$0xff]
      %v6101 = vld [vmem:[%s5742 + $0x18] sm:$0xff]
      %v6102 = vld [vmem:[%s5742 + $0x20] sm:$0x1]
      %v6103 = vld [vmem:[%s5742 + $0x28] sm:$0x1]
      %v6104 = vld [vmem:[%s5742 + $0x30] sm:$0xfe]
      %v6105 = vld [vmem:[%s5742 + $0x38] sm:$0xfe]
      %v6106 = vld [vmem:[%s5742 + $0x40] sm:$0xff]
      %v6107 = vld [vmem:[%s5742 + $0x48] sm:$0xff]
      %v6108 = vld [vmem:[%s5742 + $0x50] sm:$0x1]
      %v6109 = vld [vmem:[%s5742 + $0x58] sm:$0x1]
      %v6110 = vld [vmem:[%s5742 + $0x60] sm:$0xfe]
      %v6111 = vld [vmem:[%s5742 + $0x68] sm:$0xfe]
      %v6112 = vld [vmem:[%s5742 + $0x70] sm:$0xff]
      %v6113 = vld [vmem:[%s5742 + $0x78] sm:$0xff]
      %v6114 = vld [vmem:[%s5742 + $0x80] sm:$0x1]
      %v6115 = vld [vmem:[%s5742 + $0x88] sm:$0x1]
      %v6116 = vld [vmem:[%s5742 + $0x90] sm:$0xfe]
      %v6117 = vld [vmem:[%s5742 + $0x98] sm:$0xfe]
      %v6118 = vld [vmem:[%s5742 + $0xa0] sm:$0xff]
      %v6119 = vld [vmem:[%s5742 + $0xa8] sm:$0xff]
      %v6120 = vld [vmem:[%s5742 + $0xb0] sm:$0x1]
      %v6121 = vld [vmem:[%s5742 + $0xb8] sm:$0x1]
      %v6122 = vld [vmem:[%s5742 + $0xc0] sm:$0xfe]
      %v6123 = vld [vmem:[%s5742 + $0xc8] sm:$0xfe]
      %v6124 = vld [vmem:[%s5742 + $0xd0] sm:$0xff]
      %v6125 = vld [vmem:[%s5742 + $0xd8] sm:$0xff]
      %v6126 = vld [vmem:[%s5742 + $0xe0] sm:$0x1]
      %v6127 = vld [vmem:[%s5742 + $0xe8] sm:$0x1]
      %v6128 = vld [vmem:[%s5742 + $0xf0] sm:$0xfe]
      %v6129 = vld [vmem:[%s5742 + $0xf8] sm:$0xfe]
      %v6130 = vld [vmem:[%s5742 + $0x100] sm:$0xff]
      %v6131 = vld [vmem:[%s5742 + $0x108] sm:$0xff]
      %v6132 = vld [vmem:[%s5742 + $0x110] sm:$0x1]
      %v6133 = vld [vmem:[%s5742 + $0x118] sm:$0x1]
      %v6134 = vld [vmem:[%s5742 + $0x120] sm:$0xfe]
      %v6135 = vld [vmem:[%s5742 + $0x128] sm:$0xfe]
      %v6136 = vld [vmem:[%s5742 + $0x130] sm:$0xff]
      %v6137 = vld [vmem:[%s5742 + $0x138] sm:$0xff]
      %v6138 = vld [vmem:[%s5742 + $0x140] sm:$0x1]
      %v6139 = vld [vmem:[%s5742 + $0x148] sm:$0x1]
      %v6140 = vld [vmem:[%s5742 + $0x150] sm:$0xfe]
      %v6141 = vld [vmem:[%s5742 + $0x158] sm:$0xfe]
      %v6142 = vld [vmem:[%s5742 + $0x160] sm:$0xff]
      %v6143 = vld [vmem:[%s5742 + $0x168] sm:$0xff]
      %v6144 = vld [vmem:[%s5742 + $0x170] sm:$0x1]
      %v6145 = vld [vmem:[%s5742 + $0x178] sm:$0x1]
      %v6146 = vld [vmem:[%s5742 + $0x180] sm:$0xfe]
      %v6147 = vld [vmem:[%s5742 + $0x188] sm:$0xfe]
      %v6148 = vld [vmem:[%s5742 + $0x190] sm:$0xff]
      %v6149 = vld [vmem:[%s5742 + $0x198] sm:$0xff]
      %v6150 = vld [vmem:[%s5742 + $0x1a0] sm:$0x1]
      %v6151 = vld [vmem:[%s5742 + $0x1a8] sm:$0x1]
      %v6152 = vld [vmem:[%s5742 + $0x1b0] sm:$0xfe]
      %v6153 = vld [vmem:[%s5742 + $0x1b8] sm:$0xfe]
      %v6154 = vld [vmem:[%s5742 + $0x1c0] sm:$0xff]
      %v6155 = vld [vmem:[%s5742 + $0x1c8] sm:$0xff]
      %v6156 = vld [vmem:[%s5742 + $0x1d0] sm:$0x1]
      %v6157 = vld [vmem:[%s5742 + $0x1d8] sm:$0x1]
      %v6158 = vld [vmem:[%s5742 + $0x1e0] sm:$0xfe]
      %v6159 = vld [vmem:[%s5742 + $0x1e8] sm:$0xfe]
      %v6160 = vld [vmem:[%s5742 + $0x1f0] sm:$0xff]
      %v6161 = vld [vmem:[%s5742 + $0x1f8] sm:$0xff]
      %v6162 = vld [vmem:[%s5742 + $0x200] sm:$0x1]
      %v6163 = vld [vmem:[%s5742 + $0x208] sm:$0x1]
      %v6164 = vld [vmem:[%s5742 + $0x210] sm:$0xfe]
      %v6165 = vld [vmem:[%s5742 + $0x218] sm:$0xfe]
      %v6166 = vld [vmem:[%s5742 + $0x220] sm:$0xff]
      %v6167 = vld [vmem:[%s5742 + $0x228] sm:$0xff]
      %v6168 = vld [vmem:[%s5742 + $0x230] sm:$0x1]
      %v6169 = vld [vmem:[%s5742 + $0x238] sm:$0x1]
      %v6170 = vld [vmem:[%s5742 + $0x240] sm:$0xfe]
      %v6171 = vld [vmem:[%s5742 + $0x248] sm:$0xfe]
      %v6172 = vld [vmem:[%s5742 + $0x250] sm:$0xff]
      %v6173 = vld [vmem:[%s5742 + $0x258] sm:$0xff]
      %v6174 = vld [vmem:[%s5742 + $0x260] sm:$0x1]
      %v6175 = vld [vmem:[%s5742 + $0x268] sm:$0x1]
      %v6176 = vld [vmem:[%s5742 + $0x270] sm:$0xfe]
      %v6177 = vld [vmem:[%s5742 + $0x278] sm:$0xfe]
      %v6178 = vld [vmem:[%s5742 + $0x280] sm:$0xff]
      %v6179 = vld [vmem:[%s5742 + $0x288] sm:$0xff]
      %v6180 = vld [vmem:[%s5742 + $0x290] sm:$0x1]
      %v6181 = vld [vmem:[%s5742 + $0x298] sm:$0x1]
      %v6182 = vld [vmem:[%s5742 + $0x2a0] sm:$0xfe]
      %v6183 = vld [vmem:[%s5742 + $0x2a8] sm:$0xfe]
      %v6184 = vld [vmem:[%s5742 + $0x2b0] sm:$0xff]
      %v6185 = vld [vmem:[%s5742 + $0x2b8] sm:$0xff]
      %v6186 = vld [vmem:[%s5742 + $0x2c0] sm:$0x1]
      %v6187 = vld [vmem:[%s5742 + $0x2c8] sm:$0x1]
      %v6188 = vld [vmem:[%s5742 + $0x2d0] sm:$0xfe]
      %v6189 = vld [vmem:[%s5742 + $0x2d8] sm:$0xfe]
      %v6190 = vld [vmem:[%s5742 + $0x2e0] sm:$0xff]
      %v6191 = vld [vmem:[%s5742 + $0x2e8] sm:$0xff]
      %v6192 = vld [vmem:[%s5742 + $0x2f0] sm:$0x1]
      %v6193 = vld [vmem:[%s5742 + $0x2f8] sm:$0x1]
      %v6290 = vrot.slane %v6098, 1
      %v6291 = vrot.slane %v6100, 1
      %v6292 = vsel %vm2683, %v6290, %v6291
      %v6293 = vrot.slane %v6099, 1
      %v6294 = vrot.slane %v6101, 1
      %v6295 = vsel %vm2683, %v6293, %v6294
      %v6296 = vrot.slane %v6102, 1
      %v6297 = vsel %vm2683, %v6291, %v6296
      %v6298 = vrot.slane %v6103, 1
      %v6299 = vsel %vm2683, %v6294, %v6298
      %v6300 = vrot.slane %v6104, 1
      %v6301 = vrot.slane %v6106, 1
      %v6302 = vsel %vm2683, %v6300, %v6301
      %v6303 = vrot.slane %v6105, 1
      %v6304 = vrot.slane %v6107, 1
      %v6305 = vsel %vm2683, %v6303, %v6304
      %v6306 = vrot.slane %v6108, 1
      %v6307 = vsel %vm2683, %v6301, %v6306
      %v6308 = vrot.slane %v6109, 1
      %v6309 = vsel %vm2683, %v6304, %v6308
      %v6310 = vrot.slane %v6110, 1
      %v6311 = vrot.slane %v6112, 1
      %v6312 = vsel %vm2683, %v6310, %v6311
      %v6313 = vrot.slane %v6111, 1
      %v6314 = vrot.slane %v6113, 1
      %v6315 = vsel %vm2683, %v6313, %v6314
      %v6316 = vrot.slane %v6114, 1
      %v6317 = vsel %vm2683, %v6311, %v6316
      %v6318 = vrot.slane %v6115, 1
      %v6319 = vsel %vm2683, %v6314, %v6318
      %v6320 = vrot.slane %v6116, 1
      %v6321 = vrot.slane %v6118, 1
      %v6322 = vsel %vm2683, %v6320, %v6321
      %v6323 = vrot.slane %v6117, 1
      %v6324 = vrot.slane %v6119, 1
      %v6325 = vsel %vm2683, %v6323, %v6324
      %v6326 = vrot.slane %v6120, 1
      %v6327 = vsel %vm2683, %v6321, %v6326
      %v6328 = vrot.slane %v6121, 1
      %v6329 = vsel %vm2683, %v6324, %v6328
      %v6330 = vrot.slane %v6122, 1
      %v6331 = vrot.slane %v6124, 1
      %v6332 = vsel %vm2683, %v6330, %v6331
      %v6333 = vrot.slane %v6123, 1
      %v6334 = vrot.slane %v6125, 1
      %v6335 = vsel %vm2683, %v6333, %v6334
      %v6336 = vrot.slane %v6126, 1
      %v6337 = vsel %vm2683, %v6331, %v6336
      %v6338 = vrot.slane %v6127, 1
      %v6339 = vsel %vm2683, %v6334, %v6338
      %v6340 = vrot.slane %v6128, 1
      %v6341 = vrot.slane %v6130, 1
      %v6342 = vsel %vm2683, %v6340, %v6341
      %v6343 = vrot.slane %v6129, 1
      %v6344 = vrot.slane %v6131, 1
      %v6345 = vsel %vm2683, %v6343, %v6344
      %v6346 = vrot.slane %v6132, 1
      %v6347 = vsel %vm2683, %v6341, %v6346
      %v6348 = vrot.slane %v6133, 1
      %v6349 = vsel %vm2683, %v6344, %v6348
      %v6350 = vrot.slane %v6134, 1
      %v6351 = vrot.slane %v6136, 1
      %v6352 = vsel %vm2683, %v6350, %v6351
      %v6353 = vrot.slane %v6135, 1
      %v6354 = vrot.slane %v6137, 1
      %v6355 = vsel %vm2683, %v6353, %v6354
      %v6356 = vrot.slane %v6138, 1
      %v6357 = vsel %vm2683, %v6351, %v6356
      %v6358 = vrot.slane %v6139, 1
      %v6359 = vsel %vm2683, %v6354, %v6358
      %v6360 = vrot.slane %v6140, 1
      %v6361 = vrot.slane %v6142, 1
      %v6362 = vsel %vm2683, %v6360, %v6361
      %v6363 = vrot.slane %v6141, 1
      %v6364 = vrot.slane %v6143, 1
      %v6365 = vsel %vm2683, %v6363, %v6364
      %v6366 = vrot.slane %v6144, 1
      %v6367 = vsel %vm2683, %v6361, %v6366
      %v6368 = vrot.slane %v6145, 1
      %v6369 = vsel %vm2683, %v6364, %v6368
      %v6370 = vrot.slane %v6146, 1
      %v6371 = vrot.slane %v6148, 1
      %v6372 = vsel %vm2683, %v6370, %v6371
      %v6373 = vrot.slane %v6147, 1
      %v6374 = vrot.slane %v6149, 1
      %v6375 = vsel %vm2683, %v6373, %v6374
      %v6376 = vrot.slane %v6150, 1
      %v6377 = vsel %vm2683, %v6371, %v6376
      %v6378 = vrot.slane %v6151, 1
      %v6379 = vsel %vm2683, %v6374, %v6378
      %v6380 = vrot.slane %v6152, 1
      %v6381 = vrot.slane %v6154, 1
      %v6382 = vsel %vm2683, %v6380, %v6381
      %v6383 = vrot.slane %v6153, 1
      %v6384 = vrot.slane %v6155, 1
      %v6385 = vsel %vm2683, %v6383, %v6384
      %v6386 = vrot.slane %v6156, 1
      %v6387 = vsel %vm2683, %v6381, %v6386
      %v6388 = vrot.slane %v6157, 1
      %v6389 = vsel %vm2683, %v6384, %v6388
      %v6390 = vrot.slane %v6158, 1
      %v6391 = vrot.slane %v6160, 1
      %v6392 = vsel %vm2683, %v6390, %v6391
      %v6393 = vrot.slane %v6159, 1
      %v6394 = vrot.slane %v6161, 1
      %v6395 = vsel %vm2683, %v6393, %v6394
      %v6396 = vrot.slane %v6162, 1
      %v6397 = vsel %vm2683, %v6391, %v6396
      %v6398 = vrot.slane %v6163, 1
      %v6399 = vsel %vm2683, %v6394, %v6398
      %v6400 = vrot.slane %v6164, 1
      %v6401 = vrot.slane %v6166, 1
      %v6402 = vsel %vm2683, %v6400, %v6401
      %v6403 = vrot.slane %v6165, 1
      %v6404 = vrot.slane %v6167, 1
      %v6405 = vsel %vm2683, %v6403, %v6404
      %v6406 = vrot.slane %v6168, 1
      %v6407 = vsel %vm2683, %v6401, %v6406
      %v6408 = vrot.slane %v6169, 1
      %v6409 = vsel %vm2683, %v6404, %v6408
      %v6410 = vrot.slane %v6170, 1
      %v6411 = vrot.slane %v6172, 1
      %v6412 = vsel %vm2683, %v6410, %v6411
      %v6413 = vrot.slane %v6171, 1
      %v6414 = vrot.slane %v6173, 1
      %v6415 = vsel %vm2683, %v6413, %v6414
      %v6416 = vrot.slane %v6174, 1
      %v6417 = vsel %vm2683, %v6411, %v6416
      %v6418 = vrot.slane %v6175, 1
      %v6419 = vsel %vm2683, %v6414, %v6418
      %v6420 = vrot.slane %v6176, 1
      %v6421 = vrot.slane %v6178, 1
      %v6422 = vsel %vm2683, %v6420, %v6421
      %v6423 = vrot.slane %v6177, 1
      %v6424 = vrot.slane %v6179, 1
      %v6425 = vsel %vm2683, %v6423, %v6424
      %v6426 = vrot.slane %v6180, 1
      %v6427 = vsel %vm2683, %v6421, %v6426
      %v6428 = vrot.slane %v6181, 1
      %v6429 = vsel %vm2683, %v6424, %v6428
      %v6430 = vrot.slane %v6182, 1
      %v6431 = vrot.slane %v6184, 1
      %v6432 = vsel %vm2683, %v6430, %v6431
      %v6433 = vrot.slane %v6183, 1
      %v6434 = vrot.slane %v6185, 1
      %v6435 = vsel %vm2683, %v6433, %v6434
      %v6436 = vrot.slane %v6186, 1
      %v6437 = vsel %vm2683, %v6431, %v6436
      %v6438 = vrot.slane %v6187, 1
      %v6439 = vsel %vm2683, %v6434, %v6438
      %v6440 = vrot.slane %v6188, 1
      %v6441 = vrot.slane %v6190, 1
      %v6442 = vsel %vm2683, %v6440, %v6441
      %v6443 = vrot.slane %v6189, 1
      %v6444 = vrot.slane %v6191, 1
      %v6445 = vsel %vm2683, %v6443, %v6444
      %v6446 = vrot.slane %v6192, 1
      %v6447 = vsel %vm2683, %v6441, %v6446
      %v6448 = vrot.slane %v6193, 1
      %v6449 = vsel %vm2683, %v6444, %v6448
      %s6514 = scalar_lea.vmem %s4, 1792
      %v6515 = vld [vmem:[%s6514] sm:$0xff]
      %v6516 = vld [vmem:[%s6514 + $0x8] sm:$0xff]
      %v6517 = vld [vmem:[%s6514 + $0x10] sm:$0xff]
      %v6518 = vld [vmem:[%s6514 + $0x18] sm:$0xff]
      %v6519 = vld [vmem:[%s6514 + $0x20] sm:$0xff]
      %v6520 = vld [vmem:[%s6514 + $0x28] sm:$0xff]
      %v6521 = vld [vmem:[%s6514 + $0x30] sm:$0xff]
      %v6522 = vld [vmem:[%s6514 + $0x38] sm:$0xff]
      %v6523 = vld [vmem:[%s6514 + $0x40] sm:$0xff]
      %v6524 = vld [vmem:[%s6514 + $0x48] sm:$0xff]
      %v6525 = vld [vmem:[%s6514 + $0x50] sm:$0xff]
      %v6526 = vld [vmem:[%s6514 + $0x58] sm:$0xff]
      %v6527 = vld [vmem:[%s6514 + $0x60] sm:$0xff]
      %v6528 = vld [vmem:[%s6514 + $0x68] sm:$0xff]
      %v6529 = vld [vmem:[%s6514 + $0x70] sm:$0xff]
      %v6530 = vld [vmem:[%s6514 + $0x78] sm:$0xff]
      %v6531 = vld [vmem:[%s6514 + $0x80] sm:$0xff]
      %v6532 = vld [vmem:[%s6514 + $0x88] sm:$0xff]
      %v6533 = vld [vmem:[%s6514 + $0x90] sm:$0xff]
      %v6534 = vld [vmem:[%s6514 + $0x98] sm:$0xff]
      %v6535 = vld [vmem:[%s6514 + $0xa0] sm:$0xff]
      %v6536 = vld [vmem:[%s6514 + $0xa8] sm:$0xff]
      %v6537 = vld [vmem:[%s6514 + $0xb0] sm:$0xff]
      %v6538 = vld [vmem:[%s6514 + $0xb8] sm:$0xff]
      %v6539 = vld [vmem:[%s6514 + $0xc0] sm:$0xff]
      %v6540 = vld [vmem:[%s6514 + $0xc8] sm:$0xff]
      %v6541 = vld [vmem:[%s6514 + $0xd0] sm:$0xff]
      %v6542 = vld [vmem:[%s6514 + $0xd8] sm:$0xff]
      %v6543 = vld [vmem:[%s6514 + $0xe0] sm:$0xff]
      %v6544 = vld [vmem:[%s6514 + $0xe8] sm:$0xff]
      %v6545 = vld [vmem:[%s6514 + $0xf0] sm:$0xff]
      %v6546 = vld [vmem:[%s6514 + $0xf8] sm:$0xff]
      %6547 = vmatpush.msra.mxu0 %v6530
      %6548 = vmatpush.msra.mxu0 %v6529
      %6549 = vmatpush.msra.mxu0 %v6528
      %6550 = vmatpush.msra.mxu0 %v6527
      %6551 = vmatpush.msra.mxu0 %v6526
      %6552 = vmatpush.msra.mxu0 %v6525
      %6553 = vmatpush.msra.mxu0 %v6524
      %6554 = vmatpush.msra.mxu0 %v6523
      %6555 = vmatpush.msra.mxu0 %v6522
      %6556 = vmatpush.msra.mxu0 %v6521
      %6557 = vmatpush.msra.mxu0 %v6520
      %6558 = vmatpush.msra.mxu0 %v6519
      %6559 = vmatpush.msra.mxu0 %v6518
      %6560 = vmatpush.msra.mxu0 %v6517
      %6561 = vmatpush.msra.mxu0 %v6516
      %6562 = vmatpush.msra.mxu0 %v6515
      %6563 = vmatmul.f32.gmra.mxu0 %v6292
      %v6564 = vpop.f32.mrf.mxu0
      %v6565 = vadd.f32 0.0, %v6564
      %6566 = vmatmul.f32.gmra.mxu0 %v6297
      %v6567 = vpop.f32.mrf.mxu0
      %v6568 = vadd.f32 0.0, %v6567
      %6569 = vmatmul.f32.gmra.mxu0 %v6302
      %v6570 = vpop.f32.mrf.mxu0
      %v6571 = vadd.f32 0.0, %v6570
      %6572 = vmatmul.f32.gmra.mxu0 %v6307
      %v6573 = vpop.f32.mrf.mxu0
      %v6574 = vadd.f32 0.0, %v6573
      %6575 = vmatmul.f32.gmra.mxu0 %v6312
      %v6576 = vpop.f32.mrf.mxu0
      %v6577 = vadd.f32 0.0, %v6576
      %6578 = vmatmul.f32.gmra.mxu0 %v6317
      %v6579 = vpop.f32.mrf.mxu0
      %v6580 = vadd.f32 0.0, %v6579
      %6581 = vmatmul.f32.gmra.mxu0 %v6322
      %v6582 = vpop.f32.mrf.mxu0
      %v6583 = vadd.f32 0.0, %v6582
      %6584 = vmatmul.f32.gmra.mxu0 %v6327
      %v6585 = vpop.f32.mrf.mxu0
      %v6586 = vadd.f32 0.0, %v6585
      %6587 = vmatmul.f32.gmra.mxu0 %v6332
      %v6588 = vpop.f32.mrf.mxu0
      %v6589 = vadd.f32 0.0, %v6588
      %6590 = vmatmul.f32.gmra.mxu0 %v6337
      %v6591 = vpop.f32.mrf.mxu0
      %v6592 = vadd.f32 0.0, %v6591
      %6593 = vmatmul.f32.gmra.mxu0 %v6342
      %v6594 = vpop.f32.mrf.mxu0
      %v6595 = vadd.f32 0.0, %v6594
      %6596 = vmatmul.f32.gmra.mxu0 %v6347
      %v6597 = vpop.f32.mrf.mxu0
      %v6598 = vadd.f32 0.0, %v6597
      %6599 = vmatmul.f32.gmra.mxu0 %v6352
      %v6600 = vpop.f32.mrf.mxu0
      %v6601 = vadd.f32 0.0, %v6600
      %6602 = vmatmul.f32.gmra.mxu0 %v6357
      %v6603 = vpop.f32.mrf.mxu0
      %v6604 = vadd.f32 0.0, %v6603
      %6605 = vmatmul.f32.gmra.mxu0 %v6362
      %v6606 = vpop.f32.mrf.mxu0
      %v6607 = vadd.f32 0.0, %v6606
      %6608 = vmatmul.f32.gmra.mxu0 %v6367
      %v6609 = vpop.f32.mrf.mxu0
      %v6610 = vadd.f32 0.0, %v6609
      %6611 = vmatmul.f32.gmra.mxu0 %v6372
      %v6612 = vpop.f32.mrf.mxu0
      %v6613 = vadd.f32 0.0, %v6612
      %6614 = vmatmul.f32.gmra.mxu0 %v6377
      %v6615 = vpop.f32.mrf.mxu0
      %v6616 = vadd.f32 0.0, %v6615
      %6617 = vmatmul.f32.gmra.mxu0 %v6382
      %v6618 = vpop.f32.mrf.mxu0
      %v6619 = vadd.f32 0.0, %v6618
      %6620 = vmatmul.f32.gmra.mxu0 %v6387
      %v6621 = vpop.f32.mrf.mxu0
      %v6622 = vadd.f32 0.0, %v6621
      %6623 = vmatmul.f32.gmra.mxu0 %v6392
      %v6624 = vpop.f32.mrf.mxu0
      %v6625 = vadd.f32 0.0, %v6624
      %6626 = vmatmul.f32.gmra.mxu0 %v6397
      %v6627 = vpop.f32.mrf.mxu0
      %v6628 = vadd.f32 0.0, %v6627
      %6629 = vmatmul.f32.gmra.mxu0 %v6402
      %v6630 = vpop.f32.mrf.mxu0
      %v6631 = vadd.f32 0.0, %v6630
      %6632 = vmatmul.f32.gmra.mxu0 %v6407
      %v6633 = vpop.f32.mrf.mxu0
      %v6634 = vadd.f32 0.0, %v6633
      %6635 = vmatmul.f32.gmra.mxu0 %v6412
      %v6636 = vpop.f32.mrf.mxu0
      %v6637 = vadd.f32 0.0, %v6636
      %6638 = vmatmul.f32.gmra.mxu0 %v6417
      %v6639 = vpop.f32.mrf.mxu0
      %v6640 = vadd.f32 0.0, %v6639
      %6641 = vmatmul.f32.gmra.mxu0 %v6422
      %v6642 = vpop.f32.mrf.mxu0
      %v6643 = vadd.f32 0.0, %v6642
      %6644 = vmatmul.f32.gmra.mxu0 %v6427
      %v6645 = vpop.f32.mrf.mxu0
      %v6646 = vadd.f32 0.0, %v6645
      %6647 = vmatmul.f32.gmra.mxu0 %v6432
      %v6648 = vpop.f32.mrf.mxu0
      %v6649 = vadd.f32 0.0, %v6648
      %6650 = vmatmul.f32.gmra.mxu0 %v6437
      %v6651 = vpop.f32.mrf.mxu0
      %v6652 = vadd.f32 0.0, %v6651
      %6653 = vmatmul.f32.gmra.mxu0 %v6442
      %v6654 = vpop.f32.mrf.mxu0
      %v6655 = vadd.f32 0.0, %v6654
      %6656 = vmatmul.f32.gmra.mxu0 %v6447
      %v6657 = vpop.f32.mrf.mxu0
      %v6658 = vadd.f32 0.0, %v6657
      %6659 = vdwg.mxu0
      %6660 = vmatpush.msra.mxu0 %v6546
      %6661 = vmatpush.msra.mxu0 %v6545
      %6662 = vmatpush.msra.mxu0 %v6544
      %6663 = vmatpush.msra.mxu0 %v6543
      %6664 = vmatpush.msra.mxu0 %v6542
      %6665 = vmatpush.msra.mxu0 %v6541
      %6666 = vmatpush.msra.mxu0 %v6540
      %6667 = vmatpush.msra.mxu0 %v6539
      %6668 = vmatpush.msra.mxu0 %v6538
      %6669 = vmatpush.msra.mxu0 %v6537
      %6670 = vmatpush.msra.mxu0 %v6536
      %6671 = vmatpush.msra.mxu0 %v6535
      %6672 = vmatpush.msra.mxu0 %v6534
      %6673 = vmatpush.msra.mxu0 %v6533
      %6674 = vmatpush.msra.mxu0 %v6532
      %6675 = vmatpush.msra.mxu0 %v6531
      %6676 = vmatmul.f32.gmra.mxu0 %v6295
      %v6677 = vpop.f32.mrf.mxu0
      %v6678 = vadd.f32 %v6565, %v6677
      %6679 = vmatmul.f32.gmra.mxu0 %v6299
      %v6680 = vpop.f32.mrf.mxu0
      %v6681 = vadd.f32 %v6568, %v6680
      %6682 = vmatmul.f32.gmra.mxu0 %v6305
      %v6683 = vpop.f32.mrf.mxu0
      %v6684 = vadd.f32 %v6571, %v6683
      %6685 = vmatmul.f32.gmra.mxu0 %v6309
      %v6686 = vpop.f32.mrf.mxu0
      %v6687 = vadd.f32 %v6574, %v6686
      %6688 = vmatmul.f32.gmra.mxu0 %v6315
      %v6689 = vpop.f32.mrf.mxu0
      %v6690 = vadd.f32 %v6577, %v6689
      %6691 = vmatmul.f32.gmra.mxu0 %v6319
      %v6692 = vpop.f32.mrf.mxu0
      %v6693 = vadd.f32 %v6580, %v6692
      %6694 = vmatmul.f32.gmra.mxu0 %v6325
      %v6695 = vpop.f32.mrf.mxu0
      %v6696 = vadd.f32 %v6583, %v6695
      %6697 = vmatmul.f32.gmra.mxu0 %v6329
      %v6698 = vpop.f32.mrf.mxu0
      %v6699 = vadd.f32 %v6586, %v6698
      %6700 = vmatmul.f32.gmra.mxu0 %v6335
      %v6701 = vpop.f32.mrf.mxu0
      %v6702 = vadd.f32 %v6589, %v6701
      %6703 = vmatmul.f32.gmra.mxu0 %v6339
      %v6704 = vpop.f32.mrf.mxu0
      %v6705 = vadd.f32 %v6592, %v6704
      %6706 = vmatmul.f32.gmra.mxu0 %v6345
      %v6707 = vpop.f32.mrf.mxu0
      %v6708 = vadd.f32 %v6595, %v6707
      %6709 = vmatmul.f32.gmra.mxu0 %v6349
      %v6710 = vpop.f32.mrf.mxu0
      %v6711 = vadd.f32 %v6598, %v6710
      %6712 = vmatmul.f32.gmra.mxu0 %v6355
      %v6713 = vpop.f32.mrf.mxu0
      %v6714 = vadd.f32 %v6601, %v6713
      %6715 = vmatmul.f32.gmra.mxu0 %v6359
      %v6716 = vpop.f32.mrf.mxu0
      %v6717 = vadd.f32 %v6604, %v6716
      %6718 = vmatmul.f32.gmra.mxu0 %v6365
      %v6719 = vpop.f32.mrf.mxu0
      %v6720 = vadd.f32 %v6607, %v6719
      %6721 = vmatmul.f32.gmra.mxu0 %v6369
      %v6722 = vpop.f32.mrf.mxu0
      %v6723 = vadd.f32 %v6610, %v6722
      %6724 = vmatmul.f32.gmra.mxu0 %v6375
      %v6725 = vpop.f32.mrf.mxu0
      %v6726 = vadd.f32 %v6613, %v6725
      %6727 = vmatmul.f32.gmra.mxu0 %v6379
      %v6728 = vpop.f32.mrf.mxu0
      %v6729 = vadd.f32 %v6616, %v6728
      %6730 = vmatmul.f32.gmra.mxu0 %v6385
      %v6731 = vpop.f32.mrf.mxu0
      %v6732 = vadd.f32 %v6619, %v6731
      %6733 = vmatmul.f32.gmra.mxu0 %v6389
      %v6734 = vpop.f32.mrf.mxu0
      %v6735 = vadd.f32 %v6622, %v6734
      %6736 = vmatmul.f32.gmra.mxu0 %v6395
      %v6737 = vpop.f32.mrf.mxu0
      %v6738 = vadd.f32 %v6625, %v6737
      %6739 = vmatmul.f32.gmra.mxu0 %v6399
      %v6740 = vpop.f32.mrf.mxu0
      %v6741 = vadd.f32 %v6628, %v6740
      %6742 = vmatmul.f32.gmra.mxu0 %v6405
      %v6743 = vpop.f32.mrf.mxu0
      %v6744 = vadd.f32 %v6631, %v6743
      %6745 = vmatmul.f32.gmra.mxu0 %v6409
      %v6746 = vpop.f32.mrf.mxu0
      %v6747 = vadd.f32 %v6634, %v6746
      %6748 = vmatmul.f32.gmra.mxu0 %v6415
      %v6749 = vpop.f32.mrf.mxu0
      %v6750 = vadd.f32 %v6637, %v6749
      %6751 = vmatmul.f32.gmra.mxu0 %v6419
      %v6752 = vpop.f32.mrf.mxu0
      %v6753 = vadd.f32 %v6640, %v6752
      %6754 = vmatmul.f32.gmra.mxu0 %v6425
      %v6755 = vpop.f32.mrf.mxu0
      %v6756 = vadd.f32 %v6643, %v6755
      %6757 = vmatmul.f32.gmra.mxu0 %v6429
      %v6758 = vpop.f32.mrf.mxu0
      %v6759 = vadd.f32 %v6646, %v6758
      %6760 = vmatmul.f32.gmra.mxu0 %v6435
      %v6761 = vpop.f32.mrf.mxu0
      %v6762 = vadd.f32 %v6649, %v6761
      %6763 = vmatmul.f32.gmra.mxu0 %v6439
      %v6764 = vpop.f32.mrf.mxu0
      %v6765 = vadd.f32 %v6652, %v6764
      %6766 = vmatmul.f32.gmra.mxu0 %v6445
      %v6767 = vpop.f32.mrf.mxu0
      %v6768 = vadd.f32 %v6655, %v6767
      %6769 = vmatmul.f32.gmra.mxu0 %v6449
      %v6770 = vpop.f32.mrf.mxu0
      %v6771 = vadd.f32 %v6658, %v6770
      %6772 = vdwg.mxu0
      %v6773 = vadd.f32 %v6066, %v6678
      %v6774 = vadd.f32 %v6067, %v6681
      %v6775 = vadd.f32 %v6068, %v6684
      %v6776 = vadd.f32 %v6069, %v6687
      %v6777 = vadd.f32 %v6070, %v6690
      %v6778 = vadd.f32 %v6071, %v6693
      %v6779 = vadd.f32 %v6072, %v6696
      %v6780 = vadd.f32 %v6073, %v6699
      %v6781 = vadd.f32 %v6074, %v6702
      %v6782 = vadd.f32 %v6075, %v6705
      %v6783 = vadd.f32 %v6076, %v6708
      %v6784 = vadd.f32 %v6077, %v6711
      %v6785 = vadd.f32 %v6078, %v6714
      %v6786 = vadd.f32 %v6079, %v6717
      %v6787 = vadd.f32 %v6080, %v6720
      %v6788 = vadd.f32 %v6081, %v6723
      %v6789 = vadd.f32 %v6082, %v6726
      %v6790 = vadd.f32 %v6083, %v6729
      %v6791 = vadd.f32 %v6084, %v6732
      %v6792 = vadd.f32 %v6085, %v6735
      %v6793 = vadd.f32 %v6086, %v6738
      %v6794 = vadd.f32 %v6087, %v6741
      %v6795 = vadd.f32 %v6088, %v6744
      %v6796 = vadd.f32 %v6089, %v6747
      %v6797 = vadd.f32 %v6090, %v6750
      %v6798 = vadd.f32 %v6091, %v6753
      %v6799 = vadd.f32 %v6092, %v6756
      %v6800 = vadd.f32 %v6093, %v6759
      %v6801 = vadd.f32 %v6094, %v6762
      %v6802 = vadd.f32 %v6095, %v6765
      %v6803 = vadd.f32 %v6096, %v6768
      %v6804 = vadd.f32 %v6097, %v6771
      %v6805 = vld [vmem:[%s5742] sm:$0xfc]
      %v6806 = vld [vmem:[%s5742 + $0x8] sm:$0xfc]
      %v6807 = vld [vmem:[%s5742 + $0x20] sm:$0x3]
      %v6808 = vld [vmem:[%s5742 + $0x28] sm:$0x3]
      %v6809 = vld [vmem:[%s5742 + $0x30] sm:$0xfc]
      %v6810 = vld [vmem:[%s5742 + $0x38] sm:$0xfc]
      %v6811 = vld [vmem:[%s5742 + $0x50] sm:$0x3]
      %v6812 = vld [vmem:[%s5742 + $0x58] sm:$0x3]
      %v6813 = vld [vmem:[%s5742 + $0x60] sm:$0xfc]
      %v6814 = vld [vmem:[%s5742 + $0x68] sm:$0xfc]
      %v6815 = vld [vmem:[%s5742 + $0x80] sm:$0x3]
      %v6816 = vld [vmem:[%s5742 + $0x88] sm:$0x3]
      %v6817 = vld [vmem:[%s5742 + $0x90] sm:$0xfc]
      %v6818 = vld [vmem:[%s5742 + $0x98] sm:$0xfc]
      %v6819 = vld [vmem:[%s5742 + $0xb0] sm:$0x3]
      %v6820 = vld [vmem:[%s5742 + $0xb8] sm:$0x3]
      %v6821 = vld [vmem:[%s5742 + $0xc0] sm:$0xfc]
      %v6822 = vld [vmem:[%s5742 + $0xc8] sm:$0xfc]
      %v6823 = vld [vmem:[%s5742 + $0xe0] sm:$0x3]
      %v6824 = vld [vmem:[%s5742 + $0xe8] sm:$0x3]
      %v6825 = vld [vmem:[%s5742 + $0xf0] sm:$0xfc]
      %v6826 = vld [vmem:[%s5742 + $0xf8] sm:$0xfc]
      %v6827 = vld [vmem:[%s5742 + $0x110] sm:$0x3]
      %v6828 = vld [vmem:[%s5742 + $0x118] sm:$0x3]
      %v6829 = vld [vmem:[%s5742 + $0x120] sm:$0xfc]
      %v6830 = vld [vmem:[%s5742 + $0x128] sm:$0xfc]
      %v6831 = vld [vmem:[%s5742 + $0x140] sm:$0x3]
      %v6832 = vld [vmem:[%s5742 + $0x148] sm:$0x3]
      %v6833 = vld [vmem:[%s5742 + $0x150] sm:$0xfc]
      %v6834 = vld [vmem:[%s5742 + $0x158] sm:$0xfc]
      %v6835 = vld [vmem:[%s5742 + $0x170] sm:$0x3]
      %v6836 = vld [vmem:[%s5742 + $0x178] sm:$0x3]
      %v6837 = vld [vmem:[%s5742 + $0x180] sm:$0xfc]
      %v6838 = vld [vmem:[%s5742 + $0x188] sm:$0xfc]
      %v6839 = vld [vmem:[%s5742 + $0x1a0] sm:$0x3]
      %v6840 = vld [vmem:[%s5742 + $0x1a8] sm:$0x3]
      %v6841 = vld [vmem:[%s5742 + $0x1b0] sm:$0xfc]
      %v6842 = vld [vmem:[%s5742 + $0x1b8] sm:$0xfc]
      %v6843 = vld [vmem:[%s5742 + $0x1d0] sm:$0x3]
      %v6844 = vld [vmem:[%s5742 + $0x1d8] sm:$0x3]
      %v6845 = vld [vmem:[%s5742 + $0x1e0] sm:$0xfc]
      %v6846 = vld [vmem:[%s5742 + $0x1e8] sm:$0xfc]
      %v6847 = vld [vmem:[%s5742 + $0x200] sm:$0x3]
      %v6848 = vld [vmem:[%s5742 + $0x208] sm:$0x3]
      %v6849 = vld [vmem:[%s5742 + $0x210] sm:$0xfc]
      %v6850 = vld [vmem:[%s5742 + $0x218] sm:$0xfc]
      %v6851 = vld [vmem:[%s5742 + $0x230] sm:$0x3]
      %v6852 = vld [vmem:[%s5742 + $0x238] sm:$0x3]
      %v6853 = vld [vmem:[%s5742 + $0x240] sm:$0xfc]
      %v6854 = vld [vmem:[%s5742 + $0x248] sm:$0xfc]
      %v6855 = vld [vmem:[%s5742 + $0x260] sm:$0x3]
      %v6856 = vld [vmem:[%s5742 + $0x268] sm:$0x3]
      %v6857 = vld [vmem:[%s5742 + $0x270] sm:$0xfc]
      %v6858 = vld [vmem:[%s5742 + $0x278] sm:$0xfc]
      %v6859 = vld [vmem:[%s5742 + $0x290] sm:$0x3]
      %v6860 = vld [vmem:[%s5742 + $0x298] sm:$0x3]
      %v6861 = vld [vmem:[%s5742 + $0x2a0] sm:$0xfc]
      %v6862 = vld [vmem:[%s5742 + $0x2a8] sm:$0xfc]
      %v6863 = vld [vmem:[%s5742 + $0x2c0] sm:$0x3]
      %v6864 = vld [vmem:[%s5742 + $0x2c8] sm:$0x3]
      %v6865 = vld [vmem:[%s5742 + $0x2d0] sm:$0xfc]
      %v6866 = vld [vmem:[%s5742 + $0x2d8] sm:$0xfc]
      %v6867 = vld [vmem:[%s5742 + $0x2f0] sm:$0x3]
      %v6868 = vld [vmem:[%s5742 + $0x2f8] sm:$0x3]
      %v6933 = vrot.slane %v6805, 2
      %v6934 = vrot.slane %v6100, 2
      %v6935 = vsel %vm3521, %v6933, %v6934
      %v6936 = vrot.slane %v6806, 2
      %v6937 = vrot.slane %v6101, 2
      %v6938 = vsel %vm3521, %v6936, %v6937
      %v6939 = vrot.slane %v6807, 2
      %v6940 = vsel %vm3521, %v6934, %v6939
      %v6941 = vrot.slane %v6808, 2
      %v6942 = vsel %vm3521, %v6937, %v6941
      %v6943 = vrot.slane %v6809, 2
      %v6944 = vrot.slane %v6106, 2
      %v6945 = vsel %vm3521, %v6943, %v6944
      %v6946 = vrot.slane %v6810, 2
      %v6947 = vrot.slane %v6107, 2
      %v6948 = vsel %vm3521, %v6946, %v6947
      %v6949 = vrot.slane %v6811, 2
      %v6950 = vsel %vm3521, %v6944, %v6949
      %v6951 = vrot.slane %v6812, 2
      %v6952 = vsel %vm3521, %v6947, %v6951
      %v6953 = vrot.slane %v6813, 2
      %v6954 = vrot.slane %v6112, 2
      %v6955 = vsel %vm3521, %v6953, %v6954
      %v6956 = vrot.slane %v6814, 2
      %v6957 = vrot.slane %v6113, 2
      %v6958 = vsel %vm3521, %v6956, %v6957
      %v6959 = vrot.slane %v6815, 2
      %v6960 = vsel %vm3521, %v6954, %v6959
      %v6961 = vrot.slane %v6816, 2
      %v6962 = vsel %vm3521, %v6957, %v6961
      %v6963 = vrot.slane %v6817, 2
      %v6964 = vrot.slane %v6118, 2
      %v6965 = vsel %vm3521, %v6963, %v6964
      %v6966 = vrot.slane %v6818, 2
      %v6967 = vrot.slane %v6119, 2
      %v6968 = vsel %vm3521, %v6966, %v6967
      %v6969 = vrot.slane %v6819, 2
      %v6970 = vsel %vm3521, %v6964, %v6969
      %v6971 = vrot.slane %v6820, 2
      %v6972 = vsel %vm3521, %v6967, %v6971
      %v6973 = vrot.slane %v6821, 2
      %v6974 = vrot.slane %v6124, 2
      %v6975 = vsel %vm3521, %v6973, %v6974
      %v6976 = vrot.slane %v6822, 2
      %v6977 = vrot.slane %v6125, 2
      %v6978 = vsel %vm3521, %v6976, %v6977
      %v6979 = vrot.slane %v6823, 2
      %v6980 = vsel %vm3521, %v6974, %v6979
      %v6981 = vrot.slane %v6824, 2
      %v6982 = vsel %vm3521, %v6977, %v6981
      %v6983 = vrot.slane %v6825, 2
      %v6984 = vrot.slane %v6130, 2
      %v6985 = vsel %vm3521, %v6983, %v6984
      %v6986 = vrot.slane %v6826, 2
      %v6987 = vrot.slane %v6131, 2
      %v6988 = vsel %vm3521, %v6986, %v6987
      %v6989 = vrot.slane %v6827, 2
      %v6990 = vsel %vm3521, %v6984, %v6989
      %v6991 = vrot.slane %v6828, 2
      %v6992 = vsel %vm3521, %v6987, %v6991
      %v6993 = vrot.slane %v6829, 2
      %v6994 = vrot.slane %v6136, 2
      %v6995 = vsel %vm3521, %v6993, %v6994
      %v6996 = vrot.slane %v6830, 2
      %v6997 = vrot.slane %v6137, 2
      %v6998 = vsel %vm3521, %v6996, %v6997
      %v6999 = vrot.slane %v6831, 2
      %v7000 = vsel %vm3521, %v6994, %v6999
      %v7001 = vrot.slane %v6832, 2
      %v7002 = vsel %vm3521, %v6997, %v7001
      %v7003 = vrot.slane %v6833, 2
      %v7004 = vrot.slane %v6142, 2
      %v7005 = vsel %vm3521, %v7003, %v7004
      %v7006 = vrot.slane %v6834, 2
      %v7007 = vrot.slane %v6143, 2
      %v7008 = vsel %vm3521, %v7006, %v7007
      %v7009 = vrot.slane %v6835, 2
      %v7010 = vsel %vm3521, %v7004, %v7009
      %v7011 = vrot.slane %v6836, 2
      %v7012 = vsel %vm3521, %v7007, %v7011
      %v7013 = vrot.slane %v6837, 2
      %v7014 = vrot.slane %v6148, 2
      %v7015 = vsel %vm3521, %v7013, %v7014
      %v7016 = vrot.slane %v6838, 2
      %v7017 = vrot.slane %v6149, 2
      %v7018 = vsel %vm3521, %v7016, %v7017
      %v7019 = vrot.slane %v6839, 2
      %v7020 = vsel %vm3521, %v7014, %v7019
      %v7021 = vrot.slane %v6840, 2
      %v7022 = vsel %vm3521, %v7017, %v7021
      %v7023 = vrot.slane %v6841, 2
      %v7024 = vrot.slane %v6154, 2
      %v7025 = vsel %vm3521, %v7023, %v7024
      %v7026 = vrot.slane %v6842, 2
      %v7027 = vrot.slane %v6155, 2
      %v7028 = vsel %vm3521, %v7026, %v7027
      %v7029 = vrot.slane %v6843, 2
      %v7030 = vsel %vm3521, %v7024, %v7029
      %v7031 = vrot.slane %v6844, 2
      %v7032 = vsel %vm3521, %v7027, %v7031
      %v7033 = vrot.slane %v6845, 2
      %v7034 = vrot.slane %v6160, 2
      %v7035 = vsel %vm3521, %v7033, %v7034
      %v7036 = vrot.slane %v6846, 2
      %v7037 = vrot.slane %v6161, 2
      %v7038 = vsel %vm3521, %v7036, %v7037
      %v7039 = vrot.slane %v6847, 2
      %v7040 = vsel %vm3521, %v7034, %v7039
      %v7041 = vrot.slane %v6848, 2
      %v7042 = vsel %vm3521, %v7037, %v7041
      %v7043 = vrot.slane %v6849, 2
      %v7044 = vrot.slane %v6166, 2
      %v7045 = vsel %vm3521, %v7043, %v7044
      %v7046 = vrot.slane %v6850, 2
      %v7047 = vrot.slane %v6167, 2
      %v7048 = vsel %vm3521, %v7046, %v7047
      %v7049 = vrot.slane %v6851, 2
      %v7050 = vsel %vm3521, %v7044, %v7049
      %v7051 = vrot.slane %v6852, 2
      %v7052 = vsel %vm3521, %v7047, %v7051
      %v7053 = vrot.slane %v6853, 2
      %v7054 = vrot.slane %v6172, 2
      %v7055 = vsel %vm3521, %v7053, %v7054
      %v7056 = vrot.slane %v6854, 2
      %v7057 = vrot.slane %v6173, 2
      %v7058 = vsel %vm3521, %v7056, %v7057
      %v7059 = vrot.slane %v6855, 2
      %v7060 = vsel %vm3521, %v7054, %v7059
      %v7061 = vrot.slane %v6856, 2
      %v7062 = vsel %vm3521, %v7057, %v7061
      %v7063 = vrot.slane %v6857, 2
      %v7064 = vrot.slane %v6178, 2
      %v7065 = vsel %vm3521, %v7063, %v7064
      %v7066 = vrot.slane %v6858, 2
      %v7067 = vrot.slane %v6179, 2
      %v7068 = vsel %vm3521, %v7066, %v7067
      %v7069 = vrot.slane %v6859, 2
      %v7070 = vsel %vm3521, %v7064, %v7069
      %v7071 = vrot.slane %v6860, 2
      %v7072 = vsel %vm3521, %v7067, %v7071
      %v7073 = vrot.slane %v6861, 2
      %v7074 = vrot.slane %v6184, 2
      %v7075 = vsel %vm3521, %v7073, %v7074
      %v7076 = vrot.slane %v6862, 2
      %v7077 = vrot.slane %v6185, 2
      %v7078 = vsel %vm3521, %v7076, %v7077
      %v7079 = vrot.slane %v6863, 2
      %v7080 = vsel %vm3521, %v7074, %v7079
      %v7081 = vrot.slane %v6864, 2
      %v7082 = vsel %vm3521, %v7077, %v7081
      %v7083 = vrot.slane %v6865, 2
      %v7084 = vrot.slane %v6190, 2
      %v7085 = vsel %vm3521, %v7083, %v7084
      %v7086 = vrot.slane %v6866, 2
      %v7087 = vrot.slane %v6191, 2
      %v7088 = vsel %vm3521, %v7086, %v7087
      %v7089 = vrot.slane %v6867, 2
      %v7090 = vsel %vm3521, %v7084, %v7089
      %v7091 = vrot.slane %v6868, 2
      %v7092 = vsel %vm3521, %v7087, %v7091
      %s7157 = scalar_lea.vmem %s4, 2048
      %v7158 = vld [vmem:[%s7157] sm:$0xff]
      %v7159 = vld [vmem:[%s7157 + $0x8] sm:$0xff]
      %v7160 = vld [vmem:[%s7157 + $0x10] sm:$0xff]
      %v7161 = vld [vmem:[%s7157 + $0x18] sm:$0xff]
      %v7162 = vld [vmem:[%s7157 + $0x20] sm:$0xff]
      %v7163 = vld [vmem:[%s7157 + $0x28] sm:$0xff]
      %v7164 = vld [vmem:[%s7157 + $0x30] sm:$0xff]
      %v7165 = vld [vmem:[%s7157 + $0x38] sm:$0xff]
      %v7166 = vld [vmem:[%s7157 + $0x40] sm:$0xff]
      %v7167 = vld [vmem:[%s7157 + $0x48] sm:$0xff]
      %v7168 = vld [vmem:[%s7157 + $0x50] sm:$0xff]
      %v7169 = vld [vmem:[%s7157 + $0x58] sm:$0xff]
      %v7170 = vld [vmem:[%s7157 + $0x60] sm:$0xff]
      %v7171 = vld [vmem:[%s7157 + $0x68] sm:$0xff]
      %v7172 = vld [vmem:[%s7157 + $0x70] sm:$0xff]
      %v7173 = vld [vmem:[%s7157 + $0x78] sm:$0xff]
      %v7174 = vld [vmem:[%s7157 + $0x80] sm:$0xff]
      %v7175 = vld [vmem:[%s7157 + $0x88] sm:$0xff]
      %v7176 = vld [vmem:[%s7157 + $0x90] sm:$0xff]
      %v7177 = vld [vmem:[%s7157 + $0x98] sm:$0xff]
      %v7178 = vld [vmem:[%s7157 + $0xa0] sm:$0xff]
      %v7179 = vld [vmem:[%s7157 + $0xa8] sm:$0xff]
      %v7180 = vld [vmem:[%s7157 + $0xb0] sm:$0xff]
      %v7181 = vld [vmem:[%s7157 + $0xb8] sm:$0xff]
      %v7182 = vld [vmem:[%s7157 + $0xc0] sm:$0xff]
      %v7183 = vld [vmem:[%s7157 + $0xc8] sm:$0xff]
      %v7184 = vld [vmem:[%s7157 + $0xd0] sm:$0xff]
      %v7185 = vld [vmem:[%s7157 + $0xd8] sm:$0xff]
      %v7186 = vld [vmem:[%s7157 + $0xe0] sm:$0xff]
      %v7187 = vld [vmem:[%s7157 + $0xe8] sm:$0xff]
      %v7188 = vld [vmem:[%s7157 + $0xf0] sm:$0xff]
      %v7189 = vld [vmem:[%s7157 + $0xf8] sm:$0xff]
      %7190 = vmatpush.msra.mxu0 %v7173
      %7191 = vmatpush.msra.mxu0 %v7172
      %7192 = vmatpush.msra.mxu0 %v7171
      %7193 = vmatpush.msra.mxu0 %v7170
      %7194 = vmatpush.msra.mxu0 %v7169
      %7195 = vmatpush.msra.mxu0 %v7168
      %7196 = vmatpush.msra.mxu0 %v7167
      %7197 = vmatpush.msra.mxu0 %v7166
      %7198 = vmatpush.msra.mxu0 %v7165
      %7199 = vmatpush.msra.mxu0 %v7164
      %7200 = vmatpush.msra.mxu0 %v7163
      %7201 = vmatpush.msra.mxu0 %v7162
      %7202 = vmatpush.msra.mxu0 %v7161
      %7203 = vmatpush.msra.mxu0 %v7160
      %7204 = vmatpush.msra.mxu0 %v7159
      %7205 = vmatpush.msra.mxu0 %v7158
      %7206 = vmatmul.f32.gmra.mxu0 %v6935
      %v7207 = vpop.f32.mrf.mxu0
      %v7208 = vadd.f32 0.0, %v7207
      %7209 = vmatmul.f32.gmra.mxu0 %v6940
      %v7210 = vpop.f32.mrf.mxu0
      %v7211 = vadd.f32 0.0, %v7210
      %7212 = vmatmul.f32.gmra.mxu0 %v6945
      %v7213 = vpop.f32.mrf.mxu0
      %v7214 = vadd.f32 0.0, %v7213
      %7215 = vmatmul.f32.gmra.mxu0 %v6950
      %v7216 = vpop.f32.mrf.mxu0
      %v7217 = vadd.f32 0.0, %v7216
      %7218 = vmatmul.f32.gmra.mxu0 %v6955
      %v7219 = vpop.f32.mrf.mxu0
      %v7220 = vadd.f32 0.0, %v7219
      %7221 = vmatmul.f32.gmra.mxu0 %v6960
      %v7222 = vpop.f32.mrf.mxu0
      %v7223 = vadd.f32 0.0, %v7222
      %7224 = vmatmul.f32.gmra.mxu0 %v6965
      %v7225 = vpop.f32.mrf.mxu0
      %v7226 = vadd.f32 0.0, %v7225
      %7227 = vmatmul.f32.gmra.mxu0 %v6970
      %v7228 = vpop.f32.mrf.mxu0
      %v7229 = vadd.f32 0.0, %v7228
      %7230 = vmatmul.f32.gmra.mxu0 %v6975
      %v7231 = vpop.f32.mrf.mxu0
      %v7232 = vadd.f32 0.0, %v7231
      %7233 = vmatmul.f32.gmra.mxu0 %v6980
      %v7234 = vpop.f32.mrf.mxu0
      %v7235 = vadd.f32 0.0, %v7234
      %7236 = vmatmul.f32.gmra.mxu0 %v6985
      %v7237 = vpop.f32.mrf.mxu0
      %v7238 = vadd.f32 0.0, %v7237
      %7239 = vmatmul.f32.gmra.mxu0 %v6990
      %v7240 = vpop.f32.mrf.mxu0
      %v7241 = vadd.f32 0.0, %v7240
      %7242 = vmatmul.f32.gmra.mxu0 %v6995
      %v7243 = vpop.f32.mrf.mxu0
      %v7244 = vadd.f32 0.0, %v7243
      %7245 = vmatmul.f32.gmra.mxu0 %v7000
      %v7246 = vpop.f32.mrf.mxu0
      %v7247 = vadd.f32 0.0, %v7246
      %7248 = vmatmul.f32.gmra.mxu0 %v7005
      %v7249 = vpop.f32.mrf.mxu0
      %v7250 = vadd.f32 0.0, %v7249
      %7251 = vmatmul.f32.gmra.mxu0 %v7010
      %v7252 = vpop.f32.mrf.mxu0
      %v7253 = vadd.f32 0.0, %v7252
      %7254 = vmatmul.f32.gmra.mxu0 %v7015
      %v7255 = vpop.f32.mrf.mxu0
      %v7256 = vadd.f32 0.0, %v7255
      %7257 = vmatmul.f32.gmra.mxu0 %v7020
      %v7258 = vpop.f32.mrf.mxu0
      %v7259 = vadd.f32 0.0, %v7258
      %7260 = vmatmul.f32.gmra.mxu0 %v7025
      %v7261 = vpop.f32.mrf.mxu0
      %v7262 = vadd.f32 0.0, %v7261
      %7263 = vmatmul.f32.gmra.mxu0 %v7030
      %v7264 = vpop.f32.mrf.mxu0
      %v7265 = vadd.f32 0.0, %v7264
      %7266 = vmatmul.f32.gmra.mxu0 %v7035
      %v7267 = vpop.f32.mrf.mxu0
      %v7268 = vadd.f32 0.0, %v7267
      %7269 = vmatmul.f32.gmra.mxu0 %v7040
      %v7270 = vpop.f32.mrf.mxu0
      %v7271 = vadd.f32 0.0, %v7270
      %7272 = vmatmul.f32.gmra.mxu0 %v7045
      %v7273 = vpop.f32.mrf.mxu0
      %v7274 = vadd.f32 0.0, %v7273
      %7275 = vmatmul.f32.gmra.mxu0 %v7050
      %v7276 = vpop.f32.mrf.mxu0
      %v7277 = vadd.f32 0.0, %v7276
      %7278 = vmatmul.f32.gmra.mxu0 %v7055
      %v7279 = vpop.f32.mrf.mxu0
      %v7280 = vadd.f32 0.0, %v7279
      %7281 = vmatmul.f32.gmra.mxu0 %v7060
      %v7282 = vpop.f32.mrf.mxu0
      %v7283 = vadd.f32 0.0, %v7282
      %7284 = vmatmul.f32.gmra.mxu0 %v7065
      %v7285 = vpop.f32.mrf.mxu0
      %v7286 = vadd.f32 0.0, %v7285
      %7287 = vmatmul.f32.gmra.mxu0 %v7070
      %v7288 = vpop.f32.mrf.mxu0
      %v7289 = vadd.f32 0.0, %v7288
      %7290 = vmatmul.f32.gmra.mxu0 %v7075
      %v7291 = vpop.f32.mrf.mxu0
      %v7292 = vadd.f32 0.0, %v7291
      %7293 = vmatmul.f32.gmra.mxu0 %v7080
      %v7294 = vpop.f32.mrf.mxu0
      %v7295 = vadd.f32 0.0, %v7294
      %7296 = vmatmul.f32.gmra.mxu0 %v7085
      %v7297 = vpop.f32.mrf.mxu0
      %v7298 = vadd.f32 0.0, %v7297
      %7299 = vmatmul.f32.gmra.mxu0 %v7090
      %v7300 = vpop.f32.mrf.mxu0
      %v7301 = vadd.f32 0.0, %v7300
      %7302 = vdwg.mxu0
      %7303 = vmatpush.msra.mxu0 %v7189
      %7304 = vmatpush.msra.mxu0 %v7188
      %7305 = vmatpush.msra.mxu0 %v7187
      %7306 = vmatpush.msra.mxu0 %v7186
      %7307 = vmatpush.msra.mxu0 %v7185
      %7308 = vmatpush.msra.mxu0 %v7184
      %7309 = vmatpush.msra.mxu0 %v7183
      %7310 = vmatpush.msra.mxu0 %v7182
      %7311 = vmatpush.msra.mxu0 %v7181
      %7312 = vmatpush.msra.mxu0 %v7180
      %7313 = vmatpush.msra.mxu0 %v7179
      %7314 = vmatpush.msra.mxu0 %v7178
      %7315 = vmatpush.msra.mxu0 %v7177
      %7316 = vmatpush.msra.mxu0 %v7176
      %7317 = vmatpush.msra.mxu0 %v7175
      %7318 = vmatpush.msra.mxu0 %v7174
      %7319 = vmatmul.f32.gmra.mxu0 %v6938
      %v7320 = vpop.f32.mrf.mxu0
      %v7321 = vadd.f32 %v7208, %v7320
      %7322 = vmatmul.f32.gmra.mxu0 %v6942
      %v7323 = vpop.f32.mrf.mxu0
      %v7324 = vadd.f32 %v7211, %v7323
      %7325 = vmatmul.f32.gmra.mxu0 %v6948
      %v7326 = vpop.f32.mrf.mxu0
      %v7327 = vadd.f32 %v7214, %v7326
      %7328 = vmatmul.f32.gmra.mxu0 %v6952
      %v7329 = vpop.f32.mrf.mxu0
      %v7330 = vadd.f32 %v7217, %v7329
      %7331 = vmatmul.f32.gmra.mxu0 %v6958
      %v7332 = vpop.f32.mrf.mxu0
      %v7333 = vadd.f32 %v7220, %v7332
      %7334 = vmatmul.f32.gmra.mxu0 %v6962
      %v7335 = vpop.f32.mrf.mxu0
      %v7336 = vadd.f32 %v7223, %v7335
      %7337 = vmatmul.f32.gmra.mxu0 %v6968
      %v7338 = vpop.f32.mrf.mxu0
      %v7339 = vadd.f32 %v7226, %v7338
      %7340 = vmatmul.f32.gmra.mxu0 %v6972
      %v7341 = vpop.f32.mrf.mxu0
      %v7342 = vadd.f32 %v7229, %v7341
      %7343 = vmatmul.f32.gmra.mxu0 %v6978
      %v7344 = vpop.f32.mrf.mxu0
      %v7345 = vadd.f32 %v7232, %v7344
      %7346 = vmatmul.f32.gmra.mxu0 %v6982
      %v7347 = vpop.f32.mrf.mxu0
      %v7348 = vadd.f32 %v7235, %v7347
      %7349 = vmatmul.f32.gmra.mxu0 %v6988
      %v7350 = vpop.f32.mrf.mxu0
      %v7351 = vadd.f32 %v7238, %v7350
      %7352 = vmatmul.f32.gmra.mxu0 %v6992
      %v7353 = vpop.f32.mrf.mxu0
      %v7354 = vadd.f32 %v7241, %v7353
      %7355 = vmatmul.f32.gmra.mxu0 %v6998
      %v7356 = vpop.f32.mrf.mxu0
      %v7357 = vadd.f32 %v7244, %v7356
      %7358 = vmatmul.f32.gmra.mxu0 %v7002
      %v7359 = vpop.f32.mrf.mxu0
      %v7360 = vadd.f32 %v7247, %v7359
      %7361 = vmatmul.f32.gmra.mxu0 %v7008
      %v7362 = vpop.f32.mrf.mxu0
      %v7363 = vadd.f32 %v7250, %v7362
      %7364 = vmatmul.f32.gmra.mxu0 %v7012
      %v7365 = vpop.f32.mrf.mxu0
      %v7366 = vadd.f32 %v7253, %v7365
      %7367 = vmatmul.f32.gmra.mxu0 %v7018
      %v7368 = vpop.f32.mrf.mxu0
      %v7369 = vadd.f32 %v7256, %v7368
      %7370 = vmatmul.f32.gmra.mxu0 %v7022
      %v7371 = vpop.f32.mrf.mxu0
      %v7372 = vadd.f32 %v7259, %v7371
      %7373 = vmatmul.f32.gmra.mxu0 %v7028
      %v7374 = vpop.f32.mrf.mxu0
      %v7375 = vadd.f32 %v7262, %v7374
      %7376 = vmatmul.f32.gmra.mxu0 %v7032
      %v7377 = vpop.f32.mrf.mxu0
      %v7378 = vadd.f32 %v7265, %v7377
      %7379 = vmatmul.f32.gmra.mxu0 %v7038
      %v7380 = vpop.f32.mrf.mxu0
      %v7381 = vadd.f32 %v7268, %v7380
      %7382 = vmatmul.f32.gmra.mxu0 %v7042
      %v7383 = vpop.f32.mrf.mxu0
      %v7384 = vadd.f32 %v7271, %v7383
      %7385 = vmatmul.f32.gmra.mxu0 %v7048
      %v7386 = vpop.f32.mrf.mxu0
      %v7387 = vadd.f32 %v7274, %v7386
      %7388 = vmatmul.f32.gmra.mxu0 %v7052
      %v7389 = vpop.f32.mrf.mxu0
      %v7390 = vadd.f32 %v7277, %v7389
      %7391 = vmatmul.f32.gmra.mxu0 %v7058
      %v7392 = vpop.f32.mrf.mxu0
      %v7393 = vadd.f32 %v7280, %v7392
      %7394 = vmatmul.f32.gmra.mxu0 %v7062
      %v7395 = vpop.f32.mrf.mxu0
      %v7396 = vadd.f32 %v7283, %v7395
      %7397 = vmatmul.f32.gmra.mxu0 %v7068
      %v7398 = vpop.f32.mrf.mxu0
      %v7399 = vadd.f32 %v7286, %v7398
      %7400 = vmatmul.f32.gmra.mxu0 %v7072
      %v7401 = vpop.f32.mrf.mxu0
      %v7402 = vadd.f32 %v7289, %v7401
      %7403 = vmatmul.f32.gmra.mxu0 %v7078
      %v7404 = vpop.f32.mrf.mxu0
      %v7405 = vadd.f32 %v7292, %v7404
      %7406 = vmatmul.f32.gmra.mxu0 %v7082
      %v7407 = vpop.f32.mrf.mxu0
      %v7408 = vadd.f32 %v7295, %v7407
      %7409 = vmatmul.f32.gmra.mxu0 %v7088
      %v7410 = vpop.f32.mrf.mxu0
      %v7411 = vadd.f32 %v7298, %v7410
      %7412 = vmatmul.f32.gmra.mxu0 %v7092
      %v7413 = vpop.f32.mrf.mxu0
      %v7414 = vadd.f32 %v7301, %v7413
      %7415 = vdwg.mxu0
      %v7416 = vadd.f32 %v6773, %v7321
      %v7417 = vadd.f32 %v6774, %v7324
      %v7418 = vadd.f32 %v6775, %v7327
      %v7419 = vadd.f32 %v6776, %v7330
      %v7420 = vadd.f32 %v6777, %v7333
      %v7421 = vadd.f32 %v6778, %v7336
      %v7422 = vadd.f32 %v6779, %v7339
      %v7423 = vadd.f32 %v6780, %v7342
      %v7424 = vadd.f32 %v6781, %v7345
      %v7425 = vadd.f32 %v6782, %v7348
      %v7426 = vadd.f32 %v6783, %v7351
      %v7427 = vadd.f32 %v6784, %v7354
      %v7428 = vadd.f32 %v6785, %v7357
      %v7429 = vadd.f32 %v6786, %v7360
      %v7430 = vadd.f32 %v6787, %v7363
      %v7431 = vadd.f32 %v6788, %v7366
      %v7432 = vadd.f32 %v6789, %v7369
      %v7433 = vadd.f32 %v6790, %v7372
      %v7434 = vadd.f32 %v6791, %v7375
      %v7435 = vadd.f32 %v6792, %v7378
      %v7436 = vadd.f32 %v6793, %v7381
      %v7437 = vadd.f32 %v6794, %v7384
      %v7438 = vadd.f32 %v6795, %v7387
      %v7439 = vadd.f32 %v6796, %v7390
      %v7440 = vadd.f32 %v6797, %v7393
      %v7441 = vadd.f32 %v6798, %v7396
      %v7442 = vadd.f32 %v6799, %v7399
      %v7443 = vadd.f32 %v6800, %v7402
      %v7444 = vadd.f32 %v6801, %v7405
      %v7445 = vadd.f32 %v6802, %v7408
      %v7446 = vadd.f32 %v6803, %v7411
      %v7447 = vadd.f32 %v6804, %v7414
      %v7449 = vperm.slane %v2425, 0
      %v7451 = vmul.f32 %v7416, %v7449
      %v7452 = vmul.f32 %v7417, %v7449
      %v7453 = vmul.f32 %v7418, %v7449
      %v7454 = vmul.f32 %v7419, %v7449
      %v7455 = vmul.f32 %v7420, %v7449
      %v7456 = vmul.f32 %v7421, %v7449
      %v7457 = vmul.f32 %v7422, %v7449
      %v7458 = vmul.f32 %v7423, %v7449
      %v7459 = vmul.f32 %v7424, %v7449
      %v7460 = vmul.f32 %v7425, %v7449
      %v7461 = vmul.f32 %v7426, %v7449
      %v7462 = vmul.f32 %v7427, %v7449
      %v7463 = vmul.f32 %v7428, %v7449
      %v7464 = vmul.f32 %v7429, %v7449
      %v7465 = vmul.f32 %v7430, %v7449
      %v7466 = vmul.f32 %v7431, %v7449
      %v7467 = vmul.f32 %v7432, %v7449
      %v7468 = vmul.f32 %v7433, %v7449
      %v7469 = vmul.f32 %v7434, %v7449
      %v7470 = vmul.f32 %v7435, %v7449
      %v7471 = vmul.f32 %v7436, %v7449
      %v7472 = vmul.f32 %v7437, %v7449
      %v7473 = vmul.f32 %v7438, %v7449
      %v7474 = vmul.f32 %v7439, %v7449
      %v7475 = vmul.f32 %v7440, %v7449
      %v7476 = vmul.f32 %v7441, %v7449
      %v7477 = vmul.f32 %v7442, %v7449
      %v7478 = vmul.f32 %v7443, %v7449
      %v7479 = vmul.f32 %v7444, %v7449
      %v7480 = vmul.f32 %v7445, %v7449
      %v7481 = vmul.f32 %v7446, %v7449
      %v7482 = vmul.f32 %v7447, %v7449
      %v7484 = vperm.slane %v2426, 0
      %v7486 = vadd.f32 %v7451, %v7484
      %v7487 = vadd.f32 %v7452, %v7484
      %v7488 = vadd.f32 %v7453, %v7484
      %v7489 = vadd.f32 %v7454, %v7484
      %v7490 = vadd.f32 %v7455, %v7484
      %v7491 = vadd.f32 %v7456, %v7484
      %v7492 = vadd.f32 %v7457, %v7484
      %v7493 = vadd.f32 %v7458, %v7484
      %v7494 = vadd.f32 %v7459, %v7484
      %v7495 = vadd.f32 %v7460, %v7484
      %v7496 = vadd.f32 %v7461, %v7484
      %v7497 = vadd.f32 %v7462, %v7484
      %v7498 = vadd.f32 %v7463, %v7484
      %v7499 = vadd.f32 %v7464, %v7484
      %v7500 = vadd.f32 %v7465, %v7484
      %v7501 = vadd.f32 %v7466, %v7484
      %v7502 = vadd.f32 %v7467, %v7484
      %v7503 = vadd.f32 %v7468, %v7484
      %v7504 = vadd.f32 %v7469, %v7484
      %v7505 = vadd.f32 %v7470, %v7484
      %v7506 = vadd.f32 %v7471, %v7484
      %v7507 = vadd.f32 %v7472, %v7484
      %v7508 = vadd.f32 %v7473, %v7484
      %v7509 = vadd.f32 %v7474, %v7484
      %v7510 = vadd.f32 %v7475, %v7484
      %v7511 = vadd.f32 %v7476, %v7484
      %v7512 = vadd.f32 %v7477, %v7484
      %v7513 = vadd.f32 %v7478, %v7484
      %v7514 = vadd.f32 %v7479, %v7484
      %v7515 = vadd.f32 %v7480, %v7484
      %v7516 = vadd.f32 %v7481, %v7484
      %v7517 = vadd.f32 %v7482, %v7484
      %v7518 = vmax.f32 %v7486, 0.0
      %v7519 = vmax.f32 %v7487, 0.0
      %v7520 = vmax.f32 %v7488, 0.0
      %v7521 = vmax.f32 %v7489, 0.0
      %v7522 = vmax.f32 %v7490, 0.0
      %v7523 = vmax.f32 %v7491, 0.0
      %v7524 = vmax.f32 %v7492, 0.0
      %v7525 = vmax.f32 %v7493, 0.0
      %v7526 = vmax.f32 %v7494, 0.0
      %v7527 = vmax.f32 %v7495, 0.0
      %v7528 = vmax.f32 %v7496, 0.0
      %v7529 = vmax.f32 %v7497, 0.0
      %v7530 = vmax.f32 %v7498, 0.0
      %v7531 = vmax.f32 %v7499, 0.0
      %v7532 = vmax.f32 %v7500, 0.0
      %v7533 = vmax.f32 %v7501, 0.0
      %v7534 = vmax.f32 %v7502, 0.0
      %v7535 = vmax.f32 %v7503, 0.0
      %v7536 = vmax.f32 %v7504, 0.0
      %v7537 = vmax.f32 %v7505, 0.0
      %v7538 = vmax.f32 %v7506, 0.0
      %v7539 = vmax.f32 %v7507, 0.0
      %v7540 = vmax.f32 %v7508, 0.0
      %v7541 = vmax.f32 %v7509, 0.0
      %v7542 = vmax.f32 %v7510, 0.0
      %v7543 = vmax.f32 %v7511, 0.0
      %v7544 = vmax.f32 %v7512, 0.0
      %v7545 = vmax.f32 %v7513, 0.0
      %v7546 = vmax.f32 %v7514, 0.0
      %v7547 = vmax.f32 %v7515, 0.0
      %v7548 = vmax.f32 %v7516, 0.0
      %v7549 = vmax.f32 %v7517, 0.0
      %s7550 = scalar_lea.vmem [#allocation3], 24
      %7551 = vst [vmem:[%s7550 + $0x1] sm:$0xff] %v7518
      %7552 = vst [vmem:[%s7550 + $0x9] sm:$0xff] %v7519
      %7553 = vst [vmem:[%s7550 + $0x19] sm:$0xff] %v7520
      %7554 = vst [vmem:[%s7550 + $0x21] sm:$0xff] %v7521
      %7555 = vst [vmem:[%s7550 + $0x31] sm:$0xff] %v7522
      %7556 = vst [vmem:[%s7550 + $0x39] sm:$0xff] %v7523
      %7557 = vst [vmem:[%s7550 + $0x49] sm:$0xff] %v7524
      %7558 = vst [vmem:[%s7550 + $0x51] sm:$0xff] %v7525
      %7559 = vst [vmem:[%s7550 + $0x61] sm:$0xff] %v7526
      %7560 = vst [vmem:[%s7550 + $0x69] sm:$0xff] %v7527
      %7561 = vst [vmem:[%s7550 + $0x79] sm:$0xff] %v7528
      %7562 = vst [vmem:[%s7550 + $0x81] sm:$0xff] %v7529
      %7563 = vst [vmem:[%s7550 + $0x91] sm:$0xff] %v7530
      %7564 = vst [vmem:[%s7550 + $0x99] sm:$0xff] %v7531
      %7565 = vst [vmem:[%s7550 + $0xa9] sm:$0xff] %v7532
      %7566 = vst [vmem:[%s7550 + $0xb1] sm:$0xff] %v7533
      %7567 = vst [vmem:[%s7550 + $0xc1] sm:$0xff] %v7534
      %7568 = vst [vmem:[%s7550 + $0xc9] sm:$0xff] %v7535
      %7569 = vst [vmem:[%s7550 + $0xd9] sm:$0xff] %v7536
      %7570 = vst [vmem:[%s7550 + $0xe1] sm:$0xff] %v7537
      %7571 = vst [vmem:[%s7550 + $0xf1] sm:$0xff] %v7538
      %7572 = vst [vmem:[%s7550 + $0xf9] sm:$0xff] %v7539
      %7573 = vst [vmem:[%s7550 + $0x109] sm:$0xff] %v7540
      %7574 = vst [vmem:[%s7550 + $0x111] sm:$0xff] %v7541
      %7575 = vst [vmem:[%s7550 + $0x121] sm:$0xff] %v7542
      %7576 = vst [vmem:[%s7550 + $0x129] sm:$0xff] %v7543
      %7577 = vst [vmem:[%s7550 + $0x139] sm:$0xff] %v7544
      %7578 = vst [vmem:[%s7550 + $0x141] sm:$0xff] %v7545
      %7579 = vst [vmem:[%s7550 + $0x151] sm:$0xff] %v7546
      %7580 = vst [vmem:[%s7550 + $0x159] sm:$0xff] %v7547
      %7581 = vst [vmem:[%s7550 + $0x169] sm:$0xff] %v7548
      %7582 = vst [vmem:[%s7550 + $0x171] sm:$0xff] %v7549
      %v7583 = vld [vmem:[%s8] sm:$0x1]
      %v7584 = vld [vmem:[%s9] sm:$0x1]
      %v7585 = vld [vmem:[#allocation3] sm:$0xff]
      %v7586 = vld [vmem:[#allocation3 + $0x8] sm:$0xff]
      %v7587 = vld [vmem:[#allocation3 + $0x18] sm:$0xff]
      %v7588 = vld [vmem:[#allocation3 + $0x20] sm:$0xff]
      %v7589 = vld [vmem:[#allocation3 + $0x30] sm:$0xff]
      %v7590 = vld [vmem:[#allocation3 + $0x38] sm:$0xff]
      %v7591 = vld [vmem:[#allocation3 + $0x48] sm:$0xff]
      %v7592 = vld [vmem:[#allocation3 + $0x50] sm:$0xff]
      %v7593 = vld [vmem:[#allocation3 + $0x60] sm:$0xff]
      %v7594 = vld [vmem:[#allocation3 + $0x68] sm:$0xff]
      %v7595 = vld [vmem:[#allocation3 + $0x78] sm:$0xff]
      %v7596 = vld [vmem:[#allocation3 + $0x80] sm:$0xff]
      %v7597 = vld [vmem:[#allocation3 + $0x90] sm:$0xff]
      %v7598 = vld [vmem:[#allocation3 + $0x98] sm:$0xff]
      %v7599 = vld [vmem:[#allocation3 + $0xa8] sm:$0xff]
      %v7600 = vld [vmem:[#allocation3 + $0xb0] sm:$0xff]
      %v7601 = vld [vmem:[#allocation3 + $0xc0] sm:$0xff]
      %v7602 = vld [vmem:[#allocation3 + $0xc8] sm:$0xff]
      %v7603 = vld [vmem:[#allocation3 + $0xd8] sm:$0xff]
      %v7604 = vld [vmem:[#allocation3 + $0xe0] sm:$0xff]
      %v7605 = vld [vmem:[#allocation3 + $0xf0] sm:$0xff]
      %v7606 = vld [vmem:[#allocation3 + $0xf8] sm:$0xff]
      %v7607 = vld [vmem:[#allocation3 + $0x108] sm:$0xff]
      %v7608 = vld [vmem:[#allocation3 + $0x110] sm:$0xff]
      %v7609 = vld [vmem:[#allocation3 + $0x120] sm:$0xff]
      %v7610 = vld [vmem:[#allocation3 + $0x128] sm:$0xff]
      %v7611 = vld [vmem:[#allocation3 + $0x138] sm:$0xff]
      %v7612 = vld [vmem:[#allocation3 + $0x140] sm:$0xff]
      %v7613 = vld [vmem:[#allocation3 + $0x150] sm:$0xff]
      %v7614 = vld [vmem:[#allocation3 + $0x158] sm:$0xff]
      %v7615 = vld [vmem:[#allocation3 + $0x168] sm:$0xff]
      %v7616 = vld [vmem:[#allocation3 + $0x170] sm:$0xff]
      %v7617 = vld [vmem:[%s7] sm:$0xff]
      %v7618 = vld [vmem:[%s7 + $0x8] sm:$0xff]
      %v7619 = vld [vmem:[%s7 + $0x10] sm:$0xff]
      %v7620 = vld [vmem:[%s7 + $0x18] sm:$0xff]
      %v7621 = vld [vmem:[%s7 + $0x20] sm:$0xff]
      %v7622 = vld [vmem:[%s7 + $0x28] sm:$0xff]
      %v7623 = vld [vmem:[%s7 + $0x30] sm:$0xff]
      %v7624 = vld [vmem:[%s7 + $0x38] sm:$0xff]
      %v7625 = vld [vmem:[%s7 + $0x40] sm:$0xff]
      %v7626 = vld [vmem:[%s7 + $0x48] sm:$0xff]
      %v7627 = vld [vmem:[%s7 + $0x50] sm:$0xff]
      %v7628 = vld [vmem:[%s7 + $0x58] sm:$0xff]
      %v7629 = vld [vmem:[%s7 + $0x60] sm:$0xff]
      %v7630 = vld [vmem:[%s7 + $0x68] sm:$0xff]
      %v7631 = vld [vmem:[%s7 + $0x70] sm:$0xff]
      %v7632 = vld [vmem:[%s7 + $0x78] sm:$0xff]
      %v7633 = vld [vmem:[#allocation3 + $0x1] sm:$0xff]
      %v7634 = vld [vmem:[#allocation3 + $0x9] sm:$0xff]
      %v7635 = vld [vmem:[#allocation3 + $0x19] sm:$0xff]
      %v7636 = vld [vmem:[#allocation3 + $0x21] sm:$0xff]
      %v7637 = vld [vmem:[#allocation3 + $0x31] sm:$0xff]
      %v7638 = vld [vmem:[#allocation3 + $0x39] sm:$0xff]
      %v7639 = vld [vmem:[#allocation3 + $0x49] sm:$0xff]
      %v7640 = vld [vmem:[#allocation3 + $0x51] sm:$0xff]
      %v7641 = vld [vmem:[#allocation3 + $0x61] sm:$0xff]
      %v7642 = vld [vmem:[#allocation3 + $0x69] sm:$0xff]
      %v7643 = vld [vmem:[#allocation3 + $0x79] sm:$0xff]
      %v7644 = vld [vmem:[#allocation3 + $0x81] sm:$0xff]
      %v7645 = vld [vmem:[#allocation3 + $0x91] sm:$0xff]
      %v7646 = vld [vmem:[#allocation3 + $0x99] sm:$0xff]
      %v7647 = vld [vmem:[#allocation3 + $0xa9] sm:$0xff]
      %v7648 = vld [vmem:[#allocation3 + $0xb1] sm:$0xff]
      %v7649 = vld [vmem:[#allocation3 + $0xc1] sm:$0xff]
      %v7650 = vld [vmem:[#allocation3 + $0xc9] sm:$0xff]
      %v7651 = vld [vmem:[#allocation3 + $0xd9] sm:$0xff]
      %v7652 = vld [vmem:[#allocation3 + $0xe1] sm:$0xff]
      %v7653 = vld [vmem:[#allocation3 + $0xf1] sm:$0xff]
      %v7654 = vld [vmem:[#allocation3 + $0xf9] sm:$0xff]
      %v7655 = vld [vmem:[#allocation3 + $0x109] sm:$0xff]
      %v7656 = vld [vmem:[#allocation3 + $0x111] sm:$0xff]
      %v7657 = vld [vmem:[#allocation3 + $0x121] sm:$0xff]
      %v7658 = vld [vmem:[#allocation3 + $0x129] sm:$0xff]
      %v7659 = vld [vmem:[#allocation3 + $0x139] sm:$0xff]
      %v7660 = vld [vmem:[#allocation3 + $0x141] sm:$0xff]
      %v7661 = vld [vmem:[#allocation3 + $0x151] sm:$0xff]
      %v7662 = vld [vmem:[#allocation3 + $0x159] sm:$0xff]
      %v7663 = vld [vmem:[#allocation3 + $0x169] sm:$0xff]
      %v7664 = vld [vmem:[#allocation3 + $0x171] sm:$0xff]
      %s7665 = scalar_lea.vmem %s7, 128
      %v7666 = vld [vmem:[%s7665] sm:$0xff]
      %v7667 = vld [vmem:[%s7665 + $0x8] sm:$0xff]
      %v7668 = vld [vmem:[%s7665 + $0x10] sm:$0xff]
      %v7669 = vld [vmem:[%s7665 + $0x18] sm:$0xff]
      %v7670 = vld [vmem:[%s7665 + $0x20] sm:$0xff]
      %v7671 = vld [vmem:[%s7665 + $0x28] sm:$0xff]
      %v7672 = vld [vmem:[%s7665 + $0x30] sm:$0xff]
      %v7673 = vld [vmem:[%s7665 + $0x38] sm:$0xff]
      %v7674 = vld [vmem:[%s7665 + $0x40] sm:$0xff]
      %v7675 = vld [vmem:[%s7665 + $0x48] sm:$0xff]
      %v7676 = vld [vmem:[%s7665 + $0x50] sm:$0xff]
      %v7677 = vld [vmem:[%s7665 + $0x58] sm:$0xff]
      %v7678 = vld [vmem:[%s7665 + $0x60] sm:$0xff]
      %v7679 = vld [vmem:[%s7665 + $0x68] sm:$0xff]
      %v7680 = vld [vmem:[%s7665 + $0x70] sm:$0xff]
      %v7681 = vld [vmem:[%s7665 + $0x78] sm:$0xff]
      %7682 = vmatpush.msra.mxu0 %v7681
      %7683 = vmatpush.msra.mxu0 %v7680
      %7684 = vmatpush.msra.mxu0 %v7679
      %7685 = vmatpush.msra.mxu0 %v7678
      %7686 = vmatpush.msra.mxu0 %v7677
      %7687 = vmatpush.msra.mxu0 %v7676
      %7688 = vmatpush.msra.mxu0 %v7675
      %7689 = vmatpush.msra.mxu0 %v7674
      %7690 = vmatpush.msra.mxu0 %v7673
      %7691 = vmatpush.msra.mxu0 %v7672
      %7692 = vmatpush.msra.mxu0 %v7671
      %7693 = vmatpush.msra.mxu0 %v7670
      %7694 = vmatpush.msra.mxu0 %v7669
      %7695 = vmatpush.msra.mxu0 %v7668
      %7696 = vmatpush.msra.mxu0 %v7667
      %7697 = vmatpush.msra.mxu0 %v7666
      %7698 = vmatmul.f32.gmra.mxu0 %v7633
      %v7699 = vpop.f32.mrf.mxu0
      %v7700 = vadd.f32 0.0, %v7699
      %7701 = vmatmul.f32.gmra.mxu0 %v7634
      %v7702 = vpop.f32.mrf.mxu0
      %v7703 = vadd.f32 0.0, %v7702
      %7704 = vmatmul.f32.gmra.mxu0 %v7635
      %v7705 = vpop.f32.mrf.mxu0
      %v7706 = vadd.f32 0.0, %v7705
      %7707 = vmatmul.f32.gmra.mxu0 %v7636
      %v7708 = vpop.f32.mrf.mxu0
      %v7709 = vadd.f32 0.0, %v7708
      %7710 = vmatmul.f32.gmra.mxu0 %v7637
      %v7711 = vpop.f32.mrf.mxu0
      %v7712 = vadd.f32 0.0, %v7711
      %7713 = vmatmul.f32.gmra.mxu0 %v7638
      %v7714 = vpop.f32.mrf.mxu0
      %v7715 = vadd.f32 0.0, %v7714
      %7716 = vmatmul.f32.gmra.mxu0 %v7639
      %v7717 = vpop.f32.mrf.mxu0
      %v7718 = vadd.f32 0.0, %v7717
      %7719 = vmatmul.f32.gmra.mxu0 %v7640
      %v7720 = vpop.f32.mrf.mxu0
      %v7721 = vadd.f32 0.0, %v7720
      %7722 = vmatmul.f32.gmra.mxu0 %v7641
      %v7723 = vpop.f32.mrf.mxu0
      %v7724 = vadd.f32 0.0, %v7723
      %7725 = vmatmul.f32.gmra.mxu0 %v7642
      %v7726 = vpop.f32.mrf.mxu0
      %v7727 = vadd.f32 0.0, %v7726
      %7728 = vmatmul.f32.gmra.mxu0 %v7643
      %v7729 = vpop.f32.mrf.mxu0
      %v7730 = vadd.f32 0.0, %v7729
      %7731 = vmatmul.f32.gmra.mxu0 %v7644
      %v7732 = vpop.f32.mrf.mxu0
      %v7733 = vadd.f32 0.0, %v7732
      %7734 = vmatmul.f32.gmra.mxu0 %v7645
      %v7735 = vpop.f32.mrf.mxu0
      %v7736 = vadd.f32 0.0, %v7735
      %7737 = vmatmul.f32.gmra.mxu0 %v7646
      %v7738 = vpop.f32.mrf.mxu0
      %v7739 = vadd.f32 0.0, %v7738
      %7740 = vmatmul.f32.gmra.mxu0 %v7647
      %v7741 = vpop.f32.mrf.mxu0
      %v7742 = vadd.f32 0.0, %v7741
      %7743 = vmatmul.f32.gmra.mxu0 %v7648
      %v7744 = vpop.f32.mrf.mxu0
      %v7745 = vadd.f32 0.0, %v7744
      %7746 = vmatmul.f32.gmra.mxu0 %v7649
      %v7747 = vpop.f32.mrf.mxu0
      %v7748 = vadd.f32 0.0, %v7747
      %7749 = vmatmul.f32.gmra.mxu0 %v7650
      %v7750 = vpop.f32.mrf.mxu0
      %v7751 = vadd.f32 0.0, %v7750
      %7752 = vmatmul.f32.gmra.mxu0 %v7651
      %v7753 = vpop.f32.mrf.mxu0
      %v7754 = vadd.f32 0.0, %v7753
      %7755 = vmatmul.f32.gmra.mxu0 %v7652
      %v7756 = vpop.f32.mrf.mxu0
      %v7757 = vadd.f32 0.0, %v7756
      %7758 = vmatmul.f32.gmra.mxu0 %v7653
      %v7759 = vpop.f32.mrf.mxu0
      %v7760 = vadd.f32 0.0, %v7759
      %7761 = vmatmul.f32.gmra.mxu0 %v7654
      %v7762 = vpop.f32.mrf.mxu0
      %v7763 = vadd.f32 0.0, %v7762
      %7764 = vmatmul.f32.gmra.mxu0 %v7655
      %v7765 = vpop.f32.mrf.mxu0
      %v7766 = vadd.f32 0.0, %v7765
      %7767 = vmatmul.f32.gmra.mxu0 %v7656
      %v7768 = vpop.f32.mrf.mxu0
      %v7769 = vadd.f32 0.0, %v7768
      %7770 = vmatmul.f32.gmra.mxu0 %v7657
      %v7771 = vpop.f32.mrf.mxu0
      %v7772 = vadd.f32 0.0, %v7771
      %7773 = vmatmul.f32.gmra.mxu0 %v7658
      %v7774 = vpop.f32.mrf.mxu0
      %v7775 = vadd.f32 0.0, %v7774
      %7776 = vmatmul.f32.gmra.mxu0 %v7659
      %v7777 = vpop.f32.mrf.mxu0
      %v7778 = vadd.f32 0.0, %v7777
      %7779 = vmatmul.f32.gmra.mxu0 %v7660
      %v7780 = vpop.f32.mrf.mxu0
      %v7781 = vadd.f32 0.0, %v7780
      %7782 = vmatmul.f32.gmra.mxu0 %v7661
      %v7783 = vpop.f32.mrf.mxu0
      %v7784 = vadd.f32 0.0, %v7783
      %7785 = vmatmul.f32.gmra.mxu0 %v7662
      %v7786 = vpop.f32.mrf.mxu0
      %v7787 = vadd.f32 0.0, %v7786
      %7788 = vmatmul.f32.gmra.mxu0 %v7663
      %v7789 = vpop.f32.mrf.mxu0
      %v7790 = vadd.f32 0.0, %v7789
      %7791 = vmatmul.f32.gmra.mxu0 %v7664
      %v7792 = vpop.f32.mrf.mxu0
      %v7793 = vadd.f32 0.0, %v7792
      %7794 = vdwg.mxu0
      %7795 = vmatpush.msra.mxu0 %v7632
      %7796 = vmatpush.msra.mxu0 %v7631
      %7797 = vmatpush.msra.mxu0 %v7630
      %7798 = vmatpush.msra.mxu0 %v7629
      %7799 = vmatpush.msra.mxu0 %v7628
      %7800 = vmatpush.msra.mxu0 %v7627
      %7801 = vmatpush.msra.mxu0 %v7626
      %7802 = vmatpush.msra.mxu0 %v7625
      %7803 = vmatpush.msra.mxu0 %v7624
      %7804 = vmatpush.msra.mxu0 %v7623
      %7805 = vmatpush.msra.mxu0 %v7622
      %7806 = vmatpush.msra.mxu0 %v7621
      %7807 = vmatpush.msra.mxu0 %v7620
      %7808 = vmatpush.msra.mxu0 %v7619
      %7809 = vmatpush.msra.mxu0 %v7618
      %7810 = vmatpush.msra.mxu0 %v7617
      %7811 = vmatmul.f32.gmra.mxu0 %v7585
      %v7812 = vpop.f32.mrf.mxu0
      %v7813 = vadd.f32 %v7700, %v7812
      %7814 = vmatmul.f32.gmra.mxu0 %v7586
      %v7815 = vpop.f32.mrf.mxu0
      %v7816 = vadd.f32 %v7703, %v7815
      %7817 = vmatmul.f32.gmra.mxu0 %v7587
      %v7818 = vpop.f32.mrf.mxu0
      %v7819 = vadd.f32 %v7706, %v7818
      %7820 = vmatmul.f32.gmra.mxu0 %v7588
      %v7821 = vpop.f32.mrf.mxu0
      %v7822 = vadd.f32 %v7709, %v7821
      %7823 = vmatmul.f32.gmra.mxu0 %v7589
      %v7824 = vpop.f32.mrf.mxu0
      %v7825 = vadd.f32 %v7712, %v7824
      %7826 = vmatmul.f32.gmra.mxu0 %v7590
      %v7827 = vpop.f32.mrf.mxu0
      %v7828 = vadd.f32 %v7715, %v7827
      %7829 = vmatmul.f32.gmra.mxu0 %v7591
      %v7830 = vpop.f32.mrf.mxu0
      %v7831 = vadd.f32 %v7718, %v7830
      %7832 = vmatmul.f32.gmra.mxu0 %v7592
      %v7833 = vpop.f32.mrf.mxu0
      %v7834 = vadd.f32 %v7721, %v7833
      %7835 = vmatmul.f32.gmra.mxu0 %v7593
      %v7836 = vpop.f32.mrf.mxu0
      %v7837 = vadd.f32 %v7724, %v7836
      %7838 = vmatmul.f32.gmra.mxu0 %v7594
      %v7839 = vpop.f32.mrf.mxu0
      %v7840 = vadd.f32 %v7727, %v7839
      %7841 = vmatmul.f32.gmra.mxu0 %v7595
      %v7842 = vpop.f32.mrf.mxu0
      %v7843 = vadd.f32 %v7730, %v7842
      %7844 = vmatmul.f32.gmra.mxu0 %v7596
      %v7845 = vpop.f32.mrf.mxu0
      %v7846 = vadd.f32 %v7733, %v7845
      %7847 = vmatmul.f32.gmra.mxu0 %v7597
      %v7848 = vpop.f32.mrf.mxu0
      %v7849 = vadd.f32 %v7736, %v7848
      %7850 = vmatmul.f32.gmra.mxu0 %v7598
      %v7851 = vpop.f32.mrf.mxu0
      %v7852 = vadd.f32 %v7739, %v7851
      %7853 = vmatmul.f32.gmra.mxu0 %v7599
      %v7854 = vpop.f32.mrf.mxu0
      %v7855 = vadd.f32 %v7742, %v7854
      %7856 = vmatmul.f32.gmra.mxu0 %v7600
      %v7857 = vpop.f32.mrf.mxu0
      %v7858 = vadd.f32 %v7745, %v7857
      %7859 = vmatmul.f32.gmra.mxu0 %v7601
      %v7860 = vpop.f32.mrf.mxu0
      %v7861 = vadd.f32 %v7748, %v7860
      %7862 = vmatmul.f32.gmra.mxu0 %v7602
      %v7863 = vpop.f32.mrf.mxu0
      %v7864 = vadd.f32 %v7751, %v7863
      %7865 = vmatmul.f32.gmra.mxu0 %v7603
      %v7866 = vpop.f32.mrf.mxu0
      %v7867 = vadd.f32 %v7754, %v7866
      %7868 = vmatmul.f32.gmra.mxu0 %v7604
      %v7869 = vpop.f32.mrf.mxu0
      %v7870 = vadd.f32 %v7757, %v7869
      %7871 = vmatmul.f32.gmra.mxu0 %v7605
      %v7872 = vpop.f32.mrf.mxu0
      %v7873 = vadd.f32 %v7760, %v7872
      %7874 = vmatmul.f32.gmra.mxu0 %v7606
      %v7875 = vpop.f32.mrf.mxu0
      %v7876 = vadd.f32 %v7763, %v7875
      %7877 = vmatmul.f32.gmra.mxu0 %v7607
      %v7878 = vpop.f32.mrf.mxu0
      %v7879 = vadd.f32 %v7766, %v7878
      %7880 = vmatmul.f32.gmra.mxu0 %v7608
      %v7881 = vpop.f32.mrf.mxu0
      %v7882 = vadd.f32 %v7769, %v7881
      %7883 = vmatmul.f32.gmra.mxu0 %v7609
      %v7884 = vpop.f32.mrf.mxu0
      %v7885 = vadd.f32 %v7772, %v7884
      %7886 = vmatmul.f32.gmra.mxu0 %v7610
      %v7887 = vpop.f32.mrf.mxu0
      %v7888 = vadd.f32 %v7775, %v7887
      %7889 = vmatmul.f32.gmra.mxu0 %v7611
      %v7890 = vpop.f32.mrf.mxu0
      %v7891 = vadd.f32 %v7778, %v7890
      %7892 = vmatmul.f32.gmra.mxu0 %v7612
      %v7893 = vpop.f32.mrf.mxu0
      %v7894 = vadd.f32 %v7781, %v7893
      %7895 = vmatmul.f32.gmra.mxu0 %v7613
      %v7896 = vpop.f32.mrf.mxu0
      %v7897 = vadd.f32 %v7784, %v7896
      %7898 = vmatmul.f32.gmra.mxu0 %v7614
      %v7899 = vpop.f32.mrf.mxu0
      %v7900 = vadd.f32 %v7787, %v7899
      %7901 = vmatmul.f32.gmra.mxu0 %v7615
      %v7902 = vpop.f32.mrf.mxu0
      %v7903 = vadd.f32 %v7790, %v7902
      %7904 = vmatmul.f32.gmra.mxu0 %v7616
      %v7905 = vpop.f32.mrf.mxu0
      %v7906 = vadd.f32 %v7793, %v7905
      %7907 = vdwg.mxu0
      %v7908 = vld [vmem:[#allocation3 + $0x2] sm:$0xff]
      %v7909 = vld [vmem:[#allocation3 + $0xa] sm:$0xff]
      %v7910 = vld [vmem:[#allocation3 + $0x1a] sm:$0xff]
      %v7911 = vld [vmem:[#allocation3 + $0x22] sm:$0xff]
      %v7912 = vld [vmem:[#allocation3 + $0x32] sm:$0xff]
      %v7913 = vld [vmem:[#allocation3 + $0x3a] sm:$0xff]
      %v7914 = vld [vmem:[#allocation3 + $0x4a] sm:$0xff]
      %v7915 = vld [vmem:[#allocation3 + $0x52] sm:$0xff]
      %v7916 = vld [vmem:[#allocation3 + $0x62] sm:$0xff]
      %v7917 = vld [vmem:[#allocation3 + $0x6a] sm:$0xff]
      %v7918 = vld [vmem:[#allocation3 + $0x7a] sm:$0xff]
      %v7919 = vld [vmem:[#allocation3 + $0x82] sm:$0xff]
      %v7920 = vld [vmem:[#allocation3 + $0x92] sm:$0xff]
      %v7921 = vld [vmem:[#allocation3 + $0x9a] sm:$0xff]
      %v7922 = vld [vmem:[#allocation3 + $0xaa] sm:$0xff]
      %v7923 = vld [vmem:[#allocation3 + $0xb2] sm:$0xff]
      %v7924 = vld [vmem:[#allocation3 + $0xc2] sm:$0xff]
      %v7925 = vld [vmem:[#allocation3 + $0xca] sm:$0xff]
      %v7926 = vld [vmem:[#allocation3 + $0xda] sm:$0xff]
      %v7927 = vld [vmem:[#allocation3 + $0xe2] sm:$0xff]
      %v7928 = vld [vmem:[#allocation3 + $0xf2] sm:$0xff]
      %v7929 = vld [vmem:[#allocation3 + $0xfa] sm:$0xff]
      %v7930 = vld [vmem:[#allocation3 + $0x10a] sm:$0xff]
      %v7931 = vld [vmem:[#allocation3 + $0x112] sm:$0xff]
      %v7932 = vld [vmem:[#allocation3 + $0x122] sm:$0xff]
      %v7933 = vld [vmem:[#allocation3 + $0x12a] sm:$0xff]
      %v7934 = vld [vmem:[#allocation3 + $0x13a] sm:$0xff]
      %v7935 = vld [vmem:[#allocation3 + $0x142] sm:$0xff]
      %v7936 = vld [vmem:[#allocation3 + $0x152] sm:$0xff]
      %v7937 = vld [vmem:[#allocation3 + $0x15a] sm:$0xff]
      %v7938 = vld [vmem:[#allocation3 + $0x16a] sm:$0xff]
      %v7939 = vld [vmem:[#allocation3 + $0x172] sm:$0xff]
      %s7940 = scalar_lea.vmem %s7, 256
      %v7941 = vld [vmem:[%s7940] sm:$0xff]
      %v7942 = vld [vmem:[%s7940 + $0x8] sm:$0xff]
      %v7943 = vld [vmem:[%s7940 + $0x10] sm:$0xff]
      %v7944 = vld [vmem:[%s7940 + $0x18] sm:$0xff]
      %v7945 = vld [vmem:[%s7940 + $0x20] sm:$0xff]
      %v7946 = vld [vmem:[%s7940 + $0x28] sm:$0xff]
      %v7947 = vld [vmem:[%s7940 + $0x30] sm:$0xff]
      %v7948 = vld [vmem:[%s7940 + $0x38] sm:$0xff]
      %v7949 = vld [vmem:[%s7940 + $0x40] sm:$0xff]
      %v7950 = vld [vmem:[%s7940 + $0x48] sm:$0xff]
      %v7951 = vld [vmem:[%s7940 + $0x50] sm:$0xff]
      %v7952 = vld [vmem:[%s7940 + $0x58] sm:$0xff]
      %v7953 = vld [vmem:[%s7940 + $0x60] sm:$0xff]
      %v7954 = vld [vmem:[%s7940 + $0x68] sm:$0xff]
      %v7955 = vld [vmem:[%s7940 + $0x70] sm:$0xff]
      %v7956 = vld [vmem:[%s7940 + $0x78] sm:$0xff]
      %7957 = vmatpush.msra.mxu0 %v7956
      %7958 = vmatpush.msra.mxu0 %v7955
      %7959 = vmatpush.msra.mxu0 %v7954
      %7960 = vmatpush.msra.mxu0 %v7953
      %7961 = vmatpush.msra.mxu0 %v7952
      %7962 = vmatpush.msra.mxu0 %v7951
      %7963 = vmatpush.msra.mxu0 %v7950
      %7964 = vmatpush.msra.mxu0 %v7949
      %7965 = vmatpush.msra.mxu0 %v7948
      %7966 = vmatpush.msra.mxu0 %v7947
      %7967 = vmatpush.msra.mxu0 %v7946
      %7968 = vmatpush.msra.mxu0 %v7945
      %7969 = vmatpush.msra.mxu0 %v7944
      %7970 = vmatpush.msra.mxu0 %v7943
      %7971 = vmatpush.msra.mxu0 %v7942
      %7972 = vmatpush.msra.mxu0 %v7941
      %7973 = vmatmul.f32.gmra.mxu0 %v7908
      %v7974 = vpop.f32.mrf.mxu0
      %v7975 = vadd.f32 0.0, %v7974
      %7976 = vmatmul.f32.gmra.mxu0 %v7909
      %v7977 = vpop.f32.mrf.mxu0
      %v7978 = vadd.f32 0.0, %v7977
      %7979 = vmatmul.f32.gmra.mxu0 %v7910
      %v7980 = vpop.f32.mrf.mxu0
      %v7981 = vadd.f32 0.0, %v7980
      %7982 = vmatmul.f32.gmra.mxu0 %v7911
      %v7983 = vpop.f32.mrf.mxu0
      %v7984 = vadd.f32 0.0, %v7983
      %7985 = vmatmul.f32.gmra.mxu0 %v7912
      %v7986 = vpop.f32.mrf.mxu0
      %v7987 = vadd.f32 0.0, %v7986
      %7988 = vmatmul.f32.gmra.mxu0 %v7913
      %v7989 = vpop.f32.mrf.mxu0
      %v7990 = vadd.f32 0.0, %v7989
      %7991 = vmatmul.f32.gmra.mxu0 %v7914
      %v7992 = vpop.f32.mrf.mxu0
      %v7993 = vadd.f32 0.0, %v7992
      %7994 = vmatmul.f32.gmra.mxu0 %v7915
      %v7995 = vpop.f32.mrf.mxu0
      %v7996 = vadd.f32 0.0, %v7995
      %7997 = vmatmul.f32.gmra.mxu0 %v7916
      %v7998 = vpop.f32.mrf.mxu0
      %v7999 = vadd.f32 0.0, %v7998
      %8000 = vmatmul.f32.gmra.mxu0 %v7917
      %v8001 = vpop.f32.mrf.mxu0
      %v8002 = vadd.f32 0.0, %v8001
      %8003 = vmatmul.f32.gmra.mxu0 %v7918
      %v8004 = vpop.f32.mrf.mxu0
      %v8005 = vadd.f32 0.0, %v8004
      %8006 = vmatmul.f32.gmra.mxu0 %v7919
      %v8007 = vpop.f32.mrf.mxu0
      %v8008 = vadd.f32 0.0, %v8007
      %8009 = vmatmul.f32.gmra.mxu0 %v7920
      %v8010 = vpop.f32.mrf.mxu0
      %v8011 = vadd.f32 0.0, %v8010
      %8012 = vmatmul.f32.gmra.mxu0 %v7921
      %v8013 = vpop.f32.mrf.mxu0
      %v8014 = vadd.f32 0.0, %v8013
      %8015 = vmatmul.f32.gmra.mxu0 %v7922
      %v8016 = vpop.f32.mrf.mxu0
      %v8017 = vadd.f32 0.0, %v8016
      %8018 = vmatmul.f32.gmra.mxu0 %v7923
      %v8019 = vpop.f32.mrf.mxu0
      %v8020 = vadd.f32 0.0, %v8019
      %8021 = vmatmul.f32.gmra.mxu0 %v7924
      %v8022 = vpop.f32.mrf.mxu0
      %v8023 = vadd.f32 0.0, %v8022
      %8024 = vmatmul.f32.gmra.mxu0 %v7925
      %v8025 = vpop.f32.mrf.mxu0
      %v8026 = vadd.f32 0.0, %v8025
      %8027 = vmatmul.f32.gmra.mxu0 %v7926
      %v8028 = vpop.f32.mrf.mxu0
      %v8029 = vadd.f32 0.0, %v8028
      %8030 = vmatmul.f32.gmra.mxu0 %v7927
      %v8031 = vpop.f32.mrf.mxu0
      %v8032 = vadd.f32 0.0, %v8031
      %8033 = vmatmul.f32.gmra.mxu0 %v7928
      %v8034 = vpop.f32.mrf.mxu0
      %v8035 = vadd.f32 0.0, %v8034
      %8036 = vmatmul.f32.gmra.mxu0 %v7929
      %v8037 = vpop.f32.mrf.mxu0
      %v8038 = vadd.f32 0.0, %v8037
      %8039 = vmatmul.f32.gmra.mxu0 %v7930
      %v8040 = vpop.f32.mrf.mxu0
      %v8041 = vadd.f32 0.0, %v8040
      %8042 = vmatmul.f32.gmra.mxu0 %v7931
      %v8043 = vpop.f32.mrf.mxu0
      %v8044 = vadd.f32 0.0, %v8043
      %8045 = vmatmul.f32.gmra.mxu0 %v7932
      %v8046 = vpop.f32.mrf.mxu0
      %v8047 = vadd.f32 0.0, %v8046
      %8048 = vmatmul.f32.gmra.mxu0 %v7933
      %v8049 = vpop.f32.mrf.mxu0
      %v8050 = vadd.f32 0.0, %v8049
      %8051 = vmatmul.f32.gmra.mxu0 %v7934
      %v8052 = vpop.f32.mrf.mxu0
      %v8053 = vadd.f32 0.0, %v8052
      %8054 = vmatmul.f32.gmra.mxu0 %v7935
      %v8055 = vpop.f32.mrf.mxu0
      %v8056 = vadd.f32 0.0, %v8055
      %8057 = vmatmul.f32.gmra.mxu0 %v7936
      %v8058 = vpop.f32.mrf.mxu0
      %v8059 = vadd.f32 0.0, %v8058
      %8060 = vmatmul.f32.gmra.mxu0 %v7937
      %v8061 = vpop.f32.mrf.mxu0
      %v8062 = vadd.f32 0.0, %v8061
      %8063 = vmatmul.f32.gmra.mxu0 %v7938
      %v8064 = vpop.f32.mrf.mxu0
      %v8065 = vadd.f32 0.0, %v8064
      %8066 = vmatmul.f32.gmra.mxu0 %v7939
      %v8067 = vpop.f32.mrf.mxu0
      %v8068 = vadd.f32 0.0, %v8067
      %8069 = vdwg.mxu0
      %v8070 = vadd.f32 %v7813, %v7975
      %v8071 = vadd.f32 %v7816, %v7978
      %v8072 = vadd.f32 %v7819, %v7981
      %v8073 = vadd.f32 %v7822, %v7984
      %v8074 = vadd.f32 %v7825, %v7987
      %v8075 = vadd.f32 %v7828, %v7990
      %v8076 = vadd.f32 %v7831, %v7993
      %v8077 = vadd.f32 %v7834, %v7996
      %v8078 = vadd.f32 %v7837, %v7999
      %v8079 = vadd.f32 %v7840, %v8002
      %v8080 = vadd.f32 %v7843, %v8005
      %v8081 = vadd.f32 %v7846, %v8008
      %v8082 = vadd.f32 %v7849, %v8011
      %v8083 = vadd.f32 %v7852, %v8014
      %v8084 = vadd.f32 %v7855, %v8017
      %v8085 = vadd.f32 %v7858, %v8020
      %v8086 = vadd.f32 %v7861, %v8023
      %v8087 = vadd.f32 %v7864, %v8026
      %v8088 = vadd.f32 %v7867, %v8029
      %v8089 = vadd.f32 %v7870, %v8032
      %v8090 = vadd.f32 %v7873, %v8035
      %v8091 = vadd.f32 %v7876, %v8038
      %v8092 = vadd.f32 %v7879, %v8041
      %v8093 = vadd.f32 %v7882, %v8044
      %v8094 = vadd.f32 %v7885, %v8047
      %v8095 = vadd.f32 %v7888, %v8050
      %v8096 = vadd.f32 %v7891, %v8053
      %v8097 = vadd.f32 %v7894, %v8056
      %v8098 = vadd.f32 %v7897, %v8059
      %v8099 = vadd.f32 %v7900, %v8062
      %v8100 = vadd.f32 %v7903, %v8065
      %v8101 = vadd.f32 %v7906, %v8068
      %v8102 = vld [vmem:[%s7550] sm:$0xff]
      %v8103 = vld [vmem:[%s7550 + $0x8] sm:$0xff]
      %v8104 = vld [vmem:[%s7550 + $0x18] sm:$0xff]
      %v8105 = vld [vmem:[%s7550 + $0x20] sm:$0xff]
      %v8106 = vld [vmem:[%s7550 + $0x30] sm:$0xff]
      %v8107 = vld [vmem:[%s7550 + $0x38] sm:$0xff]
      %v8108 = vld [vmem:[%s7550 + $0x48] sm:$0xff]
      %v8109 = vld [vmem:[%s7550 + $0x50] sm:$0xff]
      %v8110 = vld [vmem:[%s7550 + $0x60] sm:$0xff]
      %v8111 = vld [vmem:[%s7550 + $0x68] sm:$0xff]
      %v8112 = vld [vmem:[%s7550 + $0x78] sm:$0xff]
      %v8113 = vld [vmem:[%s7550 + $0x80] sm:$0xff]
      %v8114 = vld [vmem:[%s7550 + $0x90] sm:$0xff]
      %v8115 = vld [vmem:[%s7550 + $0x98] sm:$0xff]
      %v8116 = vld [vmem:[%s7550 + $0xa8] sm:$0xff]
      %v8117 = vld [vmem:[%s7550 + $0xb0] sm:$0xff]
      %v8118 = vld [vmem:[%s7550 + $0xc0] sm:$0xff]
      %v8119 = vld [vmem:[%s7550 + $0xc8] sm:$0xff]
      %v8120 = vld [vmem:[%s7550 + $0xd8] sm:$0xff]
      %v8121 = vld [vmem:[%s7550 + $0xe0] sm:$0xff]
      %v8122 = vld [vmem:[%s7550 + $0xf0] sm:$0xff]
      %v8123 = vld [vmem:[%s7550 + $0xf8] sm:$0xff]
      %v8124 = vld [vmem:[%s7550 + $0x108] sm:$0xff]
      %v8125 = vld [vmem:[%s7550 + $0x110] sm:$0xff]
      %v8126 = vld [vmem:[%s7550 + $0x120] sm:$0xff]
      %v8127 = vld [vmem:[%s7550 + $0x128] sm:$0xff]
      %v8128 = vld [vmem:[%s7550 + $0x138] sm:$0xff]
      %v8129 = vld [vmem:[%s7550 + $0x140] sm:$0xff]
      %v8130 = vld [vmem:[%s7550 + $0x150] sm:$0xff]
      %v8131 = vld [vmem:[%s7550 + $0x158] sm:$0xff]
      %v8132 = vld [vmem:[%s7550 + $0x168] sm:$0xff]
      %v8133 = vld [vmem:[%s7550 + $0x170] sm:$0xff]
      %s8134 = scalar_lea.vmem %s7, 384
      %v8135 = vld [vmem:[%s8134] sm:$0xff]
      %v8136 = vld [vmem:[%s8134 + $0x8] sm:$0xff]
      %v8137 = vld [vmem:[%s8134 + $0x10] sm:$0xff]
      %v8138 = vld [vmem:[%s8134 + $0x18] sm:$0xff]
      %v8139 = vld [vmem:[%s8134 + $0x20] sm:$0xff]
      %v8140 = vld [vmem:[%s8134 + $0x28] sm:$0xff]
      %v8141 = vld [vmem:[%s8134 + $0x30] sm:$0xff]
      %v8142 = vld [vmem:[%s8134 + $0x38] sm:$0xff]
      %v8143 = vld [vmem:[%s8134 + $0x40] sm:$0xff]
      %v8144 = vld [vmem:[%s8134 + $0x48] sm:$0xff]
      %v8145 = vld [vmem:[%s8134 + $0x50] sm:$0xff]
      %v8146 = vld [vmem:[%s8134 + $0x58] sm:$0xff]
      %v8147 = vld [vmem:[%s8134 + $0x60] sm:$0xff]
      %v8148 = vld [vmem:[%s8134 + $0x68] sm:$0xff]
      %v8149 = vld [vmem:[%s8134 + $0x70] sm:$0xff]
      %v8150 = vld [vmem:[%s8134 + $0x78] sm:$0xff]
      %8151 = vmatpush.msra.mxu0 %v8150
      %8152 = vmatpush.msra.mxu0 %v8149
      %8153 = vmatpush.msra.mxu0 %v8148
      %8154 = vmatpush.msra.mxu0 %v8147
      %8155 = vmatpush.msra.mxu0 %v8146
      %8156 = vmatpush.msra.mxu0 %v8145
      %8157 = vmatpush.msra.mxu0 %v8144
      %8158 = vmatpush.msra.mxu0 %v8143
      %8159 = vmatpush.msra.mxu0 %v8142
      %8160 = vmatpush.msra.mxu0 %v8141
      %8161 = vmatpush.msra.mxu0 %v8140
      %8162 = vmatpush.msra.mxu0 %v8139
      %8163 = vmatpush.msra.mxu0 %v8138
      %8164 = vmatpush.msra.mxu0 %v8137
      %8165 = vmatpush.msra.mxu0 %v8136
      %8166 = vmatpush.msra.mxu0 %v8135
      %8167 = vmatmul.f32.gmra.mxu0 %v8102
      %v8168 = vpop.f32.mrf.mxu0
      %v8169 = vadd.f32 0.0, %v8168
      %8170 = vmatmul.f32.gmra.mxu0 %v8103
      %v8171 = vpop.f32.mrf.mxu0
      %v8172 = vadd.f32 0.0, %v8171
      %8173 = vmatmul.f32.gmra.mxu0 %v8104
      %v8174 = vpop.f32.mrf.mxu0
      %v8175 = vadd.f32 0.0, %v8174
      %8176 = vmatmul.f32.gmra.mxu0 %v8105
      %v8177 = vpop.f32.mrf.mxu0
      %v8178 = vadd.f32 0.0, %v8177
      %8179 = vmatmul.f32.gmra.mxu0 %v8106
      %v8180 = vpop.f32.mrf.mxu0
      %v8181 = vadd.f32 0.0, %v8180
      %8182 = vmatmul.f32.gmra.mxu0 %v8107
      %v8183 = vpop.f32.mrf.mxu0
      %v8184 = vadd.f32 0.0, %v8183
      %8185 = vmatmul.f32.gmra.mxu0 %v8108
      %v8186 = vpop.f32.mrf.mxu0
      %v8187 = vadd.f32 0.0, %v8186
      %8188 = vmatmul.f32.gmra.mxu0 %v8109
      %v8189 = vpop.f32.mrf.mxu0
      %v8190 = vadd.f32 0.0, %v8189
      %8191 = vmatmul.f32.gmra.mxu0 %v8110
      %v8192 = vpop.f32.mrf.mxu0
      %v8193 = vadd.f32 0.0, %v8192
      %8194 = vmatmul.f32.gmra.mxu0 %v8111
      %v8195 = vpop.f32.mrf.mxu0
      %v8196 = vadd.f32 0.0, %v8195
      %8197 = vmatmul.f32.gmra.mxu0 %v8112
      %v8198 = vpop.f32.mrf.mxu0
      %v8199 = vadd.f32 0.0, %v8198
      %8200 = vmatmul.f32.gmra.mxu0 %v8113
      %v8201 = vpop.f32.mrf.mxu0
      %v8202 = vadd.f32 0.0, %v8201
      %8203 = vmatmul.f32.gmra.mxu0 %v8114
      %v8204 = vpop.f32.mrf.mxu0
      %v8205 = vadd.f32 0.0, %v8204
      %8206 = vmatmul.f32.gmra.mxu0 %v8115
      %v8207 = vpop.f32.mrf.mxu0
      %v8208 = vadd.f32 0.0, %v8207
      %8209 = vmatmul.f32.gmra.mxu0 %v8116
      %v8210 = vpop.f32.mrf.mxu0
      %v8211 = vadd.f32 0.0, %v8210
      %8212 = vmatmul.f32.gmra.mxu0 %v8117
      %v8213 = vpop.f32.mrf.mxu0
      %v8214 = vadd.f32 0.0, %v8213
      %8215 = vmatmul.f32.gmra.mxu0 %v8118
      %v8216 = vpop.f32.mrf.mxu0
      %v8217 = vadd.f32 0.0, %v8216
      %8218 = vmatmul.f32.gmra.mxu0 %v8119
      %v8219 = vpop.f32.mrf.mxu0
      %v8220 = vadd.f32 0.0, %v8219
      %8221 = vmatmul.f32.gmra.mxu0 %v8120
      %v8222 = vpop.f32.mrf.mxu0
      %v8223 = vadd.f32 0.0, %v8222
      %8224 = vmatmul.f32.gmra.mxu0 %v8121
      %v8225 = vpop.f32.mrf.mxu0
      %v8226 = vadd.f32 0.0, %v8225
      %8227 = vmatmul.f32.gmra.mxu0 %v8122
      %v8228 = vpop.f32.mrf.mxu0
      %v8229 = vadd.f32 0.0, %v8228
      %8230 = vmatmul.f32.gmra.mxu0 %v8123
      %v8231 = vpop.f32.mrf.mxu0
      %v8232 = vadd.f32 0.0, %v8231
      %8233 = vmatmul.f32.gmra.mxu0 %v8124
      %v8234 = vpop.f32.mrf.mxu0
      %v8235 = vadd.f32 0.0, %v8234
      %8236 = vmatmul.f32.gmra.mxu0 %v8125
      %v8237 = vpop.f32.mrf.mxu0
      %v8238 = vadd.f32 0.0, %v8237
      %8239 = vmatmul.f32.gmra.mxu0 %v8126
      %v8240 = vpop.f32.mrf.mxu0
      %v8241 = vadd.f32 0.0, %v8240
      %8242 = vmatmul.f32.gmra.mxu0 %v8127
      %v8243 = vpop.f32.mrf.mxu0
      %v8244 = vadd.f32 0.0, %v8243
      %8245 = vmatmul.f32.gmra.mxu0 %v8128
      %v8246 = vpop.f32.mrf.mxu0
      %v8247 = vadd.f32 0.0, %v8246
      %8248 = vmatmul.f32.gmra.mxu0 %v8129
      %v8249 = vpop.f32.mrf.mxu0
      %v8250 = vadd.f32 0.0, %v8249
      %8251 = vmatmul.f32.gmra.mxu0 %v8130
      %v8252 = vpop.f32.mrf.mxu0
      %v8253 = vadd.f32 0.0, %v8252
      %8254 = vmatmul.f32.gmra.mxu0 %v8131
      %v8255 = vpop.f32.mrf.mxu0
      %v8256 = vadd.f32 0.0, %v8255
      %8257 = vmatmul.f32.gmra.mxu0 %v8132
      %v8258 = vpop.f32.mrf.mxu0
      %v8259 = vadd.f32 0.0, %v8258
      %8260 = vmatmul.f32.gmra.mxu0 %v8133
      %v8261 = vpop.f32.mrf.mxu0
      %v8262 = vadd.f32 0.0, %v8261
      %8263 = vdwg.mxu0
      %v8264 = vadd.f32 %v8070, %v8169
      %v8265 = vadd.f32 %v8071, %v8172
      %v8266 = vadd.f32 %v8072, %v8175
      %v8267 = vadd.f32 %v8073, %v8178
      %v8268 = vadd.f32 %v8074, %v8181
      %v8269 = vadd.f32 %v8075, %v8184
      %v8270 = vadd.f32 %v8076, %v8187
      %v8271 = vadd.f32 %v8077, %v8190
      %v8272 = vadd.f32 %v8078, %v8193
      %v8273 = vadd.f32 %v8079, %v8196
      %v8274 = vadd.f32 %v8080, %v8199
      %v8275 = vadd.f32 %v8081, %v8202
      %v8276 = vadd.f32 %v8082, %v8205
      %v8277 = vadd.f32 %v8083, %v8208
      %v8278 = vadd.f32 %v8084, %v8211
      %v8279 = vadd.f32 %v8085, %v8214
      %v8280 = vadd.f32 %v8086, %v8217
      %v8281 = vadd.f32 %v8087, %v8220
      %v8282 = vadd.f32 %v8088, %v8223
      %v8283 = vadd.f32 %v8089, %v8226
      %v8284 = vadd.f32 %v8090, %v8229
      %v8285 = vadd.f32 %v8091, %v8232
      %v8286 = vadd.f32 %v8092, %v8235
      %v8287 = vadd.f32 %v8093, %v8238
      %v8288 = vadd.f32 %v8094, %v8241
      %v8289 = vadd.f32 %v8095, %v8244
      %v8290 = vadd.f32 %v8096, %v8247
      %v8291 = vadd.f32 %v8097, %v8250
      %v8292 = vadd.f32 %v8098, %v8253
      %v8293 = vadd.f32 %v8099, %v8256
      %v8294 = vadd.f32 %v8100, %v8259
      %v8295 = vadd.f32 %v8101, %v8262
      %v8296 = vld [vmem:[%s7550 + $0x1] sm:$0xff]
      %v8297 = vld [vmem:[%s7550 + $0x9] sm:$0xff]
      %v8298 = vld [vmem:[%s7550 + $0x19] sm:$0xff]
      %v8299 = vld [vmem:[%s7550 + $0x21] sm:$0xff]
      %v8300 = vld [vmem:[%s7550 + $0x31] sm:$0xff]
      %v8301 = vld [vmem:[%s7550 + $0x39] sm:$0xff]
      %v8302 = vld [vmem:[%s7550 + $0x49] sm:$0xff]
      %v8303 = vld [vmem:[%s7550 + $0x51] sm:$0xff]
      %v8304 = vld [vmem:[%s7550 + $0x61] sm:$0xff]
      %v8305 = vld [vmem:[%s7550 + $0x69] sm:$0xff]
      %v8306 = vld [vmem:[%s7550 + $0x79] sm:$0xff]
      %v8307 = vld [vmem:[%s7550 + $0x81] sm:$0xff]
      %v8308 = vld [vmem:[%s7550 + $0x91] sm:$0xff]
      %v8309 = vld [vmem:[%s7550 + $0x99] sm:$0xff]
      %v8310 = vld [vmem:[%s7550 + $0xa9] sm:$0xff]
      %v8311 = vld [vmem:[%s7550 + $0xb1] sm:$0xff]
      %v8312 = vld [vmem:[%s7550 + $0xc1] sm:$0xff]
      %v8313 = vld [vmem:[%s7550 + $0xc9] sm:$0xff]
      %v8314 = vld [vmem:[%s7550 + $0xd9] sm:$0xff]
      %v8315 = vld [vmem:[%s7550 + $0xe1] sm:$0xff]
      %v8316 = vld [vmem:[%s7550 + $0xf1] sm:$0xff]
      %v8317 = vld [vmem:[%s7550 + $0xf9] sm:$0xff]
      %v8318 = vld [vmem:[%s7550 + $0x109] sm:$0xff]
      %v8319 = vld [vmem:[%s7550 + $0x111] sm:$0xff]
      %v8320 = vld [vmem:[%s7550 + $0x121] sm:$0xff]
      %v8321 = vld [vmem:[%s7550 + $0x129] sm:$0xff]
      %v8322 = vld [vmem:[%s7550 + $0x139] sm:$0xff]
      %v8323 = vld [vmem:[%s7550 + $0x141] sm:$0xff]
      %v8324 = vld [vmem:[%s7550 + $0x151] sm:$0xff]
      %v8325 = vld [vmem:[%s7550 + $0x159] sm:$0xff]
      %v8326 = vld [vmem:[%s7550 + $0x169] sm:$0xff]
      %v8327 = vld [vmem:[%s7550 + $0x171] sm:$0xff]
      %s8328 = scalar_lea.vmem %s7, 512
      %v8329 = vld [vmem:[%s8328] sm:$0xff]
      %v8330 = vld [vmem:[%s8328 + $0x8] sm:$0xff]
      %v8331 = vld [vmem:[%s8328 + $0x10] sm:$0xff]
      %v8332 = vld [vmem:[%s8328 + $0x18] sm:$0xff]
      %v8333 = vld [vmem:[%s8328 + $0x20] sm:$0xff]
      %v8334 = vld [vmem:[%s8328 + $0x28] sm:$0xff]
      %v8335 = vld [vmem:[%s8328 + $0x30] sm:$0xff]
      %v8336 = vld [vmem:[%s8328 + $0x38] sm:$0xff]
      %v8337 = vld [vmem:[%s8328 + $0x40] sm:$0xff]
      %v8338 = vld [vmem:[%s8328 + $0x48] sm:$0xff]
      %v8339 = vld [vmem:[%s8328 + $0x50] sm:$0xff]
      %v8340 = vld [vmem:[%s8328 + $0x58] sm:$0xff]
      %v8341 = vld [vmem:[%s8328 + $0x60] sm:$0xff]
      %v8342 = vld [vmem:[%s8328 + $0x68] sm:$0xff]
      %v8343 = vld [vmem:[%s8328 + $0x70] sm:$0xff]
      %v8344 = vld [vmem:[%s8328 + $0x78] sm:$0xff]
      %8345 = vmatpush.msra.mxu0 %v8344
      %8346 = vmatpush.msra.mxu0 %v8343
      %8347 = vmatpush.msra.mxu0 %v8342
      %8348 = vmatpush.msra.mxu0 %v8341
      %8349 = vmatpush.msra.mxu0 %v8340
      %8350 = vmatpush.msra.mxu0 %v8339
      %8351 = vmatpush.msra.mxu0 %v8338
      %8352 = vmatpush.msra.mxu0 %v8337
      %8353 = vmatpush.msra.mxu0 %v8336
      %8354 = vmatpush.msra.mxu0 %v8335
      %8355 = vmatpush.msra.mxu0 %v8334
      %8356 = vmatpush.msra.mxu0 %v8333
      %8357 = vmatpush.msra.mxu0 %v8332
      %8358 = vmatpush.msra.mxu0 %v8331
      %8359 = vmatpush.msra.mxu0 %v8330
      %8360 = vmatpush.msra.mxu0 %v8329
      %8361 = vmatmul.f32.gmra.mxu0 %v8296
      %v8362 = vpop.f32.mrf.mxu0
      %v8363 = vadd.f32 0.0, %v8362
      %8364 = vmatmul.f32.gmra.mxu0 %v8297
      %v8365 = vpop.f32.mrf.mxu0
      %v8366 = vadd.f32 0.0, %v8365
      %8367 = vmatmul.f32.gmra.mxu0 %v8298
      %v8368 = vpop.f32.mrf.mxu0
      %v8369 = vadd.f32 0.0, %v8368
      %8370 = vmatmul.f32.gmra.mxu0 %v8299
      %v8371 = vpop.f32.mrf.mxu0
      %v8372 = vadd.f32 0.0, %v8371
      %8373 = vmatmul.f32.gmra.mxu0 %v8300
      %v8374 = vpop.f32.mrf.mxu0
      %v8375 = vadd.f32 0.0, %v8374
      %8376 = vmatmul.f32.gmra.mxu0 %v8301
      %v8377 = vpop.f32.mrf.mxu0
      %v8378 = vadd.f32 0.0, %v8377
      %8379 = vmatmul.f32.gmra.mxu0 %v8302
      %v8380 = vpop.f32.mrf.mxu0
      %v8381 = vadd.f32 0.0, %v8380
      %8382 = vmatmul.f32.gmra.mxu0 %v8303
      %v8383 = vpop.f32.mrf.mxu0
      %v8384 = vadd.f32 0.0, %v8383
      %8385 = vmatmul.f32.gmra.mxu0 %v8304
      %v8386 = vpop.f32.mrf.mxu0
      %v8387 = vadd.f32 0.0, %v8386
      %8388 = vmatmul.f32.gmra.mxu0 %v8305
      %v8389 = vpop.f32.mrf.mxu0
      %v8390 = vadd.f32 0.0, %v8389
      %8391 = vmatmul.f32.gmra.mxu0 %v8306
      %v8392 = vpop.f32.mrf.mxu0
      %v8393 = vadd.f32 0.0, %v8392
      %8394 = vmatmul.f32.gmra.mxu0 %v8307
      %v8395 = vpop.f32.mrf.mxu0
      %v8396 = vadd.f32 0.0, %v8395
      %8397 = vmatmul.f32.gmra.mxu0 %v8308
      %v8398 = vpop.f32.mrf.mxu0
      %v8399 = vadd.f32 0.0, %v8398
      %8400 = vmatmul.f32.gmra.mxu0 %v8309
      %v8401 = vpop.f32.mrf.mxu0
      %v8402 = vadd.f32 0.0, %v8401
      %8403 = vmatmul.f32.gmra.mxu0 %v8310
      %v8404 = vpop.f32.mrf.mxu0
      %v8405 = vadd.f32 0.0, %v8404
      %8406 = vmatmul.f32.gmra.mxu0 %v8311
      %v8407 = vpop.f32.mrf.mxu0
      %v8408 = vadd.f32 0.0, %v8407
      %8409 = vmatmul.f32.gmra.mxu0 %v8312
      %v8410 = vpop.f32.mrf.mxu0
      %v8411 = vadd.f32 0.0, %v8410
      %8412 = vmatmul.f32.gmra.mxu0 %v8313
      %v8413 = vpop.f32.mrf.mxu0
      %v8414 = vadd.f32 0.0, %v8413
      %8415 = vmatmul.f32.gmra.mxu0 %v8314
      %v8416 = vpop.f32.mrf.mxu0
      %v8417 = vadd.f32 0.0, %v8416
      %8418 = vmatmul.f32.gmra.mxu0 %v8315
      %v8419 = vpop.f32.mrf.mxu0
      %v8420 = vadd.f32 0.0, %v8419
      %8421 = vmatmul.f32.gmra.mxu0 %v8316
      %v8422 = vpop.f32.mrf.mxu0
      %v8423 = vadd.f32 0.0, %v8422
      %8424 = vmatmul.f32.gmra.mxu0 %v8317
      %v8425 = vpop.f32.mrf.mxu0
      %v8426 = vadd.f32 0.0, %v8425
      %8427 = vmatmul.f32.gmra.mxu0 %v8318
      %v8428 = vpop.f32.mrf.mxu0
      %v8429 = vadd.f32 0.0, %v8428
      %8430 = vmatmul.f32.gmra.mxu0 %v8319
      %v8431 = vpop.f32.mrf.mxu0
      %v8432 = vadd.f32 0.0, %v8431
      %8433 = vmatmul.f32.gmra.mxu0 %v8320
      %v8434 = vpop.f32.mrf.mxu0
      %v8435 = vadd.f32 0.0, %v8434
      %8436 = vmatmul.f32.gmra.mxu0 %v8321
      %v8437 = vpop.f32.mrf.mxu0
      %v8438 = vadd.f32 0.0, %v8437
      %8439 = vmatmul.f32.gmra.mxu0 %v8322
      %v8440 = vpop.f32.mrf.mxu0
      %v8441 = vadd.f32 0.0, %v8440
      %8442 = vmatmul.f32.gmra.mxu0 %v8323
      %v8443 = vpop.f32.mrf.mxu0
      %v8444 = vadd.f32 0.0, %v8443
      %8445 = vmatmul.f32.gmra.mxu0 %v8324
      %v8446 = vpop.f32.mrf.mxu0
      %v8447 = vadd.f32 0.0, %v8446
      %8448 = vmatmul.f32.gmra.mxu0 %v8325
      %v8449 = vpop.f32.mrf.mxu0
      %v8450 = vadd.f32 0.0, %v8449
      %8451 = vmatmul.f32.gmra.mxu0 %v8326
      %v8452 = vpop.f32.mrf.mxu0
      %v8453 = vadd.f32 0.0, %v8452
      %8454 = vmatmul.f32.gmra.mxu0 %v8327
      %v8455 = vpop.f32.mrf.mxu0
      %v8456 = vadd.f32 0.0, %v8455
      %8457 = vdwg.mxu0
      %v8458 = vadd.f32 %v8264, %v8363
      %v8459 = vadd.f32 %v8265, %v8366
      %v8460 = vadd.f32 %v8266, %v8369
      %v8461 = vadd.f32 %v8267, %v8372
      %v8462 = vadd.f32 %v8268, %v8375
      %v8463 = vadd.f32 %v8269, %v8378
      %v8464 = vadd.f32 %v8270, %v8381
      %v8465 = vadd.f32 %v8271, %v8384
      %v8466 = vadd.f32 %v8272, %v8387
      %v8467 = vadd.f32 %v8273, %v8390
      %v8468 = vadd.f32 %v8274, %v8393
      %v8469 = vadd.f32 %v8275, %v8396
      %v8470 = vadd.f32 %v8276, %v8399
      %v8471 = vadd.f32 %v8277, %v8402
      %v8472 = vadd.f32 %v8278, %v8405
      %v8473 = vadd.f32 %v8279, %v8408
      %v8474 = vadd.f32 %v8280, %v8411
      %v8475 = vadd.f32 %v8281, %v8414
      %v8476 = vadd.f32 %v8282, %v8417
      %v8477 = vadd.f32 %v8283, %v8420
      %v8478 = vadd.f32 %v8284, %v8423
      %v8479 = vadd.f32 %v8285, %v8426
      %v8480 = vadd.f32 %v8286, %v8429
      %v8481 = vadd.f32 %v8287, %v8432
      %v8482 = vadd.f32 %v8288, %v8435
      %v8483 = vadd.f32 %v8289, %v8438
      %v8484 = vadd.f32 %v8290, %v8441
      %v8485 = vadd.f32 %v8291, %v8444
      %v8486 = vadd.f32 %v8292, %v8447
      %v8487 = vadd.f32 %v8293, %v8450
      %v8488 = vadd.f32 %v8294, %v8453
      %v8489 = vadd.f32 %v8295, %v8456
      %v8490 = vld [vmem:[%s7550 + $0x2] sm:$0xff]
      %v8491 = vld [vmem:[%s7550 + $0xa] sm:$0xff]
      %v8492 = vld [vmem:[%s7550 + $0x1a] sm:$0xff]
      %v8493 = vld [vmem:[%s7550 + $0x22] sm:$0xff]
      %v8494 = vld [vmem:[%s7550 + $0x32] sm:$0xff]
      %v8495 = vld [vmem:[%s7550 + $0x3a] sm:$0xff]
      %v8496 = vld [vmem:[%s7550 + $0x4a] sm:$0xff]
      %v8497 = vld [vmem:[%s7550 + $0x52] sm:$0xff]
      %v8498 = vld [vmem:[%s7550 + $0x62] sm:$0xff]
      %v8499 = vld [vmem:[%s7550 + $0x6a] sm:$0xff]
      %v8500 = vld [vmem:[%s7550 + $0x7a] sm:$0xff]
      %v8501 = vld [vmem:[%s7550 + $0x82] sm:$0xff]
      %v8502 = vld [vmem:[%s7550 + $0x92] sm:$0xff]
      %v8503 = vld [vmem:[%s7550 + $0x9a] sm:$0xff]
      %v8504 = vld [vmem:[%s7550 + $0xaa] sm:$0xff]
      %v8505 = vld [vmem:[%s7550 + $0xb2] sm:$0xff]
      %v8506 = vld [vmem:[%s7550 + $0xc2] sm:$0xff]
      %v8507 = vld [vmem:[%s7550 + $0xca] sm:$0xff]
      %v8508 = vld [vmem:[%s7550 + $0xda] sm:$0xff]
      %v8509 = vld [vmem:[%s7550 + $0xe2] sm:$0xff]
      %v8510 = vld [vmem:[%s7550 + $0xf2] sm:$0xff]
      %v8511 = vld [vmem:[%s7550 + $0xfa] sm:$0xff]
      %v8512 = vld [vmem:[%s7550 + $0x10a] sm:$0xff]
      %v8513 = vld [vmem:[%s7550 + $0x112] sm:$0xff]
      %v8514 = vld [vmem:[%s7550 + $0x122] sm:$0xff]
      %v8515 = vld [vmem:[%s7550 + $0x12a] sm:$0xff]
      %v8516 = vld [vmem:[%s7550 + $0x13a] sm:$0xff]
      %v8517 = vld [vmem:[%s7550 + $0x142] sm:$0xff]
      %v8518 = vld [vmem:[%s7550 + $0x152] sm:$0xff]
      %v8519 = vld [vmem:[%s7550 + $0x15a] sm:$0xff]
      %v8520 = vld [vmem:[%s7550 + $0x16a] sm:$0xff]
      %v8521 = vld [vmem:[%s7550 + $0x172] sm:$0xff]
      %s8522 = scalar_lea.vmem %s7, 640
      %v8523 = vld [vmem:[%s8522] sm:$0xff]
      %v8524 = vld [vmem:[%s8522 + $0x8] sm:$0xff]
      %v8525 = vld [vmem:[%s8522 + $0x10] sm:$0xff]
      %v8526 = vld [vmem:[%s8522 + $0x18] sm:$0xff]
      %v8527 = vld [vmem:[%s8522 + $0x20] sm:$0xff]
      %v8528 = vld [vmem:[%s8522 + $0x28] sm:$0xff]
      %v8529 = vld [vmem:[%s8522 + $0x30] sm:$0xff]
      %v8530 = vld [vmem:[%s8522 + $0x38] sm:$0xff]
      %v8531 = vld [vmem:[%s8522 + $0x40] sm:$0xff]
      %v8532 = vld [vmem:[%s8522 + $0x48] sm:$0xff]
      %v8533 = vld [vmem:[%s8522 + $0x50] sm:$0xff]
      %v8534 = vld [vmem:[%s8522 + $0x58] sm:$0xff]
      %v8535 = vld [vmem:[%s8522 + $0x60] sm:$0xff]
      %v8536 = vld [vmem:[%s8522 + $0x68] sm:$0xff]
      %v8537 = vld [vmem:[%s8522 + $0x70] sm:$0xff]
      %v8538 = vld [vmem:[%s8522 + $0x78] sm:$0xff]
      %8539 = vmatpush.msra.mxu0 %v8538
      %8540 = vmatpush.msra.mxu0 %v8537
      %8541 = vmatpush.msra.mxu0 %v8536
      %8542 = vmatpush.msra.mxu0 %v8535
      %8543 = vmatpush.msra.mxu0 %v8534
      %8544 = vmatpush.msra.mxu0 %v8533
      %8545 = vmatpush.msra.mxu0 %v8532
      %8546 = vmatpush.msra.mxu0 %v8531
      %8547 = vmatpush.msra.mxu0 %v8530
      %8548 = vmatpush.msra.mxu0 %v8529
      %8549 = vmatpush.msra.mxu0 %v8528
      %8550 = vmatpush.msra.mxu0 %v8527
      %8551 = vmatpush.msra.mxu0 %v8526
      %8552 = vmatpush.msra.mxu0 %v8525
      %8553 = vmatpush.msra.mxu0 %v8524
      %8554 = vmatpush.msra.mxu0 %v8523
      %8555 = vmatmul.f32.gmra.mxu0 %v8490
      %v8556 = vpop.f32.mrf.mxu0
      %v8557 = vadd.f32 0.0, %v8556
      %8558 = vmatmul.f32.gmra.mxu0 %v8491
      %v8559 = vpop.f32.mrf.mxu0
      %v8560 = vadd.f32 0.0, %v8559
      %8561 = vmatmul.f32.gmra.mxu0 %v8492
      %v8562 = vpop.f32.mrf.mxu0
      %v8563 = vadd.f32 0.0, %v8562
      %8564 = vmatmul.f32.gmra.mxu0 %v8493
      %v8565 = vpop.f32.mrf.mxu0
      %v8566 = vadd.f32 0.0, %v8565
      %8567 = vmatmul.f32.gmra.mxu0 %v8494
      %v8568 = vpop.f32.mrf.mxu0
      %v8569 = vadd.f32 0.0, %v8568
      %8570 = vmatmul.f32.gmra.mxu0 %v8495
      %v8571 = vpop.f32.mrf.mxu0
      %v8572 = vadd.f32 0.0, %v8571
      %8573 = vmatmul.f32.gmra.mxu0 %v8496
      %v8574 = vpop.f32.mrf.mxu0
      %v8575 = vadd.f32 0.0, %v8574
      %8576 = vmatmul.f32.gmra.mxu0 %v8497
      %v8577 = vpop.f32.mrf.mxu0
      %v8578 = vadd.f32 0.0, %v8577
      %8579 = vmatmul.f32.gmra.mxu0 %v8498
      %v8580 = vpop.f32.mrf.mxu0
      %v8581 = vadd.f32 0.0, %v8580
      %8582 = vmatmul.f32.gmra.mxu0 %v8499
      %v8583 = vpop.f32.mrf.mxu0
      %v8584 = vadd.f32 0.0, %v8583
      %8585 = vmatmul.f32.gmra.mxu0 %v8500
      %v8586 = vpop.f32.mrf.mxu0
      %v8587 = vadd.f32 0.0, %v8586
      %8588 = vmatmul.f32.gmra.mxu0 %v8501
      %v8589 = vpop.f32.mrf.mxu0
      %v8590 = vadd.f32 0.0, %v8589
      %8591 = vmatmul.f32.gmra.mxu0 %v8502
      %v8592 = vpop.f32.mrf.mxu0
      %v8593 = vadd.f32 0.0, %v8592
      %8594 = vmatmul.f32.gmra.mxu0 %v8503
      %v8595 = vpop.f32.mrf.mxu0
      %v8596 = vadd.f32 0.0, %v8595
      %8597 = vmatmul.f32.gmra.mxu0 %v8504
      %v8598 = vpop.f32.mrf.mxu0
      %v8599 = vadd.f32 0.0, %v8598
      %8600 = vmatmul.f32.gmra.mxu0 %v8505
      %v8601 = vpop.f32.mrf.mxu0
      %v8602 = vadd.f32 0.0, %v8601
      %8603 = vmatmul.f32.gmra.mxu0 %v8506
      %v8604 = vpop.f32.mrf.mxu0
      %v8605 = vadd.f32 0.0, %v8604
      %8606 = vmatmul.f32.gmra.mxu0 %v8507
      %v8607 = vpop.f32.mrf.mxu0
      %v8608 = vadd.f32 0.0, %v8607
      %8609 = vmatmul.f32.gmra.mxu0 %v8508
      %v8610 = vpop.f32.mrf.mxu0
      %v8611 = vadd.f32 0.0, %v8610
      %8612 = vmatmul.f32.gmra.mxu0 %v8509
      %v8613 = vpop.f32.mrf.mxu0
      %v8614 = vadd.f32 0.0, %v8613
      %8615 = vmatmul.f32.gmra.mxu0 %v8510
      %v8616 = vpop.f32.mrf.mxu0
      %v8617 = vadd.f32 0.0, %v8616
      %8618 = vmatmul.f32.gmra.mxu0 %v8511
      %v8619 = vpop.f32.mrf.mxu0
      %v8620 = vadd.f32 0.0, %v8619
      %8621 = vmatmul.f32.gmra.mxu0 %v8512
      %v8622 = vpop.f32.mrf.mxu0
      %v8623 = vadd.f32 0.0, %v8622
      %8624 = vmatmul.f32.gmra.mxu0 %v8513
      %v8625 = vpop.f32.mrf.mxu0
      %v8626 = vadd.f32 0.0, %v8625
      %8627 = vmatmul.f32.gmra.mxu0 %v8514
      %v8628 = vpop.f32.mrf.mxu0
      %v8629 = vadd.f32 0.0, %v8628
      %8630 = vmatmul.f32.gmra.mxu0 %v8515
      %v8631 = vpop.f32.mrf.mxu0
      %v8632 = vadd.f32 0.0, %v8631
      %8633 = vmatmul.f32.gmra.mxu0 %v8516
      %v8634 = vpop.f32.mrf.mxu0
      %v8635 = vadd.f32 0.0, %v8634
      %8636 = vmatmul.f32.gmra.mxu0 %v8517
      %v8637 = vpop.f32.mrf.mxu0
      %v8638 = vadd.f32 0.0, %v8637
      %8639 = vmatmul.f32.gmra.mxu0 %v8518
      %v8640 = vpop.f32.mrf.mxu0
      %v8641 = vadd.f32 0.0, %v8640
      %8642 = vmatmul.f32.gmra.mxu0 %v8519
      %v8643 = vpop.f32.mrf.mxu0
      %v8644 = vadd.f32 0.0, %v8643
      %8645 = vmatmul.f32.gmra.mxu0 %v8520
      %v8646 = vpop.f32.mrf.mxu0
      %v8647 = vadd.f32 0.0, %v8646
      %8648 = vmatmul.f32.gmra.mxu0 %v8521
      %v8649 = vpop.f32.mrf.mxu0
      %v8650 = vadd.f32 0.0, %v8649
      %8651 = vdwg.mxu0
      %v8652 = vadd.f32 %v8458, %v8557
      %v8653 = vadd.f32 %v8459, %v8560
      %v8654 = vadd.f32 %v8460, %v8563
      %v8655 = vadd.f32 %v8461, %v8566
      %v8656 = vadd.f32 %v8462, %v8569
      %v8657 = vadd.f32 %v8463, %v8572
      %v8658 = vadd.f32 %v8464, %v8575
      %v8659 = vadd.f32 %v8465, %v8578
      %v8660 = vadd.f32 %v8466, %v8581
      %v8661 = vadd.f32 %v8467, %v8584
      %v8662 = vadd.f32 %v8468, %v8587
      %v8663 = vadd.f32 %v8469, %v8590
      %v8664 = vadd.f32 %v8470, %v8593
      %v8665 = vadd.f32 %v8471, %v8596
      %v8666 = vadd.f32 %v8472, %v8599
      %v8667 = vadd.f32 %v8473, %v8602
      %v8668 = vadd.f32 %v8474, %v8605
      %v8669 = vadd.f32 %v8475, %v8608
      %v8670 = vadd.f32 %v8476, %v8611
      %v8671 = vadd.f32 %v8477, %v8614
      %v8672 = vadd.f32 %v8478, %v8617
      %v8673 = vadd.f32 %v8479, %v8620
      %v8674 = vadd.f32 %v8480, %v8623
      %v8675 = vadd.f32 %v8481, %v8626
      %v8676 = vadd.f32 %v8482, %v8629
      %v8677 = vadd.f32 %v8483, %v8632
      %v8678 = vadd.f32 %v8484, %v8635
      %v8679 = vadd.f32 %v8485, %v8638
      %v8680 = vadd.f32 %v8486, %v8641
      %v8681 = vadd.f32 %v8487, %v8644
      %v8682 = vadd.f32 %v8488, %v8647
      %v8683 = vadd.f32 %v8489, %v8650
      %s8684 = scalar_lea.vmem [#allocation3], 48
      %v8685 = vld [vmem:[%s8684] sm:$0xff]
      %v8686 = vld [vmem:[%s8684 + $0x8] sm:$0xff]
      %v8687 = vld [vmem:[%s8684 + $0x18] sm:$0xff]
      %v8688 = vld [vmem:[%s8684 + $0x20] sm:$0xff]
      %v8689 = vld [vmem:[%s8684 + $0x30] sm:$0xff]
      %v8690 = vld [vmem:[%s8684 + $0x38] sm:$0xff]
      %v8691 = vld [vmem:[%s8684 + $0x48] sm:$0xff]
      %v8692 = vld [vmem:[%s8684 + $0x50] sm:$0xff]
      %v8693 = vld [vmem:[%s8684 + $0x60] sm:$0xff]
      %v8694 = vld [vmem:[%s8684 + $0x68] sm:$0xff]
      %v8695 = vld [vmem:[%s8684 + $0x78] sm:$0xff]
      %v8696 = vld [vmem:[%s8684 + $0x80] sm:$0xff]
      %v8697 = vld [vmem:[%s8684 + $0x90] sm:$0xff]
      %v8698 = vld [vmem:[%s8684 + $0x98] sm:$0xff]
      %v8699 = vld [vmem:[%s8684 + $0xa8] sm:$0xff]
      %v8700 = vld [vmem:[%s8684 + $0xb0] sm:$0xff]
      %v8701 = vld [vmem:[%s8684 + $0xc0] sm:$0xff]
      %v8702 = vld [vmem:[%s8684 + $0xc8] sm:$0xff]
      %v8703 = vld [vmem:[%s8684 + $0xd8] sm:$0xff]
      %v8704 = vld [vmem:[%s8684 + $0xe0] sm:$0xff]
      %v8705 = vld [vmem:[%s8684 + $0xf0] sm:$0xff]
      %v8706 = vld [vmem:[%s8684 + $0xf8] sm:$0xff]
      %v8707 = vld [vmem:[%s8684 + $0x108] sm:$0xff]
      %v8708 = vld [vmem:[%s8684 + $0x110] sm:$0xff]
      %v8709 = vld [vmem:[%s8684 + $0x120] sm:$0xff]
      %v8710 = vld [vmem:[%s8684 + $0x128] sm:$0xff]
      %v8711 = vld [vmem:[%s8684 + $0x138] sm:$0xff]
      %v8712 = vld [vmem:[%s8684 + $0x140] sm:$0xff]
      %v8713 = vld [vmem:[%s8684 + $0x150] sm:$0xff]
      %v8714 = vld [vmem:[%s8684 + $0x158] sm:$0xff]
      %v8715 = vld [vmem:[%s8684 + $0x168] sm:$0xff]
      %v8716 = vld [vmem:[%s8684 + $0x170] sm:$0xff]
      %s8717 = scalar_lea.vmem %s7, 768
      %v8718 = vld [vmem:[%s8717] sm:$0xff]
      %v8719 = vld [vmem:[%s8717 + $0x8] sm:$0xff]
      %v8720 = vld [vmem:[%s8717 + $0x10] sm:$0xff]
      %v8721 = vld [vmem:[%s8717 + $0x18] sm:$0xff]
      %v8722 = vld [vmem:[%s8717 + $0x20] sm:$0xff]
      %v8723 = vld [vmem:[%s8717 + $0x28] sm:$0xff]
      %v8724 = vld [vmem:[%s8717 + $0x30] sm:$0xff]
      %v8725 = vld [vmem:[%s8717 + $0x38] sm:$0xff]
      %v8726 = vld [vmem:[%s8717 + $0x40] sm:$0xff]
      %v8727 = vld [vmem:[%s8717 + $0x48] sm:$0xff]
      %v8728 = vld [vmem:[%s8717 + $0x50] sm:$0xff]
      %v8729 = vld [vmem:[%s8717 + $0x58] sm:$0xff]
      %v8730 = vld [vmem:[%s8717 + $0x60] sm:$0xff]
      %v8731 = vld [vmem:[%s8717 + $0x68] sm:$0xff]
      %v8732 = vld [vmem:[%s8717 + $0x70] sm:$0xff]
      %v8733 = vld [vmem:[%s8717 + $0x78] sm:$0xff]
      %8734 = vmatpush.msra.mxu0 %v8733
      %8735 = vmatpush.msra.mxu0 %v8732
      %8736 = vmatpush.msra.mxu0 %v8731
      %8737 = vmatpush.msra.mxu0 %v8730
      %8738 = vmatpush.msra.mxu0 %v8729
      %8739 = vmatpush.msra.mxu0 %v8728
      %8740 = vmatpush.msra.mxu0 %v8727
      %8741 = vmatpush.msra.mxu0 %v8726
      %8742 = vmatpush.msra.mxu0 %v8725
      %8743 = vmatpush.msra.mxu0 %v8724
      %8744 = vmatpush.msra.mxu0 %v8723
      %8745 = vmatpush.msra.mxu0 %v8722
      %8746 = vmatpush.msra.mxu0 %v8721
      %8747 = vmatpush.msra.mxu0 %v8720
      %8748 = vmatpush.msra.mxu0 %v8719
      %8749 = vmatpush.msra.mxu0 %v8718
      %8750 = vmatmul.f32.gmra.mxu0 %v8685
      %v8751 = vpop.f32.mrf.mxu0
      %v8752 = vadd.f32 0.0, %v8751
      %8753 = vmatmul.f32.gmra.mxu0 %v8686
      %v8754 = vpop.f32.mrf.mxu0
      %v8755 = vadd.f32 0.0, %v8754
      %8756 = vmatmul.f32.gmra.mxu0 %v8687
      %v8757 = vpop.f32.mrf.mxu0
      %v8758 = vadd.f32 0.0, %v8757
      %8759 = vmatmul.f32.gmra.mxu0 %v8688
      %v8760 = vpop.f32.mrf.mxu0
      %v8761 = vadd.f32 0.0, %v8760
      %8762 = vmatmul.f32.gmra.mxu0 %v8689
      %v8763 = vpop.f32.mrf.mxu0
      %v8764 = vadd.f32 0.0, %v8763
      %8765 = vmatmul.f32.gmra.mxu0 %v8690
      %v8766 = vpop.f32.mrf.mxu0
      %v8767 = vadd.f32 0.0, %v8766
      %8768 = vmatmul.f32.gmra.mxu0 %v8691
      %v8769 = vpop.f32.mrf.mxu0
      %v8770 = vadd.f32 0.0, %v8769
      %8771 = vmatmul.f32.gmra.mxu0 %v8692
      %v8772 = vpop.f32.mrf.mxu0
      %v8773 = vadd.f32 0.0, %v8772
      %8774 = vmatmul.f32.gmra.mxu0 %v8693
      %v8775 = vpop.f32.mrf.mxu0
      %v8776 = vadd.f32 0.0, %v8775
      %8777 = vmatmul.f32.gmra.mxu0 %v8694
      %v8778 = vpop.f32.mrf.mxu0
      %v8779 = vadd.f32 0.0, %v8778
      %8780 = vmatmul.f32.gmra.mxu0 %v8695
      %v8781 = vpop.f32.mrf.mxu0
      %v8782 = vadd.f32 0.0, %v8781
      %8783 = vmatmul.f32.gmra.mxu0 %v8696
      %v8784 = vpop.f32.mrf.mxu0
      %v8785 = vadd.f32 0.0, %v8784
      %8786 = vmatmul.f32.gmra.mxu0 %v8697
      %v8787 = vpop.f32.mrf.mxu0
      %v8788 = vadd.f32 0.0, %v8787
      %8789 = vmatmul.f32.gmra.mxu0 %v8698
      %v8790 = vpop.f32.mrf.mxu0
      %v8791 = vadd.f32 0.0, %v8790
      %8792 = vmatmul.f32.gmra.mxu0 %v8699
      %v8793 = vpop.f32.mrf.mxu0
      %v8794 = vadd.f32 0.0, %v8793
      %8795 = vmatmul.f32.gmra.mxu0 %v8700
      %v8796 = vpop.f32.mrf.mxu0
      %v8797 = vadd.f32 0.0, %v8796
      %8798 = vmatmul.f32.gmra.mxu0 %v8701
      %v8799 = vpop.f32.mrf.mxu0
      %v8800 = vadd.f32 0.0, %v8799
      %8801 = vmatmul.f32.gmra.mxu0 %v8702
      %v8802 = vpop.f32.mrf.mxu0
      %v8803 = vadd.f32 0.0, %v8802
      %8804 = vmatmul.f32.gmra.mxu0 %v8703
      %v8805 = vpop.f32.mrf.mxu0
      %v8806 = vadd.f32 0.0, %v8805
      %8807 = vmatmul.f32.gmra.mxu0 %v8704
      %v8808 = vpop.f32.mrf.mxu0
      %v8809 = vadd.f32 0.0, %v8808
      %8810 = vmatmul.f32.gmra.mxu0 %v8705
      %v8811 = vpop.f32.mrf.mxu0
      %v8812 = vadd.f32 0.0, %v8811
      %8813 = vmatmul.f32.gmra.mxu0 %v8706
      %v8814 = vpop.f32.mrf.mxu0
      %v8815 = vadd.f32 0.0, %v8814
      %8816 = vmatmul.f32.gmra.mxu0 %v8707
      %v8817 = vpop.f32.mrf.mxu0
      %v8818 = vadd.f32 0.0, %v8817
      %8819 = vmatmul.f32.gmra.mxu0 %v8708
      %v8820 = vpop.f32.mrf.mxu0
      %v8821 = vadd.f32 0.0, %v8820
      %8822 = vmatmul.f32.gmra.mxu0 %v8709
      %v8823 = vpop.f32.mrf.mxu0
      %v8824 = vadd.f32 0.0, %v8823
      %8825 = vmatmul.f32.gmra.mxu0 %v8710
      %v8826 = vpop.f32.mrf.mxu0
      %v8827 = vadd.f32 0.0, %v8826
      %8828 = vmatmul.f32.gmra.mxu0 %v8711
      %v8829 = vpop.f32.mrf.mxu0
      %v8830 = vadd.f32 0.0, %v8829
      %8831 = vmatmul.f32.gmra.mxu0 %v8712
      %v8832 = vpop.f32.mrf.mxu0
      %v8833 = vadd.f32 0.0, %v8832
      %8834 = vmatmul.f32.gmra.mxu0 %v8713
      %v8835 = vpop.f32.mrf.mxu0
      %v8836 = vadd.f32 0.0, %v8835
      %8837 = vmatmul.f32.gmra.mxu0 %v8714
      %v8838 = vpop.f32.mrf.mxu0
      %v8839 = vadd.f32 0.0, %v8838
      %8840 = vmatmul.f32.gmra.mxu0 %v8715
      %v8841 = vpop.f32.mrf.mxu0
      %v8842 = vadd.f32 0.0, %v8841
      %8843 = vmatmul.f32.gmra.mxu0 %v8716
      %v8844 = vpop.f32.mrf.mxu0
      %v8845 = vadd.f32 0.0, %v8844
      %8846 = vdwg.mxu0
      %v8847 = vadd.f32 %v8652, %v8752
      %v8848 = vadd.f32 %v8653, %v8755
      %v8849 = vadd.f32 %v8654, %v8758
      %v8850 = vadd.f32 %v8655, %v8761
      %v8851 = vadd.f32 %v8656, %v8764
      %v8852 = vadd.f32 %v8657, %v8767
      %v8853 = vadd.f32 %v8658, %v8770
      %v8854 = vadd.f32 %v8659, %v8773
      %v8855 = vadd.f32 %v8660, %v8776
      %v8856 = vadd.f32 %v8661, %v8779
      %v8857 = vadd.f32 %v8662, %v8782
      %v8858 = vadd.f32 %v8663, %v8785
      %v8859 = vadd.f32 %v8664, %v8788
      %v8860 = vadd.f32 %v8665, %v8791
      %v8861 = vadd.f32 %v8666, %v8794
      %v8862 = vadd.f32 %v8667, %v8797
      %v8863 = vadd.f32 %v8668, %v8800
      %v8864 = vadd.f32 %v8669, %v8803
      %v8865 = vadd.f32 %v8670, %v8806
      %v8866 = vadd.f32 %v8671, %v8809
      %v8867 = vadd.f32 %v8672, %v8812
      %v8868 = vadd.f32 %v8673, %v8815
      %v8869 = vadd.f32 %v8674, %v8818
      %v8870 = vadd.f32 %v8675, %v8821
      %v8871 = vadd.f32 %v8676, %v8824
      %v8872 = vadd.f32 %v8677, %v8827
      %v8873 = vadd.f32 %v8678, %v8830
      %v8874 = vadd.f32 %v8679, %v8833
      %v8875 = vadd.f32 %v8680, %v8836
      %v8876 = vadd.f32 %v8681, %v8839
      %v8877 = vadd.f32 %v8682, %v8842
      %v8878 = vadd.f32 %v8683, %v8845
      %v8879 = vld [vmem:[%s8684 + $0x1] sm:$0xff]
      %v8880 = vld [vmem:[%s8684 + $0x9] sm:$0xff]
      %v8881 = vld [vmem:[%s8684 + $0x19] sm:$0xff]
      %v8882 = vld [vmem:[%s8684 + $0x21] sm:$0xff]
      %v8883 = vld [vmem:[%s8684 + $0x31] sm:$0xff]
      %v8884 = vld [vmem:[%s8684 + $0x39] sm:$0xff]
      %v8885 = vld [vmem:[%s8684 + $0x49] sm:$0xff]
      %v8886 = vld [vmem:[%s8684 + $0x51] sm:$0xff]
      %v8887 = vld [vmem:[%s8684 + $0x61] sm:$0xff]
      %v8888 = vld [vmem:[%s8684 + $0x69] sm:$0xff]
      %v8889 = vld [vmem:[%s8684 + $0x79] sm:$0xff]
      %v8890 = vld [vmem:[%s8684 + $0x81] sm:$0xff]
      %v8891 = vld [vmem:[%s8684 + $0x91] sm:$0xff]
      %v8892 = vld [vmem:[%s8684 + $0x99] sm:$0xff]
      %v8893 = vld [vmem:[%s8684 + $0xa9] sm:$0xff]
      %v8894 = vld [vmem:[%s8684 + $0xb1] sm:$0xff]
      %v8895 = vld [vmem:[%s8684 + $0xc1] sm:$0xff]
      %v8896 = vld [vmem:[%s8684 + $0xc9] sm:$0xff]
      %v8897 = vld [vmem:[%s8684 + $0xd9] sm:$0xff]
      %v8898 = vld [vmem:[%s8684 + $0xe1] sm:$0xff]
      %v8899 = vld [vmem:[%s8684 + $0xf1] sm:$0xff]
      %v8900 = vld [vmem:[%s8684 + $0xf9] sm:$0xff]
      %v8901 = vld [vmem:[%s8684 + $0x109] sm:$0xff]
      %v8902 = vld [vmem:[%s8684 + $0x111] sm:$0xff]
      %v8903 = vld [vmem:[%s8684 + $0x121] sm:$0xff]
      %v8904 = vld [vmem:[%s8684 + $0x129] sm:$0xff]
      %v8905 = vld [vmem:[%s8684 + $0x139] sm:$0xff]
      %v8906 = vld [vmem:[%s8684 + $0x141] sm:$0xff]
      %v8907 = vld [vmem:[%s8684 + $0x151] sm:$0xff]
      %v8908 = vld [vmem:[%s8684 + $0x159] sm:$0xff]
      %v8909 = vld [vmem:[%s8684 + $0x169] sm:$0xff]
      %v8910 = vld [vmem:[%s8684 + $0x171] sm:$0xff]
      %s8911 = scalar_lea.vmem %s7, 896
      %v8912 = vld [vmem:[%s8911] sm:$0xff]
      %v8913 = vld [vmem:[%s8911 + $0x8] sm:$0xff]
      %v8914 = vld [vmem:[%s8911 + $0x10] sm:$0xff]
      %v8915 = vld [vmem:[%s8911 + $0x18] sm:$0xff]
      %v8916 = vld [vmem:[%s8911 + $0x20] sm:$0xff]
      %v8917 = vld [vmem:[%s8911 + $0x28] sm:$0xff]
      %v8918 = vld [vmem:[%s8911 + $0x30] sm:$0xff]
      %v8919 = vld [vmem:[%s8911 + $0x38] sm:$0xff]
      %v8920 = vld [vmem:[%s8911 + $0x40] sm:$0xff]
      %v8921 = vld [vmem:[%s8911 + $0x48] sm:$0xff]
      %v8922 = vld [vmem:[%s8911 + $0x50] sm:$0xff]
      %v8923 = vld [vmem:[%s8911 + $0x58] sm:$0xff]
      %v8924 = vld [vmem:[%s8911 + $0x60] sm:$0xff]
      %v8925 = vld [vmem:[%s8911 + $0x68] sm:$0xff]
      %v8926 = vld [vmem:[%s8911 + $0x70] sm:$0xff]
      %v8927 = vld [vmem:[%s8911 + $0x78] sm:$0xff]
      %8928 = vmatpush.msra.mxu0 %v8927
      %8929 = vmatpush.msra.mxu0 %v8926
      %8930 = vmatpush.msra.mxu0 %v8925
      %8931 = vmatpush.msra.mxu0 %v8924
      %8932 = vmatpush.msra.mxu0 %v8923
      %8933 = vmatpush.msra.mxu0 %v8922
      %8934 = vmatpush.msra.mxu0 %v8921
      %8935 = vmatpush.msra.mxu0 %v8920
      %8936 = vmatpush.msra.mxu0 %v8919
      %8937 = vmatpush.msra.mxu0 %v8918
      %8938 = vmatpush.msra.mxu0 %v8917
      %8939 = vmatpush.msra.mxu0 %v8916
      %8940 = vmatpush.msra.mxu0 %v8915
      %8941 = vmatpush.msra.mxu0 %v8914
      %8942 = vmatpush.msra.mxu0 %v8913
      %8943 = vmatpush.msra.mxu0 %v8912
      %8944 = vmatmul.f32.gmra.mxu0 %v8879
      %v8945 = vpop.f32.mrf.mxu0
      %v8946 = vadd.f32 0.0, %v8945
      %8947 = vmatmul.f32.gmra.mxu0 %v8880
      %v8948 = vpop.f32.mrf.mxu0
      %v8949 = vadd.f32 0.0, %v8948
      %8950 = vmatmul.f32.gmra.mxu0 %v8881
      %v8951 = vpop.f32.mrf.mxu0
      %v8952 = vadd.f32 0.0, %v8951
      %8953 = vmatmul.f32.gmra.mxu0 %v8882
      %v8954 = vpop.f32.mrf.mxu0
      %v8955 = vadd.f32 0.0, %v8954
      %8956 = vmatmul.f32.gmra.mxu0 %v8883
      %v8957 = vpop.f32.mrf.mxu0
      %v8958 = vadd.f32 0.0, %v8957
      %8959 = vmatmul.f32.gmra.mxu0 %v8884
      %v8960 = vpop.f32.mrf.mxu0
      %v8961 = vadd.f32 0.0, %v8960
      %8962 = vmatmul.f32.gmra.mxu0 %v8885
      %v8963 = vpop.f32.mrf.mxu0
      %v8964 = vadd.f32 0.0, %v8963
      %8965 = vmatmul.f32.gmra.mxu0 %v8886
      %v8966 = vpop.f32.mrf.mxu0
      %v8967 = vadd.f32 0.0, %v8966
      %8968 = vmatmul.f32.gmra.mxu0 %v8887
      %v8969 = vpop.f32.mrf.mxu0
      %v8970 = vadd.f32 0.0, %v8969
      %8971 = vmatmul.f32.gmra.mxu0 %v8888
      %v8972 = vpop.f32.mrf.mxu0
      %v8973 = vadd.f32 0.0, %v8972
      %8974 = vmatmul.f32.gmra.mxu0 %v8889
      %v8975 = vpop.f32.mrf.mxu0
      %v8976 = vadd.f32 0.0, %v8975
      %8977 = vmatmul.f32.gmra.mxu0 %v8890
      %v8978 = vpop.f32.mrf.mxu0
      %v8979 = vadd.f32 0.0, %v8978
      %8980 = vmatmul.f32.gmra.mxu0 %v8891
      %v8981 = vpop.f32.mrf.mxu0
      %v8982 = vadd.f32 0.0, %v8981
      %8983 = vmatmul.f32.gmra.mxu0 %v8892
      %v8984 = vpop.f32.mrf.mxu0
      %v8985 = vadd.f32 0.0, %v8984
      %8986 = vmatmul.f32.gmra.mxu0 %v8893
      %v8987 = vpop.f32.mrf.mxu0
      %v8988 = vadd.f32 0.0, %v8987
      %8989 = vmatmul.f32.gmra.mxu0 %v8894
      %v8990 = vpop.f32.mrf.mxu0
      %v8991 = vadd.f32 0.0, %v8990
      %8992 = vmatmul.f32.gmra.mxu0 %v8895
      %v8993 = vpop.f32.mrf.mxu0
      %v8994 = vadd.f32 0.0, %v8993
      %8995 = vmatmul.f32.gmra.mxu0 %v8896
      %v8996 = vpop.f32.mrf.mxu0
      %v8997 = vadd.f32 0.0, %v8996
      %8998 = vmatmul.f32.gmra.mxu0 %v8897
      %v8999 = vpop.f32.mrf.mxu0
      %v9000 = vadd.f32 0.0, %v8999
      %9001 = vmatmul.f32.gmra.mxu0 %v8898
      %v9002 = vpop.f32.mrf.mxu0
      %v9003 = vadd.f32 0.0, %v9002
      %9004 = vmatmul.f32.gmra.mxu0 %v8899
      %v9005 = vpop.f32.mrf.mxu0
      %v9006 = vadd.f32 0.0, %v9005
      %9007 = vmatmul.f32.gmra.mxu0 %v8900
      %v9008 = vpop.f32.mrf.mxu0
      %v9009 = vadd.f32 0.0, %v9008
      %9010 = vmatmul.f32.gmra.mxu0 %v8901
      %v9011 = vpop.f32.mrf.mxu0
      %v9012 = vadd.f32 0.0, %v9011
      %9013 = vmatmul.f32.gmra.mxu0 %v8902
      %v9014 = vpop.f32.mrf.mxu0
      %v9015 = vadd.f32 0.0, %v9014
      %9016 = vmatmul.f32.gmra.mxu0 %v8903
      %v9017 = vpop.f32.mrf.mxu0
      %v9018 = vadd.f32 0.0, %v9017
      %9019 = vmatmul.f32.gmra.mxu0 %v8904
      %v9020 = vpop.f32.mrf.mxu0
      %v9021 = vadd.f32 0.0, %v9020
      %9022 = vmatmul.f32.gmra.mxu0 %v8905
      %v9023 = vpop.f32.mrf.mxu0
      %v9024 = vadd.f32 0.0, %v9023
      %9025 = vmatmul.f32.gmra.mxu0 %v8906
      %v9026 = vpop.f32.mrf.mxu0
      %v9027 = vadd.f32 0.0, %v9026
      %9028 = vmatmul.f32.gmra.mxu0 %v8907
      %v9029 = vpop.f32.mrf.mxu0
      %v9030 = vadd.f32 0.0, %v9029
      %9031 = vmatmul.f32.gmra.mxu0 %v8908
      %v9032 = vpop.f32.mrf.mxu0
      %v9033 = vadd.f32 0.0, %v9032
      %9034 = vmatmul.f32.gmra.mxu0 %v8909
      %v9035 = vpop.f32.mrf.mxu0
      %v9036 = vadd.f32 0.0, %v9035
      %9037 = vmatmul.f32.gmra.mxu0 %v8910
      %v9038 = vpop.f32.mrf.mxu0
      %v9039 = vadd.f32 0.0, %v9038
      %9040 = vdwg.mxu0
      %v9041 = vadd.f32 %v8847, %v8946
      %v9042 = vadd.f32 %v8848, %v8949
      %v9043 = vadd.f32 %v8849, %v8952
      %v9044 = vadd.f32 %v8850, %v8955
      %v9045 = vadd.f32 %v8851, %v8958
      %v9046 = vadd.f32 %v8852, %v8961
      %v9047 = vadd.f32 %v8853, %v8964
      %v9048 = vadd.f32 %v8854, %v8967
      %v9049 = vadd.f32 %v8855, %v8970
      %v9050 = vadd.f32 %v8856, %v8973
      %v9051 = vadd.f32 %v8857, %v8976
      %v9052 = vadd.f32 %v8858, %v8979
      %v9053 = vadd.f32 %v8859, %v8982
      %v9054 = vadd.f32 %v8860, %v8985
      %v9055 = vadd.f32 %v8861, %v8988
      %v9056 = vadd.f32 %v8862, %v8991
      %v9057 = vadd.f32 %v8863, %v8994
      %v9058 = vadd.f32 %v8864, %v8997
      %v9059 = vadd.f32 %v8865, %v9000
      %v9060 = vadd.f32 %v8866, %v9003
      %v9061 = vadd.f32 %v8867, %v9006
      %v9062 = vadd.f32 %v8868, %v9009
      %v9063 = vadd.f32 %v8869, %v9012
      %v9064 = vadd.f32 %v8870, %v9015
      %v9065 = vadd.f32 %v8871, %v9018
      %v9066 = vadd.f32 %v8872, %v9021
      %v9067 = vadd.f32 %v8873, %v9024
      %v9068 = vadd.f32 %v8874, %v9027
      %v9069 = vadd.f32 %v8875, %v9030
      %v9070 = vadd.f32 %v8876, %v9033
      %v9071 = vadd.f32 %v8877, %v9036
      %v9072 = vadd.f32 %v8878, %v9039
      %v9073 = vld [vmem:[%s8684 + $0x2] sm:$0xff]
      %v9074 = vld [vmem:[%s8684 + $0xa] sm:$0xff]
      %v9075 = vld [vmem:[%s8684 + $0x1a] sm:$0xff]
      %v9076 = vld [vmem:[%s8684 + $0x22] sm:$0xff]
      %v9077 = vld [vmem:[%s8684 + $0x32] sm:$0xff]
      %v9078 = vld [vmem:[%s8684 + $0x3a] sm:$0xff]
      %v9079 = vld [vmem:[%s8684 + $0x4a] sm:$0xff]
      %v9080 = vld [vmem:[%s8684 + $0x52] sm:$0xff]
      %v9081 = vld [vmem:[%s8684 + $0x62] sm:$0xff]
      %v9082 = vld [vmem:[%s8684 + $0x6a] sm:$0xff]
      %v9083 = vld [vmem:[%s8684 + $0x7a] sm:$0xff]
      %v9084 = vld [vmem:[%s8684 + $0x82] sm:$0xff]
      %v9085 = vld [vmem:[%s8684 + $0x92] sm:$0xff]
      %v9086 = vld [vmem:[%s8684 + $0x9a] sm:$0xff]
      %v9087 = vld [vmem:[%s8684 + $0xaa] sm:$0xff]
      %v9088 = vld [vmem:[%s8684 + $0xb2] sm:$0xff]
      %v9089 = vld [vmem:[%s8684 + $0xc2] sm:$0xff]
      %v9090 = vld [vmem:[%s8684 + $0xca] sm:$0xff]
      %v9091 = vld [vmem:[%s8684 + $0xda] sm:$0xff]
      %v9092 = vld [vmem:[%s8684 + $0xe2] sm:$0xff]
      %v9093 = vld [vmem:[%s8684 + $0xf2] sm:$0xff]
      %v9094 = vld [vmem:[%s8684 + $0xfa] sm:$0xff]
      %v9095 = vld [vmem:[%s8684 + $0x10a] sm:$0xff]
      %v9096 = vld [vmem:[%s8684 + $0x112] sm:$0xff]
      %v9097 = vld [vmem:[%s8684 + $0x122] sm:$0xff]
      %v9098 = vld [vmem:[%s8684 + $0x12a] sm:$0xff]
      %v9099 = vld [vmem:[%s8684 + $0x13a] sm:$0xff]
      %v9100 = vld [vmem:[%s8684 + $0x142] sm:$0xff]
      %v9101 = vld [vmem:[%s8684 + $0x152] sm:$0xff]
      %v9102 = vld [vmem:[%s8684 + $0x15a] sm:$0xff]
      %v9103 = vld [vmem:[%s8684 + $0x16a] sm:$0xff]
      %v9104 = vld [vmem:[%s8684 + $0x172] sm:$0xff]
      %s9105 = scalar_lea.vmem %s7, 1024
      %v9106 = vld [vmem:[%s9105] sm:$0xff]
      %v9107 = vld [vmem:[%s9105 + $0x8] sm:$0xff]
      %v9108 = vld [vmem:[%s9105 + $0x10] sm:$0xff]
      %v9109 = vld [vmem:[%s9105 + $0x18] sm:$0xff]
      %v9110 = vld [vmem:[%s9105 + $0x20] sm:$0xff]
      %v9111 = vld [vmem:[%s9105 + $0x28] sm:$0xff]
      %v9112 = vld [vmem:[%s9105 + $0x30] sm:$0xff]
      %v9113 = vld [vmem:[%s9105 + $0x38] sm:$0xff]
      %v9114 = vld [vmem:[%s9105 + $0x40] sm:$0xff]
      %v9115 = vld [vmem:[%s9105 + $0x48] sm:$0xff]
      %v9116 = vld [vmem:[%s9105 + $0x50] sm:$0xff]
      %v9117 = vld [vmem:[%s9105 + $0x58] sm:$0xff]
      %v9118 = vld [vmem:[%s9105 + $0x60] sm:$0xff]
      %v9119 = vld [vmem:[%s9105 + $0x68] sm:$0xff]
      %v9120 = vld [vmem:[%s9105 + $0x70] sm:$0xff]
      %v9121 = vld [vmem:[%s9105 + $0x78] sm:$0xff]
      %9122 = vmatpush.msra.mxu0 %v9121
      %9123 = vmatpush.msra.mxu0 %v9120
      %9124 = vmatpush.msra.mxu0 %v9119
      %9125 = vmatpush.msra.mxu0 %v9118
      %9126 = vmatpush.msra.mxu0 %v9117
      %9127 = vmatpush.msra.mxu0 %v9116
      %9128 = vmatpush.msra.mxu0 %v9115
      %9129 = vmatpush.msra.mxu0 %v9114
      %9130 = vmatpush.msra.mxu0 %v9113
      %9131 = vmatpush.msra.mxu0 %v9112
      %9132 = vmatpush.msra.mxu0 %v9111
      %9133 = vmatpush.msra.mxu0 %v9110
      %9134 = vmatpush.msra.mxu0 %v9109
      %9135 = vmatpush.msra.mxu0 %v9108
      %9136 = vmatpush.msra.mxu0 %v9107
      %9137 = vmatpush.msra.mxu0 %v9106
      %9138 = vmatmul.f32.gmra.mxu0 %v9073
      %v9139 = vpop.f32.mrf.mxu0
      %v9140 = vadd.f32 0.0, %v9139
      %9141 = vmatmul.f32.gmra.mxu0 %v9074
      %v9142 = vpop.f32.mrf.mxu0
      %v9143 = vadd.f32 0.0, %v9142
      %9144 = vmatmul.f32.gmra.mxu0 %v9075
      %v9145 = vpop.f32.mrf.mxu0
      %v9146 = vadd.f32 0.0, %v9145
      %9147 = vmatmul.f32.gmra.mxu0 %v9076
      %v9148 = vpop.f32.mrf.mxu0
      %v9149 = vadd.f32 0.0, %v9148
      %9150 = vmatmul.f32.gmra.mxu0 %v9077
      %v9151 = vpop.f32.mrf.mxu0
      %v9152 = vadd.f32 0.0, %v9151
      %9153 = vmatmul.f32.gmra.mxu0 %v9078
      %v9154 = vpop.f32.mrf.mxu0
      %v9155 = vadd.f32 0.0, %v9154
      %9156 = vmatmul.f32.gmra.mxu0 %v9079
      %v9157 = vpop.f32.mrf.mxu0
      %v9158 = vadd.f32 0.0, %v9157
      %9159 = vmatmul.f32.gmra.mxu0 %v9080
      %v9160 = vpop.f32.mrf.mxu0
      %v9161 = vadd.f32 0.0, %v9160
      %9162 = vmatmul.f32.gmra.mxu0 %v9081
      %v9163 = vpop.f32.mrf.mxu0
      %v9164 = vadd.f32 0.0, %v9163
      %9165 = vmatmul.f32.gmra.mxu0 %v9082
      %v9166 = vpop.f32.mrf.mxu0
      %v9167 = vadd.f32 0.0, %v9166
      %9168 = vmatmul.f32.gmra.mxu0 %v9083
      %v9169 = vpop.f32.mrf.mxu0
      %v9170 = vadd.f32 0.0, %v9169
      %9171 = vmatmul.f32.gmra.mxu0 %v9084
      %v9172 = vpop.f32.mrf.mxu0
      %v9173 = vadd.f32 0.0, %v9172
      %9174 = vmatmul.f32.gmra.mxu0 %v9085
      %v9175 = vpop.f32.mrf.mxu0
      %v9176 = vadd.f32 0.0, %v9175
      %9177 = vmatmul.f32.gmra.mxu0 %v9086
      %v9178 = vpop.f32.mrf.mxu0
      %v9179 = vadd.f32 0.0, %v9178
      %9180 = vmatmul.f32.gmra.mxu0 %v9087
      %v9181 = vpop.f32.mrf.mxu0
      %v9182 = vadd.f32 0.0, %v9181
      %9183 = vmatmul.f32.gmra.mxu0 %v9088
      %v9184 = vpop.f32.mrf.mxu0
      %v9185 = vadd.f32 0.0, %v9184
      %9186 = vmatmul.f32.gmra.mxu0 %v9089
      %v9187 = vpop.f32.mrf.mxu0
      %v9188 = vadd.f32 0.0, %v9187
      %9189 = vmatmul.f32.gmra.mxu0 %v9090
      %v9190 = vpop.f32.mrf.mxu0
      %v9191 = vadd.f32 0.0, %v9190
      %9192 = vmatmul.f32.gmra.mxu0 %v9091
      %v9193 = vpop.f32.mrf.mxu0
      %v9194 = vadd.f32 0.0, %v9193
      %9195 = vmatmul.f32.gmra.mxu0 %v9092
      %v9196 = vpop.f32.mrf.mxu0
      %v9197 = vadd.f32 0.0, %v9196
      %9198 = vmatmul.f32.gmra.mxu0 %v9093
      %v9199 = vpop.f32.mrf.mxu0
      %v9200 = vadd.f32 0.0, %v9199
      %9201 = vmatmul.f32.gmra.mxu0 %v9094
      %v9202 = vpop.f32.mrf.mxu0
      %v9203 = vadd.f32 0.0, %v9202
      %9204 = vmatmul.f32.gmra.mxu0 %v9095
      %v9205 = vpop.f32.mrf.mxu0
      %v9206 = vadd.f32 0.0, %v9205
      %9207 = vmatmul.f32.gmra.mxu0 %v9096
      %v9208 = vpop.f32.mrf.mxu0
      %v9209 = vadd.f32 0.0, %v9208
      %9210 = vmatmul.f32.gmra.mxu0 %v9097
      %v9211 = vpop.f32.mrf.mxu0
      %v9212 = vadd.f32 0.0, %v9211
      %9213 = vmatmul.f32.gmra.mxu0 %v9098
      %v9214 = vpop.f32.mrf.mxu0
      %v9215 = vadd.f32 0.0, %v9214
      %9216 = vmatmul.f32.gmra.mxu0 %v9099
      %v9217 = vpop.f32.mrf.mxu0
      %v9218 = vadd.f32 0.0, %v9217
      %9219 = vmatmul.f32.gmra.mxu0 %v9100
      %v9220 = vpop.f32.mrf.mxu0
      %v9221 = vadd.f32 0.0, %v9220
      %9222 = vmatmul.f32.gmra.mxu0 %v9101
      %v9223 = vpop.f32.mrf.mxu0
      %v9224 = vadd.f32 0.0, %v9223
      %9225 = vmatmul.f32.gmra.mxu0 %v9102
      %v9226 = vpop.f32.mrf.mxu0
      %v9227 = vadd.f32 0.0, %v9226
      %9228 = vmatmul.f32.gmra.mxu0 %v9103
      %v9229 = vpop.f32.mrf.mxu0
      %v9230 = vadd.f32 0.0, %v9229
      %9231 = vmatmul.f32.gmra.mxu0 %v9104
      %v9232 = vpop.f32.mrf.mxu0
      %v9233 = vadd.f32 0.0, %v9232
      %9234 = vdwg.mxu0
      %v9235 = vadd.f32 %v9041, %v9140
      %v9236 = vadd.f32 %v9042, %v9143
      %v9237 = vadd.f32 %v9043, %v9146
      %v9238 = vadd.f32 %v9044, %v9149
      %v9239 = vadd.f32 %v9045, %v9152
      %v9240 = vadd.f32 %v9046, %v9155
      %v9241 = vadd.f32 %v9047, %v9158
      %v9242 = vadd.f32 %v9048, %v9161
      %v9243 = vadd.f32 %v9049, %v9164
      %v9244 = vadd.f32 %v9050, %v9167
      %v9245 = vadd.f32 %v9051, %v9170
      %v9246 = vadd.f32 %v9052, %v9173
      %v9247 = vadd.f32 %v9053, %v9176
      %v9248 = vadd.f32 %v9054, %v9179
      %v9249 = vadd.f32 %v9055, %v9182
      %v9250 = vadd.f32 %v9056, %v9185
      %v9251 = vadd.f32 %v9057, %v9188
      %v9252 = vadd.f32 %v9058, %v9191
      %v9253 = vadd.f32 %v9059, %v9194
      %v9254 = vadd.f32 %v9060, %v9197
      %v9255 = vadd.f32 %v9061, %v9200
      %v9256 = vadd.f32 %v9062, %v9203
      %v9257 = vadd.f32 %v9063, %v9206
      %v9258 = vadd.f32 %v9064, %v9209
      %v9259 = vadd.f32 %v9065, %v9212
      %v9260 = vadd.f32 %v9066, %v9215
      %v9261 = vadd.f32 %v9067, %v9218
      %v9262 = vadd.f32 %v9068, %v9221
      %v9263 = vadd.f32 %v9069, %v9224
      %v9264 = vadd.f32 %v9070, %v9227
      %v9265 = vadd.f32 %v9071, %v9230
      %v9266 = vadd.f32 %v9072, %v9233
      %v9268 = vperm.slane %v7583, 0
      %v9270 = vmul.f32 %v9235, %v9268
      %v9271 = vmul.f32 %v9236, %v9268
      %v9272 = vmul.f32 %v9237, %v9268
      %v9273 = vmul.f32 %v9238, %v9268
      %v9274 = vmul.f32 %v9239, %v9268
      %v9275 = vmul.f32 %v9240, %v9268
      %v9276 = vmul.f32 %v9241, %v9268
      %v9277 = vmul.f32 %v9242, %v9268
      %v9278 = vmul.f32 %v9243, %v9268
      %v9279 = vmul.f32 %v9244, %v9268
      %v9280 = vmul.f32 %v9245, %v9268
      %v9281 = vmul.f32 %v9246, %v9268
      %v9282 = vmul.f32 %v9247, %v9268
      %v9283 = vmul.f32 %v9248, %v9268
      %v9284 = vmul.f32 %v9249, %v9268
      %v9285 = vmul.f32 %v9250, %v9268
      %v9286 = vmul.f32 %v9251, %v9268
      %v9287 = vmul.f32 %v9252, %v9268
      %v9288 = vmul.f32 %v9253, %v9268
      %v9289 = vmul.f32 %v9254, %v9268
      %v9290 = vmul.f32 %v9255, %v9268
      %v9291 = vmul.f32 %v9256, %v9268
      %v9292 = vmul.f32 %v9257, %v9268
      %v9293 = vmul.f32 %v9258, %v9268
      %v9294 = vmul.f32 %v9259, %v9268
      %v9295 = vmul.f32 %v9260, %v9268
      %v9296 = vmul.f32 %v9261, %v9268
      %v9297 = vmul.f32 %v9262, %v9268
      %v9298 = vmul.f32 %v9263, %v9268
      %v9299 = vmul.f32 %v9264, %v9268
      %v9300 = vmul.f32 %v9265, %v9268
      %v9301 = vmul.f32 %v9266, %v9268
      %v9303 = vperm.slane %v7584, 0
      %v9305 = vadd.f32 %v9270, %v9303
      %v9306 = vadd.f32 %v9271, %v9303
      %v9307 = vadd.f32 %v9272, %v9303
      %v9308 = vadd.f32 %v9273, %v9303
      %v9309 = vadd.f32 %v9274, %v9303
      %v9310 = vadd.f32 %v9275, %v9303
      %v9311 = vadd.f32 %v9276, %v9303
      %v9312 = vadd.f32 %v9277, %v9303
      %v9313 = vadd.f32 %v9278, %v9303
      %v9314 = vadd.f32 %v9279, %v9303
      %v9315 = vadd.f32 %v9280, %v9303
      %v9316 = vadd.f32 %v9281, %v9303
      %v9317 = vadd.f32 %v9282, %v9303
      %v9318 = vadd.f32 %v9283, %v9303
      %v9319 = vadd.f32 %v9284, %v9303
      %v9320 = vadd.f32 %v9285, %v9303
      %v9321 = vadd.f32 %v9286, %v9303
      %v9322 = vadd.f32 %v9287, %v9303
      %v9323 = vadd.f32 %v9288, %v9303
      %v9324 = vadd.f32 %v9289, %v9303
      %v9325 = vadd.f32 %v9290, %v9303
      %v9326 = vadd.f32 %v9291, %v9303
      %v9327 = vadd.f32 %v9292, %v9303
      %v9328 = vadd.f32 %v9293, %v9303
      %v9329 = vadd.f32 %v9294, %v9303
      %v9330 = vadd.f32 %v9295, %v9303
      %v9331 = vadd.f32 %v9296, %v9303
      %v9332 = vadd.f32 %v9297, %v9303
      %v9333 = vadd.f32 %v9298, %v9303
      %v9334 = vadd.f32 %v9299, %v9303
      %v9335 = vadd.f32 %v9300, %v9303
      %v9336 = vadd.f32 %v9301, %v9303
      %v9337 = vmax.f32 %v9305, 0.0
      %v9338 = vmax.f32 %v9306, 0.0
      %v9339 = vmax.f32 %v9307, 0.0
      %v9340 = vmax.f32 %v9308, 0.0
      %v9341 = vmax.f32 %v9309, 0.0
      %v9342 = vmax.f32 %v9310, 0.0
      %v9343 = vmax.f32 %v9311, 0.0
      %v9344 = vmax.f32 %v9312, 0.0
      %v9345 = vmax.f32 %v9313, 0.0
      %v9346 = vmax.f32 %v9314, 0.0
      %v9347 = vmax.f32 %v9315, 0.0
      %v9348 = vmax.f32 %v9316, 0.0
      %v9349 = vmax.f32 %v9317, 0.0
      %v9350 = vmax.f32 %v9318, 0.0
      %v9351 = vmax.f32 %v9319, 0.0
      %v9352 = vmax.f32 %v9320, 0.0
      %v9353 = vmax.f32 %v9321, 0.0
      %v9354 = vmax.f32 %v9322, 0.0
      %v9355 = vmax.f32 %v9323, 0.0
      %v9356 = vmax.f32 %v9324, 0.0
      %v9357 = vmax.f32 %v9325, 0.0
      %v9358 = vmax.f32 %v9326, 0.0
      %v9359 = vmax.f32 %v9327, 0.0
      %v9360 = vmax.f32 %v9328, 0.0
      %v9361 = vmax.f32 %v9329, 0.0
      %v9362 = vmax.f32 %v9330, 0.0
      %v9363 = vmax.f32 %v9331, 0.0
      %v9364 = vmax.f32 %v9332, 0.0
      %v9365 = vmax.f32 %v9333, 0.0
      %v9366 = vmax.f32 %v9334, 0.0
      %v9367 = vmax.f32 %v9335, 0.0
      %v9368 = vmax.f32 %v9336, 0.0
      %9369 = vst [vmem:[%s379] sm:$0xff] %v9337
      %9370 = vst [vmem:[%s379 + $0x8] sm:$0xff] %v9338
      %9371 = vst [vmem:[%s379 + $0x10] sm:$0xff] %v9339
      %9372 = vst [vmem:[%s379 + $0x18] sm:$0xff] %v9340
      %9373 = vst [vmem:[%s379 + $0x20] sm:$0xff] %v9341
      %9374 = vst [vmem:[%s379 + $0x28] sm:$0xff] %v9342
      %9375 = vst [vmem:[%s379 + $0x30] sm:$0xff] %v9343
      %9376 = vst [vmem:[%s379 + $0x38] sm:$0xff] %v9344
      %9377 = vst [vmem:[%s379 + $0x40] sm:$0xff] %v9345
      %9378 = vst [vmem:[%s379 + $0x48] sm:$0xff] %v9346
      %9379 = vst [vmem:[%s379 + $0x50] sm:$0xff] %v9347
      %9380 = vst [vmem:[%s379 + $0x58] sm:$0xff] %v9348
      %9381 = vst [vmem:[%s379 + $0x60] sm:$0xff] %v9349
      %9382 = vst [vmem:[%s379 + $0x68] sm:$0xff] %v9350
      %9383 = vst [vmem:[%s379 + $0x70] sm:$0xff] %v9351
      %9384 = vst [vmem:[%s379 + $0x78] sm:$0xff] %v9352
      %9385 = vst [vmem:[%s379 + $0x80] sm:$0xff] %v9353
      %9386 = vst [vmem:[%s379 + $0x88] sm:$0xff] %v9354
      %9387 = vst [vmem:[%s379 + $0x90] sm:$0xff] %v9355
      %9388 = vst [vmem:[%s379 + $0x98] sm:$0xff] %v9356
      %9389 = vst [vmem:[%s379 + $0xa0] sm:$0xff] %v9357
      %9390 = vst [vmem:[%s379 + $0xa8] sm:$0xff] %v9358
      %9391 = vst [vmem:[%s379 + $0xb0] sm:$0xff] %v9359
      %9392 = vst [vmem:[%s379 + $0xb8] sm:$0xff] %v9360
      %9393 = vst [vmem:[%s379 + $0xc0] sm:$0xff] %v9361
      %9394 = vst [vmem:[%s379 + $0xc8] sm:$0xff] %v9362
      %9395 = vst [vmem:[%s379 + $0xd0] sm:$0xff] %v9363
      %9396 = vst [vmem:[%s379 + $0xd8] sm:$0xff] %v9364
      %9397 = vst [vmem:[%s379 + $0xe0] sm:$0xff] %v9365
      %9398 = vst [vmem:[%s379 + $0xe8] sm:$0xff] %v9366
      %9399 = vst [vmem:[%s379 + $0xf0] sm:$0xff] %v9367
      %9400 = vst [vmem:[%s379 + $0xf8] sm:$0xff] %v9368
      %p9401 = scmp.lt.s32.totalorder %s21, 1
      %s9402 = scalar_select %p9401, %s21, 1
      %s9403 = smul.addr %s9402, 32
      %s9404 = smul.addr %s9403, 8
      %s9405 = scalar_lea.vmem %s10, %s9404
      // Predicated region
      $region61: #{up_forward.1} parent=59 // pred_check
        %p9406 = pneg %p259
      $region62: #{up_forward.1} parent=59 // pred_check_branch
        %9408 = sbr.rel (%p9406) target = $region64
      $region63: #{up_forward.1} parent=59 // pred_region
        _
      $region64: #{up_forward.1} parent=59 // pred_fallthru
        _
    $region60: #{up_forward.1} parent=5 // pred_fallthru
      _
    %p9409 = scmp.le.s32.totalorder 2, %s16
    // Predicated region
    $region65: #{up_forward.1} parent=5 // pred_check
      %p9410 = pneg %p9409
    $region66: #{up_forward.1} parent=5 // pred_check_branch
      %9412 = sbr.rel (%p9410) target = $region68
    $region67: #{up_forward.1} parent=5 // pred_region
      %s9413 = ssub.s32 %s16, 2
      // Predicated region
      $region69: #{up_forward.1} parent=67 // pred_check
        %p9414 = pneg %p265
      $region70: #{up_forward.1} parent=67 // pred_check_branch
        %9416 = sbr.rel (%p9414) target = $region72
      $region71: #{up_forward.1} parent=67 // pred_region
        %p9417 = scmp.lt.s32.totalorder %s22, 1
        %s9418 = scalar_select %p9417, %s22, 1
        %s9419 = smul.addr %s9418, 32
        %s9420 = smul.addr %s9419, 8
        %s9421 = scalar_lea.vmem %s10, %s9420
      $region72: #{up_forward.1} parent=67 // pred_fallthru
        _
    $region68: #{up_forward.1} parent=5 // pred_fallthru
      _
  $region6: #{up_forward.1} parent=0 // loop_footer
    %s20 = sadd.s32 1, %s16
  $region7: #{up_forward.1} parent=0 // loop_footer_branch
    %15 = sbr.rel target = $region3
  $region8: #{up_forward.1} parent=0 // loop_exit
    _

</llo_original>
